<compile_context>
chip_gen: v6e
topology: v6e:2x2x1
jax: 0.10.0
libtpu: 0.0.40
codegen_flags: <defaults>
</compile_context>

<pallas_src>
import functools

import jax
import jax.numpy as jnp
from jax.experimental import pallas as pl
from jax.experimental.pallas import tpu as pltpu


_VMEM_LIMIT = 32 * 1024 * 1024  # 16-32 MiB per review; safe on v5e/v6e/v7x.


def _full_spec(shape):
    # Whole-array block (no tiling) -> no (8,128) divisibility requirement.
    return pl.BlockSpec(shape, lambda *_: (0,) * len(shape))


# ----------------------------------------------------------------------------
# Glue: pool-phase im2col (gather). Columns/rows are grouped by the 2x2 pooling
# phase so the pool becomes an elementwise max INSIDE the conv kernel.
# TODO(synk): conv1's patch gather is still XLA glue (im2col blow-up ~50x); a fully
# in-kernel shifted-slice conv would remove it but needs lane-strided VMEM reads.
# ----------------------------------------------------------------------------
def _pool_phase_gather(x_chw, K, stride):
    """Axes of result: (dh, dw, C, kh, kw, ph, pw); conv output pos = (2*ph+dh, 2*pw+dw).

    Only conv positions that survive floor-mode 2x2 pooling are produced.
    """
    C, H, W = x_chw.shape
    Ho = (H - K) // stride + 1
    Wo = (W - K) // stride + 1
    Hp, Wp = Ho // 2, Wo // 2
    d2 = jnp.arange(2)
    ph = jnp.arange(Hp)
    pw = jnp.arange(Wp)
    kk = jnp.arange(K)
    rows = stride * (2 * ph[None, :, None] + d2[:, None, None]) + kk[None, None, :]  # (2,Hp,K)
    cols = stride * (2 * pw[None, :, None] + d2[:, None, None]) + kk[None, None, :]  # (2,Wp,K)
    rows_b = rows[:, None, :, :, None, None]   # (2,1,Hp,Kh,1,1)
    cols_b = cols[None, :, None, None, :, :]   # (1,2,1,1,Wp,Kw)
    p = x_chw[:, rows_b, cols_b]               # (C, dh, dw, Hp, Kh, Wp, Kw)
    p = jnp.transpose(p, (1, 2, 0, 4, 6, 3, 5))  # (dh, dw, C, kh, kw, ph, pw)
    return p, Hp, Wp


def pool_phase_patches(x_chw, K, stride):
    """(4, C*K*K, Hp*Wp): rows follow PyTorch OIHW flattening, cols = pooled position."""
    p, Hp, Wp = _pool_phase_gather(x_chw, K, stride)
    C = x_chw.shape[0]
    return p.reshape(4, C * K * K, Hp * Wp), Hp, Wp


def pool_phase_patches_T(x_chw, K, stride):
    """(4, Hp*Wp, C*K*K): transposed variant (pooled position on rows)."""
    p, Hp, Wp = _pool_phase_gather(x_chw, K, stride)
    C = x_chw.shape[0]
    p = jnp.transpose(p, (0, 1, 5, 6, 2, 3, 4))   # (dh, dw, ph, pw, C, kh, kw)
    return p.reshape(4, Hp * Wp, C * K * K), Hp, Wp


# ----------------------------------------------------------------------------
# Kernel A: conv1 (matmul) + bias + ReLU + 2x2 max-pool, tiled & pipelined.
#   out(Cout, P) = max over 4 pool phases of relu(W @ patches_phase + b)
# Grid = (P tiles [parallel], phase [arbitrary]); output block resident over phases.
# ----------------------------------------------------------------------------
def _conv_relu_pool_kernel(p_ref, w_ref, b_ref, o_ref):
    d = pl.program_id(1)
    y = jnp.dot(w_ref[...], p_ref[...], preferred_element_type=jnp.float32)
    y = jnp.maximum(y + b_ref[...], 0.0)

    @pl.when(d == 0)
    def _init():
        o_ref[...] = y

    @pl.when(d != 0)
    def _acc():
        o_ref[...] = jnp.maximum(o_ref[...], y)


def conv_relu_pool(patches, w_mat, b_col, *, tile_p=256):
    """patches: (4, C*K*K, P) bf16, w_mat: (Cout, C*K*K) bf16, b_col: (Cout, 1) f32.

    Returns the pooled activation as (Cout, P) f32 (CHW layout, lane-dense spatial).
    """
    nphase, ckk, p_len = patches.shape
    cout = w_mat.shape[0]
    assert ckk % 8 == 0, ckk
    n_tiles = pl.cdiv(p_len, tile_p)
    p_pad = n_tiles * tile_p
    if p_pad != p_len:
        patches = jnp.pad(patches, ((0, 0), (0, 0), (0, p_pad - p_len)))
    out = pl.pallas_call(
        _conv_relu_pool_kernel,
        grid=(n_tiles, nphase),
        in_specs=[
            pl.BlockSpec((None, ckk, tile_p), lambda i, d: (d, 0, i)),
            pl.BlockSpec((cout, ckk), lambda i, d: (0, 0)),
            pl.BlockSpec((cout, 1), lambda i, d: (0, 0)),
        ],
        out_specs=pl.BlockSpec((cout, tile_p), lambda i, d: (0, i)),
        out_shape=jax.ShapeDtypeStruct((cout, p_pad), jnp.float32),
        compiler_params=pltpu.CompilerParams(
            dimension_semantics=("parallel", "arbitrary"),
            vmem_limit_bytes=_VMEM_LIMIT),
    )(patches, w_mat, b_col)
    return out[:, :p_len]


# ----------------------------------------------------------------------------
# Kernel B: everything after pool1 fused in one pallas_call.
#   conv2 matmul (+bias+ReLU), 2x2 max-pool (phase max), fc1 (+ReLU), dropout=id, fc2.
# All operands are < ~1 MB -> full blocks, grid=(1,), intermediates stay in VMEM.
# ----------------------------------------------------------------------------
def _tail_kernel(p2_ref, w2_ref, b2_ref, w3_ref, b3_ref, w4_ref, b4_ref, o_ref,
                 *, pp2, p2r):
    # conv2 as one matmul with all 4 pool phases stacked on rows (pooled pos on rows).
    y = jnp.dot(p2_ref[...], w2_ref[...], preferred_element_type=jnp.float32)
    y = jnp.maximum(y + b2_ref[...], 0.0)                    # (4*p2r, Cout2)
    # 2x2 max-pool == elementwise max across the 4 phase row-blocks (8-aligned slices).
    pooled = y[0:p2r, :]
    for d in range(1, 4):
        pooled = jnp.maximum(pooled, y[d * p2r:(d + 1) * p2r, :])
    pooled = pooled.astype(jnp.bfloat16)                     # (p2r, Cout2)
    # fc1: contraction over (channel, pooled position), decomposed per pooled position so
    # PyTorch's NCHW flatten order is honored with no in-kernel transpose/reshape.
    h = jnp.dot(pooled[0:1, :], w3_ref[0], preferred_element_type=jnp.float32)
    for p in range(1, pp2):
        h = h + jnp.dot(pooled[p:p + 1, :], w3_ref[p], preferred_element_type=jnp.float32)
    h = jnp.maximum(h + b3_ref[...], 0.0)                    # (1, num_units)
    # Dropout: inference-mode identity.
    # TODO(synk): training-mode dropout mask (PyTorch RNG) not reproduced; eval semantics.
    out = jnp.dot(h.astype(jnp.bfloat16), w4_ref[...], preferred_element_type=jnp.float32)
    o_ref[...] = out + b4_ref[...]


def tail_fused(patches2, prepared):
    """patches2: (4, Pp2, Cin*K*K) bf16 (pool-phase, transposed). Returns (1, out)."""
    _, pp2, ckk2 = patches2.shape
    p2r = -(-pp2 // 8) * 8                      # round rows up so phase slices are 8-aligned
    if p2r != pp2:
        patches2 = jnp.pad(patches2, ((0, 0), (0, p2r - pp2), (0, 0)))
    p2m = patches2.reshape(4 * p2r, ckk2)
    w2t, b2 = prepared["w2t"], prepared["b2"]
    w3, b3 = prepared["w3"], prepared["b3"]
    w4, b4 = prepared["w4"], prepared["b4"]
    nout = w4.shape[-1]
    kernel = functools.partial(_tail_kernel, pp2=pp2, p2r=p2r)
    return pl.pallas_call(
        kernel,
        grid=(1,),
        in_specs=[_full_spec(p2m.shape), _full_spec(w2t.shape), _full_spec(b2.shape),
                  _full_spec(w3.shape), _full_spec(b3.shape),
                  _full_spec(w4.shape), _full_spec(b4.shape)],
        out_specs=_full_spec((1, nout)),
        out_shape=jax.ShapeDtypeStruct((1, nout), jnp.float32),
        compiler_params=pltpu.CompilerParams(
            dimension_semantics=("arbitrary",),
            vmem_limit_bytes=_VMEM_LIMIT),
    )(p2m, w2t, b2, w3, b3, w4, b4)


# ----------------------------------------------------------------------------
# Model: shapes, init, kernel-ready parameter prep, forward.
# ----------------------------------------------------------------------------
def new_width_after_conv(w, k, stride):
    return (w - k) // stride + 1


def output_spatial(input_shape):
    h, w = input_shape
    h, w = new_width_after_conv(h, 16, 2), new_width_after_conv(w, 16, 2)   # conv1
    h, w = h // 2, w // 2                                                    # pool1
    h, w = new_width_after_conv(h, 20, 2), new_width_after_conv(w, 20, 2)   # conv2
    h, w = h // 2, w // 2                                                    # pool2
    return h, w


def _uniform(key, shape, fan_in):
    bound = 1.0 / (fan_in ** 0.5)
    return jax.random.uniform(key, shape, jnp.float32, -bound, bound)


def init_params(key, input_shape, o_channel=(16, 32), num_units=400, output_size=2):
    h, w = output_spatial(input_shape)
    fc1_in = o_channel[1] * h * w
    ks = jax.random.split(key, 8)
    return {
        "conv1_w": _uniform(ks[0], (o_channel[0], 3, 16, 16), 3 * 16 * 16),
        "conv1_b": _uniform(ks[1], (o_channel[0],), 3 * 16 * 16),
        "conv2_w": _uniform(ks[2], (o_channel[1], o_channel[0], 20, 20), o_channel[0] * 20 * 20),
        "conv2_b": _uniform(ks[3], (o_channel[1],), o_channel[0] * 20 * 20),
        # stored pre-transposed: (in, out), matching x @ W
        "fc1_w": _uniform(ks[4], (num_units, fc1_in), fc1_in).T,
        "fc1_b": _uniform(ks[5], (num_units,), fc1_in),
        "fc2_w": _uniform(ks[6], (output_size, num_units), num_units).T,
        "fc2_b": _uniform(ks[7], (output_size,), num_units),
    }


def prepare_params(params, input_shape):
    """Precompute kernel-ready layouts/casts once (off the per-forward hot path)."""
    hp2, wp2 = output_spatial(input_shape)
    pp2 = hp2 * wp2
    cout1 = params["conv1_w"].shape[0]
    cout2 = params["conv2_w"].shape[0]
    nu = params["fc1_b"].shape[0]
    nout = params["fc2_b"].shape[0]
    return {
        "w1": params["conv1_w"].reshape(cout1, -1).astype(jnp.bfloat16),        # (16, 768)
        "b1": params["conv1_b"].reshape(cout1, 1).astype(jnp.float32),
        "w2t": params["conv2_w"].reshape(cout2, -1).T.astype(jnp.bfloat16),     # (6400, 32)
        "b2": params["conv2_b"].reshape(1, cout2).astype(jnp.float32),
        # fc1 weight regrouped to (pooled_pos, channel, units): reproduces NCHW flatten.
        "w3": params["fc1_w"].reshape(cout2, pp2, nu).transpose(1, 0, 2).astype(jnp.bfloat16),
        "b3": params["fc1_b"].reshape(1, nu).astype(jnp.float32),
        "w4": params["fc2_w"].astype(jnp.bfloat16),                             # (400, 2)
        "b4": params["fc2_b"].reshape(1, nout).astype(jnp.float32),
    }


def spec_model3_forward(prepared, x_chw):
    """x_chw: (3, H, W) single example (PyTorch forward unsqueezes batch=1)."""
    cout1 = prepared["w1"].shape[0]
    # conv1 + bias + ReLU + pool1: one tiled, pipelined, lane-dense Pallas kernel.
    patches1, hp1, wp1 = pool_phase_patches(x_chw.astype(jnp.bfloat16), K=16, stride=2)
    p1 = conv_relu_pool(patches1, prepared["w1"], prepared["b1"])     # (16, hp1*wp1) f32
    p1 = p1.reshape(cout1, hp1, wp1)                                  # CHW layout
    # conv2 + pool2 + fc1 + ReLU + dropout(id) + fc2: one fused Pallas kernel.
    patches2, _, _ = pool_phase_patches_T(p1.astype(jnp.bfloat16), K=20, stride=2)
    return tail_fused(patches2, prepared)                             # (1, output_size)


# ----------------------------------------------------------------------------
# Pure-JAX reference (plain im2col + HWC pooling, mirrored bf16 matmul casts)
# ----------------------------------------------------------------------------
def reference_forward(params, x_chw):
    def conv_relu(x, w_oihw, b, stride):
        Cout, K = w_oihw.shape[0], w_oihw.shape[-1]
        C, H, W = x.shape
        Ho, Wo = (H - K) // stride + 1, (W - K) // stride + 1
        rows = jnp.arange(Ho)[:, None] * stride + jnp.arange(K)[None, :]
        cols = jnp.arange(Wo)[:, None] * stride + jnp.arange(K)[None, :]
        p = x[:, rows[:, :, None, None], cols[None, None, :, :]]        # (C,Ho,K,Wo,K)
        p = jnp.transpose(p, (1, 3, 0, 2, 4)).reshape(Ho * Wo, C * K * K)
        wm = w_oihw.reshape(Cout, -1).T
        o = jnp.dot(p.astype(jnp.bfloat16), wm.astype(jnp.bfloat16),
                    preferred_element_type=jnp.float32) + b[None, :]
        return jnp.maximum(o, 0.0).reshape(Ho, Wo, Cout)

    def pool(x_hwc):
        H, W, C = x_hwc.shape
        Ho, Wo = H // 2, W // 2
        return x_hwc[:2 * Ho, :2 * Wo].reshape(Ho, 2, Wo, 2, C).max(axis=(1, 3))

    a1 = pool(conv_relu(x_chw, params["conv1_w"], params["conv1_b"], 2))
    a2 = pool(conv_relu(jnp.transpose(a1, (2, 0, 1)), params["conv2_w"], params["conv2_b"], 2))
    flat = jnp.transpose(a2, (2, 0, 1)).reshape(1, -1)                   # NCHW flatten
    h = jnp.maximum(
        jnp.dot(flat.astype(jnp.bfloat16), params["fc1_w"].astype(jnp.bfloat16),
                preferred_element_type=jnp.float32) + params["fc1_b"][None, :], 0.0)
    return jnp.dot(h.astype(jnp.bfloat16), params["fc2_w"].astype(jnp.bfloat16),
                   preferred_element_type=jnp.float32) + params["fc2_b"][None, :]


if __name__ == "__main__":
    # Small-but-valid spatial size (conv kernels of 16 and 20 force H,W >= ~94/102).
    input_shape = (120, 140)
    key = jax.random.PRNGKey(0)
    k_params, k_data = jax.random.split(key)

    params = init_params(k_params, input_shape)
    prepared = prepare_params(params, input_shape)
    x = jax.random.normal(k_data, (3,) + input_shape, dtype=jnp.float32)

    fwd = jax.jit(spec_model3_forward)
    out = jax.block_until_ready(fwd(prepared, x))
    assert out.shape == (1, 2), out.shape

    ref = jax.block_until_ready(reference_forward(params, x))
    assert jnp.allclose(out, ref, rtol=2e-2, atol=2e-2), (out, ref)

    print("KERNEL_OK")
</pallas_src>

<mosaic_0001>
module attributes {stable_mosaic.version = 11 : i64} {
  func.func @_conv_relu_pool_kernel(%arg0: i32, %arg1: i32, %arg2: memref<1x768x256xbf16, #tpu.memory_space<vmem>>, %arg3: memref<16x768xbf16, #tpu.memory_space<vmem>>, %arg4: memref<16x1xf32, #tpu.memory_space<vmem>>, %arg5: memref<16x256xf32, #tpu.memory_space<vmem>>) attributes {dimension_semantics = [#tpu.dimension_semantics<parallel>, #tpu.dimension_semantics<arbitrary>], iteration_bounds = array<i64: 4, 4>, scalar_prefetch = 0 : i64, scratch_operands = 0 : i64, tpu.core_type = #tpu.core_type<tc>, window_params = [{transform_indices = @transform_0, window_bounds = array<i64: 1, 768, 256>}, {pipeline_mode = #tpu.pipeline_mode<synchronous>, transform_indices = @transform_1, window_bounds = array<i64: 16, 768>}, {pipeline_mode = #tpu.pipeline_mode<synchronous>, transform_indices = @transform_2, window_bounds = array<i64: 16, 1>}, {transform_indices = @transform_3, window_bounds = array<i64: 16, 256>}]} {
    %c0 = arith.constant 0 : index
    %c0_0 = arith.constant 0 : index
    %0 = vector.load %arg3[%c0, %c0_0] : memref<16x768xbf16, #tpu.memory_space<vmem>>, vector<16x768xbf16>
    %c0_1 = arith.constant 0 : index
    %c0_2 = arith.constant 0 : index
    %c0_3 = arith.constant 0 : index
    %1 = vector.load %arg2[%c0_1, %c0_2, %c0_3] : memref<1x768x256xbf16, #tpu.memory_space<vmem>>, vector<1x768x256xbf16>
    %2 = vector.shape_cast %1 : vector<1x768x256xbf16> to vector<768x256xbf16>
    %cst = arith.constant dense<0.000000e+00> : vector<16x256xf32>
    %3 = tpu.matmul %0, %2, %cst {dimension_numbers = #tpu.dot_dimension_numbers<[1], [0], [0], [1], [0, 0, 1, 1], [], []>} : vector<16x768xbf16>, vector<768x256xbf16>, vector<16x256xf32> -> vector<16x256xf32>
    %c0_4 = arith.constant 0 : index
    %c0_5 = arith.constant 0 : index
    %4 = vector.load %arg4[%c0_4, %c0_5] : memref<16x1xf32, #tpu.memory_space<vmem>>, vector<16x1xf32>
    %5 = vector.broadcast %4 : vector<16x1xf32> to vector<16x256xf32>
    %6 = arith.addf %3, %5 : vector<16x256xf32>
    %cst_6 = arith.constant 0.000000e+00 : f32
    %7 = vector.broadcast %cst_6 : f32 to vector<16x256xf32>
    %8 = arith.maximumf %6, %7 : vector<16x256xf32>
    %c0_i32 = arith.constant 0 : i32
    %9 = arith.cmpi eq, %arg1, %c0_i32 : i32
    %10 = arith.extui %9 : i1 to i32
    %c0_i32_7 = arith.constant 0 : i32
    %11 = arith.cmpi ne, %10, %c0_i32_7 : i32
    scf.if %11 {
      %c0_10 = arith.constant 0 : index
      %c0_11 = arith.constant 0 : index
      %15 = vector.load %arg5[%c0_10, %c0_11] : memref<16x256xf32, #tpu.memory_space<vmem>>, vector<16x256xf32>
      tpu.vector_store %arg5[%c0_10, %c0_11], %8 {strides = array<i32>} : memref<16x256xf32, #tpu.memory_space<vmem>>, vector<16x256xf32>,
    } else {
    }
    %c0_i32_8 = arith.constant 0 : i32
    %12 = arith.cmpi ne, %arg1, %c0_i32_8 : i32
    %13 = arith.extui %12 : i1 to i32
    %c0_i32_9 = arith.constant 0 : i32
    %14 = arith.cmpi ne, %13, %c0_i32_9 : i32
    scf.if %14 {
      %c0_10 = arith.constant 0 : index
      %c0_11 = arith.constant 0 : index
      %15 = vector.load %arg5[%c0_10, %c0_11] : memref<16x256xf32, #tpu.memory_space<vmem>>, vector<16x256xf32>
      %16 = arith.maximumf %15, %8 : vector<16x256xf32>
      %c0_12 = arith.constant 0 : index
      %c0_13 = arith.constant 0 : index
      %17 = vector.load %arg5[%c0_12, %c0_13] : memref<16x256xf32, #tpu.memory_space<vmem>>, vector<16x256xf32>
      tpu.vector_store %arg5[%c0_12, %c0_13], %16 {strides = array<i32>} : memref<16x256xf32, #tpu.memory_space<vmem>>, vector<16x256xf32>,
    } else {
    }
    return
  }
  func.func @transform_0(%arg0: i32, %arg1: i32) -> (i32, i32, i32) {
    %c0_i32 = arith.constant 0 : i32
    %c0_i32_0 = arith.constant 0 : i32
    return %arg1, %c0_i32, %arg0 : i32, i32, i32
  }
  func.func @transform_1(%arg0: i32, %arg1: i32) -> (i32, i32) {
    %c0_i32 = arith.constant 0 : i32
    %c0_i32_0 = arith.constant 0 : i32
    %c0_i32_1 = arith.constant 0 : i32
    return %c0_i32, %c0_i32_0 : i32, i32
  }
  func.func @transform_2(%arg0: i32, %arg1: i32) -> (i32, i32) {
    %c0_i32 = arith.constant 0 : i32
    %c0_i32_0 = arith.constant 0 : i32
    %c0_i32_1 = arith.constant 0 : i32
    return %c0_i32, %c0_i32_0 : i32, i32
  }
  func.func @transform_3(%arg0: i32, %arg1: i32) -> (i32, i32) {
    %c0_i32 = arith.constant 0 : i32
    %c0_i32_0 = arith.constant 0 : i32
    return %c0_i32, %arg0 : i32, i32
  }
}

module attributes {stable_mosaic.version = 11 : i64} {
  func.func @_tail_kernel(%arg0: i32, %arg1: memref<32x6400xbf16, #tpu.memory_space<vmem>>, %arg2: memref<6400x32xbf16, #tpu.memory_space<vmem>>, %arg3: memref<1x32xf32, #tpu.memory_space<vmem>>, %arg4: memref<6x32x400xbf16, #tpu.memory_space<vmem>>, %arg5: memref<1x400xf32, #tpu.memory_space<vmem>>, %arg6: memref<400x2xbf16, #tpu.memory_space<vmem>>, %arg7: memref<1x2xf32, #tpu.memory_space<vmem>>, %arg8: memref<1x2xf32, #tpu.memory_space<vmem>>) attributes {dimension_semantics = [#tpu.dimension_semantics<arbitrary>], iteration_bounds = array<i64: 1>, scalar_prefetch = 0 : i64, scratch_operands = 0 : i64, tpu.core_type = #tpu.core_type<tc>, window_params = [{pipeline_mode = #tpu.pipeline_mode<synchronous>, transform_indices = @transform_0, window_bounds = array<i64: 32, 6400>}, {pipeline_mode = #tpu.pipeline_mode<synchronous>, transform_indices = @transform_1, window_bounds = array<i64: 6400, 32>}, {pipeline_mode = #tpu.pipeline_mode<synchronous>, transform_indices = @transform_2, window_bounds = array<i64: 1, 32>}, {pipeline_mode = #tpu.pipeline_mode<synchronous>, transform_indices = @transform_3, window_bounds = array<i64: 6, 32, 400>}, {pipeline_mode = #tpu.pipeline_mode<synchronous>, transform_indices = @transform_4, window_bounds = array<i64: 1, 400>}, {pipeline_mode = #tpu.pipeline_mode<synchronous>, transform_indices = @transform_5, window_bounds = array<i64: 400, 2>}, {pipeline_mode = #tpu.pipeline_mode<synchronous>, transform_indices = @transform_6, window_bounds = array<i64: 1, 2>}, {pipeline_mode = #tpu.pipeline_mode<synchronous>, transform_indices = @transform_7, window_bounds = array<i64: 1, 2>}]} {
    %c0 = arith.constant 0 : index
    %c0_0 = arith.constant 0 : index
    %0 = vector.load %arg1[%c0, %c0_0] : memref<32x6400xbf16, #tpu.memory_space<vmem>>, vector<32x6400xbf16>
    %c0_1 = arith.constant 0 : index
    %c0_2 = arith.constant 0 : index
    %1 = vector.load %arg2[%c0_1, %c0_2] : memref<6400x32xbf16, #tpu.memory_space<vmem>>, vector<6400x32xbf16>
    %cst = arith.constant dense<0.000000e+00> : vector<32x32xf32>
    %2 = tpu.matmul %0, %1, %cst {dimension_numbers = #tpu.dot_dimension_numbers<[1], [0], [0], [1], [0, 0, 1, 1], [], []>} : vector<32x6400xbf16>, vector<6400x32xbf16>, vector<32x32xf32> -> vector<32x32xf32>
    %c0_3 = arith.constant 0 : index
    %c0_4 = arith.constant 0 : index
    %3 = vector.load %arg3[%c0_3, %c0_4] : memref<1x32xf32, #tpu.memory_space<vmem>>, vector<1x32xf32>
    %4 = vector.broadcast %3 : vector<1x32xf32> to vector<32x32xf32>
    %5 = arith.addf %2, %4 : vector<32x32xf32>
    %cst_5 = arith.constant 0.000000e+00 : f32
    %6 = vector.broadcast %cst_5 : f32 to vector<32x32xf32>
    %7 = arith.maximumf %5, %6 : vector<32x32xf32>
    %8 = vector.extract_strided_slice %7 {offsets = [0, 0], sizes = [8, 32], strides = [1, 1]} : vector<32x32xf32> to vector<8x32xf32>
    %9 = vector.extract_strided_slice %7 {offsets = [8, 0], sizes = [8, 32], strides = [1, 1]} : vector<32x32xf32> to vector<8x32xf32>
    %10 = arith.maximumf %8, %9 : vector<8x32xf32>
    %11 = vector.extract_strided_slice %7 {offsets = [16, 0], sizes = [8, 32], strides = [1, 1]} : vector<32x32xf32> to vector<8x32xf32>
    %12 = arith.maximumf %10, %11 : vector<8x32xf32>
    %13 = vector.extract_strided_slice %7 {offsets = [24, 0], sizes = [8, 32], strides = [1, 1]} : vector<32x32xf32> to vector<8x32xf32>
    %14 = arith.maximumf %12, %13 : vector<8x32xf32>
    %15 = arith.truncf %14 : vector<8x32xf32> to vector<8x32xbf16>
    %16 = vector.extract_strided_slice %15 {offsets = [0, 0], sizes = [1, 32], strides = [1, 1]} : vector<8x32xbf16> to vector<1x32xbf16>
    %c0_6 = arith.constant 0 : index
    %c0_7 = arith.constant 0 : index
    %c0_8 = arith.constant 0 : index
    %17 = vector.load %arg4[%c0_6, %c0_7, %c0_8] : memref<6x32x400xbf16, #tpu.memory_space<vmem>>, vector<1x32x400xbf16>
    %18 = vector.shape_cast %17 : vector<1x32x400xbf16> to vector<32x400xbf16>
    %cst_9 = arith.constant dense<0.000000e+00> : vector<1x400xf32>
    %19 = tpu.matmul %16, %18, %cst_9 {dimension_numbers = #tpu.dot_dimension_numbers<[1], [0], [0], [1], [0, 0, 1, 1], [], []>} : vector<1x32xbf16>, vector<32x400xbf16>, vector<1x400xf32> -> vector<1x400xf32>
    %20 = vector.extract_strided_slice %15 {offsets = [1, 0], sizes = [1, 32], strides = [1, 1]} : vector<8x32xbf16> to vector<1x32xbf16>
    %c1 = arith.constant 1 : index
    %c0_10 = arith.constant 0 : index
    %c0_11 = arith.constant 0 : index
    %21 = vector.load %arg4[%c1, %c0_10, %c0_11] : memref<6x32x400xbf16, #tpu.memory_space<vmem>>, vector<1x32x400xbf16>
    %22 = vector.shape_cast %21 : vector<1x32x400xbf16> to vector<32x400xbf16>
    %cst_12 = arith.constant dense<0.000000e+00> : vector<1x400xf32>
    %23 = tpu.matmul %20, %22, %cst_12 {dimension_numbers = #tpu.dot_dimension_numbers<[1], [0], [0], [1], [0, 0, 1, 1], [], []>} : vector<1x32xbf16>, vector<32x400xbf16>, vector<1x400xf32> -> vector<1x400xf32>
    %24 = arith.addf %19, %23 : vector<1x400xf32>
    %25 = vector.extract_strided_slice %15 {offsets = [2, 0], sizes = [1, 32], strides = [1, 1]} : vector<8x32xbf16> to vector<1x32xbf16>
    %c2 = arith.constant 2 : index
    %c0_13 = arith.constant 0 : index
    %c0_14 = arith.constant 0 : index
    %26 = vector.load %arg4[%c2, %c0_13, %c0_14] : memref<6x32x400xbf16, #tpu.memory_space<vmem>>, vector<1x32x400xbf16>
    %27 = vector.shape_cast %26 : vector<1x32x400xbf16> to vector<32x400xbf16>
    %cst_15 = arith.constant dense<0.000000e+00> : vector<1x400xf32>
    %28 = tpu.matmul %25, %27, %cst_15 {dimension_numbers = #tpu.dot_dimension_numbers<[1], [0], [0], [1], [0, 0, 1, 1], [], []>} : vector<1x32xbf16>, vector<32x400xbf16>, vector<1x400xf32> -> vector<1x400xf32>
    %29 = arith.addf %24, %28 : vector<1x400xf32>
    %30 = vector.extract_strided_slice %15 {offsets = [3, 0], sizes = [1, 32], strides = [1, 1]} : vector<8x32xbf16> to vector<1x32xbf16>
    %c3 = arith.constant 3 : index
    %c0_16 = arith.constant 0 : index
    %c0_17 = arith.constant 0 : index
    %31 = vector.load %arg4[%c3, %c0_16, %c0_17] : memref<6x32x400xbf16, #tpu.memory_space<vmem>>, vector<1x32x400xbf16>
    %32 = vector.shape_cast %31 : vector<1x32x400xbf16> to vector<32x400xbf16>
    %cst_18 = arith.constant dense<0.000000e+00> : vector<1x400xf32>
    %33 = tpu.matmul %30, %32, %cst_18 {dimension_numbers = #tpu.dot_dimension_numbers<[1], [0], [0], [1], [0, 0, 1, 1], [], []>} : vector<1x32xbf16>, vector<32x400xbf16>, vector<1x400xf32> -> vector<1x400xf32>
    %34 = arith.addf %29, %33 : vector<1x400xf32>
    %35 = vector.extract_strided_slice %15 {offsets = [4, 0], sizes = [1, 32], strides = [1, 1]} : vector<8x32xbf16> to vector<1x32xbf16>
    %c4 = arith.constant 4 : index
    %c0_19 = arith.constant 0 : index
    %c0_20 = arith.constant 0 : index
    %36 = vector.load %arg4[%c4, %c0_19, %c0_20] : memref<6x32x400xbf16, #tpu.memory_space<vmem>>, vector<1x32x400xbf16>
    %37 = vector.shape_cast %36 : vector<1x32x400xbf16> to vector<32x400xbf16>
    %cst_21 = arith.constant dense<0.000000e+00> : vector<1x400xf32>
    %38 = tpu.matmul %35, %37, %cst_21 {dimension_numbers = #tpu.dot_dimension_numbers<[1], [0], [0], [1], [0, 0, 1, 1], [], []>} : vector<1x32xbf16>, vector<32x400xbf16>, vector<1x400xf32> -> vector<1x400xf32>
    %39 = arith.addf %34, %38 : vector<1x400xf32>
    %40 = vector.extract_strided_slice %15 {offsets = [5, 0], sizes = [1, 32], strides = [1, 1]} : vector<8x32xbf16> to vector<1x32xbf16>
    %c5 = arith.constant 5 : index
    %c0_22 = arith.constant 0 : index
    %c0_23 = arith.constant 0 : index
    %41 = vector.load %arg4[%c5, %c0_22, %c0_23] : memref<6x32x400xbf16, #tpu.memory_space<vmem>>, vector<1x32x400xbf16>
    %42 = vector.shape_cast %41 : vector<1x32x400xbf16> to vector<32x400xbf16>
    %cst_24 = arith.constant dense<0.000000e+00> : vector<1x400xf32>
    %43 = tpu.matmul %40, %42, %cst_24 {dimension_numbers = #tpu.dot_dimension_numbers<[1], [0], [0], [1], [0, 0, 1, 1], [], []>} : vector<1x32xbf16>, vector<32x400xbf16>, vector<1x400xf32> -> vector<1x400xf32>
    %44 = arith.addf %39, %43 : vector<1x400xf32>
    %c0_25 = arith.constant 0 : index
    %c0_26 = arith.constant 0 : index
    %45 = vector.load %arg5[%c0_25, %c0_26] : memref<1x400xf32, #tpu.memory_space<vmem>>, vector<1x400xf32>
    %46 = arith.addf %44, %45 : vector<1x400xf32>
    %cst_27 = arith.constant 0.000000e+00 : f32
    %47 = vector.broadcast %cst_27 : f32 to vector<1x400xf32>
    %48 = arith.maximumf %46, %47 : vector<1x400xf32>
    %49 = arith.truncf %48 : vector<1x400xf32> to vector<1x400xbf16>
    %c0_28 = arith.constant 0 : index
    %c0_29 = arith.constant 0 : index
    %50 = vector.load %arg6[%c0_28, %c0_29] : memref<400x2xbf16, #tpu.memory_space<vmem>>, vector<400x2xbf16>
    %cst_30 = arith.constant dense<0.000000e+00> : vector<1x2xf32>
    %51 = tpu.matmul %49, %50, %cst_30 {dimension_numbers = #tpu.dot_dimension_numbers<[1], [0], [0], [1], [0, 0, 1, 1], [], []>} : vector<1x400xbf16>, vector<400x2xbf16>, vector<1x2xf32> -> vector<1x2xf32>
    %c0_31 = arith.constant 0 : index
    %c0_32 = arith.constant 0 : index
    %52 = vector.load %arg7[%c0_31, %c0_32] : memref<1x2xf32, #tpu.memory_space<vmem>>, vector<1x2xf32>
    %53 = arith.addf %51, %52 : vector<1x2xf32>
    %c0_33 = arith.constant 0 : index
    %c0_34 = arith.constant 0 : index
    %54 = vector.load %arg8[%c0_33, %c0_34] : memref<1x2xf32, #tpu.memory_space<vmem>>, vector<1x2xf32>
    tpu.vector_store %arg8[%c0_33, %c0_34], %53 {strides = array<i32>} : memref<1x2xf32, #tpu.memory_space<vmem>>, vector<1x2xf32>,
    return
  }
  func.func @transform_0(%arg0: i32) -> (i32, i32) {
    %c0_i32 = arith.constant 0 : i32
    %c0_i32_0 = arith.constant 0 : i32
    %c0_i32_1 = arith.constant 0 : i32
    return %c0_i32, %c0_i32_0 : i32, i32
  }
  func.func @transform_1(%arg0: i32) -> (i32, i32) {
    %c0_i32 = arith.constant 0 : i32
    %c0_i32_0 = arith.constant 0 : i32
    %c0_i32_1 = arith.constant 0 : i32
    return %c0_i32, %c0_i32_0 : i32, i32
  }
  func.func @transform_2(%arg0: i32) -> (i32, i32) {
    %c0_i32 = arith.constant 0 : i32
    %c0_i32_0 = arith.constant 0 : i32
    %c0_i32_1 = arith.constant 0 : i32
    return %c0_i32, %c0_i32_0 : i32, i32
  }
  func.func @transform_3(%arg0: i32) -> (i32, i32, i32) {
    %c0_i32 = arith.constant 0 : i32
    %c0_i32_0 = arith.constant 0 : i32
    %c0_i32_1 = arith.constant 0 : i32
    %c0_i32_2 = arith.constant 0 : i32
    return %c0_i32, %c0_i32_0, %c0_i32_1 : i32, i32, i32
  }
  func.func @transform_4(%arg0: i32) -> (i32, i32) {
    %c0_i32 = arith.constant 0 : i32
    %c0_i32_0 = arith.constant 0 : i32
    %c0_i32_1 = arith.constant 0 : i32
    return %c0_i32, %c0_i32_0 : i32, i32
  }
  func.func @transform_5(%arg0: i32) -> (i32, i32) {
    %c0_i32 = arith.constant 0 : i32
    %c0_i32_0 = arith.constant 0 : i32
    %c0_i32_1 = arith.constant 0 : i32
    return %c0_i32, %c0_i32_0 : i32, i32
  }
  func.func @transform_6(%arg0: i32) -> (i32, i32) {
    %c0_i32 = arith.constant 0 : i32
    %c0_i32_0 = arith.constant 0 : i32
    %c0_i32_1 = arith.constant 0 : i32
    return %c0_i32, %c0_i32_0 : i32, i32
  }
  func.func @transform_7(%arg0: i32) -> (i32, i32) {
    %c0_i32 = arith.constant 0 : i32
    %c0_i32_0 = arith.constant 0 : i32
    %c0_i32_1 = arith.constant 0 : i32
    return %c0_i32, %c0_i32_0 : i32, i32
  }
}

</mosaic_0001>

<llo_original>
// kernel: spec_model3_forward.2
$region0: #{spec_model3_forward.2}
  #allocation0 [shape = 'u32[]', space=smem, size = 0x4, offset = 0x4, fixed_abs, tag = 'smem constant byte address 0x4 - core index']
  #allocation1 [shape = 'u32[144,128]{1,0:T(1,128)}', space=vmem, size = 0x12000, scoped, tag = 'internal scratch']
  %s0 = inlined_call_operand.vmem [shape: bf16[4,768,1024], index: 0, kind: input, shape index: {}]
  %s1 = inlined_call_operand.vmem [shape: bf16[16,768], index: 1, kind: input, shape index: {}]
  %s2 = inlined_call_operand.vmem [shape: f32[16,1], index: 2, kind: input, shape index: {}]
  %s3 = inlined_call_operand.vmem [shape: f32[16,1024], index: 3, kind: output, shape index: {}]
  %s4 = sld [smem:[#allocation0]]
  $region110: #{spec_model3_forward.2} parent=0
    _
  %s6 = ssub.s32 1, %s4
  %s7 = scalar_select 0, %s6, %s4
  $region1: #{spec_model3_forward.2} parent=0
    #allocation2 [shape = 'u8[786432]{0}', space=vmem, size = 0xc0000, scoped, tag = 'input window, operand 0']
    #allocation3 [shape = 'u8[32768]{0}', space=vmem, size = 0x8000, scoped, tag = 'output window, operand 0']
    loop: start=0, step=1, limit=18
    $region2: #{spec_model3_forward.2} parent=1 // loop_pre_header
      _
    $region3: #{spec_model3_forward.2} parent=1 // loop_header
      %s9 = sphi 0, %s13
      %p10 = scmp.ge.s32.totalorder %s9, 18
      %s16 = sphi 0, %s28
      %s17 = sphi 0, %s24
      %s18 = sphi 0, %s16
      %s19 = sphi 0, %s17
      %s20 = sphi 0, %s18
      %s21 = sphi 0, %s19
      %s33 = sphi 0, %s35
      %s36 = sphi 0, %s33
      %s37 = sphi 0, %s36
      %s53 = sphi 0, %s37
      %s57 = sphi 0, %s57
      %s59 = sphi 0, %s57
      %s60 = sphi 0, %s59
      %s74 = sphi 0, %s60
      %s78 = sphi 0, %s78
      %s80 = sphi 0, %s78
      %s81 = sphi 0, %s80
      %s95 = sphi 0, %s81
      %s101 = sphi 0, %s103
      %s104 = sphi 0, %s101
      %s105 = sphi 0, %s104
      %s121 = sphi 0, %s105
    $region4: #{spec_model3_forward.2} parent=1 // loop_header_branch
      %12 = sbr.rel (%p10) target = $region8
    $region5: #{spec_model3_forward.2} parent=1 // loop_body
      %s14 = ssub.s32 %s9, 1
      %s15 = ssub.s32 %s9, 2
      %s22 = sadd.s32 1, %s17
      %p23 = scmp.ge.s32.totalorder %s22, 4
      %s24 = scalar_select %p23, 0, %s22
      %s25 = sadd.s32 1, %s16
      %s26 = scalar_select %p23, %s25, %s16
      %p27 = scmp.ge.s32.totalorder %s26, 4
      %s28 = scalar_select %p27, 0, %s26
      %s29 = ssub.s32 %s17, %s24
      %s30 = ssub.s32 %s16, %s28
      %s31 = sor.u32 %s29, %s30
      %p32 = scmp.eq.s32.totalorder %s31, 0
      %s34 = sadd.s32 %s33, 1
      %s35 = scalar_select %p32, %s33, %s34
      %p38 = pneg %p32
      %p39 = scmp.eq.s32.totalorder %s9, 15
      %p40 = por %p38, %p39
      %p41 = scmp.ne.s32.totalorder %s33, %s36
      %p42 = scmp.eq.s32.totalorder %s9, 0
      %p43 = por %p41, %p42
      %p44 = scmp.ne.s32.totalorder %s33, %s36
      %p45 = scmp.eq.s32.totalorder %s14, 15
      %p46 = por %p44, %p45
      %p47 = scmp.ne.s32.totalorder %s36, %s37
      %p48 = scmp.eq.s32.totalorder %s14, 0
      %p49 = por %p47, %p48
      %p50 = scmp.ne.s32.totalorder %s36, %s37
      %p51 = scmp.eq.s32.totalorder %s15, 15
      %p52 = por %p50, %p51
      %p54 = scmp.ne.s32.totalorder %s37, %s53
      %p55 = scmp.eq.s32.totalorder %s15, 0
      %p56 = por %p54, %p55
      %s58 = sadd.s32 %s57, 1
      %p61 = scmp.eq.s32.totalorder %s9, 15
      %p62 = scmp.ne.s32.totalorder %s57, %s59
      %p63 = scmp.eq.s32.totalorder %s9, 0
      %p64 = por %p62, %p63
      %p65 = scmp.ne.s32.totalorder %s57, %s59
      %p66 = scmp.eq.s32.totalorder %s14, 15
      %p67 = por %p65, %p66
      %p68 = scmp.ne.s32.totalorder %s59, %s60
      %p69 = scmp.eq.s32.totalorder %s14, 0
      %p70 = por %p68, %p69
      %p71 = scmp.ne.s32.totalorder %s59, %s60
      %p72 = scmp.eq.s32.totalorder %s15, 15
      %p73 = por %p71, %p72
      %p75 = scmp.ne.s32.totalorder %s60, %s74
      %p76 = scmp.eq.s32.totalorder %s15, 0
      %p77 = por %p75, %p76
      %s79 = sadd.s32 %s78, 1
      %p82 = scmp.eq.s32.totalorder %s9, 15
      %p83 = scmp.ne.s32.totalorder %s78, %s80
      %p84 = scmp.eq.s32.totalorder %s9, 0
      %p85 = por %p83, %p84
      %p86 = scmp.ne.s32.totalorder %s78, %s80
      %p87 = scmp.eq.s32.totalorder %s14, 15
      %p88 = por %p86, %p87
      %p89 = scmp.ne.s32.totalorder %s80, %s81
      %p90 = scmp.eq.s32.totalorder %s14, 0
      %p91 = por %p89, %p90
      %p92 = scmp.ne.s32.totalorder %s80, %s81
      %p93 = scmp.eq.s32.totalorder %s15, 15
      %p94 = por %p92, %p93
      %p96 = scmp.ne.s32.totalorder %s81, %s95
      %p97 = scmp.eq.s32.totalorder %s15, 0
      %p98 = por %p96, %p97
      %s99 = ssub.s32 %s16, %s28
      %p100 = scmp.eq.s32.totalorder %s99, 0
      %s102 = sadd.s32 %s101, 1
      %s103 = scalar_select %p100, %s101, %s102
      %p106 = pneg %p100
      %p107 = scmp.eq.s32.totalorder %s9, 15
      %p108 = por %p106, %p107
      %p109 = scmp.ne.s32.totalorder %s101, %s104
      %p110 = scmp.eq.s32.totalorder %s9, 0
      %p111 = por %p109, %p110
      %p112 = scmp.ne.s32.totalorder %s101, %s104
      %p113 = scmp.eq.s32.totalorder %s14, 15
      %p114 = por %p112, %p113
      %p115 = scmp.ne.s32.totalorder %s104, %s105
      %p116 = scmp.eq.s32.totalorder %s14, 0
      %p117 = por %p115, %p116
      %p118 = scmp.ne.s32.totalorder %s104, %s105
      %p119 = scmp.eq.s32.totalorder %s15, 15
      %p120 = por %p118, %p119
      %p122 = scmp.ne.s32.totalorder %s105, %s121
      %p123 = scmp.eq.s32.totalorder %s15, 0
      %p124 = por %p122, %p123
      %p125 = scmp.le.s32.totalorder 1, %s9
      %p126 = scmp.lt.s32.totalorder %s9, 17
      %p127 = pnand %p125, %p126
      %p128 = pneg %p127
      // Predicated region
      $region9: #{spec_model3_forward.2} parent=5 // pred_check
        _
      $region10: #{spec_model3_forward.2} parent=5 // pred_check_branch
        %130 = sbr.rel (%p127) target = $region12
      $region11: #{spec_model3_forward.2} parent=5 // pred_region
        %s131 = ssub.s32 %s9, 1
        // Predicated region
        $region13: #{spec_model3_forward.2} parent=11 // pred_check
          %p132 = pneg %p70
        $region14: #{spec_model3_forward.2} parent=11 // pred_check_branch
          %134 = sbr.rel (%p132) target = $region16
        $region15: #{spec_model3_forward.2} parent=11 // pred_region
          _
        $region16: #{spec_model3_forward.2} parent=11 // pred_fallthru
          _
        // Predicated region
        $region17: #{spec_model3_forward.2} parent=11 // pred_check
          %p135 = pneg %p91
        $region18: #{spec_model3_forward.2} parent=11 // pred_check_branch
          %137 = sbr.rel (%p135) target = $region20
        $region19: #{spec_model3_forward.2} parent=11 // pred_region
          _
        $region20: #{spec_model3_forward.2} parent=11 // pred_fallthru
          _
      $region12: #{spec_model3_forward.2} parent=5 // pred_fallthru
        _
      %p138 = scmp.lt.s32.totalorder %s9, 16
      // Predicated region
      $region21: #{spec_model3_forward.2} parent=5 // pred_check
        %p139 = pneg %p138
      $region22: #{spec_model3_forward.2} parent=5 // pred_check_branch
        %141 = sbr.rel (%p139) target = $region24
      $region23: #{spec_model3_forward.2} parent=5 // pred_region
        // Predicated region
        $region25: #{spec_model3_forward.2} parent=23 // pred_check
          %p142 = pneg %p43
        $region26: #{spec_model3_forward.2} parent=23 // pred_check_branch
          %144 = sbr.rel (%p142) target = $region28
        $region27: #{spec_model3_forward.2} parent=23 // pred_region
          %s145 = sand.u32 %s33, 1
          %s146 = sand.u32 %s33, 1
          %s147 = smul.addr %s146, 768
          %s148 = scalar_lea.vmem [#allocation2], %s147
          %s149 = smul.u32 2, %s16
          %s150 = smul.addr %s17, 768
          %s151 = sadd.s32 %s149, %s150
          %s152 = smul.addr %s151, 4
          %s153 = scalar_lea.vmem %s0, %s152
          // Predicated region
          $region29: #{spec_model3_forward.2} parent=27 // pred_check
            _
          $region30: #{spec_model3_forward.2} parent=27 // pred_check_branch
            %155 = sbr.rel (0) target = $region32
          $region31: #{spec_model3_forward.2} parent=27 // pred_region
            // Predicated region
            $region33: #{spec_model3_forward.2} parent=31 // pred_check
              _
            $region34: #{spec_model3_forward.2} parent=31 // pred_check_branch
              %157 = sbr.rel (0) target = $region36
            $region35: #{spec_model3_forward.2} parent=31 // pred_region
              // Predicated region
              $region48: #{spec_model3_forward.2} parent=35 // pred_check
                _
              $region49: #{spec_model3_forward.2} parent=35 // pred_check_branch
                %363 = sbr.rel (0) target = $region51
              $region50: #{spec_model3_forward.2} parent=35 // pred_region
                loop: start=0, step=1, limit=1
                $region52: #{spec_model3_forward.2} parent=50 // loop_pre_header
                  _
                $region53: #{spec_model3_forward.2} parent=50 // loop_header
                  %s365 = sphi 0, %s369
                  %p366 = scmp.ge.s32.totalorder %s365, 1
                  %s370 = sphi %s153, %s153
                  %s371 = sphi %s148, %s148
                $region54: #{spec_model3_forward.2} parent=50 // loop_header_branch
                  %368 = sbr.rel (%p366) target = $region58
                $region55: #{spec_model3_forward.2} parent=50 // loop_body
                  %v372 = vld [vmem:[%s370] sm:$0xff]
                  %373 = vst [vmem:[%s371] sm:$0xff] %v372
                  %v374 = vld [vmem:[%s370 + $0x20] sm:$0xff]
                  %375 = vst [vmem:[%s371 + $0x8] sm:$0xff] %v374
                  %v376 = vld [vmem:[%s370 + $0x40] sm:$0xff]
                  %377 = vst [vmem:[%s371 + $0x10] sm:$0xff] %v376
                  %v378 = vld [vmem:[%s370 + $0x60] sm:$0xff]
                  %379 = vst [vmem:[%s371 + $0x18] sm:$0xff] %v378
                  %v380 = vld [vmem:[%s370 + $0x80] sm:$0xff]
                  %381 = vst [vmem:[%s371 + $0x20] sm:$0xff] %v380
                  %v382 = vld [vmem:[%s370 + $0xa0] sm:$0xff]
                  %383 = vst [vmem:[%s371 + $0x28] sm:$0xff] %v382
                  %v384 = vld [vmem:[%s370 + $0xc0] sm:$0xff]
                  %385 = vst [vmem:[%s371 + $0x30] sm:$0xff] %v384
                  %v386 = vld [vmem:[%s370 + $0xe0] sm:$0xff]
                  %387 = vst [vmem:[%s371 + $0x38] sm:$0xff] %v386
                  %v388 = vld [vmem:[%s370 + $0x100] sm:$0xff]
                  %389 = vst [vmem:[%s371 + $0x40] sm:$0xff] %v388
                  %v390 = vld [vmem:[%s370 + $0x120] sm:$0xff]
                  %391 = vst [vmem:[%s371 + $0x48] sm:$0xff] %v390
                  %v392 = vld [vmem:[%s370 + $0x140] sm:$0xff]
                  %393 = vst [vmem:[%s371 + $0x50] sm:$0xff] %v392
                  %v394 = vld [vmem:[%s370 + $0x160] sm:$0xff]
                  %395 = vst [vmem:[%s371 + $0x58] sm:$0xff] %v394
                  %v396 = vld [vmem:[%s370 + $0x180] sm:$0xff]
                  %397 = vst [vmem:[%s371 + $0x60] sm:$0xff] %v396
                  %v398 = vld [vmem:[%s370 + $0x1a0] sm:$0xff]
                  %399 = vst [vmem:[%s371 + $0x68] sm:$0xff] %v398
                  %v400 = vld [vmem:[%s370 + $0x1c0] sm:$0xff]
                  %401 = vst [vmem:[%s371 + $0x70] sm:$0xff] %v400
                  %v402 = vld [vmem:[%s370 + $0x1e0] sm:$0xff]
                  %403 = vst [vmem:[%s371 + $0x78] sm:$0xff] %v402
                  %v404 = vld [vmem:[%s370 + $0x200] sm:$0xff]
                  %405 = vst [vmem:[%s371 + $0x80] sm:$0xff] %v404
                  %v406 = vld [vmem:[%s370 + $0x220] sm:$0xff]
                  %407 = vst [vmem:[%s371 + $0x88] sm:$0xff] %v406
                  %v408 = vld [vmem:[%s370 + $0x240] sm:$0xff]
                  %409 = vst [vmem:[%s371 + $0x90] sm:$0xff] %v408
                  %v410 = vld [vmem:[%s370 + $0x260] sm:$0xff]
                  %411 = vst [vmem:[%s371 + $0x98] sm:$0xff] %v410
                  %v412 = vld [vmem:[%s370 + $0x280] sm:$0xff]
                  %413 = vst [vmem:[%s371 + $0xa0] sm:$0xff] %v412
                  %v414 = vld [vmem:[%s370 + $0x2a0] sm:$0xff]
                  %415 = vst [vmem:[%s371 + $0xa8] sm:$0xff] %v414
                  %v416 = vld [vmem:[%s370 + $0x2c0] sm:$0xff]
                  %417 = vst [vmem:[%s371 + $0xb0] sm:$0xff] %v416
                  %v418 = vld [vmem:[%s370 + $0x2e0] sm:$0xff]
                  %419 = vst [vmem:[%s371 + $0xb8] sm:$0xff] %v418
                  %v420 = vld [vmem:[%s370 + $0x300] sm:$0xff]
                  %421 = vst [vmem:[%s371 + $0xc0] sm:$0xff] %v420
                  %v422 = vld [vmem:[%s370 + $0x320] sm:$0xff]
                  %423 = vst [vmem:[%s371 + $0xc8] sm:$0xff] %v422
                  %v424 = vld [vmem:[%s370 + $0x340] sm:$0xff]
                  %425 = vst [vmem:[%s371 + $0xd0] sm:$0xff] %v424
                  %v426 = vld [vmem:[%s370 + $0x360] sm:$0xff]
                  %427 = vst [vmem:[%s371 + $0xd8] sm:$0xff] %v426
                  %v428 = vld [vmem:[%s370 + $0x380] sm:$0xff]
                  %429 = vst [vmem:[%s371 + $0xe0] sm:$0xff] %v428
                  %v430 = vld [vmem:[%s370 + $0x3a0] sm:$0xff]
                  %431 = vst [vmem:[%s371 + $0xe8] sm:$0xff] %v430
                  %v432 = vld [vmem:[%s370 + $0x3c0] sm:$0xff]
                  %433 = vst [vmem:[%s371 + $0xf0] sm:$0xff] %v432
                  %v434 = vld [vmem:[%s370 + $0x3e0] sm:$0xff]
                  %435 = vst [vmem:[%s371 + $0xf8] sm:$0xff] %v434
                  %v436 = vld [vmem:[%s370 + $0x400] sm:$0xff]
                  %437 = vst [vmem:[%s371 + $0x100] sm:$0xff] %v436
                  %v438 = vld [vmem:[%s370 + $0x420] sm:$0xff]
                  %439 = vst [vmem:[%s371 + $0x108] sm:$0xff] %v438
                  %v440 = vld [vmem:[%s370 + $0x440] sm:$0xff]
                  %441 = vst [vmem:[%s371 + $0x110] sm:$0xff] %v440
                  %v442 = vld [vmem:[%s370 + $0x460] sm:$0xff]
                  %443 = vst [vmem:[%s371 + $0x118] sm:$0xff] %v442
                  %v444 = vld [vmem:[%s370 + $0x480] sm:$0xff]
                  %445 = vst [vmem:[%s371 + $0x120] sm:$0xff] %v444
                  %v446 = vld [vmem:[%s370 + $0x4a0] sm:$0xff]
                  %447 = vst [vmem:[%s371 + $0x128] sm:$0xff] %v446
                  %v448 = vld [vmem:[%s370 + $0x4c0] sm:$0xff]
                  %449 = vst [vmem:[%s371 + $0x130] sm:$0xff] %v448
                  %v450 = vld [vmem:[%s370 + $0x4e0] sm:$0xff]
                  %451 = vst [vmem:[%s371 + $0x138] sm:$0xff] %v450
                  %v452 = vld [vmem:[%s370 + $0x500] sm:$0xff]
                  %453 = vst [vmem:[%s371 + $0x140] sm:$0xff] %v452
                  %v454 = vld [vmem:[%s370 + $0x520] sm:$0xff]
                  %455 = vst [vmem:[%s371 + $0x148] sm:$0xff] %v454
                  %v456 = vld [vmem:[%s370 + $0x540] sm:$0xff]
                  %457 = vst [vmem:[%s371 + $0x150] sm:$0xff] %v456
                  %v458 = vld [vmem:[%s370 + $0x560] sm:$0xff]
                  %459 = vst [vmem:[%s371 + $0x158] sm:$0xff] %v458
                  %v460 = vld [vmem:[%s370 + $0x580] sm:$0xff]
                  %461 = vst [vmem:[%s371 + $0x160] sm:$0xff] %v460
                  %v462 = vld [vmem:[%s370 + $0x5a0] sm:$0xff]
                  %463 = vst [vmem:[%s371 + $0x168] sm:$0xff] %v462
                  %v464 = vld [vmem:[%s370 + $0x5c0] sm:$0xff]
                  %465 = vst [vmem:[%s371 + $0x170] sm:$0xff] %v464
                  %v466 = vld [vmem:[%s370 + $0x5e0] sm:$0xff]
                  %467 = vst [vmem:[%s371 + $0x178] sm:$0xff] %v466
                  %v468 = vld [vmem:[%s370 + $0x600] sm:$0xff]
                  %469 = vst [vmem:[%s371 + $0x180] sm:$0xff] %v468
                  %v470 = vld [vmem:[%s370 + $0x620] sm:$0xff]
                  %471 = vst [vmem:[%s371 + $0x188] sm:$0xff] %v470
                  %v472 = vld [vmem:[%s370 + $0x640] sm:$0xff]
                  %473 = vst [vmem:[%s371 + $0x190] sm:$0xff] %v472
                  %v474 = vld [vmem:[%s370 + $0x660] sm:$0xff]
                  %475 = vst [vmem:[%s371 + $0x198] sm:$0xff] %v474
                  %v476 = vld [vmem:[%s370 + $0x680] sm:$0xff]
                  %477 = vst [vmem:[%s371 + $0x1a0] sm:$0xff] %v476
                  %v478 = vld [vmem:[%s370 + $0x6a0] sm:$0xff]
                  %479 = vst [vmem:[%s371 + $0x1a8] sm:$0xff] %v478
                  %v480 = vld [vmem:[%s370 + $0x6c0] sm:$0xff]
                  %481 = vst [vmem:[%s371 + $0x1b0] sm:$0xff] %v480
                  %v482 = vld [vmem:[%s370 + $0x6e0] sm:$0xff]
                  %483 = vst [vmem:[%s371 + $0x1b8] sm:$0xff] %v482
                  %v484 = vld [vmem:[%s370 + $0x700] sm:$0xff]
                  %485 = vst [vmem:[%s371 + $0x1c0] sm:$0xff] %v484
                  %v486 = vld [vmem:[%s370 + $0x720] sm:$0xff]
                  %487 = vst [vmem:[%s371 + $0x1c8] sm:$0xff] %v486
                  %v488 = vld [vmem:[%s370 + $0x740] sm:$0xff]
                  %489 = vst [vmem:[%s371 + $0x1d0] sm:$0xff] %v488
                  %v490 = vld [vmem:[%s370 + $0x760] sm:$0xff]
                  %491 = vst [vmem:[%s371 + $0x1d8] sm:$0xff] %v490
                  %v492 = vld [vmem:[%s370 + $0x780] sm:$0xff]
                  %493 = vst [vmem:[%s371 + $0x1e0] sm:$0xff] %v492
                  %v494 = vld [vmem:[%s370 + $0x7a0] sm:$0xff]
                  %495 = vst [vmem:[%s371 + $0x1e8] sm:$0xff] %v494
                  %v496 = vld [vmem:[%s370 + $0x7c0] sm:$0xff]
                  %497 = vst [vmem:[%s371 + $0x1f0] sm:$0xff] %v496
                  %v498 = vld [vmem:[%s370 + $0x7e0] sm:$0xff]
                  %499 = vst [vmem:[%s371 + $0x1f8] sm:$0xff] %v498
                  %v500 = vld [vmem:[%s370 + $0x800] sm:$0xff]
                  %501 = vst [vmem:[%s371 + $0x200] sm:$0xff] %v500
                  %v502 = vld [vmem:[%s370 + $0x820] sm:$0xff]
                  %503 = vst [vmem:[%s371 + $0x208] sm:$0xff] %v502
                  %v504 = vld [vmem:[%s370 + $0x840] sm:$0xff]
                  %505 = vst [vmem:[%s371 + $0x210] sm:$0xff] %v504
                  %v506 = vld [vmem:[%s370 + $0x860] sm:$0xff]
                  %507 = vst [vmem:[%s371 + $0x218] sm:$0xff] %v506
                  %v508 = vld [vmem:[%s370 + $0x880] sm:$0xff]
                  %509 = vst [vmem:[%s371 + $0x220] sm:$0xff] %v508
                  %v510 = vld [vmem:[%s370 + $0x8a0] sm:$0xff]
                  %511 = vst [vmem:[%s371 + $0x228] sm:$0xff] %v510
                  %v512 = vld [vmem:[%s370 + $0x8c0] sm:$0xff]
                  %513 = vst [vmem:[%s371 + $0x230] sm:$0xff] %v512
                  %v514 = vld [vmem:[%s370 + $0x8e0] sm:$0xff]
                  %515 = vst [vmem:[%s371 + $0x238] sm:$0xff] %v514
                  %v516 = vld [vmem:[%s370 + $0x900] sm:$0xff]
                  %517 = vst [vmem:[%s371 + $0x240] sm:$0xff] %v516
                  %v518 = vld [vmem:[%s370 + $0x920] sm:$0xff]
                  %519 = vst [vmem:[%s371 + $0x248] sm:$0xff] %v518
                  %v520 = vld [vmem:[%s370 + $0x940] sm:$0xff]
                  %521 = vst [vmem:[%s371 + $0x250] sm:$0xff] %v520
                  %v522 = vld [vmem:[%s370 + $0x960] sm:$0xff]
                  %523 = vst [vmem:[%s371 + $0x258] sm:$0xff] %v522
                  %v524 = vld [vmem:[%s370 + $0x980] sm:$0xff]
                  %525 = vst [vmem:[%s371 + $0x260] sm:$0xff] %v524
                  %v526 = vld [vmem:[%s370 + $0x9a0] sm:$0xff]
                  %527 = vst [vmem:[%s371 + $0x268] sm:$0xff] %v526
                  %v528 = vld [vmem:[%s370 + $0x9c0] sm:$0xff]
                  %529 = vst [vmem:[%s371 + $0x270] sm:$0xff] %v528
                  %v530 = vld [vmem:[%s370 + $0x9e0] sm:$0xff]
                  %531 = vst [vmem:[%s371 + $0x278] sm:$0xff] %v530
                  %v532 = vld [vmem:[%s370 + $0xa00] sm:$0xff]
                  %533 = vst [vmem:[%s371 + $0x280] sm:$0xff] %v532
                  %v534 = vld [vmem:[%s370 + $0xa20] sm:$0xff]
                  %535 = vst [vmem:[%s371 + $0x288] sm:$0xff] %v534
                  %v536 = vld [vmem:[%s370 + $0xa40] sm:$0xff]
                  %537 = vst [vmem:[%s371 + $0x290] sm:$0xff] %v536
                  %v538 = vld [vmem:[%s370 + $0xa60] sm:$0xff]
                  %539 = vst [vmem:[%s371 + $0x298] sm:$0xff] %v538
                  %v540 = vld [vmem:[%s370 + $0xa80] sm:$0xff]
                  %541 = vst [vmem:[%s371 + $0x2a0] sm:$0xff] %v540
                  %v542 = vld [vmem:[%s370 + $0xaa0] sm:$0xff]
                  %543 = vst [vmem:[%s371 + $0x2a8] sm:$0xff] %v542
                  %v544 = vld [vmem:[%s370 + $0xac0] sm:$0xff]
                  %545 = vst [vmem:[%s371 + $0x2b0] sm:$0xff] %v544
                  %v546 = vld [vmem:[%s370 + $0xae0] sm:$0xff]
                  %547 = vst [vmem:[%s371 + $0x2b8] sm:$0xff] %v546
                  %v548 = vld [vmem:[%s370 + $0xb00] sm:$0xff]
                  %549 = vst [vmem:[%s371 + $0x2c0] sm:$0xff] %v548
                  %v550 = vld [vmem:[%s370 + $0xb20] sm:$0xff]
                  %551 = vst [vmem:[%s371 + $0x2c8] sm:$0xff] %v550
                  %v552 = vld [vmem:[%s370 + $0xb40] sm:$0xff]
                  %553 = vst [vmem:[%s371 + $0x2d0] sm:$0xff] %v552
                  %v554 = vld [vmem:[%s370 + $0xb60] sm:$0xff]
                  %555 = vst [vmem:[%s371 + $0x2d8] sm:$0xff] %v554
                  %v556 = vld [vmem:[%s370 + $0xb80] sm:$0xff]
                  %557 = vst [vmem:[%s371 + $0x2e0] sm:$0xff] %v556
                  %v558 = vld [vmem:[%s370 + $0xba0] sm:$0xff]
                  %559 = vst [vmem:[%s371 + $0x2e8] sm:$0xff] %v558
                  %v560 = vld [vmem:[%s370 + $0xbc0] sm:$0xff]
                  %561 = vst [vmem:[%s371 + $0x2f0] sm:$0xff] %v560
                  %v562 = vld [vmem:[%s370 + $0xbe0] sm:$0xff]
                  %563 = vst [vmem:[%s371 + $0x2f8] sm:$0xff] %v562
                $region56: #{spec_model3_forward.2} parent=50 // loop_footer
                  %s369 = sadd.s32 1, %s365
                $region57: #{spec_model3_forward.2} parent=50 // loop_footer_branch
                  %364 = sbr.rel target = $region53
                $region58: #{spec_model3_forward.2} parent=50 // loop_exit
                  _
              $region51: #{spec_model3_forward.2} parent=35 // pred_fallthru
                _
              // Predicated region
              $region59: #{spec_model3_forward.2} parent=35 // pred_check
                _
              $region60: #{spec_model3_forward.2} parent=35 // pred_check_branch
                %565 = sbr.rel target = $region62
              $region61: #{spec_model3_forward.2} parent=35 // pred_region
                _
              $region62: #{spec_model3_forward.2} parent=35 // pred_fallthru
                _
            $region36: #{spec_model3_forward.2} parent=31 // pred_fallthru
              _
            // Predicated region
            $region37: #{spec_model3_forward.2} parent=31 // pred_check
              _
            $region38: #{spec_model3_forward.2} parent=31 // pred_check_branch
              %159 = sbr.rel target = $region40
            $region39: #{spec_model3_forward.2} parent=31 // pred_region
              %s161 = ssub.s32 256, 1
              loop: start=0, step=1, limit=1
              $region41: #{spec_model3_forward.2} parent=39 // loop_pre_header
                _
              $region42: #{spec_model3_forward.2} parent=39 // loop_header
                %s163 = sphi 0, %s167
                %p164 = scmp.ge.s32.totalorder %s163, 1
                %s168 = sphi %s153, %s153
                %s169 = sphi %s148, %s148
              $region43: #{spec_model3_forward.2} parent=39 // loop_header_branch
                %166 = sbr.rel (%p164) target = $region47
              $region44: #{spec_model3_forward.2} parent=39 // loop_body
                %v170 = vld [vmem:[%s168] sm:%s161]
                %171 = vst [vmem:[%s169] sm:%s161] %v170
                %v172 = vld [vmem:[%s168 + $0x20] sm:%s161]
                %173 = vst [vmem:[%s169 + $0x8] sm:%s161] %v172
                %v174 = vld [vmem:[%s168 + $0x40] sm:%s161]
                %175 = vst [vmem:[%s169 + $0x10] sm:%s161] %v174
                %v176 = vld [vmem:[%s168 + $0x60] sm:%s161]
                %177 = vst [vmem:[%s169 + $0x18] sm:%s161] %v176
                %v178 = vld [vmem:[%s168 + $0x80] sm:%s161]
                %179 = vst [vmem:[%s169 + $0x20] sm:%s161] %v178
                %v180 = vld [vmem:[%s168 + $0xa0] sm:%s161]
                %181 = vst [vmem:[%s169 + $0x28] sm:%s161] %v180
                %v182 = vld [vmem:[%s168 + $0xc0] sm:%s161]
                %183 = vst [vmem:[%s169 + $0x30] sm:%s161] %v182
                %v184 = vld [vmem:[%s168 + $0xe0] sm:%s161]
                %185 = vst [vmem:[%s169 + $0x38] sm:%s161] %v184
                %v186 = vld [vmem:[%s168 + $0x100] sm:%s161]
                %187 = vst [vmem:[%s169 + $0x40] sm:%s161] %v186
                %v188 = vld [vmem:[%s168 + $0x120] sm:%s161]
                %189 = vst [vmem:[%s169 + $0x48] sm:%s161] %v188
                %v190 = vld [vmem:[%s168 + $0x140] sm:%s161]
                %191 = vst [vmem:[%s169 + $0x50] sm:%s161] %v190
                %v192 = vld [vmem:[%s168 + $0x160] sm:%s161]
                %193 = vst [vmem:[%s169 + $0x58] sm:%s161] %v192
                %v194 = vld [vmem:[%s168 + $0x180] sm:%s161]
                %195 = vst [vmem:[%s169 + $0x60] sm:%s161] %v194
                %v196 = vld [vmem:[%s168 + $0x1a0] sm:%s161]
                %197 = vst [vmem:[%s169 + $0x68] sm:%s161] %v196
                %v198 = vld [vmem:[%s168 + $0x1c0] sm:%s161]
                %199 = vst [vmem:[%s169 + $0x70] sm:%s161] %v198
                %v200 = vld [vmem:[%s168 + $0x1e0] sm:%s161]
                %201 = vst [vmem:[%s169 + $0x78] sm:%s161] %v200
                %v202 = vld [vmem:[%s168 + $0x200] sm:%s161]
                %203 = vst [vmem:[%s169 + $0x80] sm:%s161] %v202
                %v204 = vld [vmem:[%s168 + $0x220] sm:%s161]
                %205 = vst [vmem:[%s169 + $0x88] sm:%s161] %v204
                %v206 = vld [vmem:[%s168 + $0x240] sm:%s161]
                %207 = vst [vmem:[%s169 + $0x90] sm:%s161] %v206
                %v208 = vld [vmem:[%s168 + $0x260] sm:%s161]
                %209 = vst [vmem:[%s169 + $0x98] sm:%s161] %v208
                %v210 = vld [vmem:[%s168 + $0x280] sm:%s161]
                %211 = vst [vmem:[%s169 + $0xa0] sm:%s161] %v210
                %v212 = vld [vmem:[%s168 + $0x2a0] sm:%s161]
                %213 = vst [vmem:[%s169 + $0xa8] sm:%s161] %v212
                %v214 = vld [vmem:[%s168 + $0x2c0] sm:%s161]
                %215 = vst [vmem:[%s169 + $0xb0] sm:%s161] %v214
                %v216 = vld [vmem:[%s168 + $0x2e0] sm:%s161]
                %217 = vst [vmem:[%s169 + $0xb8] sm:%s161] %v216
                %v218 = vld [vmem:[%s168 + $0x300] sm:%s161]
                %219 = vst [vmem:[%s169 + $0xc0] sm:%s161] %v218
                %v220 = vld [vmem:[%s168 + $0x320] sm:%s161]
                %221 = vst [vmem:[%s169 + $0xc8] sm:%s161] %v220
                %v222 = vld [vmem:[%s168 + $0x340] sm:%s161]
                %223 = vst [vmem:[%s169 + $0xd0] sm:%s161] %v222
                %v224 = vld [vmem:[%s168 + $0x360] sm:%s161]
                %225 = vst [vmem:[%s169 + $0xd8] sm:%s161] %v224
                %v226 = vld [vmem:[%s168 + $0x380] sm:%s161]
                %227 = vst [vmem:[%s169 + $0xe0] sm:%s161] %v226
                %v228 = vld [vmem:[%s168 + $0x3a0] sm:%s161]
                %229 = vst [vmem:[%s169 + $0xe8] sm:%s161] %v228
                %v230 = vld [vmem:[%s168 + $0x3c0] sm:%s161]
                %231 = vst [vmem:[%s169 + $0xf0] sm:%s161] %v230
                %v232 = vld [vmem:[%s168 + $0x3e0] sm:%s161]
                %233 = vst [vmem:[%s169 + $0xf8] sm:%s161] %v232
                %v234 = vld [vmem:[%s168 + $0x400] sm:%s161]
                %235 = vst [vmem:[%s169 + $0x100] sm:%s161] %v234
                %v236 = vld [vmem:[%s168 + $0x420] sm:%s161]
                %237 = vst [vmem:[%s169 + $0x108] sm:%s161] %v236
                %v238 = vld [vmem:[%s168 + $0x440] sm:%s161]
                %239 = vst [vmem:[%s169 + $0x110] sm:%s161] %v238
                %v240 = vld [vmem:[%s168 + $0x460] sm:%s161]
                %241 = vst [vmem:[%s169 + $0x118] sm:%s161] %v240
                %v242 = vld [vmem:[%s168 + $0x480] sm:%s161]
                %243 = vst [vmem:[%s169 + $0x120] sm:%s161] %v242
                %v244 = vld [vmem:[%s168 + $0x4a0] sm:%s161]
                %245 = vst [vmem:[%s169 + $0x128] sm:%s161] %v244
                %v246 = vld [vmem:[%s168 + $0x4c0] sm:%s161]
                %247 = vst [vmem:[%s169 + $0x130] sm:%s161] %v246
                %v248 = vld [vmem:[%s168 + $0x4e0] sm:%s161]
                %249 = vst [vmem:[%s169 + $0x138] sm:%s161] %v248
                %v250 = vld [vmem:[%s168 + $0x500] sm:%s161]
                %251 = vst [vmem:[%s169 + $0x140] sm:%s161] %v250
                %v252 = vld [vmem:[%s168 + $0x520] sm:%s161]
                %253 = vst [vmem:[%s169 + $0x148] sm:%s161] %v252
                %v254 = vld [vmem:[%s168 + $0x540] sm:%s161]
                %255 = vst [vmem:[%s169 + $0x150] sm:%s161] %v254
                %v256 = vld [vmem:[%s168 + $0x560] sm:%s161]
                %257 = vst [vmem:[%s169 + $0x158] sm:%s161] %v256
                %v258 = vld [vmem:[%s168 + $0x580] sm:%s161]
                %259 = vst [vmem:[%s169 + $0x160] sm:%s161] %v258
                %v260 = vld [vmem:[%s168 + $0x5a0] sm:%s161]
                %261 = vst [vmem:[%s169 + $0x168] sm:%s161] %v260
                %v262 = vld [vmem:[%s168 + $0x5c0] sm:%s161]
                %263 = vst [vmem:[%s169 + $0x170] sm:%s161] %v262
                %v264 = vld [vmem:[%s168 + $0x5e0] sm:%s161]
                %265 = vst [vmem:[%s169 + $0x178] sm:%s161] %v264
                %v266 = vld [vmem:[%s168 + $0x600] sm:%s161]
                %267 = vst [vmem:[%s169 + $0x180] sm:%s161] %v266
                %v268 = vld [vmem:[%s168 + $0x620] sm:%s161]
                %269 = vst [vmem:[%s169 + $0x188] sm:%s161] %v268
                %v270 = vld [vmem:[%s168 + $0x640] sm:%s161]
                %271 = vst [vmem:[%s169 + $0x190] sm:%s161] %v270
                %v272 = vld [vmem:[%s168 + $0x660] sm:%s161]
                %273 = vst [vmem:[%s169 + $0x198] sm:%s161] %v272
                %v274 = vld [vmem:[%s168 + $0x680] sm:%s161]
                %275 = vst [vmem:[%s169 + $0x1a0] sm:%s161] %v274
                %v276 = vld [vmem:[%s168 + $0x6a0] sm:%s161]
                %277 = vst [vmem:[%s169 + $0x1a8] sm:%s161] %v276
                %v278 = vld [vmem:[%s168 + $0x6c0] sm:%s161]
                %279 = vst [vmem:[%s169 + $0x1b0] sm:%s161] %v278
                %v280 = vld [vmem:[%s168 + $0x6e0] sm:%s161]
                %281 = vst [vmem:[%s169 + $0x1b8] sm:%s161] %v280
                %v282 = vld [vmem:[%s168 + $0x700] sm:%s161]
                %283 = vst [vmem:[%s169 + $0x1c0] sm:%s161] %v282
                %v284 = vld [vmem:[%s168 + $0x720] sm:%s161]
                %285 = vst [vmem:[%s169 + $0x1c8] sm:%s161] %v284
                %v286 = vld [vmem:[%s168 + $0x740] sm:%s161]
                %287 = vst [vmem:[%s169 + $0x1d0] sm:%s161] %v286
                %v288 = vld [vmem:[%s168 + $0x760] sm:%s161]
                %289 = vst [vmem:[%s169 + $0x1d8] sm:%s161] %v288
                %v290 = vld [vmem:[%s168 + $0x780] sm:%s161]
                %291 = vst [vmem:[%s169 + $0x1e0] sm:%s161] %v290
                %v292 = vld [vmem:[%s168 + $0x7a0] sm:%s161]
                %293 = vst [vmem:[%s169 + $0x1e8] sm:%s161] %v292
                %v294 = vld [vmem:[%s168 + $0x7c0] sm:%s161]
                %295 = vst [vmem:[%s169 + $0x1f0] sm:%s161] %v294
                %v296 = vld [vmem:[%s168 + $0x7e0] sm:%s161]
                %297 = vst [vmem:[%s169 + $0x1f8] sm:%s161] %v296
                %v298 = vld [vmem:[%s168 + $0x800] sm:%s161]
                %299 = vst [vmem:[%s169 + $0x200] sm:%s161] %v298
                %v300 = vld [vmem:[%s168 + $0x820] sm:%s161]
                %301 = vst [vmem:[%s169 + $0x208] sm:%s161] %v300
                %v302 = vld [vmem:[%s168 + $0x840] sm:%s161]
                %303 = vst [vmem:[%s169 + $0x210] sm:%s161] %v302
                %v304 = vld [vmem:[%s168 + $0x860] sm:%s161]
                %305 = vst [vmem:[%s169 + $0x218] sm:%s161] %v304
                %v306 = vld [vmem:[%s168 + $0x880] sm:%s161]
                %307 = vst [vmem:[%s169 + $0x220] sm:%s161] %v306
                %v308 = vld [vmem:[%s168 + $0x8a0] sm:%s161]
                %309 = vst [vmem:[%s169 + $0x228] sm:%s161] %v308
                %v310 = vld [vmem:[%s168 + $0x8c0] sm:%s161]
                %311 = vst [vmem:[%s169 + $0x230] sm:%s161] %v310
                %v312 = vld [vmem:[%s168 + $0x8e0] sm:%s161]
                %313 = vst [vmem:[%s169 + $0x238] sm:%s161] %v312
                %v314 = vld [vmem:[%s168 + $0x900] sm:%s161]
                %315 = vst [vmem:[%s169 + $0x240] sm:%s161] %v314
                %v316 = vld [vmem:[%s168 + $0x920] sm:%s161]
                %317 = vst [vmem:[%s169 + $0x248] sm:%s161] %v316
                %v318 = vld [vmem:[%s168 + $0x940] sm:%s161]
                %319 = vst [vmem:[%s169 + $0x250] sm:%s161] %v318
                %v320 = vld [vmem:[%s168 + $0x960] sm:%s161]
                %321 = vst [vmem:[%s169 + $0x258] sm:%s161] %v320
                %v322 = vld [vmem:[%s168 + $0x980] sm:%s161]
                %323 = vst [vmem:[%s169 + $0x260] sm:%s161] %v322
                %v324 = vld [vmem:[%s168 + $0x9a0] sm:%s161]
                %325 = vst [vmem:[%s169 + $0x268] sm:%s161] %v324
                %v326 = vld [vmem:[%s168 + $0x9c0] sm:%s161]
                %327 = vst [vmem:[%s169 + $0x270] sm:%s161] %v326
                %v328 = vld [vmem:[%s168 + $0x9e0] sm:%s161]
                %329 = vst [vmem:[%s169 + $0x278] sm:%s161] %v328
                %v330 = vld [vmem:[%s168 + $0xa00] sm:%s161]
                %331 = vst [vmem:[%s169 + $0x280] sm:%s161] %v330
                %v332 = vld [vmem:[%s168 + $0xa20] sm:%s161]
                %333 = vst [vmem:[%s169 + $0x288] sm:%s161] %v332
                %v334 = vld [vmem:[%s168 + $0xa40] sm:%s161]
                %335 = vst [vmem:[%s169 + $0x290] sm:%s161] %v334
                %v336 = vld [vmem:[%s168 + $0xa60] sm:%s161]
                %337 = vst [vmem:[%s169 + $0x298] sm:%s161] %v336
                %v338 = vld [vmem:[%s168 + $0xa80] sm:%s161]
                %339 = vst [vmem:[%s169 + $0x2a0] sm:%s161] %v338
                %v340 = vld [vmem:[%s168 + $0xaa0] sm:%s161]
                %341 = vst [vmem:[%s169 + $0x2a8] sm:%s161] %v340
                %v342 = vld [vmem:[%s168 + $0xac0] sm:%s161]
                %343 = vst [vmem:[%s169 + $0x2b0] sm:%s161] %v342
                %v344 = vld [vmem:[%s168 + $0xae0] sm:%s161]
                %345 = vst [vmem:[%s169 + $0x2b8] sm:%s161] %v344
                %v346 = vld [vmem:[%s168 + $0xb00] sm:%s161]
                %347 = vst [vmem:[%s169 + $0x2c0] sm:%s161] %v346
                %v348 = vld [vmem:[%s168 + $0xb20] sm:%s161]
                %349 = vst [vmem:[%s169 + $0x2c8] sm:%s161] %v348
                %v350 = vld [vmem:[%s168 + $0xb40] sm:%s161]
                %351 = vst [vmem:[%s169 + $0x2d0] sm:%s161] %v350
                %v352 = vld [vmem:[%s168 + $0xb60] sm:%s161]
                %353 = vst [vmem:[%s169 + $0x2d8] sm:%s161] %v352
                %v354 = vld [vmem:[%s168 + $0xb80] sm:%s161]
                %355 = vst [vmem:[%s169 + $0x2e0] sm:%s161] %v354
                %v356 = vld [vmem:[%s168 + $0xba0] sm:%s161]
                %357 = vst [vmem:[%s169 + $0x2e8] sm:%s161] %v356
                %v358 = vld [vmem:[%s168 + $0xbc0] sm:%s161]
                %359 = vst [vmem:[%s169 + $0x2f0] sm:%s161] %v358
                %v360 = vld [vmem:[%s168 + $0xbe0] sm:%s161]
                %361 = vst [vmem:[%s169 + $0x2f8] sm:%s161] %v360
              $region45: #{spec_model3_forward.2} parent=39 // loop_footer
                %s167 = sadd.s32 1, %s163
              $region46: #{spec_model3_forward.2} parent=39 // loop_footer_branch
                %162 = sbr.rel target = $region42
              $region47: #{spec_model3_forward.2} parent=39 // loop_exit
                _
            $region40: #{spec_model3_forward.2} parent=31 // pred_fallthru
              _
          $region32: #{spec_model3_forward.2} parent=27 // pred_fallthru
            _
          %566 = vnop
        $region28: #{spec_model3_forward.2} parent=23 // pred_fallthru
          _
      $region24: #{spec_model3_forward.2} parent=5 // pred_fallthru
        _
      %p567 = scmp.le.s32.totalorder 1, %s9
      %p568 = scmp.lt.s32.totalorder %s9, 17
      %p569 = pnand %p567, %p568
      %p570 = pneg %p569
      // Predicated region
      $region63: #{spec_model3_forward.2} parent=5 // pred_check
        _
      $region64: #{spec_model3_forward.2} parent=5 // pred_check_branch
        %572 = sbr.rel (%p569) target = $region66
      $region65: #{spec_model3_forward.2} parent=5 // pred_region
        %s573 = ssub.s32 %s9, 1
        %s574 = sand.u32 %s36, 1
        %s575 = sand.u32 %s36, 1
        %s576 = smul.addr %s575, 768
        %s577 = scalar_lea.vmem [#allocation2], %s576
        // Predicated region
        $region67: #{spec_model3_forward.2} parent=65 // pred_check
          %p578 = pneg %p49
        $region68: #{spec_model3_forward.2} parent=65 // pred_check_branch
          %580 = sbr.rel (%p578) target = $region70
        $region69: #{spec_model3_forward.2} parent=65 // pred_region
          _
        $region70: #{spec_model3_forward.2} parent=65 // pred_fallthru
          _
        %s581 = sand.u32 %s36, 1
        %s582 = sand.u32 %s36, 1
        %s583 = smul.addr %s582, 768
        %s584 = scalar_lea.vmem [#allocation2], %s583
        %p585 = pneg %p49
        %p586 = pneg %p46
        %p587 = pneg %p70
        %p588 = pneg %p67
        %p589 = pneg %p91
        %p590 = pneg %p88
        %p591 = pneg %p117
        %p592 = pneg %p114
        %s593 = sand.u32 %s104, 1
        %s594 = sand.u32 %s104, 1
        %s595 = smul.addr %s594, 32
        %s596 = scalar_lea.vmem [#allocation3], %s595
        %s597 = smul.u32 2, %s18
        %s598 = smul.u32 2, %s18
        %v599 = vld [vmem:[%s1] sm:$0xff]
        %v600 = vld [vmem:[%s1 + $0x8] sm:$0xff]
        %v601 = vld [vmem:[%s1 + $0x10] sm:$0xff]
        %v602 = vld [vmem:[%s1 + $0x18] sm:$0xff]
        %v603 = vld [vmem:[%s1 + $0x20] sm:$0xff]
        %v604 = vld [vmem:[%s1 + $0x28] sm:$0xff]
        %v605 = vld [vmem:[%s577] sm:$0xff]
        %v606 = vld [vmem:[%s577 + $0x8] sm:$0xff]
        %v607 = vld [vmem:[%s577 + $0x10] sm:$0xff]
        %v608 = vld [vmem:[%s577 + $0x18] sm:$0xff]
        %v609 = vld [vmem:[%s577 + $0x20] sm:$0xff]
        %v610 = vld [vmem:[%s577 + $0x28] sm:$0xff]
        %v611 = vld [vmem:[%s577 + $0x30] sm:$0xff]
        %v612 = vld [vmem:[%s577 + $0x38] sm:$0xff]
        %v613 = vld [vmem:[%s577 + $0x40] sm:$0xff]
        %v614 = vld [vmem:[%s577 + $0x48] sm:$0xff]
        %v615 = vld [vmem:[%s577 + $0x50] sm:$0xff]
        %v616 = vld [vmem:[%s577 + $0x58] sm:$0xff]
        %v617 = vld [vmem:[%s577 + $0x60] sm:$0xff]
        %v618 = vld [vmem:[%s577 + $0x68] sm:$0xff]
        %v619 = vld [vmem:[%s577 + $0x70] sm:$0xff]
        %v620 = vld [vmem:[%s577 + $0x78] sm:$0xff]
        %v621 = vld [vmem:[%s577 + $0x80] sm:$0xff]
        %v622 = vld [vmem:[%s577 + $0x88] sm:$0xff]
        %v623 = vld [vmem:[%s577 + $0x90] sm:$0xff]
        %v624 = vld [vmem:[%s577 + $0x98] sm:$0xff]
        %v625 = vld [vmem:[%s577 + $0xa0] sm:$0xff]
        %v626 = vld [vmem:[%s577 + $0xa8] sm:$0xff]
        %v627 = vld [vmem:[%s577 + $0xb0] sm:$0xff]
        %v628 = vld [vmem:[%s577 + $0xb8] sm:$0xff]
        %v629 = vld [vmem:[%s577 + $0xc0] sm:$0xff]
        %v630 = vld [vmem:[%s577 + $0xc8] sm:$0xff]
        %v631 = vld [vmem:[%s577 + $0xd0] sm:$0xff]
        %v632 = vld [vmem:[%s577 + $0xd8] sm:$0xff]
        %v633 = vld [vmem:[%s577 + $0xe0] sm:$0xff]
        %v634 = vld [vmem:[%s577 + $0xe8] sm:$0xff]
        %v635 = vld [vmem:[%s577 + $0xf0] sm:$0xff]
        %v636 = vld [vmem:[%s577 + $0xf8] sm:$0xff]
        %v637 = vld [vmem:[%s577 + $0x100] sm:$0xff]
        %v638 = vld [vmem:[%s577 + $0x108] sm:$0xff]
        %v639 = vld [vmem:[%s577 + $0x110] sm:$0xff]
        %v640 = vld [vmem:[%s577 + $0x118] sm:$0xff]
        %v641 = vld [vmem:[%s577 + $0x120] sm:$0xff]
        %v642 = vld [vmem:[%s577 + $0x128] sm:$0xff]
        %v643 = vld [vmem:[%s577 + $0x130] sm:$0xff]
        %v644 = vld [vmem:[%s577 + $0x138] sm:$0xff]
        %v645 = vld [vmem:[%s577 + $0x140] sm:$0xff]
        %v646 = vld [vmem:[%s577 + $0x148] sm:$0xff]
        %v647 = vld [vmem:[%s577 + $0x150] sm:$0xff]
        %v648 = vld [vmem:[%s577 + $0x158] sm:$0xff]
        %v649 = vld [vmem:[%s577 + $0x160] sm:$0xff]
        %v650 = vld [vmem:[%s577 + $0x168] sm:$0xff]
        %v651 = vld [vmem:[%s577 + $0x170] sm:$0xff]
        %v652 = vld [vmem:[%s577 + $0x178] sm:$0xff]
        %v653 = vld [vmem:[%s577 + $0x180] sm:$0xff]
        %v654 = vld [vmem:[%s577 + $0x188] sm:$0xff]
        %v655 = vld [vmem:[%s577 + $0x190] sm:$0xff]
        %v656 = vld [vmem:[%s577 + $0x198] sm:$0xff]
        %v657 = vld [vmem:[%s577 + $0x1a0] sm:$0xff]
        %v658 = vld [vmem:[%s577 + $0x1a8] sm:$0xff]
        %v659 = vld [vmem:[%s577 + $0x1b0] sm:$0xff]
        %v660 = vld [vmem:[%s577 + $0x1b8] sm:$0xff]
        %v661 = vld [vmem:[%s577 + $0x1c0] sm:$0xff]
        %v662 = vld [vmem:[%s577 + $0x1c8] sm:$0xff]
        %v663 = vld [vmem:[%s577 + $0x1d0] sm:$0xff]
        %v664 = vld [vmem:[%s577 + $0x1d8] sm:$0xff]
        %v665 = vld [vmem:[%s577 + $0x1e0] sm:$0xff]
        %v666 = vld [vmem:[%s577 + $0x1e8] sm:$0xff]
        %v667 = vld [vmem:[%s577 + $0x1f0] sm:$0xff]
        %v668 = vld [vmem:[%s577 + $0x1f8] sm:$0xff]
        %v669 = vld [vmem:[%s577 + $0x200] sm:$0xff]
        %v670 = vld [vmem:[%s577 + $0x208] sm:$0xff]
        %v671 = vld [vmem:[%s577 + $0x210] sm:$0xff]
        %v672 = vld [vmem:[%s577 + $0x218] sm:$0xff]
        %v673 = vld [vmem:[%s577 + $0x220] sm:$0xff]
        %v674 = vld [vmem:[%s577 + $0x228] sm:$0xff]
        %v675 = vld [vmem:[%s577 + $0x230] sm:$0xff]
        %v676 = vld [vmem:[%s577 + $0x238] sm:$0xff]
        %v677 = vld [vmem:[%s577 + $0x240] sm:$0xff]
        %v678 = vld [vmem:[%s577 + $0x248] sm:$0xff]
        %v679 = vld [vmem:[%s577 + $0x250] sm:$0xff]
        %v680 = vld [vmem:[%s577 + $0x258] sm:$0xff]
        %v681 = vld [vmem:[%s577 + $0x260] sm:$0xff]
        %v682 = vld [vmem:[%s577 + $0x268] sm:$0xff]
        %v683 = vld [vmem:[%s577 + $0x270] sm:$0xff]
        %v684 = vld [vmem:[%s577 + $0x278] sm:$0xff]
        %v685 = vld [vmem:[%s577 + $0x280] sm:$0xff]
        %v686 = vld [vmem:[%s577 + $0x288] sm:$0xff]
        %v687 = vld [vmem:[%s577 + $0x290] sm:$0xff]
        %v688 = vld [vmem:[%s577 + $0x298] sm:$0xff]
        %v689 = vld [vmem:[%s577 + $0x2a0] sm:$0xff]
        %v690 = vld [vmem:[%s577 + $0x2a8] sm:$0xff]
        %v691 = vld [vmem:[%s577 + $0x2b0] sm:$0xff]
        %v692 = vld [vmem:[%s577 + $0x2b8] sm:$0xff]
        %v693 = vld [vmem:[%s577 + $0x2c0] sm:$0xff]
        %v694 = vld [vmem:[%s577 + $0x2c8] sm:$0xff]
        %v695 = vld [vmem:[%s577 + $0x2d0] sm:$0xff]
        %v696 = vld [vmem:[%s577 + $0x2d8] sm:$0xff]
        %v697 = vld [vmem:[%s577 + $0x2e0] sm:$0xff]
        %v698 = vld [vmem:[%s577 + $0x2e8] sm:$0xff]
        %v699 = vld [vmem:[%s577 + $0x2f0] sm:$0xff]
        %v700 = vld [vmem:[%s577 + $0x2f8] sm:$0xff]
        %v701 = vld [vmem:[%s2] sm:$0xff]
        %v702 = vld [vmem:[%s2 + $0x8] sm:$0xff]
        %704 = vset.pattern.permute.xlu0 0
        %705 = vperm.xlu0 %704, %v701
        %v706 = vpop.permute.xlu0 %705
        %709 = vset.pattern.permute.xlu0 0
        %710 = vperm.xlu0 %709, %v702
        %v711 = vpop.permute.xlu0 %710
        %v719 = vunpack.c.l.b16 %v599
        %v720 = vunpack.c.h.b16 %v599
        %v721 = vunpack.c.l.b16 %v600
        %v722 = vunpack.c.h.b16 %v600
        %v723 = vunpack.c.l.b16 %v601
        %v724 = vunpack.c.h.b16 %v601
        %v725 = vunpack.c.l.b16 %v602
        %v726 = vunpack.c.h.b16 %v602
        %v727 = vunpack.c.l.b16 %v603
        %v728 = vunpack.c.h.b16 %v603
        %v729 = vunpack.c.l.b16 %v604
        %v730 = vunpack.c.h.b16 %v604
        %v731 = vpack.c.b16 %v725, %v719
        %v732 = vpack.c.b16 %v726, %v720
        %v733 = vpack.c.b16 %v727, %v721
        %v734 = vpack.c.b16 %v728, %v722
        %v735 = vpack.c.b16 %v729, %v723
        %v736 = vpack.c.b16 %v730, %v724
        %v839 = vunpack.c.l.b16 %v605
        %v840 = vunpack.c.h.b16 %v605
        %v841 = vunpack.c.l.b16 %v606
        %v842 = vunpack.c.h.b16 %v606
        %v843 = vunpack.c.l.b16 %v607
        %v844 = vunpack.c.h.b16 %v607
        %v845 = vunpack.c.l.b16 %v608
        %v846 = vunpack.c.h.b16 %v608
        %v847 = vunpack.c.l.b16 %v609
        %v848 = vunpack.c.h.b16 %v609
        %v849 = vunpack.c.l.b16 %v610
        %v850 = vunpack.c.h.b16 %v610
        %v851 = vunpack.c.l.b16 %v611
        %v852 = vunpack.c.h.b16 %v611
        %v853 = vunpack.c.l.b16 %v612
        %v854 = vunpack.c.h.b16 %v612
        %v855 = vunpack.c.l.b16 %v613
        %v856 = vunpack.c.h.b16 %v613
        %v857 = vunpack.c.l.b16 %v614
        %v858 = vunpack.c.h.b16 %v614
        %v859 = vunpack.c.l.b16 %v615
        %v860 = vunpack.c.h.b16 %v615
        %v861 = vunpack.c.l.b16 %v616
        %v862 = vunpack.c.h.b16 %v616
        %v863 = vunpack.c.l.b16 %v617
        %v864 = vunpack.c.h.b16 %v617
        %v865 = vunpack.c.l.b16 %v618
        %v866 = vunpack.c.h.b16 %v618
        %v867 = vunpack.c.l.b16 %v619
        %v868 = vunpack.c.h.b16 %v619
        %v869 = vunpack.c.l.b16 %v620
        %v870 = vunpack.c.h.b16 %v620
        %v871 = vunpack.c.l.b16 %v621
        %v872 = vunpack.c.h.b16 %v621
        %v873 = vunpack.c.l.b16 %v622
        %v874 = vunpack.c.h.b16 %v622
        %v875 = vunpack.c.l.b16 %v623
        %v876 = vunpack.c.h.b16 %v623
        %v877 = vunpack.c.l.b16 %v624
        %v878 = vunpack.c.h.b16 %v624
        %v879 = vunpack.c.l.b16 %v625
        %v880 = vunpack.c.h.b16 %v625
        %v881 = vunpack.c.l.b16 %v626
        %v882 = vunpack.c.h.b16 %v626
        %v883 = vunpack.c.l.b16 %v627
        %v884 = vunpack.c.h.b16 %v627
        %v885 = vunpack.c.l.b16 %v628
        %v886 = vunpack.c.h.b16 %v628
        %v887 = vunpack.c.l.b16 %v629
        %v888 = vunpack.c.h.b16 %v629
        %v889 = vunpack.c.l.b16 %v630
        %v890 = vunpack.c.h.b16 %v630
        %v891 = vunpack.c.l.b16 %v631
        %v892 = vunpack.c.h.b16 %v631
        %v893 = vunpack.c.l.b16 %v632
        %v894 = vunpack.c.h.b16 %v632
        %v895 = vunpack.c.l.b16 %v633
        %v896 = vunpack.c.h.b16 %v633
        %v897 = vunpack.c.l.b16 %v634
        %v898 = vunpack.c.h.b16 %v634
        %v899 = vunpack.c.l.b16 %v635
        %v900 = vunpack.c.h.b16 %v635
        %v901 = vunpack.c.l.b16 %v636
        %v902 = vunpack.c.h.b16 %v636
        %v903 = vunpack.c.l.b16 %v637
        %v904 = vunpack.c.h.b16 %v637
        %v905 = vunpack.c.l.b16 %v638
        %v906 = vunpack.c.h.b16 %v638
        %v907 = vunpack.c.l.b16 %v639
        %v908 = vunpack.c.h.b16 %v639
        %v909 = vunpack.c.l.b16 %v640
        %v910 = vunpack.c.h.b16 %v640
        %v911 = vunpack.c.l.b16 %v641
        %v912 = vunpack.c.h.b16 %v641
        %v913 = vunpack.c.l.b16 %v642
        %v914 = vunpack.c.h.b16 %v642
        %v915 = vunpack.c.l.b16 %v643
        %v916 = vunpack.c.h.b16 %v643
        %v917 = vunpack.c.l.b16 %v644
        %v918 = vunpack.c.h.b16 %v644
        %v919 = vunpack.c.l.b16 %v645
        %v920 = vunpack.c.h.b16 %v645
        %v921 = vunpack.c.l.b16 %v646
        %v922 = vunpack.c.h.b16 %v646
        %v923 = vunpack.c.l.b16 %v647
        %v924 = vunpack.c.h.b16 %v647
        %v925 = vunpack.c.l.b16 %v648
        %v926 = vunpack.c.h.b16 %v648
        %v927 = vunpack.c.l.b16 %v649
        %v928 = vunpack.c.h.b16 %v649
        %v929 = vunpack.c.l.b16 %v650
        %v930 = vunpack.c.h.b16 %v650
        %v931 = vunpack.c.l.b16 %v651
        %v932 = vunpack.c.h.b16 %v651
        %v933 = vunpack.c.l.b16 %v652
        %v934 = vunpack.c.h.b16 %v652
        %v935 = vunpack.c.l.b16 %v653
        %v936 = vunpack.c.h.b16 %v653
        %v937 = vunpack.c.l.b16 %v654
        %v938 = vunpack.c.h.b16 %v654
        %v939 = vunpack.c.l.b16 %v655
        %v940 = vunpack.c.h.b16 %v655
        %v941 = vunpack.c.l.b16 %v656
        %v942 = vunpack.c.h.b16 %v656
        %v943 = vunpack.c.l.b16 %v657
        %v944 = vunpack.c.h.b16 %v657
        %v945 = vunpack.c.l.b16 %v658
        %v946 = vunpack.c.h.b16 %v658
        %v947 = vunpack.c.l.b16 %v659
        %v948 = vunpack.c.h.b16 %v659
        %v949 = vunpack.c.l.b16 %v660
        %v950 = vunpack.c.h.b16 %v660
        %v951 = vunpack.c.l.b16 %v661
        %v952 = vunpack.c.h.b16 %v661
        %v953 = vunpack.c.l.b16 %v662
        %v954 = vunpack.c.h.b16 %v662
        %v955 = vunpack.c.l.b16 %v663
        %v956 = vunpack.c.h.b16 %v663
        %v957 = vunpack.c.l.b16 %v664
        %v958 = vunpack.c.h.b16 %v664
        %v959 = vunpack.c.l.b16 %v665
        %v960 = vunpack.c.h.b16 %v665
        %v961 = vunpack.c.l.b16 %v666
        %v962 = vunpack.c.h.b16 %v666
        %v963 = vunpack.c.l.b16 %v667
        %v964 = vunpack.c.h.b16 %v667
        %v965 = vunpack.c.l.b16 %v668
        %v966 = vunpack.c.h.b16 %v668
        %v967 = vunpack.c.l.b16 %v669
        %v968 = vunpack.c.h.b16 %v669
        %v969 = vunpack.c.l.b16 %v670
        %v970 = vunpack.c.h.b16 %v670
        %v971 = vunpack.c.l.b16 %v671
        %v972 = vunpack.c.h.b16 %v671
        %v973 = vunpack.c.l.b16 %v672
        %v974 = vunpack.c.h.b16 %v672
        %v975 = vunpack.c.l.b16 %v673
        %v976 = vunpack.c.h.b16 %v673
        %v977 = vunpack.c.l.b16 %v674
        %v978 = vunpack.c.h.b16 %v674
        %v979 = vunpack.c.l.b16 %v675
        %v980 = vunpack.c.h.b16 %v675
        %v981 = vunpack.c.l.b16 %v676
        %v982 = vunpack.c.h.b16 %v676
        %v983 = vunpack.c.l.b16 %v677
        %v984 = vunpack.c.h.b16 %v677
        %v985 = vunpack.c.l.b16 %v678
        %v986 = vunpack.c.h.b16 %v678
        %v987 = vunpack.c.l.b16 %v679
        %v988 = vunpack.c.h.b16 %v679
        %v989 = vunpack.c.l.b16 %v680
        %v990 = vunpack.c.h.b16 %v680
        %v991 = vunpack.c.l.b16 %v681
        %v992 = vunpack.c.h.b16 %v681
        %v993 = vunpack.c.l.b16 %v682
        %v994 = vunpack.c.h.b16 %v682
        %v995 = vunpack.c.l.b16 %v683
        %v996 = vunpack.c.h.b16 %v683
        %v997 = vunpack.c.l.b16 %v684
        %v998 = vunpack.c.h.b16 %v684
        %v999 = vunpack.c.l.b16 %v685
        %v1000 = vunpack.c.h.b16 %v685
        %v1001 = vunpack.c.l.b16 %v686
        %v1002 = vunpack.c.h.b16 %v686
        %v1003 = vunpack.c.l.b16 %v687
        %v1004 = vunpack.c.h.b16 %v687
        %v1005 = vunpack.c.l.b16 %v688
        %v1006 = vunpack.c.h.b16 %v688
        %v1007 = vunpack.c.l.b16 %v689
        %v1008 = vunpack.c.h.b16 %v689
        %v1009 = vunpack.c.l.b16 %v690
        %v1010 = vunpack.c.h.b16 %v690
        %v1011 = vunpack.c.l.b16 %v691
        %v1012 = vunpack.c.h.b16 %v691
        %v1013 = vunpack.c.l.b16 %v692
        %v1014 = vunpack.c.h.b16 %v692
        %v1015 = vunpack.c.l.b16 %v693
        %v1016 = vunpack.c.h.b16 %v693
        %v1017 = vunpack.c.l.b16 %v694
        %v1018 = vunpack.c.h.b16 %v694
        %v1019 = vunpack.c.l.b16 %v695
        %v1020 = vunpack.c.h.b16 %v695
        %v1021 = vunpack.c.l.b16 %v696
        %v1022 = vunpack.c.h.b16 %v696
        %v1023 = vunpack.c.l.b16 %v697
        %v1024 = vunpack.c.h.b16 %v697
        %v1025 = vunpack.c.l.b16 %v698
        %v1026 = vunpack.c.h.b16 %v698
        %v1027 = vunpack.c.l.b16 %v699
        %v1028 = vunpack.c.h.b16 %v699
        %v1029 = vunpack.c.l.b16 %v700
        %v1030 = vunpack.c.h.b16 %v700
        %v1031 = vpack.c.b16 %v841, %v839
        %v1032 = vpack.c.b16 %v842, %v840
        %v1033 = vpack.c.b16 %v845, %v843
        %v1034 = vpack.c.b16 %v846, %v844
        %v1035 = vpack.c.b16 %v849, %v847
        %v1036 = vpack.c.b16 %v850, %v848
        %v1037 = vpack.c.b16 %v853, %v851
        %v1038 = vpack.c.b16 %v854, %v852
        %v1039 = vpack.c.b16 %v857, %v855
        %v1040 = vpack.c.b16 %v858, %v856
        %v1041 = vpack.c.b16 %v861, %v859
        %v1042 = vpack.c.b16 %v862, %v860
        %v1043 = vpack.c.b16 %v865, %v863
        %v1044 = vpack.c.b16 %v866, %v864
        %v1045 = vpack.c.b16 %v869, %v867
        %v1046 = vpack.c.b16 %v870, %v868
        %v1047 = vpack.c.b16 %v873, %v871
        %v1048 = vpack.c.b16 %v874, %v872
        %v1049 = vpack.c.b16 %v877, %v875
        %v1050 = vpack.c.b16 %v878, %v876
        %v1051 = vpack.c.b16 %v881, %v879
        %v1052 = vpack.c.b16 %v882, %v880
        %v1053 = vpack.c.b16 %v885, %v883
        %v1054 = vpack.c.b16 %v886, %v884
        %v1055 = vpack.c.b16 %v889, %v887
        %v1056 = vpack.c.b16 %v890, %v888
        %v1057 = vpack.c.b16 %v893, %v891
        %v1058 = vpack.c.b16 %v894, %v892
        %v1059 = vpack.c.b16 %v897, %v895
        %v1060 = vpack.c.b16 %v898, %v896
        %v1061 = vpack.c.b16 %v901, %v899
        %v1062 = vpack.c.b16 %v902, %v900
        %v1063 = vpack.c.b16 %v905, %v903
        %v1064 = vpack.c.b16 %v906, %v904
        %v1065 = vpack.c.b16 %v909, %v907
        %v1066 = vpack.c.b16 %v910, %v908
        %v1067 = vpack.c.b16 %v913, %v911
        %v1068 = vpack.c.b16 %v914, %v912
        %v1069 = vpack.c.b16 %v917, %v915
        %v1070 = vpack.c.b16 %v918, %v916
        %v1071 = vpack.c.b16 %v921, %v919
        %v1072 = vpack.c.b16 %v922, %v920
        %v1073 = vpack.c.b16 %v925, %v923
        %v1074 = vpack.c.b16 %v926, %v924
        %v1075 = vpack.c.b16 %v929, %v927
        %v1076 = vpack.c.b16 %v930, %v928
        %v1077 = vpack.c.b16 %v933, %v931
        %v1078 = vpack.c.b16 %v934, %v932
        %v1079 = vpack.c.b16 %v937, %v935
        %v1080 = vpack.c.b16 %v938, %v936
        %v1081 = vpack.c.b16 %v941, %v939
        %v1082 = vpack.c.b16 %v942, %v940
        %v1083 = vpack.c.b16 %v945, %v943
        %v1084 = vpack.c.b16 %v946, %v944
        %v1085 = vpack.c.b16 %v949, %v947
        %v1086 = vpack.c.b16 %v950, %v948
        %v1087 = vpack.c.b16 %v953, %v951
        %v1088 = vpack.c.b16 %v954, %v952
        %v1089 = vpack.c.b16 %v957, %v955
        %v1090 = vpack.c.b16 %v958, %v956
        %v1091 = vpack.c.b16 %v961, %v959
        %v1092 = vpack.c.b16 %v962, %v960
        %v1093 = vpack.c.b16 %v965, %v963
        %v1094 = vpack.c.b16 %v966, %v964
        %v1095 = vpack.c.b16 %v969, %v967
        %v1096 = vpack.c.b16 %v970, %v968
        %v1097 = vpack.c.b16 %v973, %v971
        %v1098 = vpack.c.b16 %v974, %v972
        %v1099 = vpack.c.b16 %v977, %v975
        %v1100 = vpack.c.b16 %v978, %v976
        %v1101 = vpack.c.b16 %v981, %v979
        %v1102 = vpack.c.b16 %v982, %v980
        %v1103 = vpack.c.b16 %v985, %v983
        %v1104 = vpack.c.b16 %v986, %v984
        %v1105 = vpack.c.b16 %v989, %v987
        %v1106 = vpack.c.b16 %v990, %v988
        %v1107 = vpack.c.b16 %v993, %v991
        %v1108 = vpack.c.b16 %v994, %v992
        %v1109 = vpack.c.b16 %v997, %v995
        %v1110 = vpack.c.b16 %v998, %v996
        %v1111 = vpack.c.b16 %v1001, %v999
        %v1112 = vpack.c.b16 %v1002, %v1000
        %v1113 = vpack.c.b16 %v1005, %v1003
        %v1114 = vpack.c.b16 %v1006, %v1004
        %v1115 = vpack.c.b16 %v1009, %v1007
        %v1116 = vpack.c.b16 %v1010, %v1008
        %v1117 = vpack.c.b16 %v1013, %v1011
        %v1118 = vpack.c.b16 %v1014, %v1012
        %v1119 = vpack.c.b16 %v1017, %v1015
        %v1120 = vpack.c.b16 %v1018, %v1016
        %v1121 = vpack.c.b16 %v1021, %v1019
        %v1122 = vpack.c.b16 %v1022, %v1020
        %v1123 = vpack.c.b16 %v1025, %v1023
        %v1124 = vpack.c.b16 %v1026, %v1024
        %v1125 = vpack.c.b16 %v1029, %v1027
        %v1126 = vpack.c.b16 %v1030, %v1028
        %1223 = vmatprep.subr.bf16.mxu0 %v1046
        %1224 = vmatpush1.bf16.msra.mxu0 %v1045
        %1225 = vmatprep.subr.bf16.mxu0 %v1044
        %1226 = vmatpush1.bf16.msra.mxu0 %v1043
        %1227 = vmatprep.subr.bf16.mxu0 %v1042
        %1228 = vmatpush1.bf16.msra.mxu0 %v1041
        %1229 = vmatprep.subr.bf16.mxu0 %v1040
        %1230 = vmatpush1.bf16.msra.mxu0 %v1039
        %1231 = vmatprep.subr.bf16.mxu0 %v1038
        %1232 = vmatpush1.bf16.msra.mxu0 %v1037
        %1233 = vmatprep.subr.bf16.mxu0 %v1036
        %1234 = vmatpush1.bf16.msra.mxu0 %v1035
        %1235 = vmatprep.subr.bf16.mxu0 %v1034
        %1236 = vmatpush1.bf16.msra.mxu0 %v1033
        %1237 = vmatprep.subr.bf16.mxu0 %v1032
        %1238 = vmatpush1.bf16.msra.mxu0 %v1031
        %1239 = vmatprep.subr.bf16.mxu0 %v1062
        %1240 = vmatpush2.bf16.msra.mxu0 %v1061
        %1241 = vmatprep.subr.bf16.mxu0 %v1060
        %1242 = vmatpush2.bf16.msra.mxu0 %v1059
        %1243 = vmatprep.subr.bf16.mxu0 %v1058
        %1244 = vmatpush2.bf16.msra.mxu0 %v1057
        %1245 = vmatprep.subr.bf16.mxu0 %v1056
        %1246 = vmatpush2.bf16.msra.mxu0 %v1055
        %1247 = vmatprep.subr.bf16.mxu0 %v1054
        %1248 = vmatpush2.bf16.msra.mxu0 %v1053
        %1249 = vmatprep.subr.bf16.mxu0 %v1052
        %1250 = vmatpush2.bf16.msra.mxu0 %v1051
        %1251 = vmatprep.subr.bf16.mxu0 %v1050
        %1252 = vmatpush2.bf16.msra.mxu0 %v1049
        %1253 = vmatprep.subr.bf16.mxu0 %v1048
        %1254 = vmatpush2.bf16.msra.mxu0 %v1047
        %1255 = vmatprep.mubr.bf16.mxu0 %v732
        %1256 = vmatmul.mubr.bf16.gmra.mxu0 %v731
        %v1257 = vpop.f32.mrf.mxu0
        %v1258 = vadd.f32 %v706, %v1257
        %v1259 = vpop.f32.mrf.mxu0
        %v1260 = vadd.f32 %v706, %v1259
        %v1261 = vpop.f32.mrf.mxu0
        %v1262 = vadd.f32 %v711, %v1261
        %v1263 = vpop.f32.mrf.mxu0
        %v1264 = vadd.f32 %v711, %v1263
        %1265 = vdwg.mxu0
        %1266 = vmatprep.subr.bf16.mxu0 %v1078
        %1267 = vmatpush1.bf16.msra.mxu0 %v1077
        %1268 = vmatprep.subr.bf16.mxu0 %v1076
        %1269 = vmatpush1.bf16.msra.mxu0 %v1075
        %1270 = vmatprep.subr.bf16.mxu0 %v1074
        %1271 = vmatpush1.bf16.msra.mxu0 %v1073
        %1272 = vmatprep.subr.bf16.mxu0 %v1072
        %1273 = vmatpush1.bf16.msra.mxu0 %v1071
        %1274 = vmatprep.subr.bf16.mxu0 %v1070
        %1275 = vmatpush1.bf16.msra.mxu0 %v1069
        %1276 = vmatprep.subr.bf16.mxu0 %v1068
        %1277 = vmatpush1.bf16.msra.mxu0 %v1067
        %1278 = vmatprep.subr.bf16.mxu0 %v1066
        %1279 = vmatpush1.bf16.msra.mxu0 %v1065
        %1280 = vmatprep.subr.bf16.mxu0 %v1064
        %1281 = vmatpush1.bf16.msra.mxu0 %v1063
        %1282 = vmatprep.subr.bf16.mxu0 %v1094
        %1283 = vmatpush2.bf16.msra.mxu0 %v1093
        %1284 = vmatprep.subr.bf16.mxu0 %v1092
        %1285 = vmatpush2.bf16.msra.mxu0 %v1091
        %1286 = vmatprep.subr.bf16.mxu0 %v1090
        %1287 = vmatpush2.bf16.msra.mxu0 %v1089
        %1288 = vmatprep.subr.bf16.mxu0 %v1088
        %1289 = vmatpush2.bf16.msra.mxu0 %v1087
        %1290 = vmatprep.subr.bf16.mxu0 %v1086
        %1291 = vmatpush2.bf16.msra.mxu0 %v1085
        %1292 = vmatprep.subr.bf16.mxu0 %v1084
        %1293 = vmatpush2.bf16.msra.mxu0 %v1083
        %1294 = vmatprep.subr.bf16.mxu0 %v1082
        %1295 = vmatpush2.bf16.msra.mxu0 %v1081
        %1296 = vmatprep.subr.bf16.mxu0 %v1080
        %1297 = vmatpush2.bf16.msra.mxu0 %v1079
        %1298 = vmatprep.mubr.bf16.mxu0 %v734
        %1299 = vmatmul.mubr.bf16.gmra.mxu0 %v733
        %v1300 = vpop.f32.mrf.mxu0
        %v1301 = vadd.f32 %v1258, %v1300
        %v1302 = vpop.f32.mrf.mxu0
        %v1303 = vadd.f32 %v1260, %v1302
        %v1304 = vpop.f32.mrf.mxu0
        %v1305 = vadd.f32 %v1262, %v1304
        %v1306 = vpop.f32.mrf.mxu0
        %v1307 = vadd.f32 %v1264, %v1306
        %1308 = vdwg.mxu0
        %1309 = vmatprep.subr.bf16.mxu0 %v1110
        %1310 = vmatpush1.bf16.msra.mxu0 %v1109
        %1311 = vmatprep.subr.bf16.mxu0 %v1108
        %1312 = vmatpush1.bf16.msra.mxu0 %v1107
        %1313 = vmatprep.subr.bf16.mxu0 %v1106
        %1314 = vmatpush1.bf16.msra.mxu0 %v1105
        %1315 = vmatprep.subr.bf16.mxu0 %v1104
        %1316 = vmatpush1.bf16.msra.mxu0 %v1103
        %1317 = vmatprep.subr.bf16.mxu0 %v1102
        %1318 = vmatpush1.bf16.msra.mxu0 %v1101
        %1319 = vmatprep.subr.bf16.mxu0 %v1100
        %1320 = vmatpush1.bf16.msra.mxu0 %v1099
        %1321 = vmatprep.subr.bf16.mxu0 %v1098
        %1322 = vmatpush1.bf16.msra.mxu0 %v1097
        %1323 = vmatprep.subr.bf16.mxu0 %v1096
        %1324 = vmatpush1.bf16.msra.mxu0 %v1095
        %1325 = vmatprep.subr.bf16.mxu0 %v1126
        %1326 = vmatpush2.bf16.msra.mxu0 %v1125
        %1327 = vmatprep.subr.bf16.mxu0 %v1124
        %1328 = vmatpush2.bf16.msra.mxu0 %v1123
        %1329 = vmatprep.subr.bf16.mxu0 %v1122
        %1330 = vmatpush2.bf16.msra.mxu0 %v1121
        %1331 = vmatprep.subr.bf16.mxu0 %v1120
        %1332 = vmatpush2.bf16.msra.mxu0 %v1119
        %1333 = vmatprep.subr.bf16.mxu0 %v1118
        %1334 = vmatpush2.bf16.msra.mxu0 %v1117
        %1335 = vmatprep.subr.bf16.mxu0 %v1116
        %1336 = vmatpush2.bf16.msra.mxu0 %v1115
        %1337 = vmatprep.subr.bf16.mxu0 %v1114
        %1338 = vmatpush2.bf16.msra.mxu0 %v1113
        %1339 = vmatprep.subr.bf16.mxu0 %v1112
        %1340 = vmatpush2.bf16.msra.mxu0 %v1111
        %1341 = vmatprep.mubr.bf16.mxu0 %v736
        %1342 = vmatmul.mubr.bf16.gmra.mxu0 %v735
        %v1343 = vpop.f32.mrf.mxu0
        %v1344 = vadd.f32 %v1301, %v1343
        %v1345 = vpop.f32.mrf.mxu0
        %v1346 = vadd.f32 %v1303, %v1345
        %v1347 = vpop.f32.mrf.mxu0
        %v1348 = vadd.f32 %v1305, %v1347
        %v1349 = vpop.f32.mrf.mxu0
        %v1350 = vadd.f32 %v1307, %v1349
        %1351 = vdwg.mxu0
        %v1352 = vmax.f32 %v1344, 0.0
        %v1353 = vmax.f32 %v1346, 0.0
        %v1354 = vmax.f32 %v1348, 0.0
        %v1355 = vmax.f32 %v1350, 0.0
        %p1356 = scmp.eq.s32.totalorder %s19, 0
        // Predicated region
        $region71: #{spec_model3_forward.2} parent=65 // pred_check
          %p1357 = pneg %p1356
        $region72: #{spec_model3_forward.2} parent=65 // pred_check_branch
          %1359 = sbr.rel (%p1357) target = $region74
        $region73: #{spec_model3_forward.2} parent=65 // pred_region
          %1360 = vst [vmem:[%s596] sm:$0xff] %v1352
          %1361 = vst [vmem:[%s596 + $0x8] sm:$0xff] %v1353
          %1362 = vst [vmem:[%s596 + $0x10] sm:$0xff] %v1354
          %1363 = vst [vmem:[%s596 + $0x18] sm:$0xff] %v1355
        $region74: #{spec_model3_forward.2} parent=65 // pred_fallthru
          _
        %p1364 = scmp.ne.s32.totalorder %s19, 0
        // Predicated region
        $region75: #{spec_model3_forward.2} parent=65 // pred_check
          %p1365 = pneg %p1364
        $region76: #{spec_model3_forward.2} parent=65 // pred_check_branch
          %1367 = sbr.rel (%p1365) target = $region78
        $region77: #{spec_model3_forward.2} parent=65 // pred_region
          %v1368 = vld [vmem:[%s596] sm:$0xff]
          %v1369 = vld [vmem:[%s596 + $0x8] sm:$0xff]
          %v1370 = vld [vmem:[%s596 + $0x10] sm:$0xff]
          %v1371 = vld [vmem:[%s596 + $0x18] sm:$0xff]
          %v1372 = vmax.f32 %v1368, %v1352
          %v1373 = vmax.f32 %v1369, %v1353
          %v1374 = vmax.f32 %v1370, %v1354
          %v1375 = vmax.f32 %v1371, %v1355
          %1376 = vst [vmem:[%s596] sm:$0xff] %v1372
          %1377 = vst [vmem:[%s596 + $0x8] sm:$0xff] %v1373
          %1378 = vst [vmem:[%s596 + $0x10] sm:$0xff] %v1374
          %1379 = vst [vmem:[%s596 + $0x18] sm:$0xff] %v1375
        $region78: #{spec_model3_forward.2} parent=65 // pred_fallthru
          _
        %s1380 = sand.u32 %s104, 1
        %s1381 = sand.u32 %s104, 1
        %s1382 = smul.addr %s1381, 32
        %s1383 = scalar_lea.vmem [#allocation3], %s1382
        // Predicated region
        $region79: #{spec_model3_forward.2} parent=65 // pred_check
          %p1384 = pneg %p114
        $region80: #{spec_model3_forward.2} parent=65 // pred_check_branch
          %1386 = sbr.rel (%p1384) target = $region82
        $region81: #{spec_model3_forward.2} parent=65 // pred_region
          %s1387 = smul.u32 2, %s18
          %s1388 = smul.addr %s1387, 8
          %s1389 = scalar_lea.vmem %s3, %s1388
          // Predicated region
          $region83: #{spec_model3_forward.2} parent=81 // pred_check
            _
          $region84: #{spec_model3_forward.2} parent=81 // pred_check_branch
            %1391 = sbr.rel (0) target = $region86
          $region85: #{spec_model3_forward.2} parent=81 // pred_region
            // Predicated region
            $region87: #{spec_model3_forward.2} parent=85 // pred_check
              _
            $region88: #{spec_model3_forward.2} parent=85 // pred_check_branch
              %1393 = sbr.rel (0) target = $region90
            $region89: #{spec_model3_forward.2} parent=85 // pred_region
              loop: start=0, step=1, limit=1
              $region91: #{spec_model3_forward.2} parent=89 // loop_pre_header
                _
              $region92: #{spec_model3_forward.2} parent=89 // loop_header
                %s1395 = sphi 0, %s1399
                %p1396 = scmp.ge.s32.totalorder %s1395, 1
                %s1400 = sphi %s1383, %s1383
                %s1401 = sphi %s1389, %s1389
              $region93: #{spec_model3_forward.2} parent=89 // loop_header_branch
                %1398 = sbr.rel (%p1396) target = $region97
              $region94: #{spec_model3_forward.2} parent=89 // loop_body
                %v1402 = vld [vmem:[%s1400] sm:$0xff]
                %1403 = vst [vmem:[%s1401] sm:$0xff] %v1402
                %v1404 = vld [vmem:[%s1400 + $0x8] sm:$0xff]
                %1405 = vst [vmem:[%s1401 + $0x8] sm:$0xff] %v1404
                %v1406 = vld [vmem:[%s1400 + $0x10] sm:$0xff]
                %1407 = vst [vmem:[%s1401 + $0x40] sm:$0xff] %v1406
                %v1408 = vld [vmem:[%s1400 + $0x18] sm:$0xff]
                %1409 = vst [vmem:[%s1401 + $0x48] sm:$0xff] %v1408
              $region95: #{spec_model3_forward.2} parent=89 // loop_footer
                %s1399 = sadd.s32 1, %s1395
              $region96: #{spec_model3_forward.2} parent=89 // loop_footer_branch
                %1394 = sbr.rel target = $region92
              $region97: #{spec_model3_forward.2} parent=89 // loop_exit
                _
            $region90: #{spec_model3_forward.2} parent=85 // pred_fallthru
              _
            // Predicated region
            $region98: #{spec_model3_forward.2} parent=85 // pred_check
              _
            $region99: #{spec_model3_forward.2} parent=85 // pred_check_branch
              %1411 = sbr.rel target = $region101
            $region100: #{spec_model3_forward.2} parent=85 // pred_region
              _
            $region101: #{spec_model3_forward.2} parent=85 // pred_fallthru
              _
          $region86: #{spec_model3_forward.2} parent=81 // pred_fallthru
            _
          %1412 = vnop
        $region82: #{spec_model3_forward.2} parent=65 // pred_fallthru
          _
      $region66: #{spec_model3_forward.2} parent=5 // pred_fallthru
        _
      %p1413 = scmp.le.s32.totalorder 2, %s9
      // Predicated region
      $region102: #{spec_model3_forward.2} parent=5 // pred_check
        %p1414 = pneg %p1413
      $region103: #{spec_model3_forward.2} parent=5 // pred_check_branch
        %1416 = sbr.rel (%p1414) target = $region105
      $region104: #{spec_model3_forward.2} parent=5 // pred_region
        %s1417 = ssub.s32 %s9, 2
        // Predicated region
        $region106: #{spec_model3_forward.2} parent=104 // pred_check
          %p1418 = pneg %p120
        $region107: #{spec_model3_forward.2} parent=104 // pred_check_branch
          %1420 = sbr.rel (%p1418) target = $region109
        $region108: #{spec_model3_forward.2} parent=104 // pred_region
          %s1421 = sand.u32 %s105, 1
          %s1422 = sand.u32 %s105, 1
          %s1423 = smul.addr %s1422, 32
          %s1424 = scalar_lea.vmem [#allocation3], %s1423
        $region109: #{spec_model3_forward.2} parent=104 // pred_fallthru
          _
      $region105: #{spec_model3_forward.2} parent=5 // pred_fallthru
        _
    $region6: #{spec_model3_forward.2} parent=1 // loop_footer
      %s13 = sadd.s32 1, %s9
    $region7: #{spec_model3_forward.2} parent=1 // loop_footer_branch
      %8 = sbr.rel target = $region3
    $region8: #{spec_model3_forward.2} parent=1 // loop_exit
      _

// kernel: spec_model3_forward.3
$region0: #{spec_model3_forward.3}
  #allocation0 [shape = 'u32[]', space=smem, size = 0x4, offset = 0x4, fixed_abs, tag = 'smem constant byte address 0x4 - core index']
  #allocation1 [shape = 'u32[144,128]{1,0:T(1,128)}', space=vmem, size = 0x12000, scoped, tag = 'internal scratch']
  %s0 = inlined_call_operand.vmem [shape: bf16[32,6400], index: 0, kind: input, shape index: {}]
  %s1 = inlined_call_operand.vmem [shape: bf16[6400,32], index: 1, kind: input, shape index: {}]
  %s2 = inlined_call_operand.vmem [shape: f32[1,32], index: 2, kind: input, shape index: {}]
  %s3 = inlined_call_operand.vmem [shape: bf16[6,32,400], index: 3, kind: input, shape index: {}]
  %s4 = inlined_call_operand.vmem [shape: f32[1,400], index: 4, kind: input, shape index: {}]
  %s5 = inlined_call_operand.vmem [shape: bf16[400,2], index: 5, kind: input, shape index: {}]
  %s6 = inlined_call_operand.vmem [shape: f32[1,2], index: 6, kind: input, shape index: {}]
  %s7 = inlined_call_operand.hbm [shape: f32[1,2], index: 7, kind: output, shape index: {}]
  %s8 = sld [smem:[#allocation0]]
  $region38: #{spec_model3_forward.3} parent=0
    _
  %s10 = ssub.s32 1, %s8
  %s11 = scalar_select 0, %s10, %s8
  $region1: #{spec_model3_forward.3} parent=0
    #allocation2 [shape = 'u8[512]{0}', space=vmem, size = 0x400, scoped, tag = 'output window, operand 0, single buffered']
    #allocation3 [shape = 's32[1]{0}', space=sflag, size = 0x4, scoped, tag = 'scoped memory for spec_model3_forward.3']
    %12 = vsyncpa [#allocation3], 0
    // Predicated region
    $region2: #{spec_model3_forward.3} parent=1 // pred_check
      _
    $region3: #{spec_model3_forward.3} parent=1 // pred_check_branch
      %14 = sbr.rel (0) target = $region5
    $region4: #{spec_model3_forward.3} parent=1 // pred_region
      _
    $region5: #{spec_model3_forward.3} parent=1 // pred_fallthru
      _
    // Predicated region
    $region6: #{spec_model3_forward.3} parent=1 // pred_check
      _
    $region7: #{spec_model3_forward.3} parent=1 // pred_check_branch
      %16 = sbr.rel (0) target = $region9
    $region8: #{spec_model3_forward.3} parent=1 // pred_region
      _
    $region9: #{spec_model3_forward.3} parent=1 // pred_fallthru
      _
    // Predicated region
    $region10: #{spec_model3_forward.3} parent=1 // pred_check
      _
    $region11: #{spec_model3_forward.3} parent=1 // pred_check_branch
      %18 = sbr.rel (0) target = $region13
    $region12: #{spec_model3_forward.3} parent=1 // pred_region
      _
    $region13: #{spec_model3_forward.3} parent=1 // pred_fallthru
      _
    // Predicated region
    $region14: #{spec_model3_forward.3} parent=1 // pred_check
      _
    $region15: #{spec_model3_forward.3} parent=1 // pred_check_branch
      %20 = sbr.rel (0) target = $region17
    $region16: #{spec_model3_forward.3} parent=1 // pred_region
      _
    $region17: #{spec_model3_forward.3} parent=1 // pred_fallthru
      _
    // Predicated region
    $region18: #{spec_model3_forward.3} parent=1 // pred_check
      _
    $region19: #{spec_model3_forward.3} parent=1 // pred_check_branch
      %22 = sbr.rel (0) target = $region21
    $region20: #{spec_model3_forward.3} parent=1 // pred_region
      _
    $region21: #{spec_model3_forward.3} parent=1 // pred_fallthru
      _
    // Predicated region
    $region22: #{spec_model3_forward.3} parent=1 // pred_check
      _
    $region23: #{spec_model3_forward.3} parent=1 // pred_check_branch
      %24 = sbr.rel (0) target = $region25
    $region24: #{spec_model3_forward.3} parent=1 // pred_region
      _
    $region25: #{spec_model3_forward.3} parent=1 // pred_fallthru
      _
    // Predicated region
    $region26: #{spec_model3_forward.3} parent=1 // pred_check
      _
    $region27: #{spec_model3_forward.3} parent=1 // pred_check_branch
      %26 = sbr.rel (0) target = $region29
    $region28: #{spec_model3_forward.3} parent=1 // pred_region
      _
    $region29: #{spec_model3_forward.3} parent=1 // pred_fallthru
      _
    %v28 = vld [vmem:[%s0] sm:$0xff]
    %v29 = vld [vmem:[%s0 + $0x8] sm:$0xff]
    %v30 = vld [vmem:[%s0 + $0x10] sm:$0xff]
    %v31 = vld [vmem:[%s0 + $0x18] sm:$0xff]
    %v32 = vld [vmem:[%s0 + $0x20] sm:$0xff]
    %v33 = vld [vmem:[%s0 + $0x28] sm:$0xff]
    %v34 = vld [vmem:[%s0 + $0x30] sm:$0xff]
    %v35 = vld [vmem:[%s0 + $0x38] sm:$0xff]
    %v36 = vld [vmem:[%s0 + $0x40] sm:$0xff]
    %v37 = vld [vmem:[%s0 + $0x48] sm:$0xff]
    %v38 = vld [vmem:[%s0 + $0x50] sm:$0xff]
    %v39 = vld [vmem:[%s0 + $0x58] sm:$0xff]
    %v40 = vld [vmem:[%s0 + $0x60] sm:$0xff]
    %v41 = vld [vmem:[%s0 + $0x68] sm:$0xff]
    %v42 = vld [vmem:[%s0 + $0x70] sm:$0xff]
    %v43 = vld [vmem:[%s0 + $0x78] sm:$0xff]
    %v44 = vld [vmem:[%s0 + $0x80] sm:$0xff]
    %v45 = vld [vmem:[%s0 + $0x88] sm:$0xff]
    %v46 = vld [vmem:[%s0 + $0x90] sm:$0xff]
    %v47 = vld [vmem:[%s0 + $0x98] sm:$0xff]
    %v48 = vld [vmem:[%s0 + $0xa0] sm:$0xff]
    %v49 = vld [vmem:[%s0 + $0xa8] sm:$0xff]
    %v50 = vld [vmem:[%s0 + $0xb0] sm:$0xff]
    %v51 = vld [vmem:[%s0 + $0xb8] sm:$0xff]
    %v52 = vld [vmem:[%s0 + $0xc0] sm:$0xff]
    %v53 = vld [vmem:[%s0 + $0xc8] sm:$0xff]
    %v54 = vld [vmem:[%s0 + $0xd0] sm:$0xff]
    %v55 = vld [vmem:[%s0 + $0xd8] sm:$0xff]
    %v56 = vld [vmem:[%s0 + $0xe0] sm:$0xff]
    %v57 = vld [vmem:[%s0 + $0xe8] sm:$0xff]
    %v58 = vld [vmem:[%s0 + $0xf0] sm:$0xff]
    %v59 = vld [vmem:[%s0 + $0xf8] sm:$0xff]
    %v60 = vld [vmem:[%s0 + $0x100] sm:$0xff]
    %v61 = vld [vmem:[%s0 + $0x108] sm:$0xff]
    %v62 = vld [vmem:[%s0 + $0x110] sm:$0xff]
    %v63 = vld [vmem:[%s0 + $0x118] sm:$0xff]
    %v64 = vld [vmem:[%s0 + $0x120] sm:$0xff]
    %v65 = vld [vmem:[%s0 + $0x128] sm:$0xff]
    %v66 = vld [vmem:[%s0 + $0x130] sm:$0xff]
    %v67 = vld [vmem:[%s0 + $0x138] sm:$0xff]
    %v68 = vld [vmem:[%s0 + $0x140] sm:$0xff]
    %v69 = vld [vmem:[%s0 + $0x148] sm:$0xff]
    %v70 = vld [vmem:[%s0 + $0x150] sm:$0xff]
    %v71 = vld [vmem:[%s0 + $0x158] sm:$0xff]
    %v72 = vld [vmem:[%s0 + $0x160] sm:$0xff]
    %v73 = vld [vmem:[%s0 + $0x168] sm:$0xff]
    %v74 = vld [vmem:[%s0 + $0x170] sm:$0xff]
    %v75 = vld [vmem:[%s0 + $0x178] sm:$0xff]
    %v76 = vld [vmem:[%s0 + $0x180] sm:$0xff]
    %v77 = vld [vmem:[%s0 + $0x188] sm:$0xff]
    %v78 = vld [vmem:[%s0 + $0x190] sm:$0xff]
    %v79 = vld [vmem:[%s0 + $0x198] sm:$0xff]
    %v80 = vld [vmem:[%s0 + $0x1a0] sm:$0xff]
    %v81 = vld [vmem:[%s0 + $0x1a8] sm:$0xff]
    %v82 = vld [vmem:[%s0 + $0x1b0] sm:$0xff]
    %v83 = vld [vmem:[%s0 + $0x1b8] sm:$0xff]
    %v84 = vld [vmem:[%s0 + $0x1c0] sm:$0xff]
    %v85 = vld [vmem:[%s0 + $0x1c8] sm:$0xff]
    %v86 = vld [vmem:[%s0 + $0x1d0] sm:$0xff]
    %v87 = vld [vmem:[%s0 + $0x1d8] sm:$0xff]
    %v88 = vld [vmem:[%s0 + $0x1e0] sm:$0xff]
    %v89 = vld [vmem:[%s0 + $0x1e8] sm:$0xff]
    %v90 = vld [vmem:[%s0 + $0x1f0] sm:$0xff]
    %v91 = vld [vmem:[%s0 + $0x1f8] sm:$0xff]
    %v92 = vld [vmem:[%s0 + $0x200] sm:$0xff]
    %v93 = vld [vmem:[%s0 + $0x208] sm:$0xff]
    %v94 = vld [vmem:[%s0 + $0x210] sm:$0xff]
    %v95 = vld [vmem:[%s0 + $0x218] sm:$0xff]
    %v96 = vld [vmem:[%s0 + $0x220] sm:$0xff]
    %v97 = vld [vmem:[%s0 + $0x228] sm:$0xff]
    %v98 = vld [vmem:[%s0 + $0x230] sm:$0xff]
    %v99 = vld [vmem:[%s0 + $0x238] sm:$0xff]
    %v100 = vld [vmem:[%s0 + $0x240] sm:$0xff]
    %v101 = vld [vmem:[%s0 + $0x248] sm:$0xff]
    %v102 = vld [vmem:[%s0 + $0x250] sm:$0xff]
    %v103 = vld [vmem:[%s0 + $0x258] sm:$0xff]
    %v104 = vld [vmem:[%s0 + $0x260] sm:$0xff]
    %v105 = vld [vmem:[%s0 + $0x268] sm:$0xff]
    %v106 = vld [vmem:[%s0 + $0x270] sm:$0xff]
    %v107 = vld [vmem:[%s0 + $0x278] sm:$0xff]
    %v108 = vld [vmem:[%s0 + $0x280] sm:$0xff]
    %v109 = vld [vmem:[%s0 + $0x288] sm:$0xff]
    %v110 = vld [vmem:[%s0 + $0x290] sm:$0xff]
    %v111 = vld [vmem:[%s0 + $0x298] sm:$0xff]
    %v112 = vld [vmem:[%s0 + $0x2a0] sm:$0xff]
    %v113 = vld [vmem:[%s0 + $0x2a8] sm:$0xff]
    %v114 = vld [vmem:[%s0 + $0x2b0] sm:$0xff]
    %v115 = vld [vmem:[%s0 + $0x2b8] sm:$0xff]
    %v116 = vld [vmem:[%s0 + $0x2c0] sm:$0xff]
    %v117 = vld [vmem:[%s0 + $0x2c8] sm:$0xff]
    %v118 = vld [vmem:[%s0 + $0x2d0] sm:$0xff]
    %v119 = vld [vmem:[%s0 + $0x2d8] sm:$0xff]
    %v120 = vld [vmem:[%s0 + $0x2e0] sm:$0xff]
    %v121 = vld [vmem:[%s0 + $0x2e8] sm:$0xff]
    %v122 = vld [vmem:[%s0 + $0x2f0] sm:$0xff]
    %v123 = vld [vmem:[%s0 + $0x2f8] sm:$0xff]
    %v124 = vld [vmem:[%s0 + $0x300] sm:$0xff]
    %v125 = vld [vmem:[%s0 + $0x308] sm:$0xff]
    %v126 = vld [vmem:[%s0 + $0x310] sm:$0xff]
    %v127 = vld [vmem:[%s0 + $0x318] sm:$0xff]
    %v128 = vld [vmem:[%s1] sm:$0xf]
    %v129 = vld [vmem:[%s1 + $0x4] sm:$0xf]
    %v130 = vld [vmem:[%s1 + $0x8] sm:$0xf]
    %v131 = vld [vmem:[%s1 + $0xc] sm:$0xf]
    %v132 = vld [vmem:[%s1 + $0x10] sm:$0xf]
    %v133 = vld [vmem:[%s1 + $0x14] sm:$0xf]
    %v134 = vld [vmem:[%s1 + $0x18] sm:$0xf]
    %v135 = vld [vmem:[%s1 + $0x1c] sm:$0xf]
    %v136 = vld [vmem:[%s1 + $0x20] sm:$0xf]
    %v137 = vld [vmem:[%s1 + $0x24] sm:$0xf]
    %v138 = vld [vmem:[%s1 + $0x28] sm:$0xf]
    %v139 = vld [vmem:[%s1 + $0x2c] sm:$0xf]
    %v140 = vld [vmem:[%s1 + $0x30] sm:$0xf]
    %v141 = vld [vmem:[%s1 + $0x34] sm:$0xf]
    %v142 = vld [vmem:[%s1 + $0x38] sm:$0xf]
    %v143 = vld [vmem:[%s1 + $0x3c] sm:$0xf]
    %v144 = vld [vmem:[%s1 + $0x40] sm:$0xf]
    %v145 = vld [vmem:[%s1 + $0x44] sm:$0xf]
    %v146 = vld [vmem:[%s1 + $0x48] sm:$0xf]
    %v147 = vld [vmem:[%s1 + $0x4c] sm:$0xf]
    %v148 = vld [vmem:[%s1 + $0x50] sm:$0xf]
    %v149 = vld [vmem:[%s1 + $0x54] sm:$0xf]
    %v150 = vld [vmem:[%s1 + $0x58] sm:$0xf]
    %v151 = vld [vmem:[%s1 + $0x5c] sm:$0xf]
    %v152 = vld [vmem:[%s1 + $0x60] sm:$0xf]
    %v153 = vld [vmem:[%s1 + $0x64] sm:$0xf]
    %v154 = vld [vmem:[%s1 + $0x68] sm:$0xf]
    %v155 = vld [vmem:[%s1 + $0x6c] sm:$0xf]
    %v156 = vld [vmem:[%s1 + $0x70] sm:$0xf]
    %v157 = vld [vmem:[%s1 + $0x74] sm:$0xf]
    %v158 = vld [vmem:[%s1 + $0x78] sm:$0xf]
    %v159 = vld [vmem:[%s1 + $0x7c] sm:$0xf]
    %v160 = vld [vmem:[%s1 + $0x80] sm:$0xf]
    %v161 = vld [vmem:[%s1 + $0x84] sm:$0xf]
    %v162 = vld [vmem:[%s1 + $0x88] sm:$0xf]
    %v163 = vld [vmem:[%s1 + $0x8c] sm:$0xf]
    %v164 = vld [vmem:[%s1 + $0x90] sm:$0xf]
    %v165 = vld [vmem:[%s1 + $0x94] sm:$0xf]
    %v166 = vld [vmem:[%s1 + $0x98] sm:$0xf]
    %v167 = vld [vmem:[%s1 + $0x9c] sm:$0xf]
    %v168 = vld [vmem:[%s1 + $0xa0] sm:$0xf]
    %v169 = vld [vmem:[%s1 + $0xa4] sm:$0xf]
    %v170 = vld [vmem:[%s1 + $0xa8] sm:$0xf]
    %v171 = vld [vmem:[%s1 + $0xac] sm:$0xf]
    %v172 = vld [vmem:[%s1 + $0xb0] sm:$0xf]
    %v173 = vld [vmem:[%s1 + $0xb4] sm:$0xf]
    %v174 = vld [vmem:[%s1 + $0xb8] sm:$0xf]
    %v175 = vld [vmem:[%s1 + $0xbc] sm:$0xf]
    %v176 = vld [vmem:[%s1 + $0xc0] sm:$0xf]
    %v177 = vld [vmem:[%s1 + $0xc4] sm:$0xf]
    %v178 = vld [vmem:[%s1 + $0xc8] sm:$0xf]
    %v179 = vld [vmem:[%s1 + $0xcc] sm:$0xf]
    %v180 = vld [vmem:[%s1 + $0xd0] sm:$0xf]
    %v181 = vld [vmem:[%s1 + $0xd4] sm:$0xf]
    %v182 = vld [vmem:[%s1 + $0xd8] sm:$0xf]
    %v183 = vld [vmem:[%s1 + $0xdc] sm:$0xf]
    %v184 = vld [vmem:[%s1 + $0xe0] sm:$0xf]
    %v185 = vld [vmem:[%s1 + $0xe4] sm:$0xf]
    %v186 = vld [vmem:[%s1 + $0xe8] sm:$0xf]
    %v187 = vld [vmem:[%s1 + $0xec] sm:$0xf]
    %v188 = vld [vmem:[%s1 + $0xf0] sm:$0xf]
    %v189 = vld [vmem:[%s1 + $0xf4] sm:$0xf]
    %v190 = vld [vmem:[%s1 + $0xf8] sm:$0xf]
    %v191 = vld [vmem:[%s1 + $0xfc] sm:$0xf]
    %v192 = vld [vmem:[%s1 + $0x100] sm:$0xf]
    %v193 = vld [vmem:[%s1 + $0x104] sm:$0xf]
    %v194 = vld [vmem:[%s1 + $0x108] sm:$0xf]
    %v195 = vld [vmem:[%s1 + $0x10c] sm:$0xf]
    %v196 = vld [vmem:[%s1 + $0x110] sm:$0xf]
    %v197 = vld [vmem:[%s1 + $0x114] sm:$0xf]
    %v198 = vld [vmem:[%s1 + $0x118] sm:$0xf]
    %v199 = vld [vmem:[%s1 + $0x11c] sm:$0xf]
    %v200 = vld [vmem:[%s1 + $0x120] sm:$0xf]
    %v201 = vld [vmem:[%s1 + $0x124] sm:$0xf]
    %v202 = vld [vmem:[%s1 + $0x128] sm:$0xf]
    %v203 = vld [vmem:[%s1 + $0x12c] sm:$0xf]
    %v204 = vld [vmem:[%s1 + $0x130] sm:$0xf]
    %v205 = vld [vmem:[%s1 + $0x134] sm:$0xf]
    %v206 = vld [vmem:[%s1 + $0x138] sm:$0xf]
    %v207 = vld [vmem:[%s1 + $0x13c] sm:$0xf]
    %v208 = vld [vmem:[%s1 + $0x140] sm:$0xf]
    %v209 = vld [vmem:[%s1 + $0x144] sm:$0xf]
    %v210 = vld [vmem:[%s1 + $0x148] sm:$0xf]
    %v211 = vld [vmem:[%s1 + $0x14c] sm:$0xf]
    %v212 = vld [vmem:[%s1 + $0x150] sm:$0xf]
    %v213 = vld [vmem:[%s1 + $0x154] sm:$0xf]
    %v214 = vld [vmem:[%s1 + $0x158] sm:$0xf]
    %v215 = vld [vmem:[%s1 + $0x15c] sm:$0xf]
    %v216 = vld [vmem:[%s1 + $0x160] sm:$0xf]
    %v217 = vld [vmem:[%s1 + $0x164] sm:$0xf]
    %v218 = vld [vmem:[%s1 + $0x168] sm:$0xf]
    %v219 = vld [vmem:[%s1 + $0x16c] sm:$0xf]
    %v220 = vld [vmem:[%s1 + $0x170] sm:$0xf]
    %v221 = vld [vmem:[%s1 + $0x174] sm:$0xf]
    %v222 = vld [vmem:[%s1 + $0x178] sm:$0xf]
    %v223 = vld [vmem:[%s1 + $0x17c] sm:$0xf]
    %v224 = vld [vmem:[%s1 + $0x180] sm:$0xf]
    %v225 = vld [vmem:[%s1 + $0x184] sm:$0xf]
    %v226 = vld [vmem:[%s1 + $0x188] sm:$0xf]
    %v227 = vld [vmem:[%s1 + $0x18c] sm:$0xf]
    %v228 = vld [vmem:[%s1 + $0x190] sm:$0xf]
    %v229 = vld [vmem:[%s1 + $0x194] sm:$0xf]
    %v230 = vld [vmem:[%s1 + $0x198] sm:$0xf]
    %v231 = vld [vmem:[%s1 + $0x19c] sm:$0xf]
    %v232 = vld [vmem:[%s1 + $0x1a0] sm:$0xf]
    %v233 = vld [vmem:[%s1 + $0x1a4] sm:$0xf]
    %v234 = vld [vmem:[%s1 + $0x1a8] sm:$0xf]
    %v235 = vld [vmem:[%s1 + $0x1ac] sm:$0xf]
    %v236 = vld [vmem:[%s1 + $0x1b0] sm:$0xf]
    %v237 = vld [vmem:[%s1 + $0x1b4] sm:$0xf]
    %v238 = vld [vmem:[%s1 + $0x1b8] sm:$0xf]
    %v239 = vld [vmem:[%s1 + $0x1bc] sm:$0xf]
    %v240 = vld [vmem:[%s1 + $0x1c0] sm:$0xf]
    %v241 = vld [vmem:[%s1 + $0x1c4] sm:$0xf]
    %v242 = vld [vmem:[%s1 + $0x1c8] sm:$0xf]
    %v243 = vld [vmem:[%s1 + $0x1cc] sm:$0xf]
    %v244 = vld [vmem:[%s1 + $0x1d0] sm:$0xf]
    %v245 = vld [vmem:[%s1 + $0x1d4] sm:$0xf]
    %v246 = vld [vmem:[%s1 + $0x1d8] sm:$0xf]
    %v247 = vld [vmem:[%s1 + $0x1dc] sm:$0xf]
    %v248 = vld [vmem:[%s1 + $0x1e0] sm:$0xf]
    %v249 = vld [vmem:[%s1 + $0x1e4] sm:$0xf]
    %v250 = vld [vmem:[%s1 + $0x1e8] sm:$0xf]
    %v251 = vld [vmem:[%s1 + $0x1ec] sm:$0xf]
    %v252 = vld [vmem:[%s1 + $0x1f0] sm:$0xf]
    %v253 = vld [vmem:[%s1 + $0x1f4] sm:$0xf]
    %v254 = vld [vmem:[%s1 + $0x1f8] sm:$0xf]
    %v255 = vld [vmem:[%s1 + $0x1fc] sm:$0xf]
    %v256 = vld [vmem:[%s1 + $0x200] sm:$0xf]
    %v257 = vld [vmem:[%s1 + $0x204] sm:$0xf]
    %v258 = vld [vmem:[%s1 + $0x208] sm:$0xf]
    %v259 = vld [vmem:[%s1 + $0x20c] sm:$0xf]
    %v260 = vld [vmem:[%s1 + $0x210] sm:$0xf]
    %v261 = vld [vmem:[%s1 + $0x214] sm:$0xf]
    %v262 = vld [vmem:[%s1 + $0x218] sm:$0xf]
    %v263 = vld [vmem:[%s1 + $0x21c] sm:$0xf]
    %v264 = vld [vmem:[%s1 + $0x220] sm:$0xf]
    %v265 = vld [vmem:[%s1 + $0x224] sm:$0xf]
    %v266 = vld [vmem:[%s1 + $0x228] sm:$0xf]
    %v267 = vld [vmem:[%s1 + $0x22c] sm:$0xf]
    %v268 = vld [vmem:[%s1 + $0x230] sm:$0xf]
    %v269 = vld [vmem:[%s1 + $0x234] sm:$0xf]
    %v270 = vld [vmem:[%s1 + $0x238] sm:$0xf]
    %v271 = vld [vmem:[%s1 + $0x23c] sm:$0xf]
    %v272 = vld [vmem:[%s1 + $0x240] sm:$0xf]
    %v273 = vld [vmem:[%s1 + $0x244] sm:$0xf]
    %v274 = vld [vmem:[%s1 + $0x248] sm:$0xf]
    %v275 = vld [vmem:[%s1 + $0x24c] sm:$0xf]
    %v276 = vld [vmem:[%s1 + $0x250] sm:$0xf]
    %v277 = vld [vmem:[%s1 + $0x254] sm:$0xf]
    %v278 = vld [vmem:[%s1 + $0x258] sm:$0xf]
    %v279 = vld [vmem:[%s1 + $0x25c] sm:$0xf]
    %v280 = vld [vmem:[%s1 + $0x260] sm:$0xf]
    %v281 = vld [vmem:[%s1 + $0x264] sm:$0xf]
    %v282 = vld [vmem:[%s1 + $0x268] sm:$0xf]
    %v283 = vld [vmem:[%s1 + $0x26c] sm:$0xf]
    %v284 = vld [vmem:[%s1 + $0x270] sm:$0xf]
    %v285 = vld [vmem:[%s1 + $0x274] sm:$0xf]
    %v286 = vld [vmem:[%s1 + $0x278] sm:$0xf]
    %v287 = vld [vmem:[%s1 + $0x27c] sm:$0xf]
    %v288 = vld [vmem:[%s1 + $0x280] sm:$0xf]
    %v289 = vld [vmem:[%s1 + $0x284] sm:$0xf]
    %v290 = vld [vmem:[%s1 + $0x288] sm:$0xf]
    %v291 = vld [vmem:[%s1 + $0x28c] sm:$0xf]
    %v292 = vld [vmem:[%s1 + $0x290] sm:$0xf]
    %v293 = vld [vmem:[%s1 + $0x294] sm:$0xf]
    %v294 = vld [vmem:[%s1 + $0x298] sm:$0xf]
    %v295 = vld [vmem:[%s1 + $0x29c] sm:$0xf]
    %v296 = vld [vmem:[%s1 + $0x2a0] sm:$0xf]
    %v297 = vld [vmem:[%s1 + $0x2a4] sm:$0xf]
    %v298 = vld [vmem:[%s1 + $0x2a8] sm:$0xf]
    %v299 = vld [vmem:[%s1 + $0x2ac] sm:$0xf]
    %v300 = vld [vmem:[%s1 + $0x2b0] sm:$0xf]
    %v301 = vld [vmem:[%s1 + $0x2b4] sm:$0xf]
    %v302 = vld [vmem:[%s1 + $0x2b8] sm:$0xf]
    %v303 = vld [vmem:[%s1 + $0x2bc] sm:$0xf]
    %v304 = vld [vmem:[%s1 + $0x2c0] sm:$0xf]
    %v305 = vld [vmem:[%s1 + $0x2c4] sm:$0xf]
    %v306 = vld [vmem:[%s1 + $0x2c8] sm:$0xf]
    %v307 = vld [vmem:[%s1 + $0x2cc] sm:$0xf]
    %v308 = vld [vmem:[%s1 + $0x2d0] sm:$0xf]
    %v309 = vld [vmem:[%s1 + $0x2d4] sm:$0xf]
    %v310 = vld [vmem:[%s1 + $0x2d8] sm:$0xf]
    %v311 = vld [vmem:[%s1 + $0x2dc] sm:$0xf]
    %v312 = vld [vmem:[%s1 + $0x2e0] sm:$0xf]
    %v313 = vld [vmem:[%s1 + $0x2e4] sm:$0xf]
    %v314 = vld [vmem:[%s1 + $0x2e8] sm:$0xf]
    %v315 = vld [vmem:[%s1 + $0x2ec] sm:$0xf]
    %v316 = vld [vmem:[%s1 + $0x2f0] sm:$0xf]
    %v317 = vld [vmem:[%s1 + $0x2f4] sm:$0xf]
    %v318 = vld [vmem:[%s1 + $0x2f8] sm:$0xf]
    %v319 = vld [vmem:[%s1 + $0x2fc] sm:$0xf]
    %v320 = vld [vmem:[%s1 + $0x300] sm:$0xf]
    %v321 = vld [vmem:[%s1 + $0x304] sm:$0xf]
    %v322 = vld [vmem:[%s1 + $0x308] sm:$0xf]
    %v323 = vld [vmem:[%s1 + $0x30c] sm:$0xf]
    %v324 = vld [vmem:[%s1 + $0x310] sm:$0xf]
    %v325 = vld [vmem:[%s1 + $0x314] sm:$0xf]
    %v326 = vld [vmem:[%s1 + $0x318] sm:$0xf]
    %v327 = vld [vmem:[%s1 + $0x31c] sm:$0xf]
    %v328 = vld [vmem:[%s1 + $0x320] sm:$0xf]
    %v329 = vld [vmem:[%s1 + $0x324] sm:$0xf]
    %v330 = vld [vmem:[%s1 + $0x328] sm:$0xf]
    %v331 = vld [vmem:[%s1 + $0x32c] sm:$0xf]
    %v332 = vld [vmem:[%s1 + $0x330] sm:$0xf]
    %v333 = vld [vmem:[%s1 + $0x334] sm:$0xf]
    %v334 = vld [vmem:[%s1 + $0x338] sm:$0xf]
    %v335 = vld [vmem:[%s1 + $0x33c] sm:$0xf]
    %v336 = vld [vmem:[%s1 + $0x340] sm:$0xf]
    %v337 = vld [vmem:[%s1 + $0x344] sm:$0xf]
    %v338 = vld [vmem:[%s1 + $0x348] sm:$0xf]
    %v339 = vld [vmem:[%s1 + $0x34c] sm:$0xf]
    %v340 = vld [vmem:[%s1 + $0x350] sm:$0xf]
    %v341 = vld [vmem:[%s1 + $0x354] sm:$0xf]
    %v342 = vld [vmem:[%s1 + $0x358] sm:$0xf]
    %v343 = vld [vmem:[%s1 + $0x35c] sm:$0xf]
    %v344 = vld [vmem:[%s1 + $0x360] sm:$0xf]
    %v345 = vld [vmem:[%s1 + $0x364] sm:$0xf]
    %v346 = vld [vmem:[%s1 + $0x368] sm:$0xf]
    %v347 = vld [vmem:[%s1 + $0x36c] sm:$0xf]
    %v348 = vld [vmem:[%s1 + $0x370] sm:$0xf]
    %v349 = vld [vmem:[%s1 + $0x374] sm:$0xf]
    %v350 = vld [vmem:[%s1 + $0x378] sm:$0xf]
    %v351 = vld [vmem:[%s1 + $0x37c] sm:$0xf]
    %v352 = vld [vmem:[%s1 + $0x380] sm:$0xf]
    %v353 = vld [vmem:[%s1 + $0x384] sm:$0xf]
    %v354 = vld [vmem:[%s1 + $0x388] sm:$0xf]
    %v355 = vld [vmem:[%s1 + $0x38c] sm:$0xf]
    %v356 = vld [vmem:[%s1 + $0x390] sm:$0xf]
    %v357 = vld [vmem:[%s1 + $0x394] sm:$0xf]
    %v358 = vld [vmem:[%s1 + $0x398] sm:$0xf]
    %v359 = vld [vmem:[%s1 + $0x39c] sm:$0xf]
    %v360 = vld [vmem:[%s1 + $0x3a0] sm:$0xf]
    %v361 = vld [vmem:[%s1 + $0x3a4] sm:$0xf]
    %v362 = vld [vmem:[%s1 + $0x3a8] sm:$0xf]
    %v363 = vld [vmem:[%s1 + $0x3ac] sm:$0xf]
    %v364 = vld [vmem:[%s1 + $0x3b0] sm:$0xf]
    %v365 = vld [vmem:[%s1 + $0x3b4] sm:$0xf]
    %v366 = vld [vmem:[%s1 + $0x3b8] sm:$0xf]
    %v367 = vld [vmem:[%s1 + $0x3bc] sm:$0xf]
    %v368 = vld [vmem:[%s1 + $0x3c0] sm:$0xf]
    %v369 = vld [vmem:[%s1 + $0x3c4] sm:$0xf]
    %v370 = vld [vmem:[%s1 + $0x3c8] sm:$0xf]
    %v371 = vld [vmem:[%s1 + $0x3cc] sm:$0xf]
    %v372 = vld [vmem:[%s1 + $0x3d0] sm:$0xf]
    %v373 = vld [vmem:[%s1 + $0x3d4] sm:$0xf]
    %v374 = vld [vmem:[%s1 + $0x3d8] sm:$0xf]
    %v375 = vld [vmem:[%s1 + $0x3dc] sm:$0xf]
    %v376 = vld [vmem:[%s1 + $0x3e0] sm:$0xf]
    %v377 = vld [vmem:[%s1 + $0x3e4] sm:$0xf]
    %v378 = vld [vmem:[%s1 + $0x3e8] sm:$0xf]
    %v379 = vld [vmem:[%s1 + $0x3ec] sm:$0xf]
    %v380 = vld [vmem:[%s1 + $0x3f0] sm:$0xf]
    %v381 = vld [vmem:[%s1 + $0x3f4] sm:$0xf]
    %v382 = vld [vmem:[%s1 + $0x3f8] sm:$0xf]
    %v383 = vld [vmem:[%s1 + $0x3fc] sm:$0xf]
    %v384 = vld [vmem:[%s1 + $0x400] sm:$0xf]
    %v385 = vld [vmem:[%s1 + $0x404] sm:$0xf]
    %v386 = vld [vmem:[%s1 + $0x408] sm:$0xf]
    %v387 = vld [vmem:[%s1 + $0x40c] sm:$0xf]
    %v388 = vld [vmem:[%s1 + $0x410] sm:$0xf]
    %v389 = vld [vmem:[%s1 + $0x414] sm:$0xf]
    %v390 = vld [vmem:[%s1 + $0x418] sm:$0xf]
    %v391 = vld [vmem:[%s1 + $0x41c] sm:$0xf]
    %v392 = vld [vmem:[%s1 + $0x420] sm:$0xf]
    %v393 = vld [vmem:[%s1 + $0x424] sm:$0xf]
    %v394 = vld [vmem:[%s1 + $0x428] sm:$0xf]
    %v395 = vld [vmem:[%s1 + $0x42c] sm:$0xf]
    %v396 = vld [vmem:[%s1 + $0x430] sm:$0xf]
    %v397 = vld [vmem:[%s1 + $0x434] sm:$0xf]
    %v398 = vld [vmem:[%s1 + $0x438] sm:$0xf]
    %v399 = vld [vmem:[%s1 + $0x43c] sm:$0xf]
    %v400 = vld [vmem:[%s1 + $0x440] sm:$0xf]
    %v401 = vld [vmem:[%s1 + $0x444] sm:$0xf]
    %v402 = vld [vmem:[%s1 + $0x448] sm:$0xf]
    %v403 = vld [vmem:[%s1 + $0x44c] sm:$0xf]
    %v404 = vld [vmem:[%s1 + $0x450] sm:$0xf]
    %v405 = vld [vmem:[%s1 + $0x454] sm:$0xf]
    %v406 = vld [vmem:[%s1 + $0x458] sm:$0xf]
    %v407 = vld [vmem:[%s1 + $0x45c] sm:$0xf]
    %v408 = vld [vmem:[%s1 + $0x460] sm:$0xf]
    %v409 = vld [vmem:[%s1 + $0x464] sm:$0xf]
    %v410 = vld [vmem:[%s1 + $0x468] sm:$0xf]
    %v411 = vld [vmem:[%s1 + $0x46c] sm:$0xf]
    %v412 = vld [vmem:[%s1 + $0x470] sm:$0xf]
    %v413 = vld [vmem:[%s1 + $0x474] sm:$0xf]
    %v414 = vld [vmem:[%s1 + $0x478] sm:$0xf]
    %v415 = vld [vmem:[%s1 + $0x47c] sm:$0xf]
    %v416 = vld [vmem:[%s1 + $0x480] sm:$0xf]
    %v417 = vld [vmem:[%s1 + $0x484] sm:$0xf]
    %v418 = vld [vmem:[%s1 + $0x488] sm:$0xf]
    %v419 = vld [vmem:[%s1 + $0x48c] sm:$0xf]
    %v420 = vld [vmem:[%s1 + $0x490] sm:$0xf]
    %v421 = vld [vmem:[%s1 + $0x494] sm:$0xf]
    %v422 = vld [vmem:[%s1 + $0x498] sm:$0xf]
    %v423 = vld [vmem:[%s1 + $0x49c] sm:$0xf]
    %v424 = vld [vmem:[%s1 + $0x4a0] sm:$0xf]
    %v425 = vld [vmem:[%s1 + $0x4a4] sm:$0xf]
    %v426 = vld [vmem:[%s1 + $0x4a8] sm:$0xf]
    %v427 = vld [vmem:[%s1 + $0x4ac] sm:$0xf]
    %v428 = vld [vmem:[%s1 + $0x4b0] sm:$0xf]
    %v429 = vld [vmem:[%s1 + $0x4b4] sm:$0xf]
    %v430 = vld [vmem:[%s1 + $0x4b8] sm:$0xf]
    %v431 = vld [vmem:[%s1 + $0x4bc] sm:$0xf]
    %v432 = vld [vmem:[%s1 + $0x4c0] sm:$0xf]
    %v433 = vld [vmem:[%s1 + $0x4c4] sm:$0xf]
    %v434 = vld [vmem:[%s1 + $0x4c8] sm:$0xf]
    %v435 = vld [vmem:[%s1 + $0x4cc] sm:$0xf]
    %v436 = vld [vmem:[%s1 + $0x4d0] sm:$0xf]
    %v437 = vld [vmem:[%s1 + $0x4d4] sm:$0xf]
    %v438 = vld [vmem:[%s1 + $0x4d8] sm:$0xf]
    %v439 = vld [vmem:[%s1 + $0x4dc] sm:$0xf]
    %v440 = vld [vmem:[%s1 + $0x4e0] sm:$0xf]
    %v441 = vld [vmem:[%s1 + $0x4e4] sm:$0xf]
    %v442 = vld [vmem:[%s1 + $0x4e8] sm:$0xf]
    %v443 = vld [vmem:[%s1 + $0x4ec] sm:$0xf]
    %v444 = vld [vmem:[%s1 + $0x4f0] sm:$0xf]
    %v445 = vld [vmem:[%s1 + $0x4f4] sm:$0xf]
    %v446 = vld [vmem:[%s1 + $0x4f8] sm:$0xf]
    %v447 = vld [vmem:[%s1 + $0x4fc] sm:$0xf]
    %v448 = vld [vmem:[%s1 + $0x500] sm:$0xf]
    %v449 = vld [vmem:[%s1 + $0x504] sm:$0xf]
    %v450 = vld [vmem:[%s1 + $0x508] sm:$0xf]
    %v451 = vld [vmem:[%s1 + $0x50c] sm:$0xf]
    %v452 = vld [vmem:[%s1 + $0x510] sm:$0xf]
    %v453 = vld [vmem:[%s1 + $0x514] sm:$0xf]
    %v454 = vld [vmem:[%s1 + $0x518] sm:$0xf]
    %v455 = vld [vmem:[%s1 + $0x51c] sm:$0xf]
    %v456 = vld [vmem:[%s1 + $0x520] sm:$0xf]
    %v457 = vld [vmem:[%s1 + $0x524] sm:$0xf]
    %v458 = vld [vmem:[%s1 + $0x528] sm:$0xf]
    %v459 = vld [vmem:[%s1 + $0x52c] sm:$0xf]
    %v460 = vld [vmem:[%s1 + $0x530] sm:$0xf]
    %v461 = vld [vmem:[%s1 + $0x534] sm:$0xf]
    %v462 = vld [vmem:[%s1 + $0x538] sm:$0xf]
    %v463 = vld [vmem:[%s1 + $0x53c] sm:$0xf]
    %v464 = vld [vmem:[%s1 + $0x540] sm:$0xf]
    %v465 = vld [vmem:[%s1 + $0x544] sm:$0xf]
    %v466 = vld [vmem:[%s1 + $0x548] sm:$0xf]
    %v467 = vld [vmem:[%s1 + $0x54c] sm:$0xf]
    %v468 = vld [vmem:[%s1 + $0x550] sm:$0xf]
    %v469 = vld [vmem:[%s1 + $0x554] sm:$0xf]
    %v470 = vld [vmem:[%s1 + $0x558] sm:$0xf]
    %v471 = vld [vmem:[%s1 + $0x55c] sm:$0xf]
    %v472 = vld [vmem:[%s1 + $0x560] sm:$0xf]
    %v473 = vld [vmem:[%s1 + $0x564] sm:$0xf]
    %v474 = vld [vmem:[%s1 + $0x568] sm:$0xf]
    %v475 = vld [vmem:[%s1 + $0x56c] sm:$0xf]
    %v476 = vld [vmem:[%s1 + $0x570] sm:$0xf]
    %v477 = vld [vmem:[%s1 + $0x574] sm:$0xf]
    %v478 = vld [vmem:[%s1 + $0x578] sm:$0xf]
    %v479 = vld [vmem:[%s1 + $0x57c] sm:$0xf]
    %v480 = vld [vmem:[%s1 + $0x580] sm:$0xf]
    %v481 = vld [vmem:[%s1 + $0x584] sm:$0xf]
    %v482 = vld [vmem:[%s1 + $0x588] sm:$0xf]
    %v483 = vld [vmem:[%s1 + $0x58c] sm:$0xf]
    %v484 = vld [vmem:[%s1 + $0x590] sm:$0xf]
    %v485 = vld [vmem:[%s1 + $0x594] sm:$0xf]
    %v486 = vld [vmem:[%s1 + $0x598] sm:$0xf]
    %v487 = vld [vmem:[%s1 + $0x59c] sm:$0xf]
    %v488 = vld [vmem:[%s1 + $0x5a0] sm:$0xf]
    %v489 = vld [vmem:[%s1 + $0x5a4] sm:$0xf]
    %v490 = vld [vmem:[%s1 + $0x5a8] sm:$0xf]
    %v491 = vld [vmem:[%s1 + $0x5ac] sm:$0xf]
    %v492 = vld [vmem:[%s1 + $0x5b0] sm:$0xf]
    %v493 = vld [vmem:[%s1 + $0x5b4] sm:$0xf]
    %v494 = vld [vmem:[%s1 + $0x5b8] sm:$0xf]
    %v495 = vld [vmem:[%s1 + $0x5bc] sm:$0xf]
    %v496 = vld [vmem:[%s1 + $0x5c0] sm:$0xf]
    %v497 = vld [vmem:[%s1 + $0x5c4] sm:$0xf]
    %v498 = vld [vmem:[%s1 + $0x5c8] sm:$0xf]
    %v499 = vld [vmem:[%s1 + $0x5cc] sm:$0xf]
    %v500 = vld [vmem:[%s1 + $0x5d0] sm:$0xf]
    %v501 = vld [vmem:[%s1 + $0x5d4] sm:$0xf]
    %v502 = vld [vmem:[%s1 + $0x5d8] sm:$0xf]
    %v503 = vld [vmem:[%s1 + $0x5dc] sm:$0xf]
    %v504 = vld [vmem:[%s1 + $0x5e0] sm:$0xf]
    %v505 = vld [vmem:[%s1 + $0x5e4] sm:$0xf]
    %v506 = vld [vmem:[%s1 + $0x5e8] sm:$0xf]
    %v507 = vld [vmem:[%s1 + $0x5ec] sm:$0xf]
    %v508 = vld [vmem:[%s1 + $0x5f0] sm:$0xf]
    %v509 = vld [vmem:[%s1 + $0x5f4] sm:$0xf]
    %v510 = vld [vmem:[%s1 + $0x5f8] sm:$0xf]
    %v511 = vld [vmem:[%s1 + $0x5fc] sm:$0xf]
    %v512 = vld [vmem:[%s1 + $0x600] sm:$0xf]
    %v513 = vld [vmem:[%s1 + $0x604] sm:$0xf]
    %v514 = vld [vmem:[%s1 + $0x608] sm:$0xf]
    %v515 = vld [vmem:[%s1 + $0x60c] sm:$0xf]
    %v516 = vld [vmem:[%s1 + $0x610] sm:$0xf]
    %v517 = vld [vmem:[%s1 + $0x614] sm:$0xf]
    %v518 = vld [vmem:[%s1 + $0x618] sm:$0xf]
    %v519 = vld [vmem:[%s1 + $0x61c] sm:$0xf]
    %v520 = vld [vmem:[%s1 + $0x620] sm:$0xf]
    %v521 = vld [vmem:[%s1 + $0x624] sm:$0xf]
    %v522 = vld [vmem:[%s1 + $0x628] sm:$0xf]
    %v523 = vld [vmem:[%s1 + $0x62c] sm:$0xf]
    %v524 = vld [vmem:[%s1 + $0x630] sm:$0xf]
    %v525 = vld [vmem:[%s1 + $0x634] sm:$0xf]
    %v526 = vld [vmem:[%s1 + $0x638] sm:$0xf]
    %v527 = vld [vmem:[%s1 + $0x63c] sm:$0xf]
    %v528 = vld [vmem:[%s1 + $0x640] sm:$0xf]
    %v529 = vld [vmem:[%s1 + $0x644] sm:$0xf]
    %v530 = vld [vmem:[%s1 + $0x648] sm:$0xf]
    %v531 = vld [vmem:[%s1 + $0x64c] sm:$0xf]
    %v532 = vld [vmem:[%s1 + $0x650] sm:$0xf]
    %v533 = vld [vmem:[%s1 + $0x654] sm:$0xf]
    %v534 = vld [vmem:[%s1 + $0x658] sm:$0xf]
    %v535 = vld [vmem:[%s1 + $0x65c] sm:$0xf]
    %v536 = vld [vmem:[%s1 + $0x660] sm:$0xf]
    %v537 = vld [vmem:[%s1 + $0x664] sm:$0xf]
    %v538 = vld [vmem:[%s1 + $0x668] sm:$0xf]
    %v539 = vld [vmem:[%s1 + $0x66c] sm:$0xf]
    %v540 = vld [vmem:[%s1 + $0x670] sm:$0xf]
    %v541 = vld [vmem:[%s1 + $0x674] sm:$0xf]
    %v542 = vld [vmem:[%s1 + $0x678] sm:$0xf]
    %v543 = vld [vmem:[%s1 + $0x67c] sm:$0xf]
    %v544 = vld [vmem:[%s1 + $0x680] sm:$0xf]
    %v545 = vld [vmem:[%s1 + $0x684] sm:$0xf]
    %v546 = vld [vmem:[%s1 + $0x688] sm:$0xf]
    %v547 = vld [vmem:[%s1 + $0x68c] sm:$0xf]
    %v548 = vld [vmem:[%s1 + $0x690] sm:$0xf]
    %v549 = vld [vmem:[%s1 + $0x694] sm:$0xf]
    %v550 = vld [vmem:[%s1 + $0x698] sm:$0xf]
    %v551 = vld [vmem:[%s1 + $0x69c] sm:$0xf]
    %v552 = vld [vmem:[%s1 + $0x6a0] sm:$0xf]
    %v553 = vld [vmem:[%s1 + $0x6a4] sm:$0xf]
    %v554 = vld [vmem:[%s1 + $0x6a8] sm:$0xf]
    %v555 = vld [vmem:[%s1 + $0x6ac] sm:$0xf]
    %v556 = vld [vmem:[%s1 + $0x6b0] sm:$0xf]
    %v557 = vld [vmem:[%s1 + $0x6b4] sm:$0xf]
    %v558 = vld [vmem:[%s1 + $0x6b8] sm:$0xf]
    %v559 = vld [vmem:[%s1 + $0x6bc] sm:$0xf]
    %v560 = vld [vmem:[%s1 + $0x6c0] sm:$0xf]
    %v561 = vld [vmem:[%s1 + $0x6c4] sm:$0xf]
    %v562 = vld [vmem:[%s1 + $0x6c8] sm:$0xf]
    %v563 = vld [vmem:[%s1 + $0x6cc] sm:$0xf]
    %v564 = vld [vmem:[%s1 + $0x6d0] sm:$0xf]
    %v565 = vld [vmem:[%s1 + $0x6d4] sm:$0xf]
    %v566 = vld [vmem:[%s1 + $0x6d8] sm:$0xf]
    %v567 = vld [vmem:[%s1 + $0x6dc] sm:$0xf]
    %v568 = vld [vmem:[%s1 + $0x6e0] sm:$0xf]
    %v569 = vld [vmem:[%s1 + $0x6e4] sm:$0xf]
    %v570 = vld [vmem:[%s1 + $0x6e8] sm:$0xf]
    %v571 = vld [vmem:[%s1 + $0x6ec] sm:$0xf]
    %v572 = vld [vmem:[%s1 + $0x6f0] sm:$0xf]
    %v573 = vld [vmem:[%s1 + $0x6f4] sm:$0xf]
    %v574 = vld [vmem:[%s1 + $0x6f8] sm:$0xf]
    %v575 = vld [vmem:[%s1 + $0x6fc] sm:$0xf]
    %v576 = vld [vmem:[%s1 + $0x700] sm:$0xf]
    %v577 = vld [vmem:[%s1 + $0x704] sm:$0xf]
    %v578 = vld [vmem:[%s1 + $0x708] sm:$0xf]
    %v579 = vld [vmem:[%s1 + $0x70c] sm:$0xf]
    %v580 = vld [vmem:[%s1 + $0x710] sm:$0xf]
    %v581 = vld [vmem:[%s1 + $0x714] sm:$0xf]
    %v582 = vld [vmem:[%s1 + $0x718] sm:$0xf]
    %v583 = vld [vmem:[%s1 + $0x71c] sm:$0xf]
    %v584 = vld [vmem:[%s1 + $0x720] sm:$0xf]
    %v585 = vld [vmem:[%s1 + $0x724] sm:$0xf]
    %v586 = vld [vmem:[%s1 + $0x728] sm:$0xf]
    %v587 = vld [vmem:[%s1 + $0x72c] sm:$0xf]
    %v588 = vld [vmem:[%s1 + $0x730] sm:$0xf]
    %v589 = vld [vmem:[%s1 + $0x734] sm:$0xf]
    %v590 = vld [vmem:[%s1 + $0x738] sm:$0xf]
    %v591 = vld [vmem:[%s1 + $0x73c] sm:$0xf]
    %v592 = vld [vmem:[%s1 + $0x740] sm:$0xf]
    %v593 = vld [vmem:[%s1 + $0x744] sm:$0xf]
    %v594 = vld [vmem:[%s1 + $0x748] sm:$0xf]
    %v595 = vld [vmem:[%s1 + $0x74c] sm:$0xf]
    %v596 = vld [vmem:[%s1 + $0x750] sm:$0xf]
    %v597 = vld [vmem:[%s1 + $0x754] sm:$0xf]
    %v598 = vld [vmem:[%s1 + $0x758] sm:$0xf]
    %v599 = vld [vmem:[%s1 + $0x75c] sm:$0xf]
    %v600 = vld [vmem:[%s1 + $0x760] sm:$0xf]
    %v601 = vld [vmem:[%s1 + $0x764] sm:$0xf]
    %v602 = vld [vmem:[%s1 + $0x768] sm:$0xf]
    %v603 = vld [vmem:[%s1 + $0x76c] sm:$0xf]
    %v604 = vld [vmem:[%s1 + $0x770] sm:$0xf]
    %v605 = vld [vmem:[%s1 + $0x774] sm:$0xf]
    %v606 = vld [vmem:[%s1 + $0x778] sm:$0xf]
    %v607 = vld [vmem:[%s1 + $0x77c] sm:$0xf]
    %v608 = vld [vmem:[%s1 + $0x780] sm:$0xf]
    %v609 = vld [vmem:[%s1 + $0x784] sm:$0xf]
    %v610 = vld [vmem:[%s1 + $0x788] sm:$0xf]
    %v611 = vld [vmem:[%s1 + $0x78c] sm:$0xf]
    %v612 = vld [vmem:[%s1 + $0x790] sm:$0xf]
    %v613 = vld [vmem:[%s1 + $0x794] sm:$0xf]
    %v614 = vld [vmem:[%s1 + $0x798] sm:$0xf]
    %v615 = vld [vmem:[%s1 + $0x79c] sm:$0xf]
    %v616 = vld [vmem:[%s1 + $0x7a0] sm:$0xf]
    %v617 = vld [vmem:[%s1 + $0x7a4] sm:$0xf]
    %v618 = vld [vmem:[%s1 + $0x7a8] sm:$0xf]
    %v619 = vld [vmem:[%s1 + $0x7ac] sm:$0xf]
    %v620 = vld [vmem:[%s1 + $0x7b0] sm:$0xf]
    %v621 = vld [vmem:[%s1 + $0x7b4] sm:$0xf]
    %v622 = vld [vmem:[%s1 + $0x7b8] sm:$0xf]
    %v623 = vld [vmem:[%s1 + $0x7bc] sm:$0xf]
    %v624 = vld [vmem:[%s1 + $0x7c0] sm:$0xf]
    %v625 = vld [vmem:[%s1 + $0x7c4] sm:$0xf]
    %v626 = vld [vmem:[%s1 + $0x7c8] sm:$0xf]
    %v627 = vld [vmem:[%s1 + $0x7cc] sm:$0xf]
    %v628 = vld [vmem:[%s1 + $0x7d0] sm:$0xf]
    %v629 = vld [vmem:[%s1 + $0x7d4] sm:$0xf]
    %v630 = vld [vmem:[%s1 + $0x7d8] sm:$0xf]
    %v631 = vld [vmem:[%s1 + $0x7dc] sm:$0xf]
    %v632 = vld [vmem:[%s1 + $0x7e0] sm:$0xf]
    %v633 = vld [vmem:[%s1 + $0x7e4] sm:$0xf]
    %v634 = vld [vmem:[%s1 + $0x7e8] sm:$0xf]
    %v635 = vld [vmem:[%s1 + $0x7ec] sm:$0xf]
    %v636 = vld [vmem:[%s1 + $0x7f0] sm:$0xf]
    %v637 = vld [vmem:[%s1 + $0x7f4] sm:$0xf]
    %v638 = vld [vmem:[%s1 + $0x7f8] sm:$0xf]
    %v639 = vld [vmem:[%s1 + $0x7fc] sm:$0xf]
    %v640 = vld [vmem:[%s1 + $0x800] sm:$0xf]
    %v641 = vld [vmem:[%s1 + $0x804] sm:$0xf]
    %v642 = vld [vmem:[%s1 + $0x808] sm:$0xf]
    %v643 = vld [vmem:[%s1 + $0x80c] sm:$0xf]
    %v644 = vld [vmem:[%s1 + $0x810] sm:$0xf]
    %v645 = vld [vmem:[%s1 + $0x814] sm:$0xf]
    %v646 = vld [vmem:[%s1 + $0x818] sm:$0xf]
    %v647 = vld [vmem:[%s1 + $0x81c] sm:$0xf]
    %v648 = vld [vmem:[%s1 + $0x820] sm:$0xf]
    %v649 = vld [vmem:[%s1 + $0x824] sm:$0xf]
    %v650 = vld [vmem:[%s1 + $0x828] sm:$0xf]
    %v651 = vld [vmem:[%s1 + $0x82c] sm:$0xf]
    %v652 = vld [vmem:[%s1 + $0x830] sm:$0xf]
    %v653 = vld [vmem:[%s1 + $0x834] sm:$0xf]
    %v654 = vld [vmem:[%s1 + $0x838] sm:$0xf]
    %v655 = vld [vmem:[%s1 + $0x83c] sm:$0xf]
    %v656 = vld [vmem:[%s1 + $0x840] sm:$0xf]
    %v657 = vld [vmem:[%s1 + $0x844] sm:$0xf]
    %v658 = vld [vmem:[%s1 + $0x848] sm:$0xf]
    %v659 = vld [vmem:[%s1 + $0x84c] sm:$0xf]
    %v660 = vld [vmem:[%s1 + $0x850] sm:$0xf]
    %v661 = vld [vmem:[%s1 + $0x854] sm:$0xf]
    %v662 = vld [vmem:[%s1 + $0x858] sm:$0xf]
    %v663 = vld [vmem:[%s1 + $0x85c] sm:$0xf]
    %v664 = vld [vmem:[%s1 + $0x860] sm:$0xf]
    %v665 = vld [vmem:[%s1 + $0x864] sm:$0xf]
    %v666 = vld [vmem:[%s1 + $0x868] sm:$0xf]
    %v667 = vld [vmem:[%s1 + $0x86c] sm:$0xf]
    %v668 = vld [vmem:[%s1 + $0x870] sm:$0xf]
    %v669 = vld [vmem:[%s1 + $0x874] sm:$0xf]
    %v670 = vld [vmem:[%s1 + $0x878] sm:$0xf]
    %v671 = vld [vmem:[%s1 + $0x87c] sm:$0xf]
    %v672 = vld [vmem:[%s1 + $0x880] sm:$0xf]
    %v673 = vld [vmem:[%s1 + $0x884] sm:$0xf]
    %v674 = vld [vmem:[%s1 + $0x888] sm:$0xf]
    %v675 = vld [vmem:[%s1 + $0x88c] sm:$0xf]
    %v676 = vld [vmem:[%s1 + $0x890] sm:$0xf]
    %v677 = vld [vmem:[%s1 + $0x894] sm:$0xf]
    %v678 = vld [vmem:[%s1 + $0x898] sm:$0xf]
    %v679 = vld [vmem:[%s1 + $0x89c] sm:$0xf]
    %v680 = vld [vmem:[%s1 + $0x8a0] sm:$0xf]
    %v681 = vld [vmem:[%s1 + $0x8a4] sm:$0xf]
    %v682 = vld [vmem:[%s1 + $0x8a8] sm:$0xf]
    %v683 = vld [vmem:[%s1 + $0x8ac] sm:$0xf]
    %v684 = vld [vmem:[%s1 + $0x8b0] sm:$0xf]
    %v685 = vld [vmem:[%s1 + $0x8b4] sm:$0xf]
    %v686 = vld [vmem:[%s1 + $0x8b8] sm:$0xf]
    %v687 = vld [vmem:[%s1 + $0x8bc] sm:$0xf]
    %v688 = vld [vmem:[%s1 + $0x8c0] sm:$0xf]
    %v689 = vld [vmem:[%s1 + $0x8c4] sm:$0xf]
    %v690 = vld [vmem:[%s1 + $0x8c8] sm:$0xf]
    %v691 = vld [vmem:[%s1 + $0x8cc] sm:$0xf]
    %v692 = vld [vmem:[%s1 + $0x8d0] sm:$0xf]
    %v693 = vld [vmem:[%s1 + $0x8d4] sm:$0xf]
    %v694 = vld [vmem:[%s1 + $0x8d8] sm:$0xf]
    %v695 = vld [vmem:[%s1 + $0x8dc] sm:$0xf]
    %v696 = vld [vmem:[%s1 + $0x8e0] sm:$0xf]
    %v697 = vld [vmem:[%s1 + $0x8e4] sm:$0xf]
    %v698 = vld [vmem:[%s1 + $0x8e8] sm:$0xf]
    %v699 = vld [vmem:[%s1 + $0x8ec] sm:$0xf]
    %v700 = vld [vmem:[%s1 + $0x8f0] sm:$0xf]
    %v701 = vld [vmem:[%s1 + $0x8f4] sm:$0xf]
    %v702 = vld [vmem:[%s1 + $0x8f8] sm:$0xf]
    %v703 = vld [vmem:[%s1 + $0x8fc] sm:$0xf]
    %v704 = vld [vmem:[%s1 + $0x900] sm:$0xf]
    %v705 = vld [vmem:[%s1 + $0x904] sm:$0xf]
    %v706 = vld [vmem:[%s1 + $0x908] sm:$0xf]
    %v707 = vld [vmem:[%s1 + $0x90c] sm:$0xf]
    %v708 = vld [vmem:[%s1 + $0x910] sm:$0xf]
    %v709 = vld [vmem:[%s1 + $0x914] sm:$0xf]
    %v710 = vld [vmem:[%s1 + $0x918] sm:$0xf]
    %v711 = vld [vmem:[%s1 + $0x91c] sm:$0xf]
    %v712 = vld [vmem:[%s1 + $0x920] sm:$0xf]
    %v713 = vld [vmem:[%s1 + $0x924] sm:$0xf]
    %v714 = vld [vmem:[%s1 + $0x928] sm:$0xf]
    %v715 = vld [vmem:[%s1 + $0x92c] sm:$0xf]
    %v716 = vld [vmem:[%s1 + $0x930] sm:$0xf]
    %v717 = vld [vmem:[%s1 + $0x934] sm:$0xf]
    %v718 = vld [vmem:[%s1 + $0x938] sm:$0xf]
    %v719 = vld [vmem:[%s1 + $0x93c] sm:$0xf]
    %v720 = vld [vmem:[%s1 + $0x940] sm:$0xf]
    %v721 = vld [vmem:[%s1 + $0x944] sm:$0xf]
    %v722 = vld [vmem:[%s1 + $0x948] sm:$0xf]
    %v723 = vld [vmem:[%s1 + $0x94c] sm:$0xf]
    %v724 = vld [vmem:[%s1 + $0x950] sm:$0xf]
    %v725 = vld [vmem:[%s1 + $0x954] sm:$0xf]
    %v726 = vld [vmem:[%s1 + $0x958] sm:$0xf]
    %v727 = vld [vmem:[%s1 + $0x95c] sm:$0xf]
    %v728 = vld [vmem:[%s1 + $0x960] sm:$0xf]
    %v729 = vld [vmem:[%s1 + $0x964] sm:$0xf]
    %v730 = vld [vmem:[%s1 + $0x968] sm:$0xf]
    %v731 = vld [vmem:[%s1 + $0x96c] sm:$0xf]
    %v732 = vld [vmem:[%s1 + $0x970] sm:$0xf]
    %v733 = vld [vmem:[%s1 + $0x974] sm:$0xf]
    %v734 = vld [vmem:[%s1 + $0x978] sm:$0xf]
    %v735 = vld [vmem:[%s1 + $0x97c] sm:$0xf]
    %v736 = vld [vmem:[%s1 + $0x980] sm:$0xf]
    %v737 = vld [vmem:[%s1 + $0x984] sm:$0xf]
    %v738 = vld [vmem:[%s1 + $0x988] sm:$0xf]
    %v739 = vld [vmem:[%s1 + $0x98c] sm:$0xf]
    %v740 = vld [vmem:[%s1 + $0x990] sm:$0xf]
    %v741 = vld [vmem:[%s1 + $0x994] sm:$0xf]
    %v742 = vld [vmem:[%s1 + $0x998] sm:$0xf]
    %v743 = vld [vmem:[%s1 + $0x99c] sm:$0xf]
    %v744 = vld [vmem:[%s1 + $0x9a0] sm:$0xf]
    %v745 = vld [vmem:[%s1 + $0x9a4] sm:$0xf]
    %v746 = vld [vmem:[%s1 + $0x9a8] sm:$0xf]
    %v747 = vld [vmem:[%s1 + $0x9ac] sm:$0xf]
    %v748 = vld [vmem:[%s1 + $0x9b0] sm:$0xf]
    %v749 = vld [vmem:[%s1 + $0x9b4] sm:$0xf]
    %v750 = vld [vmem:[%s1 + $0x9b8] sm:$0xf]
    %v751 = vld [vmem:[%s1 + $0x9bc] sm:$0xf]
    %v752 = vld [vmem:[%s1 + $0x9c0] sm:$0xf]
    %v753 = vld [vmem:[%s1 + $0x9c4] sm:$0xf]
    %v754 = vld [vmem:[%s1 + $0x9c8] sm:$0xf]
    %v755 = vld [vmem:[%s1 + $0x9cc] sm:$0xf]
    %v756 = vld [vmem:[%s1 + $0x9d0] sm:$0xf]
    %v757 = vld [vmem:[%s1 + $0x9d4] sm:$0xf]
    %v758 = vld [vmem:[%s1 + $0x9d8] sm:$0xf]
    %v759 = vld [vmem:[%s1 + $0x9dc] sm:$0xf]
    %v760 = vld [vmem:[%s1 + $0x9e0] sm:$0xf]
    %v761 = vld [vmem:[%s1 + $0x9e4] sm:$0xf]
    %v762 = vld [vmem:[%s1 + $0x9e8] sm:$0xf]
    %v763 = vld [vmem:[%s1 + $0x9ec] sm:$0xf]
    %v764 = vld [vmem:[%s1 + $0x9f0] sm:$0xf]
    %v765 = vld [vmem:[%s1 + $0x9f4] sm:$0xf]
    %v766 = vld [vmem:[%s1 + $0x9f8] sm:$0xf]
    %v767 = vld [vmem:[%s1 + $0x9fc] sm:$0xf]
    %v768 = vld [vmem:[%s1 + $0xa00] sm:$0xf]
    %v769 = vld [vmem:[%s1 + $0xa04] sm:$0xf]
    %v770 = vld [vmem:[%s1 + $0xa08] sm:$0xf]
    %v771 = vld [vmem:[%s1 + $0xa0c] sm:$0xf]
    %v772 = vld [vmem:[%s1 + $0xa10] sm:$0xf]
    %v773 = vld [vmem:[%s1 + $0xa14] sm:$0xf]
    %v774 = vld [vmem:[%s1 + $0xa18] sm:$0xf]
    %v775 = vld [vmem:[%s1 + $0xa1c] sm:$0xf]
    %v776 = vld [vmem:[%s1 + $0xa20] sm:$0xf]
    %v777 = vld [vmem:[%s1 + $0xa24] sm:$0xf]
    %v778 = vld [vmem:[%s1 + $0xa28] sm:$0xf]
    %v779 = vld [vmem:[%s1 + $0xa2c] sm:$0xf]
    %v780 = vld [vmem:[%s1 + $0xa30] sm:$0xf]
    %v781 = vld [vmem:[%s1 + $0xa34] sm:$0xf]
    %v782 = vld [vmem:[%s1 + $0xa38] sm:$0xf]
    %v783 = vld [vmem:[%s1 + $0xa3c] sm:$0xf]
    %v784 = vld [vmem:[%s1 + $0xa40] sm:$0xf]
    %v785 = vld [vmem:[%s1 + $0xa44] sm:$0xf]
    %v786 = vld [vmem:[%s1 + $0xa48] sm:$0xf]
    %v787 = vld [vmem:[%s1 + $0xa4c] sm:$0xf]
    %v788 = vld [vmem:[%s1 + $0xa50] sm:$0xf]
    %v789 = vld [vmem:[%s1 + $0xa54] sm:$0xf]
    %v790 = vld [vmem:[%s1 + $0xa58] sm:$0xf]
    %v791 = vld [vmem:[%s1 + $0xa5c] sm:$0xf]
    %v792 = vld [vmem:[%s1 + $0xa60] sm:$0xf]
    %v793 = vld [vmem:[%s1 + $0xa64] sm:$0xf]
    %v794 = vld [vmem:[%s1 + $0xa68] sm:$0xf]
    %v795 = vld [vmem:[%s1 + $0xa6c] sm:$0xf]
    %v796 = vld [vmem:[%s1 + $0xa70] sm:$0xf]
    %v797 = vld [vmem:[%s1 + $0xa74] sm:$0xf]
    %v798 = vld [vmem:[%s1 + $0xa78] sm:$0xf]
    %v799 = vld [vmem:[%s1 + $0xa7c] sm:$0xf]
    %v800 = vld [vmem:[%s1 + $0xa80] sm:$0xf]
    %v801 = vld [vmem:[%s1 + $0xa84] sm:$0xf]
    %v802 = vld [vmem:[%s1 + $0xa88] sm:$0xf]
    %v803 = vld [vmem:[%s1 + $0xa8c] sm:$0xf]
    %v804 = vld [vmem:[%s1 + $0xa90] sm:$0xf]
    %v805 = vld [vmem:[%s1 + $0xa94] sm:$0xf]
    %v806 = vld [vmem:[%s1 + $0xa98] sm:$0xf]
    %v807 = vld [vmem:[%s1 + $0xa9c] sm:$0xf]
    %v808 = vld [vmem:[%s1 + $0xaa0] sm:$0xf]
    %v809 = vld [vmem:[%s1 + $0xaa4] sm:$0xf]
    %v810 = vld [vmem:[%s1 + $0xaa8] sm:$0xf]
    %v811 = vld [vmem:[%s1 + $0xaac] sm:$0xf]
    %v812 = vld [vmem:[%s1 + $0xab0] sm:$0xf]
    %v813 = vld [vmem:[%s1 + $0xab4] sm:$0xf]
    %v814 = vld [vmem:[%s1 + $0xab8] sm:$0xf]
    %v815 = vld [vmem:[%s1 + $0xabc] sm:$0xf]
    %v816 = vld [vmem:[%s1 + $0xac0] sm:$0xf]
    %v817 = vld [vmem:[%s1 + $0xac4] sm:$0xf]
    %v818 = vld [vmem:[%s1 + $0xac8] sm:$0xf]
    %v819 = vld [vmem:[%s1 + $0xacc] sm:$0xf]
    %v820 = vld [vmem:[%s1 + $0xad0] sm:$0xf]
    %v821 = vld [vmem:[%s1 + $0xad4] sm:$0xf]
    %v822 = vld [vmem:[%s1 + $0xad8] sm:$0xf]
    %v823 = vld [vmem:[%s1 + $0xadc] sm:$0xf]
    %v824 = vld [vmem:[%s1 + $0xae0] sm:$0xf]
    %v825 = vld [vmem:[%s1 + $0xae4] sm:$0xf]
    %v826 = vld [vmem:[%s1 + $0xae8] sm:$0xf]
    %v827 = vld [vmem:[%s1 + $0xaec] sm:$0xf]
    %v828 = vld [vmem:[%s1 + $0xaf0] sm:$0xf]
    %v829 = vld [vmem:[%s1 + $0xaf4] sm:$0xf]
    %v830 = vld [vmem:[%s1 + $0xaf8] sm:$0xf]
    %v831 = vld [vmem:[%s1 + $0xafc] sm:$0xf]
    %v832 = vld [vmem:[%s1 + $0xb00] sm:$0xf]
    %v833 = vld [vmem:[%s1 + $0xb04] sm:$0xf]
    %v834 = vld [vmem:[%s1 + $0xb08] sm:$0xf]
    %v835 = vld [vmem:[%s1 + $0xb0c] sm:$0xf]
    %v836 = vld [vmem:[%s1 + $0xb10] sm:$0xf]
    %v837 = vld [vmem:[%s1 + $0xb14] sm:$0xf]
    %v838 = vld [vmem:[%s1 + $0xb18] sm:$0xf]
    %v839 = vld [vmem:[%s1 + $0xb1c] sm:$0xf]
    %v840 = vld [vmem:[%s1 + $0xb20] sm:$0xf]
    %v841 = vld [vmem:[%s1 + $0xb24] sm:$0xf]
    %v842 = vld [vmem:[%s1 + $0xb28] sm:$0xf]
    %v843 = vld [vmem:[%s1 + $0xb2c] sm:$0xf]
    %v844 = vld [vmem:[%s1 + $0xb30] sm:$0xf]
    %v845 = vld [vmem:[%s1 + $0xb34] sm:$0xf]
    %v846 = vld [vmem:[%s1 + $0xb38] sm:$0xf]
    %v847 = vld [vmem:[%s1 + $0xb3c] sm:$0xf]
    %v848 = vld [vmem:[%s1 + $0xb40] sm:$0xf]
    %v849 = vld [vmem:[%s1 + $0xb44] sm:$0xf]
    %v850 = vld [vmem:[%s1 + $0xb48] sm:$0xf]
    %v851 = vld [vmem:[%s1 + $0xb4c] sm:$0xf]
    %v852 = vld [vmem:[%s1 + $0xb50] sm:$0xf]
    %v853 = vld [vmem:[%s1 + $0xb54] sm:$0xf]
    %v854 = vld [vmem:[%s1 + $0xb58] sm:$0xf]
    %v855 = vld [vmem:[%s1 + $0xb5c] sm:$0xf]
    %v856 = vld [vmem:[%s1 + $0xb60] sm:$0xf]
    %v857 = vld [vmem:[%s1 + $0xb64] sm:$0xf]
    %v858 = vld [vmem:[%s1 + $0xb68] sm:$0xf]
    %v859 = vld [vmem:[%s1 + $0xb6c] sm:$0xf]
    %v860 = vld [vmem:[%s1 + $0xb70] sm:$0xf]
    %v861 = vld [vmem:[%s1 + $0xb74] sm:$0xf]
    %v862 = vld [vmem:[%s1 + $0xb78] sm:$0xf]
    %v863 = vld [vmem:[%s1 + $0xb7c] sm:$0xf]
    %v864 = vld [vmem:[%s1 + $0xb80] sm:$0xf]
    %v865 = vld [vmem:[%s1 + $0xb84] sm:$0xf]
    %v866 = vld [vmem:[%s1 + $0xb88] sm:$0xf]
    %v867 = vld [vmem:[%s1 + $0xb8c] sm:$0xf]
    %v868 = vld [vmem:[%s1 + $0xb90] sm:$0xf]
    %v869 = vld [vmem:[%s1 + $0xb94] sm:$0xf]
    %v870 = vld [vmem:[%s1 + $0xb98] sm:$0xf]
    %v871 = vld [vmem:[%s1 + $0xb9c] sm:$0xf]
    %v872 = vld [vmem:[%s1 + $0xba0] sm:$0xf]
    %v873 = vld [vmem:[%s1 + $0xba4] sm:$0xf]
    %v874 = vld [vmem:[%s1 + $0xba8] sm:$0xf]
    %v875 = vld [vmem:[%s1 + $0xbac] sm:$0xf]
    %v876 = vld [vmem:[%s1 + $0xbb0] sm:$0xf]
    %v877 = vld [vmem:[%s1 + $0xbb4] sm:$0xf]
    %v878 = vld [vmem:[%s1 + $0xbb8] sm:$0xf]
    %v879 = vld [vmem:[%s1 + $0xbbc] sm:$0xf]
    %v880 = vld [vmem:[%s1 + $0xbc0] sm:$0xf]
    %v881 = vld [vmem:[%s1 + $0xbc4] sm:$0xf]
    %v882 = vld [vmem:[%s1 + $0xbc8] sm:$0xf]
    %v883 = vld [vmem:[%s1 + $0xbcc] sm:$0xf]
    %v884 = vld [vmem:[%s1 + $0xbd0] sm:$0xf]
    %v885 = vld [vmem:[%s1 + $0xbd4] sm:$0xf]
    %v886 = vld [vmem:[%s1 + $0xbd8] sm:$0xf]
    %v887 = vld [vmem:[%s1 + $0xbdc] sm:$0xf]
    %v888 = vld [vmem:[%s1 + $0xbe0] sm:$0xf]
    %v889 = vld [vmem:[%s1 + $0xbe4] sm:$0xf]
    %v890 = vld [vmem:[%s1 + $0xbe8] sm:$0xf]
    %v891 = vld [vmem:[%s1 + $0xbec] sm:$0xf]
    %v892 = vld [vmem:[%s1 + $0xbf0] sm:$0xf]
    %v893 = vld [vmem:[%s1 + $0xbf4] sm:$0xf]
    %v894 = vld [vmem:[%s1 + $0xbf8] sm:$0xf]
    %v895 = vld [vmem:[%s1 + $0xbfc] sm:$0xf]
    %v896 = vld [vmem:[%s1 + $0xc00] sm:$0xf]
    %v897 = vld [vmem:[%s1 + $0xc04] sm:$0xf]
    %v898 = vld [vmem:[%s1 + $0xc08] sm:$0xf]
    %v899 = vld [vmem:[%s1 + $0xc0c] sm:$0xf]
    %v900 = vld [vmem:[%s1 + $0xc10] sm:$0xf]
    %v901 = vld [vmem:[%s1 + $0xc14] sm:$0xf]
    %v902 = vld [vmem:[%s1 + $0xc18] sm:$0xf]
    %v903 = vld [vmem:[%s1 + $0xc1c] sm:$0xf]
    %v904 = vld [vmem:[%s1 + $0xc20] sm:$0xf]
    %v905 = vld [vmem:[%s1 + $0xc24] sm:$0xf]
    %v906 = vld [vmem:[%s1 + $0xc28] sm:$0xf]
    %v907 = vld [vmem:[%s1 + $0xc2c] sm:$0xf]
    %v908 = vld [vmem:[%s1 + $0xc30] sm:$0xf]
    %v909 = vld [vmem:[%s1 + $0xc34] sm:$0xf]
    %v910 = vld [vmem:[%s1 + $0xc38] sm:$0xf]
    %v911 = vld [vmem:[%s1 + $0xc3c] sm:$0xf]
    %v912 = vld [vmem:[%s1 + $0xc40] sm:$0xf]
    %v913 = vld [vmem:[%s1 + $0xc44] sm:$0xf]
    %v914 = vld [vmem:[%s1 + $0xc48] sm:$0xf]
    %v915 = vld [vmem:[%s1 + $0xc4c] sm:$0xf]
    %v916 = vld [vmem:[%s1 + $0xc50] sm:$0xf]
    %v917 = vld [vmem:[%s1 + $0xc54] sm:$0xf]
    %v918 = vld [vmem:[%s1 + $0xc58] sm:$0xf]
    %v919 = vld [vmem:[%s1 + $0xc5c] sm:$0xf]
    %v920 = vld [vmem:[%s1 + $0xc60] sm:$0xf]
    %v921 = vld [vmem:[%s1 + $0xc64] sm:$0xf]
    %v922 = vld [vmem:[%s1 + $0xc68] sm:$0xf]
    %v923 = vld [vmem:[%s1 + $0xc6c] sm:$0xf]
    %v924 = vld [vmem:[%s1 + $0xc70] sm:$0xf]
    %v925 = vld [vmem:[%s1 + $0xc74] sm:$0xf]
    %v926 = vld [vmem:[%s1 + $0xc78] sm:$0xf]
    %v927 = vld [vmem:[%s1 + $0xc7c] sm:$0xf]
    %v928 = vld [vmem:[%s2] sm:$0x1]
    %v930 = vlaneseq
    %v931 = vshrl.u32 %v930, 7
    %v932 = vsub.s32 0, %v931
    %v933 = vrot.slane %v928, %v932
    %v1035 = vunpack.c.l.b16 %v28
    %v1036 = vunpack.c.h.b16 %v28
    %v1037 = vunpack.c.l.b16 %v29
    %v1038 = vunpack.c.h.b16 %v29
    %v1039 = vunpack.c.l.b16 %v30
    %v1040 = vunpack.c.h.b16 %v30
    %v1041 = vunpack.c.l.b16 %v31
    %v1042 = vunpack.c.h.b16 %v31
    %v1043 = vunpack.c.l.b16 %v32
    %v1044 = vunpack.c.h.b16 %v32
    %v1045 = vunpack.c.l.b16 %v33
    %v1046 = vunpack.c.h.b16 %v33
    %v1047 = vunpack.c.l.b16 %v34
    %v1048 = vunpack.c.h.b16 %v34
    %v1049 = vunpack.c.l.b16 %v35
    %v1050 = vunpack.c.h.b16 %v35
    %v1051 = vunpack.c.l.b16 %v36
    %v1052 = vunpack.c.h.b16 %v36
    %v1053 = vunpack.c.l.b16 %v37
    %v1054 = vunpack.c.h.b16 %v37
    %v1055 = vunpack.c.l.b16 %v38
    %v1056 = vunpack.c.h.b16 %v38
    %v1057 = vunpack.c.l.b16 %v39
    %v1058 = vunpack.c.h.b16 %v39
    %v1059 = vunpack.c.l.b16 %v40
    %v1060 = vunpack.c.h.b16 %v40
    %v1061 = vunpack.c.l.b16 %v41
    %v1062 = vunpack.c.h.b16 %v41
    %v1063 = vunpack.c.l.b16 %v42
    %v1064 = vunpack.c.h.b16 %v42
    %v1065 = vunpack.c.l.b16 %v43
    %v1066 = vunpack.c.h.b16 %v43
    %v1067 = vunpack.c.l.b16 %v44
    %v1068 = vunpack.c.h.b16 %v44
    %v1069 = vunpack.c.l.b16 %v45
    %v1070 = vunpack.c.h.b16 %v45
    %v1071 = vunpack.c.l.b16 %v46
    %v1072 = vunpack.c.h.b16 %v46
    %v1073 = vunpack.c.l.b16 %v47
    %v1074 = vunpack.c.h.b16 %v47
    %v1075 = vunpack.c.l.b16 %v48
    %v1076 = vunpack.c.h.b16 %v48
    %v1077 = vunpack.c.l.b16 %v49
    %v1078 = vunpack.c.h.b16 %v49
    %v1079 = vunpack.c.l.b16 %v50
    %v1080 = vunpack.c.h.b16 %v50
    %v1081 = vunpack.c.l.b16 %v51
    %v1082 = vunpack.c.h.b16 %v51
    %v1083 = vunpack.c.l.b16 %v52
    %v1084 = vunpack.c.h.b16 %v52
    %v1085 = vunpack.c.l.b16 %v53
    %v1086 = vunpack.c.h.b16 %v53
    %v1087 = vunpack.c.l.b16 %v54
    %v1088 = vunpack.c.h.b16 %v54
    %v1089 = vunpack.c.l.b16 %v55
    %v1090 = vunpack.c.h.b16 %v55
    %v1091 = vunpack.c.l.b16 %v56
    %v1092 = vunpack.c.h.b16 %v56
    %v1093 = vunpack.c.l.b16 %v57
    %v1094 = vunpack.c.h.b16 %v57
    %v1095 = vunpack.c.l.b16 %v58
    %v1096 = vunpack.c.h.b16 %v58
    %v1097 = vunpack.c.l.b16 %v59
    %v1098 = vunpack.c.h.b16 %v59
    %v1099 = vunpack.c.l.b16 %v60
    %v1100 = vunpack.c.h.b16 %v60
    %v1101 = vunpack.c.l.b16 %v61
    %v1102 = vunpack.c.h.b16 %v61
    %v1103 = vunpack.c.l.b16 %v62
    %v1104 = vunpack.c.h.b16 %v62
    %v1105 = vunpack.c.l.b16 %v63
    %v1106 = vunpack.c.h.b16 %v63
    %v1107 = vunpack.c.l.b16 %v64
    %v1108 = vunpack.c.h.b16 %v64
    %v1109 = vunpack.c.l.b16 %v65
    %v1110 = vunpack.c.h.b16 %v65
    %v1111 = vunpack.c.l.b16 %v66
    %v1112 = vunpack.c.h.b16 %v66
    %v1113 = vunpack.c.l.b16 %v67
    %v1114 = vunpack.c.h.b16 %v67
    %v1115 = vunpack.c.l.b16 %v68
    %v1116 = vunpack.c.h.b16 %v68
    %v1117 = vunpack.c.l.b16 %v69
    %v1118 = vunpack.c.h.b16 %v69
    %v1119 = vunpack.c.l.b16 %v70
    %v1120 = vunpack.c.h.b16 %v70
    %v1121 = vunpack.c.l.b16 %v71
    %v1122 = vunpack.c.h.b16 %v71
    %v1123 = vunpack.c.l.b16 %v72
    %v1124 = vunpack.c.h.b16 %v72
    %v1125 = vunpack.c.l.b16 %v73
    %v1126 = vunpack.c.h.b16 %v73
    %v1127 = vunpack.c.l.b16 %v74
    %v1128 = vunpack.c.h.b16 %v74
    %v1129 = vunpack.c.l.b16 %v75
    %v1130 = vunpack.c.h.b16 %v75
    %v1131 = vunpack.c.l.b16 %v76
    %v1132 = vunpack.c.h.b16 %v76
    %v1133 = vunpack.c.l.b16 %v77
    %v1134 = vunpack.c.h.b16 %v77
    %v1135 = vunpack.c.l.b16 %v78
    %v1136 = vunpack.c.h.b16 %v78
    %v1137 = vunpack.c.l.b16 %v79
    %v1138 = vunpack.c.h.b16 %v79
    %v1139 = vunpack.c.l.b16 %v80
    %v1140 = vunpack.c.h.b16 %v80
    %v1141 = vunpack.c.l.b16 %v81
    %v1142 = vunpack.c.h.b16 %v81
    %v1143 = vunpack.c.l.b16 %v82
    %v1144 = vunpack.c.h.b16 %v82
    %v1145 = vunpack.c.l.b16 %v83
    %v1146 = vunpack.c.h.b16 %v83
    %v1147 = vunpack.c.l.b16 %v84
    %v1148 = vunpack.c.h.b16 %v84
    %v1149 = vunpack.c.l.b16 %v85
    %v1150 = vunpack.c.h.b16 %v85
    %v1151 = vunpack.c.l.b16 %v86
    %v1152 = vunpack.c.h.b16 %v86
    %v1153 = vunpack.c.l.b16 %v87
    %v1154 = vunpack.c.h.b16 %v87
    %v1155 = vunpack.c.l.b16 %v88
    %v1156 = vunpack.c.h.b16 %v88
    %v1157 = vunpack.c.l.b16 %v89
    %v1158 = vunpack.c.h.b16 %v89
    %v1159 = vunpack.c.l.b16 %v90
    %v1160 = vunpack.c.h.b16 %v90
    %v1161 = vunpack.c.l.b16 %v91
    %v1162 = vunpack.c.h.b16 %v91
    %v1163 = vunpack.c.l.b16 %v92
    %v1164 = vunpack.c.h.b16 %v92
    %v1165 = vunpack.c.l.b16 %v93
    %v1166 = vunpack.c.h.b16 %v93
    %v1167 = vunpack.c.l.b16 %v94
    %v1168 = vunpack.c.h.b16 %v94
    %v1169 = vunpack.c.l.b16 %v95
    %v1170 = vunpack.c.h.b16 %v95
    %v1171 = vunpack.c.l.b16 %v96
    %v1172 = vunpack.c.h.b16 %v96
    %v1173 = vunpack.c.l.b16 %v97
    %v1174 = vunpack.c.h.b16 %v97
    %v1175 = vunpack.c.l.b16 %v98
    %v1176 = vunpack.c.h.b16 %v98
    %v1177 = vunpack.c.l.b16 %v99
    %v1178 = vunpack.c.h.b16 %v99
    %v1179 = vunpack.c.l.b16 %v100
    %v1180 = vunpack.c.h.b16 %v100
    %v1181 = vunpack.c.l.b16 %v101
    %v1182 = vunpack.c.h.b16 %v101
    %v1183 = vunpack.c.l.b16 %v102
    %v1184 = vunpack.c.h.b16 %v102
    %v1185 = vunpack.c.l.b16 %v103
    %v1186 = vunpack.c.h.b16 %v103
    %v1187 = vunpack.c.l.b16 %v104
    %v1188 = vunpack.c.h.b16 %v104
    %v1189 = vunpack.c.l.b16 %v105
    %v1190 = vunpack.c.h.b16 %v105
    %v1191 = vunpack.c.l.b16 %v106
    %v1192 = vunpack.c.h.b16 %v106
    %v1193 = vunpack.c.l.b16 %v107
    %v1194 = vunpack.c.h.b16 %v107
    %v1195 = vunpack.c.l.b16 %v108
    %v1196 = vunpack.c.h.b16 %v108
    %v1197 = vunpack.c.l.b16 %v109
    %v1198 = vunpack.c.h.b16 %v109
    %v1199 = vunpack.c.l.b16 %v110
    %v1200 = vunpack.c.h.b16 %v110
    %v1201 = vunpack.c.l.b16 %v111
    %v1202 = vunpack.c.h.b16 %v111
    %v1203 = vunpack.c.l.b16 %v112
    %v1204 = vunpack.c.h.b16 %v112
    %v1205 = vunpack.c.l.b16 %v113
    %v1206 = vunpack.c.h.b16 %v113
    %v1207 = vunpack.c.l.b16 %v114
    %v1208 = vunpack.c.h.b16 %v114
    %v1209 = vunpack.c.l.b16 %v115
    %v1210 = vunpack.c.h.b16 %v115
    %v1211 = vunpack.c.l.b16 %v116
    %v1212 = vunpack.c.h.b16 %v116
    %v1213 = vunpack.c.l.b16 %v117
    %v1214 = vunpack.c.h.b16 %v117
    %v1215 = vunpack.c.l.b16 %v118
    %v1216 = vunpack.c.h.b16 %v118
    %v1217 = vunpack.c.l.b16 %v119
    %v1218 = vunpack.c.h.b16 %v119
    %v1219 = vunpack.c.l.b16 %v120
    %v1220 = vunpack.c.h.b16 %v120
    %v1221 = vunpack.c.l.b16 %v121
    %v1222 = vunpack.c.h.b16 %v121
    %v1223 = vunpack.c.l.b16 %v122
    %v1224 = vunpack.c.h.b16 %v122
    %v1225 = vunpack.c.l.b16 %v123
    %v1226 = vunpack.c.h.b16 %v123
    %v1227 = vunpack.c.l.b16 %v124
    %v1228 = vunpack.c.h.b16 %v124
    %v1229 = vunpack.c.l.b16 %v125
    %v1230 = vunpack.c.h.b16 %v125
    %v1231 = vunpack.c.l.b16 %v126
    %v1232 = vunpack.c.h.b16 %v126
    %v1233 = vunpack.c.l.b16 %v127
    %v1234 = vunpack.c.h.b16 %v127
    %v1235 = vpack.c.b16 %v1085, %v1035
    %v1236 = vpack.c.b16 %v1086, %v1036
    %v1237 = vpack.c.b16 %v1087, %v1037
    %v1238 = vpack.c.b16 %v1088, %v1038
    %v1239 = vpack.c.b16 %v1089, %v1039
    %v1240 = vpack.c.b16 %v1090, %v1040
    %v1241 = vpack.c.b16 %v1091, %v1041
    %v1242 = vpack.c.b16 %v1092, %v1042
    %v1243 = vpack.c.b16 %v1093, %v1043
    %v1244 = vpack.c.b16 %v1094, %v1044
    %v1245 = vpack.c.b16 %v1095, %v1045
    %v1246 = vpack.c.b16 %v1096, %v1046
    %v1247 = vpack.c.b16 %v1097, %v1047
    %v1248 = vpack.c.b16 %v1098, %v1048
    %v1249 = vpack.c.b16 %v1099, %v1049
    %v1250 = vpack.c.b16 %v1100, %v1050
    %v1251 = vpack.c.b16 %v1101, %v1051
    %v1252 = vpack.c.b16 %v1102, %v1052
    %v1253 = vpack.c.b16 %v1103, %v1053
    %v1254 = vpack.c.b16 %v1104, %v1054
    %v1255 = vpack.c.b16 %v1105, %v1055
    %v1256 = vpack.c.b16 %v1106, %v1056
    %v1257 = vpack.c.b16 %v1107, %v1057
    %v1258 = vpack.c.b16 %v1108, %v1058
    %v1259 = vpack.c.b16 %v1109, %v1059
    %v1260 = vpack.c.b16 %v1110, %v1060
    %v1261 = vpack.c.b16 %v1111, %v1061
    %v1262 = vpack.c.b16 %v1112, %v1062
    %v1263 = vpack.c.b16 %v1113, %v1063
    %v1264 = vpack.c.b16 %v1114, %v1064
    %v1265 = vpack.c.b16 %v1115, %v1065
    %v1266 = vpack.c.b16 %v1116, %v1066
    %v1267 = vpack.c.b16 %v1117, %v1067
    %v1268 = vpack.c.b16 %v1118, %v1068
    %v1269 = vpack.c.b16 %v1119, %v1069
    %v1270 = vpack.c.b16 %v1120, %v1070
    %v1271 = vpack.c.b16 %v1121, %v1071
    %v1272 = vpack.c.b16 %v1122, %v1072
    %v1273 = vpack.c.b16 %v1123, %v1073
    %v1274 = vpack.c.b16 %v1124, %v1074
    %v1275 = vpack.c.b16 %v1125, %v1075
    %v1276 = vpack.c.b16 %v1126, %v1076
    %v1277 = vpack.c.b16 %v1127, %v1077
    %v1278 = vpack.c.b16 %v1128, %v1078
    %v1279 = vpack.c.b16 %v1129, %v1079
    %v1280 = vpack.c.b16 %v1130, %v1080
    %v1281 = vpack.c.b16 %v1131, %v1081
    %v1282 = vpack.c.b16 %v1132, %v1082
    %v1283 = vpack.c.b16 %v1133, %v1083
    %v1284 = vpack.c.b16 %v1134, %v1084
    %v1285 = vpack.c.b16 %v1185, %v1135
    %v1286 = vpack.c.b16 %v1186, %v1136
    %v1287 = vpack.c.b16 %v1187, %v1137
    %v1288 = vpack.c.b16 %v1188, %v1138
    %v1289 = vpack.c.b16 %v1189, %v1139
    %v1290 = vpack.c.b16 %v1190, %v1140
    %v1291 = vpack.c.b16 %v1191, %v1141
    %v1292 = vpack.c.b16 %v1192, %v1142
    %v1293 = vpack.c.b16 %v1193, %v1143
    %v1294 = vpack.c.b16 %v1194, %v1144
    %v1295 = vpack.c.b16 %v1195, %v1145
    %v1296 = vpack.c.b16 %v1196, %v1146
    %v1297 = vpack.c.b16 %v1197, %v1147
    %v1298 = vpack.c.b16 %v1198, %v1148
    %v1299 = vpack.c.b16 %v1199, %v1149
    %v1300 = vpack.c.b16 %v1200, %v1150
    %v1301 = vpack.c.b16 %v1201, %v1151
    %v1302 = vpack.c.b16 %v1202, %v1152
    %v1303 = vpack.c.b16 %v1203, %v1153
    %v1304 = vpack.c.b16 %v1204, %v1154
    %v1305 = vpack.c.b16 %v1205, %v1155
    %v1306 = vpack.c.b16 %v1206, %v1156
    %v1307 = vpack.c.b16 %v1207, %v1157
    %v1308 = vpack.c.b16 %v1208, %v1158
    %v1309 = vpack.c.b16 %v1209, %v1159
    %v1310 = vpack.c.b16 %v1210, %v1160
    %v1311 = vpack.c.b16 %v1211, %v1161
    %v1312 = vpack.c.b16 %v1212, %v1162
    %v1313 = vpack.c.b16 %v1213, %v1163
    %v1314 = vpack.c.b16 %v1214, %v1164
    %v1315 = vpack.c.b16 %v1215, %v1165
    %v1316 = vpack.c.b16 %v1216, %v1166
    %v1317 = vpack.c.b16 %v1217, %v1167
    %v1318 = vpack.c.b16 %v1218, %v1168
    %v1319 = vpack.c.b16 %v1219, %v1169
    %v1320 = vpack.c.b16 %v1220, %v1170
    %v1321 = vpack.c.b16 %v1221, %v1171
    %v1322 = vpack.c.b16 %v1222, %v1172
    %v1323 = vpack.c.b16 %v1223, %v1173
    %v1324 = vpack.c.b16 %v1224, %v1174
    %v1325 = vpack.c.b16 %v1225, %v1175
    %v1326 = vpack.c.b16 %v1226, %v1176
    %v1327 = vpack.c.b16 %v1227, %v1177
    %v1328 = vpack.c.b16 %v1228, %v1178
    %v1329 = vpack.c.b16 %v1229, %v1179
    %v1330 = vpack.c.b16 %v1230, %v1180
    %v1331 = vpack.c.b16 %v1231, %v1181
    %v1332 = vpack.c.b16 %v1232, %v1182
    %v1333 = vpack.c.b16 %v1233, %v1183
    %v1334 = vpack.c.b16 %v1234, %v1184
    %v2235 = vunpack.c.l.b16 %v128
    %v2236 = vunpack.c.l.b16 %v129
    %v2237 = vunpack.c.l.b16 %v130
    %v2238 = vunpack.c.l.b16 %v131
    %v2239 = vunpack.c.l.b16 %v132
    %v2240 = vunpack.c.l.b16 %v133
    %v2241 = vunpack.c.l.b16 %v134
    %v2242 = vunpack.c.l.b16 %v135
    %v2243 = vunpack.c.l.b16 %v136
    %v2244 = vunpack.c.l.b16 %v137
    %v2245 = vunpack.c.l.b16 %v138
    %v2246 = vunpack.c.l.b16 %v139
    %v2247 = vunpack.c.l.b16 %v140
    %v2248 = vunpack.c.l.b16 %v141
    %v2249 = vunpack.c.l.b16 %v142
    %v2250 = vunpack.c.l.b16 %v143
    %v2251 = vunpack.c.l.b16 %v144
    %v2252 = vunpack.c.l.b16 %v145
    %v2253 = vunpack.c.l.b16 %v146
    %v2254 = vunpack.c.l.b16 %v147
    %v2255 = vunpack.c.l.b16 %v148
    %v2256 = vunpack.c.l.b16 %v149
    %v2257 = vunpack.c.l.b16 %v150
    %v2258 = vunpack.c.l.b16 %v151
    %v2259 = vunpack.c.l.b16 %v152
    %v2260 = vunpack.c.l.b16 %v153
    %v2261 = vunpack.c.l.b16 %v154
    %v2262 = vunpack.c.l.b16 %v155
    %v2263 = vunpack.c.l.b16 %v156
    %v2264 = vunpack.c.l.b16 %v157
    %v2265 = vunpack.c.l.b16 %v158
    %v2266 = vunpack.c.l.b16 %v159
    %v2267 = vunpack.c.l.b16 %v160
    %v2268 = vunpack.c.l.b16 %v161
    %v2269 = vunpack.c.l.b16 %v162
    %v2270 = vunpack.c.l.b16 %v163
    %v2271 = vunpack.c.l.b16 %v164
    %v2272 = vunpack.c.l.b16 %v165
    %v2273 = vunpack.c.l.b16 %v166
    %v2274 = vunpack.c.l.b16 %v167
    %v2275 = vunpack.c.l.b16 %v168
    %v2276 = vunpack.c.l.b16 %v169
    %v2277 = vunpack.c.l.b16 %v170
    %v2278 = vunpack.c.l.b16 %v171
    %v2279 = vunpack.c.l.b16 %v172
    %v2280 = vunpack.c.l.b16 %v173
    %v2281 = vunpack.c.l.b16 %v174
    %v2282 = vunpack.c.l.b16 %v175
    %v2283 = vunpack.c.l.b16 %v176
    %v2284 = vunpack.c.l.b16 %v177
    %v2285 = vunpack.c.l.b16 %v178
    %v2286 = vunpack.c.l.b16 %v179
    %v2287 = vunpack.c.l.b16 %v180
    %v2288 = vunpack.c.l.b16 %v181
    %v2289 = vunpack.c.l.b16 %v182
    %v2290 = vunpack.c.l.b16 %v183
    %v2291 = vunpack.c.l.b16 %v184
    %v2292 = vunpack.c.l.b16 %v185
    %v2293 = vunpack.c.l.b16 %v186
    %v2294 = vunpack.c.l.b16 %v187
    %v2295 = vunpack.c.l.b16 %v188
    %v2296 = vunpack.c.l.b16 %v189
    %v2297 = vunpack.c.l.b16 %v190
    %v2298 = vunpack.c.l.b16 %v191
    %v2299 = vunpack.c.l.b16 %v192
    %v2300 = vunpack.c.l.b16 %v193
    %v2301 = vunpack.c.l.b16 %v194
    %v2302 = vunpack.c.l.b16 %v195
    %v2303 = vunpack.c.l.b16 %v196
    %v2304 = vunpack.c.l.b16 %v197
    %v2305 = vunpack.c.l.b16 %v198
    %v2306 = vunpack.c.l.b16 %v199
    %v2307 = vunpack.c.l.b16 %v200
    %v2308 = vunpack.c.l.b16 %v201
    %v2309 = vunpack.c.l.b16 %v202
    %v2310 = vunpack.c.l.b16 %v203
    %v2311 = vunpack.c.l.b16 %v204
    %v2312 = vunpack.c.l.b16 %v205
    %v2313 = vunpack.c.l.b16 %v206
    %v2314 = vunpack.c.l.b16 %v207
    %v2315 = vunpack.c.l.b16 %v208
    %v2316 = vunpack.c.l.b16 %v209
    %v2317 = vunpack.c.l.b16 %v210
    %v2318 = vunpack.c.l.b16 %v211
    %v2319 = vunpack.c.l.b16 %v212
    %v2320 = vunpack.c.l.b16 %v213
    %v2321 = vunpack.c.l.b16 %v214
    %v2322 = vunpack.c.l.b16 %v215
    %v2323 = vunpack.c.l.b16 %v216
    %v2324 = vunpack.c.l.b16 %v217
    %v2325 = vunpack.c.l.b16 %v218
    %v2326 = vunpack.c.l.b16 %v219
    %v2327 = vunpack.c.l.b16 %v220
    %v2328 = vunpack.c.l.b16 %v221
    %v2329 = vunpack.c.l.b16 %v222
    %v2330 = vunpack.c.l.b16 %v223
    %v2331 = vunpack.c.l.b16 %v224
    %v2332 = vunpack.c.l.b16 %v225
    %v2333 = vunpack.c.l.b16 %v226
    %v2334 = vunpack.c.l.b16 %v227
    %v2335 = vunpack.c.l.b16 %v228
    %v2336 = vunpack.c.l.b16 %v229
    %v2337 = vunpack.c.l.b16 %v230
    %v2338 = vunpack.c.l.b16 %v231
    %v2339 = vunpack.c.l.b16 %v232
    %v2340 = vunpack.c.l.b16 %v233
    %v2341 = vunpack.c.l.b16 %v234
    %v2342 = vunpack.c.l.b16 %v235
    %v2343 = vunpack.c.l.b16 %v236
    %v2344 = vunpack.c.l.b16 %v237
    %v2345 = vunpack.c.l.b16 %v238
    %v2346 = vunpack.c.l.b16 %v239
    %v2347 = vunpack.c.l.b16 %v240
    %v2348 = vunpack.c.l.b16 %v241
    %v2349 = vunpack.c.l.b16 %v242
    %v2350 = vunpack.c.l.b16 %v243
    %v2351 = vunpack.c.l.b16 %v244
    %v2352 = vunpack.c.l.b16 %v245
    %v2353 = vunpack.c.l.b16 %v246
    %v2354 = vunpack.c.l.b16 %v247
    %v2355 = vunpack.c.l.b16 %v248
    %v2356 = vunpack.c.l.b16 %v249
    %v2357 = vunpack.c.l.b16 %v250
    %v2358 = vunpack.c.l.b16 %v251
    %v2359 = vunpack.c.l.b16 %v252
    %v2360 = vunpack.c.l.b16 %v253
    %v2361 = vunpack.c.l.b16 %v254
    %v2362 = vunpack.c.l.b16 %v255
    %v2363 = vunpack.c.l.b16 %v256
    %v2364 = vunpack.c.l.b16 %v257
    %v2365 = vunpack.c.l.b16 %v258
    %v2366 = vunpack.c.l.b16 %v259
    %v2367 = vunpack.c.l.b16 %v260
    %v2368 = vunpack.c.l.b16 %v261
    %v2369 = vunpack.c.l.b16 %v262
    %v2370 = vunpack.c.l.b16 %v263
    %v2371 = vunpack.c.l.b16 %v264
    %v2372 = vunpack.c.l.b16 %v265
    %v2373 = vunpack.c.l.b16 %v266
    %v2374 = vunpack.c.l.b16 %v267
    %v2375 = vunpack.c.l.b16 %v268
    %v2376 = vunpack.c.l.b16 %v269
    %v2377 = vunpack.c.l.b16 %v270
    %v2378 = vunpack.c.l.b16 %v271
    %v2379 = vunpack.c.l.b16 %v272
    %v2380 = vunpack.c.l.b16 %v273
    %v2381 = vunpack.c.l.b16 %v274
    %v2382 = vunpack.c.l.b16 %v275
    %v2383 = vunpack.c.l.b16 %v276
    %v2384 = vunpack.c.l.b16 %v277
    %v2385 = vunpack.c.l.b16 %v278
    %v2386 = vunpack.c.l.b16 %v279
    %v2387 = vunpack.c.l.b16 %v280
    %v2388 = vunpack.c.l.b16 %v281
    %v2389 = vunpack.c.l.b16 %v282
    %v2390 = vunpack.c.l.b16 %v283
    %v2391 = vunpack.c.l.b16 %v284
    %v2392 = vunpack.c.l.b16 %v285
    %v2393 = vunpack.c.l.b16 %v286
    %v2394 = vunpack.c.l.b16 %v287
    %v2395 = vunpack.c.l.b16 %v288
    %v2396 = vunpack.c.l.b16 %v289
    %v2397 = vunpack.c.l.b16 %v290
    %v2398 = vunpack.c.l.b16 %v291
    %v2399 = vunpack.c.l.b16 %v292
    %v2400 = vunpack.c.l.b16 %v293
    %v2401 = vunpack.c.l.b16 %v294
    %v2402 = vunpack.c.l.b16 %v295
    %v2403 = vunpack.c.l.b16 %v296
    %v2404 = vunpack.c.l.b16 %v297
    %v2405 = vunpack.c.l.b16 %v298
    %v2406 = vunpack.c.l.b16 %v299
    %v2407 = vunpack.c.l.b16 %v300
    %v2408 = vunpack.c.l.b16 %v301
    %v2409 = vunpack.c.l.b16 %v302
    %v2410 = vunpack.c.l.b16 %v303
    %v2411 = vunpack.c.l.b16 %v304
    %v2412 = vunpack.c.l.b16 %v305
    %v2413 = vunpack.c.l.b16 %v306
    %v2414 = vunpack.c.l.b16 %v307
    %v2415 = vunpack.c.l.b16 %v308
    %v2416 = vunpack.c.l.b16 %v309
    %v2417 = vunpack.c.l.b16 %v310
    %v2418 = vunpack.c.l.b16 %v311
    %v2419 = vunpack.c.l.b16 %v312
    %v2420 = vunpack.c.l.b16 %v313
    %v2421 = vunpack.c.l.b16 %v314
    %v2422 = vunpack.c.l.b16 %v315
    %v2423 = vunpack.c.l.b16 %v316
    %v2424 = vunpack.c.l.b16 %v317
    %v2425 = vunpack.c.l.b16 %v318
    %v2426 = vunpack.c.l.b16 %v319
    %v2427 = vunpack.c.l.b16 %v320
    %v2428 = vunpack.c.l.b16 %v321
    %v2429 = vunpack.c.l.b16 %v322
    %v2430 = vunpack.c.l.b16 %v323
    %v2431 = vunpack.c.l.b16 %v324
    %v2432 = vunpack.c.l.b16 %v325
    %v2433 = vunpack.c.l.b16 %v326
    %v2434 = vunpack.c.l.b16 %v327
    %v2435 = vunpack.c.l.b16 %v328
    %v2436 = vunpack.c.l.b16 %v329
    %v2437 = vunpack.c.l.b16 %v330
    %v2438 = vunpack.c.l.b16 %v331
    %v2439 = vunpack.c.l.b16 %v332
    %v2440 = vunpack.c.l.b16 %v333
    %v2441 = vunpack.c.l.b16 %v334
    %v2442 = vunpack.c.l.b16 %v335
    %v2443 = vunpack.c.l.b16 %v336
    %v2444 = vunpack.c.l.b16 %v337
    %v2445 = vunpack.c.l.b16 %v338
    %v2446 = vunpack.c.l.b16 %v339
    %v2447 = vunpack.c.l.b16 %v340
    %v2448 = vunpack.c.l.b16 %v341
    %v2449 = vunpack.c.l.b16 %v342
    %v2450 = vunpack.c.l.b16 %v343
    %v2451 = vunpack.c.l.b16 %v344
    %v2452 = vunpack.c.l.b16 %v345
    %v2453 = vunpack.c.l.b16 %v346
    %v2454 = vunpack.c.l.b16 %v347
    %v2455 = vunpack.c.l.b16 %v348
    %v2456 = vunpack.c.l.b16 %v349
    %v2457 = vunpack.c.l.b16 %v350
    %v2458 = vunpack.c.l.b16 %v351
    %v2459 = vunpack.c.l.b16 %v352
    %v2460 = vunpack.c.l.b16 %v353
    %v2461 = vunpack.c.l.b16 %v354
    %v2462 = vunpack.c.l.b16 %v355
    %v2463 = vunpack.c.l.b16 %v356
    %v2464 = vunpack.c.l.b16 %v357
    %v2465 = vunpack.c.l.b16 %v358
    %v2466 = vunpack.c.l.b16 %v359
    %v2467 = vunpack.c.l.b16 %v360
    %v2468 = vunpack.c.l.b16 %v361
    %v2469 = vunpack.c.l.b16 %v362
    %v2470 = vunpack.c.l.b16 %v363
    %v2471 = vunpack.c.l.b16 %v364
    %v2472 = vunpack.c.l.b16 %v365
    %v2473 = vunpack.c.l.b16 %v366
    %v2474 = vunpack.c.l.b16 %v367
    %v2475 = vunpack.c.l.b16 %v368
    %v2476 = vunpack.c.l.b16 %v369
    %v2477 = vunpack.c.l.b16 %v370
    %v2478 = vunpack.c.l.b16 %v371
    %v2479 = vunpack.c.l.b16 %v372
    %v2480 = vunpack.c.l.b16 %v373
    %v2481 = vunpack.c.l.b16 %v374
    %v2482 = vunpack.c.l.b16 %v375
    %v2483 = vunpack.c.l.b16 %v376
    %v2484 = vunpack.c.l.b16 %v377
    %v2485 = vunpack.c.l.b16 %v378
    %v2486 = vunpack.c.l.b16 %v379
    %v2487 = vunpack.c.l.b16 %v380
    %v2488 = vunpack.c.l.b16 %v381
    %v2489 = vunpack.c.l.b16 %v382
    %v2490 = vunpack.c.l.b16 %v383
    %v2491 = vunpack.c.l.b16 %v384
    %v2492 = vunpack.c.l.b16 %v385
    %v2493 = vunpack.c.l.b16 %v386
    %v2494 = vunpack.c.l.b16 %v387
    %v2495 = vunpack.c.l.b16 %v388
    %v2496 = vunpack.c.l.b16 %v389
    %v2497 = vunpack.c.l.b16 %v390
    %v2498 = vunpack.c.l.b16 %v391
    %v2499 = vunpack.c.l.b16 %v392
    %v2500 = vunpack.c.l.b16 %v393
    %v2501 = vunpack.c.l.b16 %v394
    %v2502 = vunpack.c.l.b16 %v395
    %v2503 = vunpack.c.l.b16 %v396
    %v2504 = vunpack.c.l.b16 %v397
    %v2505 = vunpack.c.l.b16 %v398
    %v2506 = vunpack.c.l.b16 %v399
    %v2507 = vunpack.c.l.b16 %v400
    %v2508 = vunpack.c.l.b16 %v401
    %v2509 = vunpack.c.l.b16 %v402
    %v2510 = vunpack.c.l.b16 %v403
    %v2511 = vunpack.c.l.b16 %v404
    %v2512 = vunpack.c.l.b16 %v405
    %v2513 = vunpack.c.l.b16 %v406
    %v2514 = vunpack.c.l.b16 %v407
    %v2515 = vunpack.c.l.b16 %v408
    %v2516 = vunpack.c.l.b16 %v409
    %v2517 = vunpack.c.l.b16 %v410
    %v2518 = vunpack.c.l.b16 %v411
    %v2519 = vunpack.c.l.b16 %v412
    %v2520 = vunpack.c.l.b16 %v413
    %v2521 = vunpack.c.l.b16 %v414
    %v2522 = vunpack.c.l.b16 %v415
    %v2523 = vunpack.c.l.b16 %v416
    %v2524 = vunpack.c.l.b16 %v417
    %v2525 = vunpack.c.l.b16 %v418
    %v2526 = vunpack.c.l.b16 %v419
    %v2527 = vunpack.c.l.b16 %v420
    %v2528 = vunpack.c.l.b16 %v421
    %v2529 = vunpack.c.l.b16 %v422
    %v2530 = vunpack.c.l.b16 %v423
    %v2531 = vunpack.c.l.b16 %v424
    %v2532 = vunpack.c.l.b16 %v425
    %v2533 = vunpack.c.l.b16 %v426
    %v2534 = vunpack.c.l.b16 %v427
    %v2535 = vunpack.c.l.b16 %v428
    %v2536 = vunpack.c.l.b16 %v429
    %v2537 = vunpack.c.l.b16 %v430
    %v2538 = vunpack.c.l.b16 %v431
    %v2539 = vunpack.c.l.b16 %v432
    %v2540 = vunpack.c.l.b16 %v433
    %v2541 = vunpack.c.l.b16 %v434
    %v2542 = vunpack.c.l.b16 %v435
    %v2543 = vunpack.c.l.b16 %v436
    %v2544 = vunpack.c.l.b16 %v437
    %v2545 = vunpack.c.l.b16 %v438
    %v2546 = vunpack.c.l.b16 %v439
    %v2547 = vunpack.c.l.b16 %v440
    %v2548 = vunpack.c.l.b16 %v441
    %v2549 = vunpack.c.l.b16 %v442
    %v2550 = vunpack.c.l.b16 %v443
    %v2551 = vunpack.c.l.b16 %v444
    %v2552 = vunpack.c.l.b16 %v445
    %v2553 = vunpack.c.l.b16 %v446
    %v2554 = vunpack.c.l.b16 %v447
    %v2555 = vunpack.c.l.b16 %v448
    %v2556 = vunpack.c.l.b16 %v449
    %v2557 = vunpack.c.l.b16 %v450
    %v2558 = vunpack.c.l.b16 %v451
    %v2559 = vunpack.c.l.b16 %v452
    %v2560 = vunpack.c.l.b16 %v453
    %v2561 = vunpack.c.l.b16 %v454
    %v2562 = vunpack.c.l.b16 %v455
    %v2563 = vunpack.c.l.b16 %v456
    %v2564 = vunpack.c.l.b16 %v457
    %v2565 = vunpack.c.l.b16 %v458
    %v2566 = vunpack.c.l.b16 %v459
    %v2567 = vunpack.c.l.b16 %v460
    %v2568 = vunpack.c.l.b16 %v461
    %v2569 = vunpack.c.l.b16 %v462
    %v2570 = vunpack.c.l.b16 %v463
    %v2571 = vunpack.c.l.b16 %v464
    %v2572 = vunpack.c.l.b16 %v465
    %v2573 = vunpack.c.l.b16 %v466
    %v2574 = vunpack.c.l.b16 %v467
    %v2575 = vunpack.c.l.b16 %v468
    %v2576 = vunpack.c.l.b16 %v469
    %v2577 = vunpack.c.l.b16 %v470
    %v2578 = vunpack.c.l.b16 %v471
    %v2579 = vunpack.c.l.b16 %v472
    %v2580 = vunpack.c.l.b16 %v473
    %v2581 = vunpack.c.l.b16 %v474
    %v2582 = vunpack.c.l.b16 %v475
    %v2583 = vunpack.c.l.b16 %v476
    %v2584 = vunpack.c.l.b16 %v477
    %v2585 = vunpack.c.l.b16 %v478
    %v2586 = vunpack.c.l.b16 %v479
    %v2587 = vunpack.c.l.b16 %v480
    %v2588 = vunpack.c.l.b16 %v481
    %v2589 = vunpack.c.l.b16 %v482
    %v2590 = vunpack.c.l.b16 %v483
    %v2591 = vunpack.c.l.b16 %v484
    %v2592 = vunpack.c.l.b16 %v485
    %v2593 = vunpack.c.l.b16 %v486
    %v2594 = vunpack.c.l.b16 %v487
    %v2595 = vunpack.c.l.b16 %v488
    %v2596 = vunpack.c.l.b16 %v489
    %v2597 = vunpack.c.l.b16 %v490
    %v2598 = vunpack.c.l.b16 %v491
    %v2599 = vunpack.c.l.b16 %v492
    %v2600 = vunpack.c.l.b16 %v493
    %v2601 = vunpack.c.l.b16 %v494
    %v2602 = vunpack.c.l.b16 %v495
    %v2603 = vunpack.c.l.b16 %v496
    %v2604 = vunpack.c.l.b16 %v497
    %v2605 = vunpack.c.l.b16 %v498
    %v2606 = vunpack.c.l.b16 %v499
    %v2607 = vunpack.c.l.b16 %v500
    %v2608 = vunpack.c.l.b16 %v501
    %v2609 = vunpack.c.l.b16 %v502
    %v2610 = vunpack.c.l.b16 %v503
    %v2611 = vunpack.c.l.b16 %v504
    %v2612 = vunpack.c.l.b16 %v505
    %v2613 = vunpack.c.l.b16 %v506
    %v2614 = vunpack.c.l.b16 %v507
    %v2615 = vunpack.c.l.b16 %v508
    %v2616 = vunpack.c.l.b16 %v509
    %v2617 = vunpack.c.l.b16 %v510
    %v2618 = vunpack.c.l.b16 %v511
    %v2619 = vunpack.c.l.b16 %v512
    %v2620 = vunpack.c.l.b16 %v513
    %v2621 = vunpack.c.l.b16 %v514
    %v2622 = vunpack.c.l.b16 %v515
    %v2623 = vunpack.c.l.b16 %v516
    %v2624 = vunpack.c.l.b16 %v517
    %v2625 = vunpack.c.l.b16 %v518
    %v2626 = vunpack.c.l.b16 %v519
    %v2627 = vunpack.c.l.b16 %v520
    %v2628 = vunpack.c.l.b16 %v521
    %v2629 = vunpack.c.l.b16 %v522
    %v2630 = vunpack.c.l.b16 %v523
    %v2631 = vunpack.c.l.b16 %v524
    %v2632 = vunpack.c.l.b16 %v525
    %v2633 = vunpack.c.l.b16 %v526
    %v2634 = vunpack.c.l.b16 %v527
    %v2635 = vunpack.c.l.b16 %v528
    %v2636 = vunpack.c.l.b16 %v529
    %v2637 = vunpack.c.l.b16 %v530
    %v2638 = vunpack.c.l.b16 %v531
    %v2639 = vunpack.c.l.b16 %v532
    %v2640 = vunpack.c.l.b16 %v533
    %v2641 = vunpack.c.l.b16 %v534
    %v2642 = vunpack.c.l.b16 %v535
    %v2643 = vunpack.c.l.b16 %v536
    %v2644 = vunpack.c.l.b16 %v537
    %v2645 = vunpack.c.l.b16 %v538
    %v2646 = vunpack.c.l.b16 %v539
    %v2647 = vunpack.c.l.b16 %v540
    %v2648 = vunpack.c.l.b16 %v541
    %v2649 = vunpack.c.l.b16 %v542
    %v2650 = vunpack.c.l.b16 %v543
    %v2651 = vunpack.c.l.b16 %v544
    %v2652 = vunpack.c.l.b16 %v545
    %v2653 = vunpack.c.l.b16 %v546
    %v2654 = vunpack.c.l.b16 %v547
    %v2655 = vunpack.c.l.b16 %v548
    %v2656 = vunpack.c.l.b16 %v549
    %v2657 = vunpack.c.l.b16 %v550
    %v2658 = vunpack.c.l.b16 %v551
    %v2659 = vunpack.c.l.b16 %v552
    %v2660 = vunpack.c.l.b16 %v553
    %v2661 = vunpack.c.l.b16 %v554
    %v2662 = vunpack.c.l.b16 %v555
    %v2663 = vunpack.c.l.b16 %v556
    %v2664 = vunpack.c.l.b16 %v557
    %v2665 = vunpack.c.l.b16 %v558
    %v2666 = vunpack.c.l.b16 %v559
    %v2667 = vunpack.c.l.b16 %v560
    %v2668 = vunpack.c.l.b16 %v561
    %v2669 = vunpack.c.l.b16 %v562
    %v2670 = vunpack.c.l.b16 %v563
    %v2671 = vunpack.c.l.b16 %v564
    %v2672 = vunpack.c.l.b16 %v565
    %v2673 = vunpack.c.l.b16 %v566
    %v2674 = vunpack.c.l.b16 %v567
    %v2675 = vunpack.c.l.b16 %v568
    %v2676 = vunpack.c.l.b16 %v569
    %v2677 = vunpack.c.l.b16 %v570
    %v2678 = vunpack.c.l.b16 %v571
    %v2679 = vunpack.c.l.b16 %v572
    %v2680 = vunpack.c.l.b16 %v573
    %v2681 = vunpack.c.l.b16 %v574
    %v2682 = vunpack.c.l.b16 %v575
    %v2683 = vunpack.c.l.b16 %v576
    %v2684 = vunpack.c.l.b16 %v577
    %v2685 = vunpack.c.l.b16 %v578
    %v2686 = vunpack.c.l.b16 %v579
    %v2687 = vunpack.c.l.b16 %v580
    %v2688 = vunpack.c.l.b16 %v581
    %v2689 = vunpack.c.l.b16 %v582
    %v2690 = vunpack.c.l.b16 %v583
    %v2691 = vunpack.c.l.b16 %v584
    %v2692 = vunpack.c.l.b16 %v585
    %v2693 = vunpack.c.l.b16 %v586
    %v2694 = vunpack.c.l.b16 %v587
    %v2695 = vunpack.c.l.b16 %v588
    %v2696 = vunpack.c.l.b16 %v589
    %v2697 = vunpack.c.l.b16 %v590
    %v2698 = vunpack.c.l.b16 %v591
    %v2699 = vunpack.c.l.b16 %v592
    %v2700 = vunpack.c.l.b16 %v593
    %v2701 = vunpack.c.l.b16 %v594
    %v2702 = vunpack.c.l.b16 %v595
    %v2703 = vunpack.c.l.b16 %v596
    %v2704 = vunpack.c.l.b16 %v597
    %v2705 = vunpack.c.l.b16 %v598
    %v2706 = vunpack.c.l.b16 %v599
    %v2707 = vunpack.c.l.b16 %v600
    %v2708 = vunpack.c.l.b16 %v601
    %v2709 = vunpack.c.l.b16 %v602
    %v2710 = vunpack.c.l.b16 %v603
    %v2711 = vunpack.c.l.b16 %v604
    %v2712 = vunpack.c.l.b16 %v605
    %v2713 = vunpack.c.l.b16 %v606
    %v2714 = vunpack.c.l.b16 %v607
    %v2715 = vunpack.c.l.b16 %v608
    %v2716 = vunpack.c.l.b16 %v609
    %v2717 = vunpack.c.l.b16 %v610
    %v2718 = vunpack.c.l.b16 %v611
    %v2719 = vunpack.c.l.b16 %v612
    %v2720 = vunpack.c.l.b16 %v613
    %v2721 = vunpack.c.l.b16 %v614
    %v2722 = vunpack.c.l.b16 %v615
    %v2723 = vunpack.c.l.b16 %v616
    %v2724 = vunpack.c.l.b16 %v617
    %v2725 = vunpack.c.l.b16 %v618
    %v2726 = vunpack.c.l.b16 %v619
    %v2727 = vunpack.c.l.b16 %v620
    %v2728 = vunpack.c.l.b16 %v621
    %v2729 = vunpack.c.l.b16 %v622
    %v2730 = vunpack.c.l.b16 %v623
    %v2731 = vunpack.c.l.b16 %v624
    %v2732 = vunpack.c.l.b16 %v625
    %v2733 = vunpack.c.l.b16 %v626
    %v2734 = vunpack.c.l.b16 %v627
    %v2735 = vunpack.c.l.b16 %v628
    %v2736 = vunpack.c.l.b16 %v629
    %v2737 = vunpack.c.l.b16 %v630
    %v2738 = vunpack.c.l.b16 %v631
    %v2739 = vunpack.c.l.b16 %v632
    %v2740 = vunpack.c.l.b16 %v633
    %v2741 = vunpack.c.l.b16 %v634
    %v2742 = vunpack.c.l.b16 %v635
    %v2743 = vunpack.c.l.b16 %v636
    %v2744 = vunpack.c.l.b16 %v637
    %v2745 = vunpack.c.l.b16 %v638
    %v2746 = vunpack.c.l.b16 %v639
    %v2747 = vunpack.c.l.b16 %v640
    %v2748 = vunpack.c.l.b16 %v641
    %v2749 = vunpack.c.l.b16 %v642
    %v2750 = vunpack.c.l.b16 %v643
    %v2751 = vunpack.c.l.b16 %v644
    %v2752 = vunpack.c.l.b16 %v645
    %v2753 = vunpack.c.l.b16 %v646
    %v2754 = vunpack.c.l.b16 %v647
    %v2755 = vunpack.c.l.b16 %v648
    %v2756 = vunpack.c.l.b16 %v649
    %v2757 = vunpack.c.l.b16 %v650
    %v2758 = vunpack.c.l.b16 %v651
    %v2759 = vunpack.c.l.b16 %v652
    %v2760 = vunpack.c.l.b16 %v653
    %v2761 = vunpack.c.l.b16 %v654
    %v2762 = vunpack.c.l.b16 %v655
    %v2763 = vunpack.c.l.b16 %v656
    %v2764 = vunpack.c.l.b16 %v657
    %v2765 = vunpack.c.l.b16 %v658
    %v2766 = vunpack.c.l.b16 %v659
    %v2767 = vunpack.c.l.b16 %v660
    %v2768 = vunpack.c.l.b16 %v661
    %v2769 = vunpack.c.l.b16 %v662
    %v2770 = vunpack.c.l.b16 %v663
    %v2771 = vunpack.c.l.b16 %v664
    %v2772 = vunpack.c.l.b16 %v665
    %v2773 = vunpack.c.l.b16 %v666
    %v2774 = vunpack.c.l.b16 %v667
    %v2775 = vunpack.c.l.b16 %v668
    %v2776 = vunpack.c.l.b16 %v669
    %v2777 = vunpack.c.l.b16 %v670
    %v2778 = vunpack.c.l.b16 %v671
    %v2779 = vunpack.c.l.b16 %v672
    %v2780 = vunpack.c.l.b16 %v673
    %v2781 = vunpack.c.l.b16 %v674
    %v2782 = vunpack.c.l.b16 %v675
    %v2783 = vunpack.c.l.b16 %v676
    %v2784 = vunpack.c.l.b16 %v677
    %v2785 = vunpack.c.l.b16 %v678
    %v2786 = vunpack.c.l.b16 %v679
    %v2787 = vunpack.c.l.b16 %v680
    %v2788 = vunpack.c.l.b16 %v681
    %v2789 = vunpack.c.l.b16 %v682
    %v2790 = vunpack.c.l.b16 %v683
    %v2791 = vunpack.c.l.b16 %v684
    %v2792 = vunpack.c.l.b16 %v685
    %v2793 = vunpack.c.l.b16 %v686
    %v2794 = vunpack.c.l.b16 %v687
    %v2795 = vunpack.c.l.b16 %v688
    %v2796 = vunpack.c.l.b16 %v689
    %v2797 = vunpack.c.l.b16 %v690
    %v2798 = vunpack.c.l.b16 %v691
    %v2799 = vunpack.c.l.b16 %v692
    %v2800 = vunpack.c.l.b16 %v693
    %v2801 = vunpack.c.l.b16 %v694
    %v2802 = vunpack.c.l.b16 %v695
    %v2803 = vunpack.c.l.b16 %v696
    %v2804 = vunpack.c.l.b16 %v697
    %v2805 = vunpack.c.l.b16 %v698
    %v2806 = vunpack.c.l.b16 %v699
    %v2807 = vunpack.c.l.b16 %v700
    %v2808 = vunpack.c.l.b16 %v701
    %v2809 = vunpack.c.l.b16 %v702
    %v2810 = vunpack.c.l.b16 %v703
    %v2811 = vunpack.c.l.b16 %v704
    %v2812 = vunpack.c.l.b16 %v705
    %v2813 = vunpack.c.l.b16 %v706
    %v2814 = vunpack.c.l.b16 %v707
    %v2815 = vunpack.c.l.b16 %v708
    %v2816 = vunpack.c.l.b16 %v709
    %v2817 = vunpack.c.l.b16 %v710
    %v2818 = vunpack.c.l.b16 %v711
    %v2819 = vunpack.c.l.b16 %v712
    %v2820 = vunpack.c.l.b16 %v713
    %v2821 = vunpack.c.l.b16 %v714
    %v2822 = vunpack.c.l.b16 %v715
    %v2823 = vunpack.c.l.b16 %v716
    %v2824 = vunpack.c.l.b16 %v717
    %v2825 = vunpack.c.l.b16 %v718
    %v2826 = vunpack.c.l.b16 %v719
    %v2827 = vunpack.c.l.b16 %v720
    %v2828 = vunpack.c.l.b16 %v721
    %v2829 = vunpack.c.l.b16 %v722
    %v2830 = vunpack.c.l.b16 %v723
    %v2831 = vunpack.c.l.b16 %v724
    %v2832 = vunpack.c.l.b16 %v725
    %v2833 = vunpack.c.l.b16 %v726
    %v2834 = vunpack.c.l.b16 %v727
    %v2835 = vunpack.c.l.b16 %v728
    %v2836 = vunpack.c.l.b16 %v729
    %v2837 = vunpack.c.l.b16 %v730
    %v2838 = vunpack.c.l.b16 %v731
    %v2839 = vunpack.c.l.b16 %v732
    %v2840 = vunpack.c.l.b16 %v733
    %v2841 = vunpack.c.l.b16 %v734
    %v2842 = vunpack.c.l.b16 %v735
    %v2843 = vunpack.c.l.b16 %v736
    %v2844 = vunpack.c.l.b16 %v737
    %v2845 = vunpack.c.l.b16 %v738
    %v2846 = vunpack.c.l.b16 %v739
    %v2847 = vunpack.c.l.b16 %v740
    %v2848 = vunpack.c.l.b16 %v741
    %v2849 = vunpack.c.l.b16 %v742
    %v2850 = vunpack.c.l.b16 %v743
    %v2851 = vunpack.c.l.b16 %v744
    %v2852 = vunpack.c.l.b16 %v745
    %v2853 = vunpack.c.l.b16 %v746
    %v2854 = vunpack.c.l.b16 %v747
    %v2855 = vunpack.c.l.b16 %v748
    %v2856 = vunpack.c.l.b16 %v749
    %v2857 = vunpack.c.l.b16 %v750
    %v2858 = vunpack.c.l.b16 %v751
    %v2859 = vunpack.c.l.b16 %v752
    %v2860 = vunpack.c.l.b16 %v753
    %v2861 = vunpack.c.l.b16 %v754
    %v2862 = vunpack.c.l.b16 %v755
    %v2863 = vunpack.c.l.b16 %v756
    %v2864 = vunpack.c.l.b16 %v757
    %v2865 = vunpack.c.l.b16 %v758
    %v2866 = vunpack.c.l.b16 %v759
    %v2867 = vunpack.c.l.b16 %v760
    %v2868 = vunpack.c.l.b16 %v761
    %v2869 = vunpack.c.l.b16 %v762
    %v2870 = vunpack.c.l.b16 %v763
    %v2871 = vunpack.c.l.b16 %v764
    %v2872 = vunpack.c.l.b16 %v765
    %v2873 = vunpack.c.l.b16 %v766
    %v2874 = vunpack.c.l.b16 %v767
    %v2875 = vunpack.c.l.b16 %v768
    %v2876 = vunpack.c.l.b16 %v769
    %v2877 = vunpack.c.l.b16 %v770
    %v2878 = vunpack.c.l.b16 %v771
    %v2879 = vunpack.c.l.b16 %v772
    %v2880 = vunpack.c.l.b16 %v773
    %v2881 = vunpack.c.l.b16 %v774
    %v2882 = vunpack.c.l.b16 %v775
    %v2883 = vunpack.c.l.b16 %v776
    %v2884 = vunpack.c.l.b16 %v777
    %v2885 = vunpack.c.l.b16 %v778
    %v2886 = vunpack.c.l.b16 %v779
    %v2887 = vunpack.c.l.b16 %v780
    %v2888 = vunpack.c.l.b16 %v781
    %v2889 = vunpack.c.l.b16 %v782
    %v2890 = vunpack.c.l.b16 %v783
    %v2891 = vunpack.c.l.b16 %v784
    %v2892 = vunpack.c.l.b16 %v785
    %v2893 = vunpack.c.l.b16 %v786
    %v2894 = vunpack.c.l.b16 %v787
    %v2895 = vunpack.c.l.b16 %v788
    %v2896 = vunpack.c.l.b16 %v789
    %v2897 = vunpack.c.l.b16 %v790
    %v2898 = vunpack.c.l.b16 %v791
    %v2899 = vunpack.c.l.b16 %v792
    %v2900 = vunpack.c.l.b16 %v793
    %v2901 = vunpack.c.l.b16 %v794
    %v2902 = vunpack.c.l.b16 %v795
    %v2903 = vunpack.c.l.b16 %v796
    %v2904 = vunpack.c.l.b16 %v797
    %v2905 = vunpack.c.l.b16 %v798
    %v2906 = vunpack.c.l.b16 %v799
    %v2907 = vunpack.c.l.b16 %v800
    %v2908 = vunpack.c.l.b16 %v801
    %v2909 = vunpack.c.l.b16 %v802
    %v2910 = vunpack.c.l.b16 %v803
    %v2911 = vunpack.c.l.b16 %v804
    %v2912 = vunpack.c.l.b16 %v805
    %v2913 = vunpack.c.l.b16 %v806
    %v2914 = vunpack.c.l.b16 %v807
    %v2915 = vunpack.c.l.b16 %v808
    %v2916 = vunpack.c.l.b16 %v809
    %v2917 = vunpack.c.l.b16 %v810
    %v2918 = vunpack.c.l.b16 %v811
    %v2919 = vunpack.c.l.b16 %v812
    %v2920 = vunpack.c.l.b16 %v813
    %v2921 = vunpack.c.l.b16 %v814
    %v2922 = vunpack.c.l.b16 %v815
    %v2923 = vunpack.c.l.b16 %v816
    %v2924 = vunpack.c.l.b16 %v817
    %v2925 = vunpack.c.l.b16 %v818
    %v2926 = vunpack.c.l.b16 %v819
    %v2927 = vunpack.c.l.b16 %v820
    %v2928 = vunpack.c.l.b16 %v821
    %v2929 = vunpack.c.l.b16 %v822
    %v2930 = vunpack.c.l.b16 %v823
    %v2931 = vunpack.c.l.b16 %v824
    %v2932 = vunpack.c.l.b16 %v825
    %v2933 = vunpack.c.l.b16 %v826
    %v2934 = vunpack.c.l.b16 %v827
    %v2935 = vunpack.c.l.b16 %v828
    %v2936 = vunpack.c.l.b16 %v829
    %v2937 = vunpack.c.l.b16 %v830
    %v2938 = vunpack.c.l.b16 %v831
    %v2939 = vunpack.c.l.b16 %v832
    %v2940 = vunpack.c.l.b16 %v833
    %v2941 = vunpack.c.l.b16 %v834
    %v2942 = vunpack.c.l.b16 %v835
    %v2943 = vunpack.c.l.b16 %v836
    %v2944 = vunpack.c.l.b16 %v837
    %v2945 = vunpack.c.l.b16 %v838
    %v2946 = vunpack.c.l.b16 %v839
    %v2947 = vunpack.c.l.b16 %v840
    %v2948 = vunpack.c.l.b16 %v841
    %v2949 = vunpack.c.l.b16 %v842
    %v2950 = vunpack.c.l.b16 %v843
    %v2951 = vunpack.c.l.b16 %v844
    %v2952 = vunpack.c.l.b16 %v845
    %v2953 = vunpack.c.l.b16 %v846
    %v2954 = vunpack.c.l.b16 %v847
    %v2955 = vunpack.c.l.b16 %v848
    %v2956 = vunpack.c.l.b16 %v849
    %v2957 = vunpack.c.l.b16 %v850
    %v2958 = vunpack.c.l.b16 %v851
    %v2959 = vunpack.c.l.b16 %v852
    %v2960 = vunpack.c.l.b16 %v853
    %v2961 = vunpack.c.l.b16 %v854
    %v2962 = vunpack.c.l.b16 %v855
    %v2963 = vunpack.c.l.b16 %v856
    %v2964 = vunpack.c.l.b16 %v857
    %v2965 = vunpack.c.l.b16 %v858
    %v2966 = vunpack.c.l.b16 %v859
    %v2967 = vunpack.c.l.b16 %v860
    %v2968 = vunpack.c.l.b16 %v861
    %v2969 = vunpack.c.l.b16 %v862
    %v2970 = vunpack.c.l.b16 %v863
    %v2971 = vunpack.c.l.b16 %v864
    %v2972 = vunpack.c.l.b16 %v865
    %v2973 = vunpack.c.l.b16 %v866
    %v2974 = vunpack.c.l.b16 %v867
    %v2975 = vunpack.c.l.b16 %v868
    %v2976 = vunpack.c.l.b16 %v869
    %v2977 = vunpack.c.l.b16 %v870
    %v2978 = vunpack.c.l.b16 %v871
    %v2979 = vunpack.c.l.b16 %v872
    %v2980 = vunpack.c.l.b16 %v873
    %v2981 = vunpack.c.l.b16 %v874
    %v2982 = vunpack.c.l.b16 %v875
    %v2983 = vunpack.c.l.b16 %v876
    %v2984 = vunpack.c.l.b16 %v877
    %v2985 = vunpack.c.l.b16 %v878
    %v2986 = vunpack.c.l.b16 %v879
    %v2987 = vunpack.c.l.b16 %v880
    %v2988 = vunpack.c.l.b16 %v881
    %v2989 = vunpack.c.l.b16 %v882
    %v2990 = vunpack.c.l.b16 %v883
    %v2991 = vunpack.c.l.b16 %v884
    %v2992 = vunpack.c.l.b16 %v885
    %v2993 = vunpack.c.l.b16 %v886
    %v2994 = vunpack.c.l.b16 %v887
    %v2995 = vunpack.c.l.b16 %v888
    %v2996 = vunpack.c.l.b16 %v889
    %v2997 = vunpack.c.l.b16 %v890
    %v2998 = vunpack.c.l.b16 %v891
    %v2999 = vunpack.c.l.b16 %v892
    %v3000 = vunpack.c.l.b16 %v893
    %v3001 = vunpack.c.l.b16 %v894
    %v3002 = vunpack.c.l.b16 %v895
    %v3003 = vunpack.c.l.b16 %v896
    %v3004 = vunpack.c.l.b16 %v897
    %v3005 = vunpack.c.l.b16 %v898
    %v3006 = vunpack.c.l.b16 %v899
    %v3007 = vunpack.c.l.b16 %v900
    %v3008 = vunpack.c.l.b16 %v901
    %v3009 = vunpack.c.l.b16 %v902
    %v3010 = vunpack.c.l.b16 %v903
    %v3011 = vunpack.c.l.b16 %v904
    %v3012 = vunpack.c.l.b16 %v905
    %v3013 = vunpack.c.l.b16 %v906
    %v3014 = vunpack.c.l.b16 %v907
    %v3015 = vunpack.c.l.b16 %v908
    %v3016 = vunpack.c.l.b16 %v909
    %v3017 = vunpack.c.l.b16 %v910
    %v3018 = vunpack.c.l.b16 %v911
    %v3019 = vunpack.c.l.b16 %v912
    %v3020 = vunpack.c.l.b16 %v913
    %v3021 = vunpack.c.l.b16 %v914
    %v3022 = vunpack.c.l.b16 %v915
    %v3023 = vunpack.c.l.b16 %v916
    %v3024 = vunpack.c.l.b16 %v917
    %v3025 = vunpack.c.l.b16 %v918
    %v3026 = vunpack.c.l.b16 %v919
    %v3027 = vunpack.c.l.b16 %v920
    %v3028 = vunpack.c.l.b16 %v921
    %v3029 = vunpack.c.l.b16 %v922
    %v3030 = vunpack.c.l.b16 %v923
    %v3031 = vunpack.c.l.b16 %v924
    %v3032 = vunpack.c.l.b16 %v925
    %v3033 = vunpack.c.l.b16 %v926
    %v3034 = vunpack.c.l.b16 %v927
    %v3035 = vpack.c.b16 %v2236, %v2235
    %v3036 = vpack.c.b16 %v2238, %v2237
    %v3037 = vpack.c.b16 %v2240, %v2239
    %v3038 = vpack.c.b16 %v2242, %v2241
    %v3039 = vpack.c.b16 %v2244, %v2243
    %v3040 = vpack.c.b16 %v2246, %v2245
    %v3041 = vpack.c.b16 %v2248, %v2247
    %v3042 = vpack.c.b16 %v2250, %v2249
    %v3043 = vpack.c.b16 %v2252, %v2251
    %v3044 = vpack.c.b16 %v2254, %v2253
    %v3045 = vpack.c.b16 %v2256, %v2255
    %v3046 = vpack.c.b16 %v2258, %v2257
    %v3047 = vpack.c.b16 %v2260, %v2259
    %v3048 = vpack.c.b16 %v2262, %v2261
    %v3049 = vpack.c.b16 %v2264, %v2263
    %v3050 = vpack.c.b16 %v2266, %v2265
    %v3051 = vpack.c.b16 %v2268, %v2267
    %v3052 = vpack.c.b16 %v2270, %v2269
    %v3053 = vpack.c.b16 %v2272, %v2271
    %v3054 = vpack.c.b16 %v2274, %v2273
    %v3055 = vpack.c.b16 %v2276, %v2275
    %v3056 = vpack.c.b16 %v2278, %v2277
    %v3057 = vpack.c.b16 %v2280, %v2279
    %v3058 = vpack.c.b16 %v2282, %v2281
    %v3059 = vpack.c.b16 %v2284, %v2283
    %v3060 = vpack.c.b16 %v2286, %v2285
    %v3061 = vpack.c.b16 %v2288, %v2287
    %v3062 = vpack.c.b16 %v2290, %v2289
    %v3063 = vpack.c.b16 %v2292, %v2291
    %v3064 = vpack.c.b16 %v2294, %v2293
    %v3065 = vpack.c.b16 %v2296, %v2295
    %v3066 = vpack.c.b16 %v2298, %v2297
    %v3067 = vpack.c.b16 %v2300, %v2299
    %v3068 = vpack.c.b16 %v2302, %v2301
    %v3069 = vpack.c.b16 %v2304, %v2303
    %v3070 = vpack.c.b16 %v2306, %v2305
    %v3071 = vpack.c.b16 %v2308, %v2307
    %v3072 = vpack.c.b16 %v2310, %v2309
    %v3073 = vpack.c.b16 %v2312, %v2311
    %v3074 = vpack.c.b16 %v2314, %v2313
    %v3075 = vpack.c.b16 %v2316, %v2315
    %v3076 = vpack.c.b16 %v2318, %v2317
    %v3077 = vpack.c.b16 %v2320, %v2319
    %v3078 = vpack.c.b16 %v2322, %v2321
    %v3079 = vpack.c.b16 %v2324, %v2323
    %v3080 = vpack.c.b16 %v2326, %v2325
    %v3081 = vpack.c.b16 %v2328, %v2327
    %v3082 = vpack.c.b16 %v2330, %v2329
    %v3083 = vpack.c.b16 %v2332, %v2331
    %v3084 = vpack.c.b16 %v2334, %v2333
    %v3085 = vpack.c.b16 %v2336, %v2335
    %v3086 = vpack.c.b16 %v2338, %v2337
    %v3087 = vpack.c.b16 %v2340, %v2339
    %v3088 = vpack.c.b16 %v2342, %v2341
    %v3089 = vpack.c.b16 %v2344, %v2343
    %v3090 = vpack.c.b16 %v2346, %v2345
    %v3091 = vpack.c.b16 %v2348, %v2347
    %v3092 = vpack.c.b16 %v2350, %v2349
    %v3093 = vpack.c.b16 %v2352, %v2351
    %v3094 = vpack.c.b16 %v2354, %v2353
    %v3095 = vpack.c.b16 %v2356, %v2355
    %v3096 = vpack.c.b16 %v2358, %v2357
    %v3097 = vpack.c.b16 %v2360, %v2359
    %v3098 = vpack.c.b16 %v2362, %v2361
    %v3099 = vpack.c.b16 %v2364, %v2363
    %v3100 = vpack.c.b16 %v2366, %v2365
    %v3101 = vpack.c.b16 %v2368, %v2367
    %v3102 = vpack.c.b16 %v2370, %v2369
    %v3103 = vpack.c.b16 %v2372, %v2371
    %v3104 = vpack.c.b16 %v2374, %v2373
    %v3105 = vpack.c.b16 %v2376, %v2375
    %v3106 = vpack.c.b16 %v2378, %v2377
    %v3107 = vpack.c.b16 %v2380, %v2379
    %v3108 = vpack.c.b16 %v2382, %v2381
    %v3109 = vpack.c.b16 %v2384, %v2383
    %v3110 = vpack.c.b16 %v2386, %v2385
    %v3111 = vpack.c.b16 %v2388, %v2387
    %v3112 = vpack.c.b16 %v2390, %v2389
    %v3113 = vpack.c.b16 %v2392, %v2391
    %v3114 = vpack.c.b16 %v2394, %v2393
    %v3115 = vpack.c.b16 %v2396, %v2395
    %v3116 = vpack.c.b16 %v2398, %v2397
    %v3117 = vpack.c.b16 %v2400, %v2399
    %v3118 = vpack.c.b16 %v2402, %v2401
    %v3119 = vpack.c.b16 %v2404, %v2403
    %v3120 = vpack.c.b16 %v2406, %v2405
    %v3121 = vpack.c.b16 %v2408, %v2407
    %v3122 = vpack.c.b16 %v2410, %v2409
    %v3123 = vpack.c.b16 %v2412, %v2411
    %v3124 = vpack.c.b16 %v2414, %v2413
    %v3125 = vpack.c.b16 %v2416, %v2415
    %v3126 = vpack.c.b16 %v2418, %v2417
    %v3127 = vpack.c.b16 %v2420, %v2419
    %v3128 = vpack.c.b16 %v2422, %v2421
    %v3129 = vpack.c.b16 %v2424, %v2423
    %v3130 = vpack.c.b16 %v2426, %v2425
    %v3131 = vpack.c.b16 %v2428, %v2427
    %v3132 = vpack.c.b16 %v2430, %v2429
    %v3133 = vpack.c.b16 %v2432, %v2431
    %v3134 = vpack.c.b16 %v2434, %v2433
    %v3135 = vpack.c.b16 %v2436, %v2435
    %v3136 = vpack.c.b16 %v2438, %v2437
    %v3137 = vpack.c.b16 %v2440, %v2439
    %v3138 = vpack.c.b16 %v2442, %v2441
    %v3139 = vpack.c.b16 %v2444, %v2443
    %v3140 = vpack.c.b16 %v2446, %v2445
    %v3141 = vpack.c.b16 %v2448, %v2447
    %v3142 = vpack.c.b16 %v2450, %v2449
    %v3143 = vpack.c.b16 %v2452, %v2451
    %v3144 = vpack.c.b16 %v2454, %v2453
    %v3145 = vpack.c.b16 %v2456, %v2455
    %v3146 = vpack.c.b16 %v2458, %v2457
    %v3147 = vpack.c.b16 %v2460, %v2459
    %v3148 = vpack.c.b16 %v2462, %v2461
    %v3149 = vpack.c.b16 %v2464, %v2463
    %v3150 = vpack.c.b16 %v2466, %v2465
    %v3151 = vpack.c.b16 %v2468, %v2467
    %v3152 = vpack.c.b16 %v2470, %v2469
    %v3153 = vpack.c.b16 %v2472, %v2471
    %v3154 = vpack.c.b16 %v2474, %v2473
    %v3155 = vpack.c.b16 %v2476, %v2475
    %v3156 = vpack.c.b16 %v2478, %v2477
    %v3157 = vpack.c.b16 %v2480, %v2479
    %v3158 = vpack.c.b16 %v2482, %v2481
    %v3159 = vpack.c.b16 %v2484, %v2483
    %v3160 = vpack.c.b16 %v2486, %v2485
    %v3161 = vpack.c.b16 %v2488, %v2487
    %v3162 = vpack.c.b16 %v2490, %v2489
    %v3163 = vpack.c.b16 %v2492, %v2491
    %v3164 = vpack.c.b16 %v2494, %v2493
    %v3165 = vpack.c.b16 %v2496, %v2495
    %v3166 = vpack.c.b16 %v2498, %v2497
    %v3167 = vpack.c.b16 %v2500, %v2499
    %v3168 = vpack.c.b16 %v2502, %v2501
    %v3169 = vpack.c.b16 %v2504, %v2503
    %v3170 = vpack.c.b16 %v2506, %v2505
    %v3171 = vpack.c.b16 %v2508, %v2507
    %v3172 = vpack.c.b16 %v2510, %v2509
    %v3173 = vpack.c.b16 %v2512, %v2511
    %v3174 = vpack.c.b16 %v2514, %v2513
    %v3175 = vpack.c.b16 %v2516, %v2515
    %v3176 = vpack.c.b16 %v2518, %v2517
    %v3177 = vpack.c.b16 %v2520, %v2519
    %v3178 = vpack.c.b16 %v2522, %v2521
    %v3179 = vpack.c.b16 %v2524, %v2523
    %v3180 = vpack.c.b16 %v2526, %v2525
    %v3181 = vpack.c.b16 %v2528, %v2527
    %v3182 = vpack.c.b16 %v2530, %v2529
    %v3183 = vpack.c.b16 %v2532, %v2531
    %v3184 = vpack.c.b16 %v2534, %v2533
    %v3185 = vpack.c.b16 %v2536, %v2535
    %v3186 = vpack.c.b16 %v2538, %v2537
    %v3187 = vpack.c.b16 %v2540, %v2539
    %v3188 = vpack.c.b16 %v2542, %v2541
    %v3189 = vpack.c.b16 %v2544, %v2543
    %v3190 = vpack.c.b16 %v2546, %v2545
    %v3191 = vpack.c.b16 %v2548, %v2547
    %v3192 = vpack.c.b16 %v2550, %v2549
    %v3193 = vpack.c.b16 %v2552, %v2551
    %v3194 = vpack.c.b16 %v2554, %v2553
    %v3195 = vpack.c.b16 %v2556, %v2555
    %v3196 = vpack.c.b16 %v2558, %v2557
    %v3197 = vpack.c.b16 %v2560, %v2559
    %v3198 = vpack.c.b16 %v2562, %v2561
    %v3199 = vpack.c.b16 %v2564, %v2563
    %v3200 = vpack.c.b16 %v2566, %v2565
    %v3201 = vpack.c.b16 %v2568, %v2567
    %v3202 = vpack.c.b16 %v2570, %v2569
    %v3203 = vpack.c.b16 %v2572, %v2571
    %v3204 = vpack.c.b16 %v2574, %v2573
    %v3205 = vpack.c.b16 %v2576, %v2575
    %v3206 = vpack.c.b16 %v2578, %v2577
    %v3207 = vpack.c.b16 %v2580, %v2579
    %v3208 = vpack.c.b16 %v2582, %v2581
    %v3209 = vpack.c.b16 %v2584, %v2583
    %v3210 = vpack.c.b16 %v2586, %v2585
    %v3211 = vpack.c.b16 %v2588, %v2587
    %v3212 = vpack.c.b16 %v2590, %v2589
    %v3213 = vpack.c.b16 %v2592, %v2591
    %v3214 = vpack.c.b16 %v2594, %v2593
    %v3215 = vpack.c.b16 %v2596, %v2595
    %v3216 = vpack.c.b16 %v2598, %v2597
    %v3217 = vpack.c.b16 %v2600, %v2599
    %v3218 = vpack.c.b16 %v2602, %v2601
    %v3219 = vpack.c.b16 %v2604, %v2603
    %v3220 = vpack.c.b16 %v2606, %v2605
    %v3221 = vpack.c.b16 %v2608, %v2607
    %v3222 = vpack.c.b16 %v2610, %v2609
    %v3223 = vpack.c.b16 %v2612, %v2611
    %v3224 = vpack.c.b16 %v2614, %v2613
    %v3225 = vpack.c.b16 %v2616, %v2615
    %v3226 = vpack.c.b16 %v2618, %v2617
    %v3227 = vpack.c.b16 %v2620, %v2619
    %v3228 = vpack.c.b16 %v2622, %v2621
    %v3229 = vpack.c.b16 %v2624, %v2623
    %v3230 = vpack.c.b16 %v2626, %v2625
    %v3231 = vpack.c.b16 %v2628, %v2627
    %v3232 = vpack.c.b16 %v2630, %v2629
    %v3233 = vpack.c.b16 %v2632, %v2631
    %v3234 = vpack.c.b16 %v2634, %v2633
    %v3235 = vpack.c.b16 %v2636, %v2635
    %v3236 = vpack.c.b16 %v2638, %v2637
    %v3237 = vpack.c.b16 %v2640, %v2639
    %v3238 = vpack.c.b16 %v2642, %v2641
    %v3239 = vpack.c.b16 %v2644, %v2643
    %v3240 = vpack.c.b16 %v2646, %v2645
    %v3241 = vpack.c.b16 %v2648, %v2647
    %v3242 = vpack.c.b16 %v2650, %v2649
    %v3243 = vpack.c.b16 %v2652, %v2651
    %v3244 = vpack.c.b16 %v2654, %v2653
    %v3245 = vpack.c.b16 %v2656, %v2655
    %v3246 = vpack.c.b16 %v2658, %v2657
    %v3247 = vpack.c.b16 %v2660, %v2659
    %v3248 = vpack.c.b16 %v2662, %v2661
    %v3249 = vpack.c.b16 %v2664, %v2663
    %v3250 = vpack.c.b16 %v2666, %v2665
    %v3251 = vpack.c.b16 %v2668, %v2667
    %v3252 = vpack.c.b16 %v2670, %v2669
    %v3253 = vpack.c.b16 %v2672, %v2671
    %v3254 = vpack.c.b16 %v2674, %v2673
    %v3255 = vpack.c.b16 %v2676, %v2675
    %v3256 = vpack.c.b16 %v2678, %v2677
    %v3257 = vpack.c.b16 %v2680, %v2679
    %v3258 = vpack.c.b16 %v2682, %v2681
    %v3259 = vpack.c.b16 %v2684, %v2683
    %v3260 = vpack.c.b16 %v2686, %v2685
    %v3261 = vpack.c.b16 %v2688, %v2687
    %v3262 = vpack.c.b16 %v2690, %v2689
    %v3263 = vpack.c.b16 %v2692, %v2691
    %v3264 = vpack.c.b16 %v2694, %v2693
    %v3265 = vpack.c.b16 %v2696, %v2695
    %v3266 = vpack.c.b16 %v2698, %v2697
    %v3267 = vpack.c.b16 %v2700, %v2699
    %v3268 = vpack.c.b16 %v2702, %v2701
    %v3269 = vpack.c.b16 %v2704, %v2703
    %v3270 = vpack.c.b16 %v2706, %v2705
    %v3271 = vpack.c.b16 %v2708, %v2707
    %v3272 = vpack.c.b16 %v2710, %v2709
    %v3273 = vpack.c.b16 %v2712, %v2711
    %v3274 = vpack.c.b16 %v2714, %v2713
    %v3275 = vpack.c.b16 %v2716, %v2715
    %v3276 = vpack.c.b16 %v2718, %v2717
    %v3277 = vpack.c.b16 %v2720, %v2719
    %v3278 = vpack.c.b16 %v2722, %v2721
    %v3279 = vpack.c.b16 %v2724, %v2723
    %v3280 = vpack.c.b16 %v2726, %v2725
    %v3281 = vpack.c.b16 %v2728, %v2727
    %v3282 = vpack.c.b16 %v2730, %v2729
    %v3283 = vpack.c.b16 %v2732, %v2731
    %v3284 = vpack.c.b16 %v2734, %v2733
    %v3285 = vpack.c.b16 %v2736, %v2735
    %v3286 = vpack.c.b16 %v2738, %v2737
    %v3287 = vpack.c.b16 %v2740, %v2739
    %v3288 = vpack.c.b16 %v2742, %v2741
    %v3289 = vpack.c.b16 %v2744, %v2743
    %v3290 = vpack.c.b16 %v2746, %v2745
    %v3291 = vpack.c.b16 %v2748, %v2747
    %v3292 = vpack.c.b16 %v2750, %v2749
    %v3293 = vpack.c.b16 %v2752, %v2751
    %v3294 = vpack.c.b16 %v2754, %v2753
    %v3295 = vpack.c.b16 %v2756, %v2755
    %v3296 = vpack.c.b16 %v2758, %v2757
    %v3297 = vpack.c.b16 %v2760, %v2759
    %v3298 = vpack.c.b16 %v2762, %v2761
    %v3299 = vpack.c.b16 %v2764, %v2763
    %v3300 = vpack.c.b16 %v2766, %v2765
    %v3301 = vpack.c.b16 %v2768, %v2767
    %v3302 = vpack.c.b16 %v2770, %v2769
    %v3303 = vpack.c.b16 %v2772, %v2771
    %v3304 = vpack.c.b16 %v2774, %v2773
    %v3305 = vpack.c.b16 %v2776, %v2775
    %v3306 = vpack.c.b16 %v2778, %v2777
    %v3307 = vpack.c.b16 %v2780, %v2779
    %v3308 = vpack.c.b16 %v2782, %v2781
    %v3309 = vpack.c.b16 %v2784, %v2783
    %v3310 = vpack.c.b16 %v2786, %v2785
    %v3311 = vpack.c.b16 %v2788, %v2787
    %v3312 = vpack.c.b16 %v2790, %v2789
    %v3313 = vpack.c.b16 %v2792, %v2791
    %v3314 = vpack.c.b16 %v2794, %v2793
    %v3315 = vpack.c.b16 %v2796, %v2795
    %v3316 = vpack.c.b16 %v2798, %v2797
    %v3317 = vpack.c.b16 %v2800, %v2799
    %v3318 = vpack.c.b16 %v2802, %v2801
    %v3319 = vpack.c.b16 %v2804, %v2803
    %v3320 = vpack.c.b16 %v2806, %v2805
    %v3321 = vpack.c.b16 %v2808, %v2807
    %v3322 = vpack.c.b16 %v2810, %v2809
    %v3323 = vpack.c.b16 %v2812, %v2811
    %v3324 = vpack.c.b16 %v2814, %v2813
    %v3325 = vpack.c.b16 %v2816, %v2815
    %v3326 = vpack.c.b16 %v2818, %v2817
    %v3327 = vpack.c.b16 %v2820, %v2819
    %v3328 = vpack.c.b16 %v2822, %v2821
    %v3329 = vpack.c.b16 %v2824, %v2823
    %v3330 = vpack.c.b16 %v2826, %v2825
    %v3331 = vpack.c.b16 %v2828, %v2827
    %v3332 = vpack.c.b16 %v2830, %v2829
    %v3333 = vpack.c.b16 %v2832, %v2831
    %v3334 = vpack.c.b16 %v2834, %v2833
    %v3335 = vpack.c.b16 %v2836, %v2835
    %v3336 = vpack.c.b16 %v2838, %v2837
    %v3337 = vpack.c.b16 %v2840, %v2839
    %v3338 = vpack.c.b16 %v2842, %v2841
    %v3339 = vpack.c.b16 %v2844, %v2843
    %v3340 = vpack.c.b16 %v2846, %v2845
    %v3341 = vpack.c.b16 %v2848, %v2847
    %v3342 = vpack.c.b16 %v2850, %v2849
    %v3343 = vpack.c.b16 %v2852, %v2851
    %v3344 = vpack.c.b16 %v2854, %v2853
    %v3345 = vpack.c.b16 %v2856, %v2855
    %v3346 = vpack.c.b16 %v2858, %v2857
    %v3347 = vpack.c.b16 %v2860, %v2859
    %v3348 = vpack.c.b16 %v2862, %v2861
    %v3349 = vpack.c.b16 %v2864, %v2863
    %v3350 = vpack.c.b16 %v2866, %v2865
    %v3351 = vpack.c.b16 %v2868, %v2867
    %v3352 = vpack.c.b16 %v2870, %v2869
    %v3353 = vpack.c.b16 %v2872, %v2871
    %v3354 = vpack.c.b16 %v2874, %v2873
    %v3355 = vpack.c.b16 %v2876, %v2875
    %v3356 = vpack.c.b16 %v2878, %v2877
    %v3357 = vpack.c.b16 %v2880, %v2879
    %v3358 = vpack.c.b16 %v2882, %v2881
    %v3359 = vpack.c.b16 %v2884, %v2883
    %v3360 = vpack.c.b16 %v2886, %v2885
    %v3361 = vpack.c.b16 %v2888, %v2887
    %v3362 = vpack.c.b16 %v2890, %v2889
    %v3363 = vpack.c.b16 %v2892, %v2891
    %v3364 = vpack.c.b16 %v2894, %v2893
    %v3365 = vpack.c.b16 %v2896, %v2895
    %v3366 = vpack.c.b16 %v2898, %v2897
    %v3367 = vpack.c.b16 %v2900, %v2899
    %v3368 = vpack.c.b16 %v2902, %v2901
    %v3369 = vpack.c.b16 %v2904, %v2903
    %v3370 = vpack.c.b16 %v2906, %v2905
    %v3371 = vpack.c.b16 %v2908, %v2907
    %v3372 = vpack.c.b16 %v2910, %v2909
    %v3373 = vpack.c.b16 %v2912, %v2911
    %v3374 = vpack.c.b16 %v2914, %v2913
    %v3375 = vpack.c.b16 %v2916, %v2915
    %v3376 = vpack.c.b16 %v2918, %v2917
    %v3377 = vpack.c.b16 %v2920, %v2919
    %v3378 = vpack.c.b16 %v2922, %v2921
    %v3379 = vpack.c.b16 %v2924, %v2923
    %v3380 = vpack.c.b16 %v2926, %v2925
    %v3381 = vpack.c.b16 %v2928, %v2927
    %v3382 = vpack.c.b16 %v2930, %v2929
    %v3383 = vpack.c.b16 %v2932, %v2931
    %v3384 = vpack.c.b16 %v2934, %v2933
    %v3385 = vpack.c.b16 %v2936, %v2935
    %v3386 = vpack.c.b16 %v2938, %v2937
    %v3387 = vpack.c.b16 %v2940, %v2939
    %v3388 = vpack.c.b16 %v2942, %v2941
    %v3389 = vpack.c.b16 %v2944, %v2943
    %v3390 = vpack.c.b16 %v2946, %v2945
    %v3391 = vpack.c.b16 %v2948, %v2947
    %v3392 = vpack.c.b16 %v2950, %v2949
    %v3393 = vpack.c.b16 %v2952, %v2951
    %v3394 = vpack.c.b16 %v2954, %v2953
    %v3395 = vpack.c.b16 %v2956, %v2955
    %v3396 = vpack.c.b16 %v2958, %v2957
    %v3397 = vpack.c.b16 %v2960, %v2959
    %v3398 = vpack.c.b16 %v2962, %v2961
    %v3399 = vpack.c.b16 %v2964, %v2963
    %v3400 = vpack.c.b16 %v2966, %v2965
    %v3401 = vpack.c.b16 %v2968, %v2967
    %v3402 = vpack.c.b16 %v2970, %v2969
    %v3403 = vpack.c.b16 %v2972, %v2971
    %v3404 = vpack.c.b16 %v2974, %v2973
    %v3405 = vpack.c.b16 %v2976, %v2975
    %v3406 = vpack.c.b16 %v2978, %v2977
    %v3407 = vpack.c.b16 %v2980, %v2979
    %v3408 = vpack.c.b16 %v2982, %v2981
    %v3409 = vpack.c.b16 %v2984, %v2983
    %v3410 = vpack.c.b16 %v2986, %v2985
    %v3411 = vpack.c.b16 %v2988, %v2987
    %v3412 = vpack.c.b16 %v2990, %v2989
    %v3413 = vpack.c.b16 %v2992, %v2991
    %v3414 = vpack.c.b16 %v2994, %v2993
    %v3415 = vpack.c.b16 %v2996, %v2995
    %v3416 = vpack.c.b16 %v2998, %v2997
    %v3417 = vpack.c.b16 %v3000, %v2999
    %v3418 = vpack.c.b16 %v3002, %v3001
    %v3419 = vpack.c.b16 %v3004, %v3003
    %v3420 = vpack.c.b16 %v3006, %v3005
    %v3421 = vpack.c.b16 %v3008, %v3007
    %v3422 = vpack.c.b16 %v3010, %v3009
    %v3423 = vpack.c.b16 %v3012, %v3011
    %v3424 = vpack.c.b16 %v3014, %v3013
    %v3425 = vpack.c.b16 %v3016, %v3015
    %v3426 = vpack.c.b16 %v3018, %v3017
    %v3427 = vpack.c.b16 %v3020, %v3019
    %v3428 = vpack.c.b16 %v3022, %v3021
    %v3429 = vpack.c.b16 %v3024, %v3023
    %v3430 = vpack.c.b16 %v3026, %v3025
    %v3431 = vpack.c.b16 %v3028, %v3027
    %v3432 = vpack.c.b16 %v3030, %v3029
    %v3433 = vpack.c.b16 %v3032, %v3031
    %v3434 = vpack.c.b16 %v3034, %v3033
    %3835 = vmatprep.subr.bf16.mxu0 0
    %3836 = vmatpush1.bf16.msra.mxu0 %v3042
    %3837 = vmatprep.subr.bf16.mxu0 0
    %3838 = vmatpush1.bf16.msra.mxu0 %v3041
    %3839 = vmatprep.subr.bf16.mxu0 0
    %3840 = vmatpush1.bf16.msra.mxu0 %v3040
    %3841 = vmatprep.subr.bf16.mxu0 0
    %3842 = vmatpush1.bf16.msra.mxu0 %v3039
    %3843 = vmatprep.subr.bf16.mxu0 0
    %3844 = vmatpush1.bf16.msra.mxu0 %v3038
    %3845 = vmatprep.subr.bf16.mxu0 0
    %3846 = vmatpush1.bf16.msra.mxu0 %v3037
    %3847 = vmatprep.subr.bf16.mxu0 0
    %3848 = vmatpush1.bf16.msra.mxu0 %v3036
    %3849 = vmatprep.subr.bf16.mxu0 0
    %3850 = vmatpush1.bf16.msra.mxu0 %v3035
    %3851 = vmatprep.subr.bf16.mxu0 0
    %3852 = vmatpush2.bf16.msra.mxu0 %v3050
    %3853 = vmatprep.subr.bf16.mxu0 0
    %3854 = vmatpush2.bf16.msra.mxu0 %v3049
    %3855 = vmatprep.subr.bf16.mxu0 0
    %3856 = vmatpush2.bf16.msra.mxu0 %v3048
    %3857 = vmatprep.subr.bf16.mxu0 0
    %3858 = vmatpush2.bf16.msra.mxu0 %v3047
    %3859 = vmatprep.subr.bf16.mxu0 0
    %3860 = vmatpush2.bf16.msra.mxu0 %v3046
    %3861 = vmatprep.subr.bf16.mxu0 0
    %3862 = vmatpush2.bf16.msra.mxu0 %v3045
    %3863 = vmatprep.subr.bf16.mxu0 0
    %3864 = vmatpush2.bf16.msra.mxu0 %v3044
    %3865 = vmatprep.subr.bf16.mxu0 0
    %3866 = vmatpush2.bf16.msra.mxu0 %v3043
    %3867 = vmatprep.mubr.bf16.mxu0 %v1236
    %3868 = vmatmul.mubr.bf16.gmra.mxu0 %v1235
    %v3869 = vpop.f32.mrf.mxu0
    %v3870 = vadd.f32 %v933, %v3869
    %v3871 = vpop.f32.mrf.mxu0
    %v3872 = vpop.f32.mrf.mxu0
    %v3873 = vadd.f32 %v933, %v3872
    %v3874 = vpop.f32.mrf.mxu0
    %3875 = vmatprep.mubr.bf16.mxu0 %v1286
    %3876 = vmatmul.mubr.bf16.gmra.mxu0 %v1285
    %v3877 = vpop.f32.mrf.mxu0
    %v3878 = vadd.f32 %v933, %v3877
    %v3879 = vpop.f32.mrf.mxu0
    %v3880 = vpop.f32.mrf.mxu0
    %v3881 = vadd.f32 %v933, %v3880
    %v3882 = vpop.f32.mrf.mxu0
    %3883 = vdwg.mxu0
    %3884 = vmatprep.subr.bf16.mxu0 0
    %3885 = vmatpush1.bf16.msra.mxu0 %v3058
    %3886 = vmatprep.subr.bf16.mxu0 0
    %3887 = vmatpush1.bf16.msra.mxu0 %v3057
    %3888 = vmatprep.subr.bf16.mxu0 0
    %3889 = vmatpush1.bf16.msra.mxu0 %v3056
    %3890 = vmatprep.subr.bf16.mxu0 0
    %3891 = vmatpush1.bf16.msra.mxu0 %v3055
    %3892 = vmatprep.subr.bf16.mxu0 0
    %3893 = vmatpush1.bf16.msra.mxu0 %v3054
    %3894 = vmatprep.subr.bf16.mxu0 0
    %3895 = vmatpush1.bf16.msra.mxu0 %v3053
    %3896 = vmatprep.subr.bf16.mxu0 0
    %3897 = vmatpush1.bf16.msra.mxu0 %v3052
    %3898 = vmatprep.subr.bf16.mxu0 0
    %3899 = vmatpush1.bf16.msra.mxu0 %v3051
    %3900 = vmatprep.subr.bf16.mxu0 0
    %3901 = vmatpush2.bf16.msra.mxu0 %v3066
    %3902 = vmatprep.subr.bf16.mxu0 0
    %3903 = vmatpush2.bf16.msra.mxu0 %v3065
    %3904 = vmatprep.subr.bf16.mxu0 0
    %3905 = vmatpush2.bf16.msra.mxu0 %v3064
    %3906 = vmatprep.subr.bf16.mxu0 0
    %3907 = vmatpush2.bf16.msra.mxu0 %v3063
    %3908 = vmatprep.subr.bf16.mxu0 0
    %3909 = vmatpush2.bf16.msra.mxu0 %v3062
    %3910 = vmatprep.subr.bf16.mxu0 0
    %3911 = vmatpush2.bf16.msra.mxu0 %v3061
    %3912 = vmatprep.subr.bf16.mxu0 0
    %3913 = vmatpush2.bf16.msra.mxu0 %v3060
    %3914 = vmatprep.subr.bf16.mxu0 0
    %3915 = vmatpush2.bf16.msra.mxu0 %v3059
    %3916 = vmatprep.mubr.bf16.mxu0 %v1238
    %3917 = vmatmul.mubr.bf16.gmra.mxu0 %v1237
    %v3918 = vpop.f32.mrf.mxu0
    %v3919 = vadd.f32 %v3870, %v3918
    %v3920 = vpop.f32.mrf.mxu0
    %v3921 = vpop.f32.mrf.mxu0
    %v3922 = vadd.f32 %v3873, %v3921
    %v3923 = vpop.f32.mrf.mxu0
    %3924 = vmatprep.mubr.bf16.mxu0 %v1288
    %3925 = vmatmul.mubr.bf16.gmra.mxu0 %v1287
    %v3926 = vpop.f32.mrf.mxu0
    %v3927 = vadd.f32 %v3878, %v3926
    %v3928 = vpop.f32.mrf.mxu0
    %v3929 = vpop.f32.mrf.mxu0
    %v3930 = vadd.f32 %v3881, %v3929
    %v3931 = vpop.f32.mrf.mxu0
    %3932 = vdwg.mxu0
    %3933 = vmatprep.subr.bf16.mxu0 0
    %3934 = vmatpush1.bf16.msra.mxu0 %v3074
    %3935 = vmatprep.subr.bf16.mxu0 0
    %3936 = vmatpush1.bf16.msra.mxu0 %v3073
    %3937 = vmatprep.subr.bf16.mxu0 0
    %3938 = vmatpush1.bf16.msra.mxu0 %v3072
    %3939 = vmatprep.subr.bf16.mxu0 0
    %3940 = vmatpush1.bf16.msra.mxu0 %v3071
    %3941 = vmatprep.subr.bf16.mxu0 0
    %3942 = vmatpush1.bf16.msra.mxu0 %v3070
    %3943 = vmatprep.subr.bf16.mxu0 0
    %3944 = vmatpush1.bf16.msra.mxu0 %v3069
    %3945 = vmatprep.subr.bf16.mxu0 0
    %3946 = vmatpush1.bf16.msra.mxu0 %v3068
    %3947 = vmatprep.subr.bf16.mxu0 0
    %3948 = vmatpush1.bf16.msra.mxu0 %v3067
    %3949 = vmatprep.subr.bf16.mxu0 0
    %3950 = vmatpush2.bf16.msra.mxu0 %v3082
    %3951 = vmatprep.subr.bf16.mxu0 0
    %3952 = vmatpush2.bf16.msra.mxu0 %v3081
    %3953 = vmatprep.subr.bf16.mxu0 0
    %3954 = vmatpush2.bf16.msra.mxu0 %v3080
    %3955 = vmatprep.subr.bf16.mxu0 0
    %3956 = vmatpush2.bf16.msra.mxu0 %v3079
    %3957 = vmatprep.subr.bf16.mxu0 0
    %3958 = vmatpush2.bf16.msra.mxu0 %v3078
    %3959 = vmatprep.subr.bf16.mxu0 0
    %3960 = vmatpush2.bf16.msra.mxu0 %v3077
    %3961 = vmatprep.subr.bf16.mxu0 0
    %3962 = vmatpush2.bf16.msra.mxu0 %v3076
    %3963 = vmatprep.subr.bf16.mxu0 0
    %3964 = vmatpush2.bf16.msra.mxu0 %v3075
    %3965 = vmatprep.mubr.bf16.mxu0 %v1240
    %3966 = vmatmul.mubr.bf16.gmra.mxu0 %v1239
    %v3967 = vpop.f32.mrf.mxu0
    %v3968 = vadd.f32 %v3919, %v3967
    %v3969 = vpop.f32.mrf.mxu0
    %v3970 = vpop.f32.mrf.mxu0
    %v3971 = vadd.f32 %v3922, %v3970
    %v3972 = vpop.f32.mrf.mxu0
    %3973 = vmatprep.mubr.bf16.mxu0 %v1290
    %3974 = vmatmul.mubr.bf16.gmra.mxu0 %v1289
    %v3975 = vpop.f32.mrf.mxu0
    %v3976 = vadd.f32 %v3927, %v3975
    %v3977 = vpop.f32.mrf.mxu0
    %v3978 = vpop.f32.mrf.mxu0
    %v3979 = vadd.f32 %v3930, %v3978
    %v3980 = vpop.f32.mrf.mxu0
    %3981 = vdwg.mxu0
    %3982 = vmatprep.subr.bf16.mxu0 0
    %3983 = vmatpush1.bf16.msra.mxu0 %v3090
    %3984 = vmatprep.subr.bf16.mxu0 0
    %3985 = vmatpush1.bf16.msra.mxu0 %v3089
    %3986 = vmatprep.subr.bf16.mxu0 0
    %3987 = vmatpush1.bf16.msra.mxu0 %v3088
    %3988 = vmatprep.subr.bf16.mxu0 0
    %3989 = vmatpush1.bf16.msra.mxu0 %v3087
    %3990 = vmatprep.subr.bf16.mxu0 0
    %3991 = vmatpush1.bf16.msra.mxu0 %v3086
    %3992 = vmatprep.subr.bf16.mxu0 0
    %3993 = vmatpush1.bf16.msra.mxu0 %v3085
    %3994 = vmatprep.subr.bf16.mxu0 0
    %3995 = vmatpush1.bf16.msra.mxu0 %v3084
    %3996 = vmatprep.subr.bf16.mxu0 0
    %3997 = vmatpush1.bf16.msra.mxu0 %v3083
    %3998 = vmatprep.subr.bf16.mxu0 0
    %3999 = vmatpush2.bf16.msra.mxu0 %v3098
    %4000 = vmatprep.subr.bf16.mxu0 0
    %4001 = vmatpush2.bf16.msra.mxu0 %v3097
    %4002 = vmatprep.subr.bf16.mxu0 0
    %4003 = vmatpush2.bf16.msra.mxu0 %v3096
    %4004 = vmatprep.subr.bf16.mxu0 0
    %4005 = vmatpush2.bf16.msra.mxu0 %v3095
    %4006 = vmatprep.subr.bf16.mxu0 0
    %4007 = vmatpush2.bf16.msra.mxu0 %v3094
    %4008 = vmatprep.subr.bf16.mxu0 0
    %4009 = vmatpush2.bf16.msra.mxu0 %v3093
    %4010 = vmatprep.subr.bf16.mxu0 0
    %4011 = vmatpush2.bf16.msra.mxu0 %v3092
    %4012 = vmatprep.subr.bf16.mxu0 0
    %4013 = vmatpush2.bf16.msra.mxu0 %v3091
    %4014 = vmatprep.mubr.bf16.mxu0 %v1242
    %4015 = vmatmul.mubr.bf16.gmra.mxu0 %v1241
    %v4016 = vpop.f32.mrf.mxu0
    %v4017 = vadd.f32 %v3968, %v4016
    %v4018 = vpop.f32.mrf.mxu0
    %v4019 = vpop.f32.mrf.mxu0
    %v4020 = vadd.f32 %v3971, %v4019
    %v4021 = vpop.f32.mrf.mxu0
    %4022 = vmatprep.mubr.bf16.mxu0 %v1292
    %4023 = vmatmul.mubr.bf16.gmra.mxu0 %v1291
    %v4024 = vpop.f32.mrf.mxu0
    %v4025 = vadd.f32 %v3976, %v4024
    %v4026 = vpop.f32.mrf.mxu0
    %v4027 = vpop.f32.mrf.mxu0
    %v4028 = vadd.f32 %v3979, %v4027
    %v4029 = vpop.f32.mrf.mxu0
    %4030 = vdwg.mxu0
    %4031 = vmatprep.subr.bf16.mxu0 0
    %4032 = vmatpush1.bf16.msra.mxu0 %v3106
    %4033 = vmatprep.subr.bf16.mxu0 0
    %4034 = vmatpush1.bf16.msra.mxu0 %v3105
    %4035 = vmatprep.subr.bf16.mxu0 0
    %4036 = vmatpush1.bf16.msra.mxu0 %v3104
    %4037 = vmatprep.subr.bf16.mxu0 0
    %4038 = vmatpush1.bf16.msra.mxu0 %v3103
    %4039 = vmatprep.subr.bf16.mxu0 0
    %4040 = vmatpush1.bf16.msra.mxu0 %v3102
    %4041 = vmatprep.subr.bf16.mxu0 0
    %4042 = vmatpush1.bf16.msra.mxu0 %v3101
    %4043 = vmatprep.subr.bf16.mxu0 0
    %4044 = vmatpush1.bf16.msra.mxu0 %v3100
    %4045 = vmatprep.subr.bf16.mxu0 0
    %4046 = vmatpush1.bf16.msra.mxu0 %v3099
    %4047 = vmatprep.subr.bf16.mxu0 0
    %4048 = vmatpush2.bf16.msra.mxu0 %v3114
    %4049 = vmatprep.subr.bf16.mxu0 0
    %4050 = vmatpush2.bf16.msra.mxu0 %v3113
    %4051 = vmatprep.subr.bf16.mxu0 0
    %4052 = vmatpush2.bf16.msra.mxu0 %v3112
    %4053 = vmatprep.subr.bf16.mxu0 0
    %4054 = vmatpush2.bf16.msra.mxu0 %v3111
    %4055 = vmatprep.subr.bf16.mxu0 0
    %4056 = vmatpush2.bf16.msra.mxu0 %v3110
    %4057 = vmatprep.subr.bf16.mxu0 0
    %4058 = vmatpush2.bf16.msra.mxu0 %v3109
    %4059 = vmatprep.subr.bf16.mxu0 0
    %4060 = vmatpush2.bf16.msra.mxu0 %v3108
    %4061 = vmatprep.subr.bf16.mxu0 0
    %4062 = vmatpush2.bf16.msra.mxu0 %v3107
    %4063 = vmatprep.mubr.bf16.mxu0 %v1244
    %4064 = vmatmul.mubr.bf16.gmra.mxu0 %v1243
    %v4065 = vpop.f32.mrf.mxu0
    %v4066 = vadd.f32 %v4017, %v4065
    %v4067 = vpop.f32.mrf.mxu0
    %v4068 = vpop.f32.mrf.mxu0
    %v4069 = vadd.f32 %v4020, %v4068
    %v4070 = vpop.f32.mrf.mxu0
    %4071 = vmatprep.mubr.bf16.mxu0 %v1294
    %4072 = vmatmul.mubr.bf16.gmra.mxu0 %v1293
    %v4073 = vpop.f32.mrf.mxu0
    %v4074 = vadd.f32 %v4025, %v4073
    %v4075 = vpop.f32.mrf.mxu0
    %v4076 = vpop.f32.mrf.mxu0
    %v4077 = vadd.f32 %v4028, %v4076
    %v4078 = vpop.f32.mrf.mxu0
    %4079 = vdwg.mxu0
    %4080 = vmatprep.subr.bf16.mxu0 0
    %4081 = vmatpush1.bf16.msra.mxu0 %v3122
    %4082 = vmatprep.subr.bf16.mxu0 0
    %4083 = vmatpush1.bf16.msra.mxu0 %v3121
    %4084 = vmatprep.subr.bf16.mxu0 0
    %4085 = vmatpush1.bf16.msra.mxu0 %v3120
    %4086 = vmatprep.subr.bf16.mxu0 0
    %4087 = vmatpush1.bf16.msra.mxu0 %v3119
    %4088 = vmatprep.subr.bf16.mxu0 0
    %4089 = vmatpush1.bf16.msra.mxu0 %v3118
    %4090 = vmatprep.subr.bf16.mxu0 0
    %4091 = vmatpush1.bf16.msra.mxu0 %v3117
    %4092 = vmatprep.subr.bf16.mxu0 0
    %4093 = vmatpush1.bf16.msra.mxu0 %v3116
    %4094 = vmatprep.subr.bf16.mxu0 0
    %4095 = vmatpush1.bf16.msra.mxu0 %v3115
    %4096 = vmatprep.subr.bf16.mxu0 0
    %4097 = vmatpush2.bf16.msra.mxu0 %v3130
    %4098 = vmatprep.subr.bf16.mxu0 0
    %4099 = vmatpush2.bf16.msra.mxu0 %v3129
    %4100 = vmatprep.subr.bf16.mxu0 0
    %4101 = vmatpush2.bf16.msra.mxu0 %v3128
    %4102 = vmatprep.subr.bf16.mxu0 0
    %4103 = vmatpush2.bf16.msra.mxu0 %v3127
    %4104 = vmatprep.subr.bf16.mxu0 0
    %4105 = vmatpush2.bf16.msra.mxu0 %v3126
    %4106 = vmatprep.subr.bf16.mxu0 0
    %4107 = vmatpush2.bf16.msra.mxu0 %v3125
    %4108 = vmatprep.subr.bf16.mxu0 0
    %4109 = vmatpush2.bf16.msra.mxu0 %v3124
    %4110 = vmatprep.subr.bf16.mxu0 0
    %4111 = vmatpush2.bf16.msra.mxu0 %v3123
    %4112 = vmatprep.mubr.bf16.mxu0 %v1246
    %4113 = vmatmul.mubr.bf16.gmra.mxu0 %v1245
    %v4114 = vpop.f32.mrf.mxu0
    %v4115 = vadd.f32 %v4066, %v4114
    %v4116 = vpop.f32.mrf.mxu0
    %v4117 = vpop.f32.mrf.mxu0
    %v4118 = vadd.f32 %v4069, %v4117
    %v4119 = vpop.f32.mrf.mxu0
    %4120 = vmatprep.mubr.bf16.mxu0 %v1296
    %4121 = vmatmul.mubr.bf16.gmra.mxu0 %v1295
    %v4122 = vpop.f32.mrf.mxu0
    %v4123 = vadd.f32 %v4074, %v4122
    %v4124 = vpop.f32.mrf.mxu0
    %v4125 = vpop.f32.mrf.mxu0
    %v4126 = vadd.f32 %v4077, %v4125
    %v4127 = vpop.f32.mrf.mxu0
    %4128 = vdwg.mxu0
    %4129 = vmatprep.subr.bf16.mxu0 0
    %4130 = vmatpush1.bf16.msra.mxu0 %v3138
    %4131 = vmatprep.subr.bf16.mxu0 0
    %4132 = vmatpush1.bf16.msra.mxu0 %v3137
    %4133 = vmatprep.subr.bf16.mxu0 0
    %4134 = vmatpush1.bf16.msra.mxu0 %v3136
    %4135 = vmatprep.subr.bf16.mxu0 0
    %4136 = vmatpush1.bf16.msra.mxu0 %v3135
    %4137 = vmatprep.subr.bf16.mxu0 0
    %4138 = vmatpush1.bf16.msra.mxu0 %v3134
    %4139 = vmatprep.subr.bf16.mxu0 0
    %4140 = vmatpush1.bf16.msra.mxu0 %v3133
    %4141 = vmatprep.subr.bf16.mxu0 0
    %4142 = vmatpush1.bf16.msra.mxu0 %v3132
    %4143 = vmatprep.subr.bf16.mxu0 0
    %4144 = vmatpush1.bf16.msra.mxu0 %v3131
    %4145 = vmatprep.subr.bf16.mxu0 0
    %4146 = vmatpush2.bf16.msra.mxu0 %v3146
    %4147 = vmatprep.subr.bf16.mxu0 0
    %4148 = vmatpush2.bf16.msra.mxu0 %v3145
    %4149 = vmatprep.subr.bf16.mxu0 0
    %4150 = vmatpush2.bf16.msra.mxu0 %v3144
    %4151 = vmatprep.subr.bf16.mxu0 0
    %4152 = vmatpush2.bf16.msra.mxu0 %v3143
    %4153 = vmatprep.subr.bf16.mxu0 0
    %4154 = vmatpush2.bf16.msra.mxu0 %v3142
    %4155 = vmatprep.subr.bf16.mxu0 0
    %4156 = vmatpush2.bf16.msra.mxu0 %v3141
    %4157 = vmatprep.subr.bf16.mxu0 0
    %4158 = vmatpush2.bf16.msra.mxu0 %v3140
    %4159 = vmatprep.subr.bf16.mxu0 0
    %4160 = vmatpush2.bf16.msra.mxu0 %v3139
    %4161 = vmatprep.mubr.bf16.mxu0 %v1248
    %4162 = vmatmul.mubr.bf16.gmra.mxu0 %v1247
    %v4163 = vpop.f32.mrf.mxu0
    %v4164 = vadd.f32 %v4115, %v4163
    %v4165 = vpop.f32.mrf.mxu0
    %v4166 = vpop.f32.mrf.mxu0
    %v4167 = vadd.f32 %v4118, %v4166
    %v4168 = vpop.f32.mrf.mxu0
    %4169 = vmatprep.mubr.bf16.mxu0 %v1298
    %4170 = vmatmul.mubr.bf16.gmra.mxu0 %v1297
    %v4171 = vpop.f32.mrf.mxu0
    %v4172 = vadd.f32 %v4123, %v4171
    %v4173 = vpop.f32.mrf.mxu0
    %v4174 = vpop.f32.mrf.mxu0
    %v4175 = vadd.f32 %v4126, %v4174
    %v4176 = vpop.f32.mrf.mxu0
    %4177 = vdwg.mxu0
    %4178 = vmatprep.subr.bf16.mxu0 0
    %4179 = vmatpush1.bf16.msra.mxu0 %v3154
    %4180 = vmatprep.subr.bf16.mxu0 0
    %4181 = vmatpush1.bf16.msra.mxu0 %v3153
    %4182 = vmatprep.subr.bf16.mxu0 0
    %4183 = vmatpush1.bf16.msra.mxu0 %v3152
    %4184 = vmatprep.subr.bf16.mxu0 0
    %4185 = vmatpush1.bf16.msra.mxu0 %v3151
    %4186 = vmatprep.subr.bf16.mxu0 0
    %4187 = vmatpush1.bf16.msra.mxu0 %v3150
    %4188 = vmatprep.subr.bf16.mxu0 0
    %4189 = vmatpush1.bf16.msra.mxu0 %v3149
    %4190 = vmatprep.subr.bf16.mxu0 0
    %4191 = vmatpush1.bf16.msra.mxu0 %v3148
    %4192 = vmatprep.subr.bf16.mxu0 0
    %4193 = vmatpush1.bf16.msra.mxu0 %v3147
    %4194 = vmatprep.subr.bf16.mxu0 0
    %4195 = vmatpush2.bf16.msra.mxu0 %v3162
    %4196 = vmatprep.subr.bf16.mxu0 0
    %4197 = vmatpush2.bf16.msra.mxu0 %v3161
    %4198 = vmatprep.subr.bf16.mxu0 0
    %4199 = vmatpush2.bf16.msra.mxu0 %v3160
    %4200 = vmatprep.subr.bf16.mxu0 0
    %4201 = vmatpush2.bf16.msra.mxu0 %v3159
    %4202 = vmatprep.subr.bf16.mxu0 0
    %4203 = vmatpush2.bf16.msra.mxu0 %v3158
    %4204 = vmatprep.subr.bf16.mxu0 0
    %4205 = vmatpush2.bf16.msra.mxu0 %v3157
    %4206 = vmatprep.subr.bf16.mxu0 0
    %4207 = vmatpush2.bf16.msra.mxu0 %v3156
    %4208 = vmatprep.subr.bf16.mxu0 0
    %4209 = vmatpush2.bf16.msra.mxu0 %v3155
    %4210 = vmatprep.mubr.bf16.mxu0 %v1250
    %4211 = vmatmul.mubr.bf16.gmra.mxu0 %v1249
    %v4212 = vpop.f32.mrf.mxu0
    %v4213 = vadd.f32 %v4164, %v4212
    %v4214 = vpop.f32.mrf.mxu0
    %v4215 = vpop.f32.mrf.mxu0
    %v4216 = vadd.f32 %v4167, %v4215
    %v4217 = vpop.f32.mrf.mxu0
    %4218 = vmatprep.mubr.bf16.mxu0 %v1300
    %4219 = vmatmul.mubr.bf16.gmra.mxu0 %v1299
    %v4220 = vpop.f32.mrf.mxu0
    %v4221 = vadd.f32 %v4172, %v4220
    %v4222 = vpop.f32.mrf.mxu0
    %v4223 = vpop.f32.mrf.mxu0
    %v4224 = vadd.f32 %v4175, %v4223
    %v4225 = vpop.f32.mrf.mxu0
    %4226 = vdwg.mxu0
    %4227 = vmatprep.subr.bf16.mxu0 0
    %4228 = vmatpush1.bf16.msra.mxu0 %v3170
    %4229 = vmatprep.subr.bf16.mxu0 0
    %4230 = vmatpush1.bf16.msra.mxu0 %v3169
    %4231 = vmatprep.subr.bf16.mxu0 0
    %4232 = vmatpush1.bf16.msra.mxu0 %v3168
    %4233 = vmatprep.subr.bf16.mxu0 0
    %4234 = vmatpush1.bf16.msra.mxu0 %v3167
    %4235 = vmatprep.subr.bf16.mxu0 0
    %4236 = vmatpush1.bf16.msra.mxu0 %v3166
    %4237 = vmatprep.subr.bf16.mxu0 0
    %4238 = vmatpush1.bf16.msra.mxu0 %v3165
    %4239 = vmatprep.subr.bf16.mxu0 0
    %4240 = vmatpush1.bf16.msra.mxu0 %v3164
    %4241 = vmatprep.subr.bf16.mxu0 0
    %4242 = vmatpush1.bf16.msra.mxu0 %v3163
    %4243 = vmatprep.subr.bf16.mxu0 0
    %4244 = vmatpush2.bf16.msra.mxu0 %v3178
    %4245 = vmatprep.subr.bf16.mxu0 0
    %4246 = vmatpush2.bf16.msra.mxu0 %v3177
    %4247 = vmatprep.subr.bf16.mxu0 0
    %4248 = vmatpush2.bf16.msra.mxu0 %v3176
    %4249 = vmatprep.subr.bf16.mxu0 0
    %4250 = vmatpush2.bf16.msra.mxu0 %v3175
    %4251 = vmatprep.subr.bf16.mxu0 0
    %4252 = vmatpush2.bf16.msra.mxu0 %v3174
    %4253 = vmatprep.subr.bf16.mxu0 0
    %4254 = vmatpush2.bf16.msra.mxu0 %v3173
    %4255 = vmatprep.subr.bf16.mxu0 0
    %4256 = vmatpush2.bf16.msra.mxu0 %v3172
    %4257 = vmatprep.subr.bf16.mxu0 0
    %4258 = vmatpush2.bf16.msra.mxu0 %v3171
    %4259 = vmatprep.mubr.bf16.mxu0 %v1252
    %4260 = vmatmul.mubr.bf16.gmra.mxu0 %v1251
    %v4261 = vpop.f32.mrf.mxu0
    %v4262 = vadd.f32 %v4213, %v4261
    %v4263 = vpop.f32.mrf.mxu0
    %v4264 = vpop.f32.mrf.mxu0
    %v4265 = vadd.f32 %v4216, %v4264
    %v4266 = vpop.f32.mrf.mxu0
    %4267 = vmatprep.mubr.bf16.mxu0 %v1302
    %4268 = vmatmul.mubr.bf16.gmra.mxu0 %v1301
    %v4269 = vpop.f32.mrf.mxu0
    %v4270 = vadd.f32 %v4221, %v4269
    %v4271 = vpop.f32.mrf.mxu0
    %v4272 = vpop.f32.mrf.mxu0
    %v4273 = vadd.f32 %v4224, %v4272
    %v4274 = vpop.f32.mrf.mxu0
    %4275 = vdwg.mxu0
    %4276 = vmatprep.subr.bf16.mxu0 0
    %4277 = vmatpush1.bf16.msra.mxu0 %v3186
    %4278 = vmatprep.subr.bf16.mxu0 0
    %4279 = vmatpush1.bf16.msra.mxu0 %v3185
    %4280 = vmatprep.subr.bf16.mxu0 0
    %4281 = vmatpush1.bf16.msra.mxu0 %v3184
    %4282 = vmatprep.subr.bf16.mxu0 0
    %4283 = vmatpush1.bf16.msra.mxu0 %v3183
    %4284 = vmatprep.subr.bf16.mxu0 0
    %4285 = vmatpush1.bf16.msra.mxu0 %v3182
    %4286 = vmatprep.subr.bf16.mxu0 0
    %4287 = vmatpush1.bf16.msra.mxu0 %v3181
    %4288 = vmatprep.subr.bf16.mxu0 0
    %4289 = vmatpush1.bf16.msra.mxu0 %v3180
    %4290 = vmatprep.subr.bf16.mxu0 0
    %4291 = vmatpush1.bf16.msra.mxu0 %v3179
    %4292 = vmatprep.subr.bf16.mxu0 0
    %4293 = vmatpush2.bf16.msra.mxu0 %v3194
    %4294 = vmatprep.subr.bf16.mxu0 0
    %4295 = vmatpush2.bf16.msra.mxu0 %v3193
    %4296 = vmatprep.subr.bf16.mxu0 0
    %4297 = vmatpush2.bf16.msra.mxu0 %v3192
    %4298 = vmatprep.subr.bf16.mxu0 0
    %4299 = vmatpush2.bf16.msra.mxu0 %v3191
    %4300 = vmatprep.subr.bf16.mxu0 0
    %4301 = vmatpush2.bf16.msra.mxu0 %v3190
    %4302 = vmatprep.subr.bf16.mxu0 0
    %4303 = vmatpush2.bf16.msra.mxu0 %v3189
    %4304 = vmatprep.subr.bf16.mxu0 0
    %4305 = vmatpush2.bf16.msra.mxu0 %v3188
    %4306 = vmatprep.subr.bf16.mxu0 0
    %4307 = vmatpush2.bf16.msra.mxu0 %v3187
    %4308 = vmatprep.mubr.bf16.mxu0 %v1254
    %4309 = vmatmul.mubr.bf16.gmra.mxu0 %v1253
    %v4310 = vpop.f32.mrf.mxu0
    %v4311 = vadd.f32 %v4262, %v4310
    %v4312 = vpop.f32.mrf.mxu0
    %v4313 = vpop.f32.mrf.mxu0
    %v4314 = vadd.f32 %v4265, %v4313
    %v4315 = vpop.f32.mrf.mxu0
    %4316 = vmatprep.mubr.bf16.mxu0 %v1304
    %4317 = vmatmul.mubr.bf16.gmra.mxu0 %v1303
    %v4318 = vpop.f32.mrf.mxu0
    %v4319 = vadd.f32 %v4270, %v4318
    %v4320 = vpop.f32.mrf.mxu0
    %v4321 = vpop.f32.mrf.mxu0
    %v4322 = vadd.f32 %v4273, %v4321
    %v4323 = vpop.f32.mrf.mxu0
    %4324 = vdwg.mxu0
    %4325 = vmatprep.subr.bf16.mxu0 0
    %4326 = vmatpush1.bf16.msra.mxu0 %v3202
    %4327 = vmatprep.subr.bf16.mxu0 0
    %4328 = vmatpush1.bf16.msra.mxu0 %v3201
    %4329 = vmatprep.subr.bf16.mxu0 0
    %4330 = vmatpush1.bf16.msra.mxu0 %v3200
    %4331 = vmatprep.subr.bf16.mxu0 0
    %4332 = vmatpush1.bf16.msra.mxu0 %v3199
    %4333 = vmatprep.subr.bf16.mxu0 0
    %4334 = vmatpush1.bf16.msra.mxu0 %v3198
    %4335 = vmatprep.subr.bf16.mxu0 0
    %4336 = vmatpush1.bf16.msra.mxu0 %v3197
    %4337 = vmatprep.subr.bf16.mxu0 0
    %4338 = vmatpush1.bf16.msra.mxu0 %v3196
    %4339 = vmatprep.subr.bf16.mxu0 0
    %4340 = vmatpush1.bf16.msra.mxu0 %v3195
    %4341 = vmatprep.subr.bf16.mxu0 0
    %4342 = vmatpush2.bf16.msra.mxu0 %v3210
    %4343 = vmatprep.subr.bf16.mxu0 0
    %4344 = vmatpush2.bf16.msra.mxu0 %v3209
    %4345 = vmatprep.subr.bf16.mxu0 0
    %4346 = vmatpush2.bf16.msra.mxu0 %v3208
    %4347 = vmatprep.subr.bf16.mxu0 0
    %4348 = vmatpush2.bf16.msra.mxu0 %v3207
    %4349 = vmatprep.subr.bf16.mxu0 0
    %4350 = vmatpush2.bf16.msra.mxu0 %v3206
    %4351 = vmatprep.subr.bf16.mxu0 0
    %4352 = vmatpush2.bf16.msra.mxu0 %v3205
    %4353 = vmatprep.subr.bf16.mxu0 0
    %4354 = vmatpush2.bf16.msra.mxu0 %v3204
    %4355 = vmatprep.subr.bf16.mxu0 0
    %4356 = vmatpush2.bf16.msra.mxu0 %v3203
    %4357 = vmatprep.mubr.bf16.mxu0 %v1256
    %4358 = vmatmul.mubr.bf16.gmra.mxu0 %v1255
    %v4359 = vpop.f32.mrf.mxu0
    %v4360 = vadd.f32 %v4311, %v4359
    %v4361 = vpop.f32.mrf.mxu0
    %v4362 = vpop.f32.mrf.mxu0
    %v4363 = vadd.f32 %v4314, %v4362
    %v4364 = vpop.f32.mrf.mxu0
    %4365 = vmatprep.mubr.bf16.mxu0 %v1306
    %4366 = vmatmul.mubr.bf16.gmra.mxu0 %v1305
    %v4367 = vpop.f32.mrf.mxu0
    %v4368 = vadd.f32 %v4319, %v4367
    %v4369 = vpop.f32.mrf.mxu0
    %v4370 = vpop.f32.mrf.mxu0
    %v4371 = vadd.f32 %v4322, %v4370
    %v4372 = vpop.f32.mrf.mxu0
    %4373 = vdwg.mxu0
    %4374 = vmatprep.subr.bf16.mxu0 0
    %4375 = vmatpush1.bf16.msra.mxu0 %v3218
    %4376 = vmatprep.subr.bf16.mxu0 0
    %4377 = vmatpush1.bf16.msra.mxu0 %v3217
    %4378 = vmatprep.subr.bf16.mxu0 0
    %4379 = vmatpush1.bf16.msra.mxu0 %v3216
    %4380 = vmatprep.subr.bf16.mxu0 0
    %4381 = vmatpush1.bf16.msra.mxu0 %v3215
    %4382 = vmatprep.subr.bf16.mxu0 0
    %4383 = vmatpush1.bf16.msra.mxu0 %v3214
    %4384 = vmatprep.subr.bf16.mxu0 0
    %4385 = vmatpush1.bf16.msra.mxu0 %v3213
    %4386 = vmatprep.subr.bf16.mxu0 0
    %4387 = vmatpush1.bf16.msra.mxu0 %v3212
    %4388 = vmatprep.subr.bf16.mxu0 0
    %4389 = vmatpush1.bf16.msra.mxu0 %v3211
    %4390 = vmatprep.subr.bf16.mxu0 0
    %4391 = vmatpush2.bf16.msra.mxu0 %v3226
    %4392 = vmatprep.subr.bf16.mxu0 0
    %4393 = vmatpush2.bf16.msra.mxu0 %v3225
    %4394 = vmatprep.subr.bf16.mxu0 0
    %4395 = vmatpush2.bf16.msra.mxu0 %v3224
    %4396 = vmatprep.subr.bf16.mxu0 0
    %4397 = vmatpush2.bf16.msra.mxu0 %v3223
    %4398 = vmatprep.subr.bf16.mxu0 0
    %4399 = vmatpush2.bf16.msra.mxu0 %v3222
    %4400 = vmatprep.subr.bf16.mxu0 0
    %4401 = vmatpush2.bf16.msra.mxu0 %v3221
    %4402 = vmatprep.subr.bf16.mxu0 0
    %4403 = vmatpush2.bf16.msra.mxu0 %v3220
    %4404 = vmatprep.subr.bf16.mxu0 0
    %4405 = vmatpush2.bf16.msra.mxu0 %v3219
    %4406 = vmatprep.mubr.bf16.mxu0 %v1258
    %4407 = vmatmul.mubr.bf16.gmra.mxu0 %v1257
    %v4408 = vpop.f32.mrf.mxu0
    %v4409 = vadd.f32 %v4360, %v4408
    %v4410 = vpop.f32.mrf.mxu0
    %v4411 = vpop.f32.mrf.mxu0
    %v4412 = vadd.f32 %v4363, %v4411
    %v4413 = vpop.f32.mrf.mxu0
    %4414 = vmatprep.mubr.bf16.mxu0 %v1308
    %4415 = vmatmul.mubr.bf16.gmra.mxu0 %v1307
    %v4416 = vpop.f32.mrf.mxu0
    %v4417 = vadd.f32 %v4368, %v4416
    %v4418 = vpop.f32.mrf.mxu0
    %v4419 = vpop.f32.mrf.mxu0
    %v4420 = vadd.f32 %v4371, %v4419
    %v4421 = vpop.f32.mrf.mxu0
    %4422 = vdwg.mxu0
    %4423 = vmatprep.subr.bf16.mxu0 0
    %4424 = vmatpush1.bf16.msra.mxu0 %v3234
    %4425 = vmatprep.subr.bf16.mxu0 0
    %4426 = vmatpush1.bf16.msra.mxu0 %v3233
    %4427 = vmatprep.subr.bf16.mxu0 0
    %4428 = vmatpush1.bf16.msra.mxu0 %v3232
    %4429 = vmatprep.subr.bf16.mxu0 0
    %4430 = vmatpush1.bf16.msra.mxu0 %v3231
    %4431 = vmatprep.subr.bf16.mxu0 0
    %4432 = vmatpush1.bf16.msra.mxu0 %v3230
    %4433 = vmatprep.subr.bf16.mxu0 0
    %4434 = vmatpush1.bf16.msra.mxu0 %v3229
    %4435 = vmatprep.subr.bf16.mxu0 0
    %4436 = vmatpush1.bf16.msra.mxu0 %v3228
    %4437 = vmatprep.subr.bf16.mxu0 0
    %4438 = vmatpush1.bf16.msra.mxu0 %v3227
    %4439 = vmatprep.subr.bf16.mxu0 0
    %4440 = vmatpush2.bf16.msra.mxu0 %v3242
    %4441 = vmatprep.subr.bf16.mxu0 0
    %4442 = vmatpush2.bf16.msra.mxu0 %v3241
    %4443 = vmatprep.subr.bf16.mxu0 0
    %4444 = vmatpush2.bf16.msra.mxu0 %v3240
    %4445 = vmatprep.subr.bf16.mxu0 0
    %4446 = vmatpush2.bf16.msra.mxu0 %v3239
    %4447 = vmatprep.subr.bf16.mxu0 0
    %4448 = vmatpush2.bf16.msra.mxu0 %v3238
    %4449 = vmatprep.subr.bf16.mxu0 0
    %4450 = vmatpush2.bf16.msra.mxu0 %v3237
    %4451 = vmatprep.subr.bf16.mxu0 0
    %4452 = vmatpush2.bf16.msra.mxu0 %v3236
    %4453 = vmatprep.subr.bf16.mxu0 0
    %4454 = vmatpush2.bf16.msra.mxu0 %v3235
    %4455 = vmatprep.mubr.bf16.mxu0 %v1260
    %4456 = vmatmul.mubr.bf16.gmra.mxu0 %v1259
    %v4457 = vpop.f32.mrf.mxu0
    %v4458 = vadd.f32 %v4409, %v4457
    %v4459 = vpop.f32.mrf.mxu0
    %v4460 = vpop.f32.mrf.mxu0
    %v4461 = vadd.f32 %v4412, %v4460
    %v4462 = vpop.f32.mrf.mxu0
    %4463 = vmatprep.mubr.bf16.mxu0 %v1310
    %4464 = vmatmul.mubr.bf16.gmra.mxu0 %v1309
    %v4465 = vpop.f32.mrf.mxu0
    %v4466 = vadd.f32 %v4417, %v4465
    %v4467 = vpop.f32.mrf.mxu0
    %v4468 = vpop.f32.mrf.mxu0
    %v4469 = vadd.f32 %v4420, %v4468
    %v4470 = vpop.f32.mrf.mxu0
    %4471 = vdwg.mxu0
    %4472 = vmatprep.subr.bf16.mxu0 0
    %4473 = vmatpush1.bf16.msra.mxu0 %v3250
    %4474 = vmatprep.subr.bf16.mxu0 0
    %4475 = vmatpush1.bf16.msra.mxu0 %v3249
    %4476 = vmatprep.subr.bf16.mxu0 0
    %4477 = vmatpush1.bf16.msra.mxu0 %v3248
    %4478 = vmatprep.subr.bf16.mxu0 0
    %4479 = vmatpush1.bf16.msra.mxu0 %v3247
    %4480 = vmatprep.subr.bf16.mxu0 0
    %4481 = vmatpush1.bf16.msra.mxu0 %v3246
    %4482 = vmatprep.subr.bf16.mxu0 0
    %4483 = vmatpush1.bf16.msra.mxu0 %v3245
    %4484 = vmatprep.subr.bf16.mxu0 0
    %4485 = vmatpush1.bf16.msra.mxu0 %v3244
    %4486 = vmatprep.subr.bf16.mxu0 0
    %4487 = vmatpush1.bf16.msra.mxu0 %v3243
    %4488 = vmatprep.subr.bf16.mxu0 0
    %4489 = vmatpush2.bf16.msra.mxu0 %v3258
    %4490 = vmatprep.subr.bf16.mxu0 0
    %4491 = vmatpush2.bf16.msra.mxu0 %v3257
    %4492 = vmatprep.subr.bf16.mxu0 0
    %4493 = vmatpush2.bf16.msra.mxu0 %v3256
    %4494 = vmatprep.subr.bf16.mxu0 0
    %4495 = vmatpush2.bf16.msra.mxu0 %v3255
    %4496 = vmatprep.subr.bf16.mxu0 0
    %4497 = vmatpush2.bf16.msra.mxu0 %v3254
    %4498 = vmatprep.subr.bf16.mxu0 0
    %4499 = vmatpush2.bf16.msra.mxu0 %v3253
    %4500 = vmatprep.subr.bf16.mxu0 0
    %4501 = vmatpush2.bf16.msra.mxu0 %v3252
    %4502 = vmatprep.subr.bf16.mxu0 0
    %4503 = vmatpush2.bf16.msra.mxu0 %v3251
    %4504 = vmatprep.mubr.bf16.mxu0 %v1262
    %4505 = vmatmul.mubr.bf16.gmra.mxu0 %v1261
    %v4506 = vpop.f32.mrf.mxu0
    %v4507 = vadd.f32 %v4458, %v4506
    %v4508 = vpop.f32.mrf.mxu0
    %v4509 = vpop.f32.mrf.mxu0
    %v4510 = vadd.f32 %v4461, %v4509
    %v4511 = vpop.f32.mrf.mxu0
    %4512 = vmatprep.mubr.bf16.mxu0 %v1312
    %4513 = vmatmul.mubr.bf16.gmra.mxu0 %v1311
    %v4514 = vpop.f32.mrf.mxu0
    %v4515 = vadd.f32 %v4466, %v4514
    %v4516 = vpop.f32.mrf.mxu0
    %v4517 = vpop.f32.mrf.mxu0
    %v4518 = vadd.f32 %v4469, %v4517
    %v4519 = vpop.f32.mrf.mxu0
    %4520 = vdwg.mxu0
    %4521 = vmatprep.subr.bf16.mxu0 0
    %4522 = vmatpush1.bf16.msra.mxu0 %v3266
    %4523 = vmatprep.subr.bf16.mxu0 0
    %4524 = vmatpush1.bf16.msra.mxu0 %v3265
    %4525 = vmatprep.subr.bf16.mxu0 0
    %4526 = vmatpush1.bf16.msra.mxu0 %v3264
    %4527 = vmatprep.subr.bf16.mxu0 0
    %4528 = vmatpush1.bf16.msra.mxu0 %v3263
    %4529 = vmatprep.subr.bf16.mxu0 0
    %4530 = vmatpush1.bf16.msra.mxu0 %v3262
    %4531 = vmatprep.subr.bf16.mxu0 0
    %4532 = vmatpush1.bf16.msra.mxu0 %v3261
    %4533 = vmatprep.subr.bf16.mxu0 0
    %4534 = vmatpush1.bf16.msra.mxu0 %v3260
    %4535 = vmatprep.subr.bf16.mxu0 0
    %4536 = vmatpush1.bf16.msra.mxu0 %v3259
    %4537 = vmatprep.subr.bf16.mxu0 0
    %4538 = vmatpush2.bf16.msra.mxu0 %v3274
    %4539 = vmatprep.subr.bf16.mxu0 0
    %4540 = vmatpush2.bf16.msra.mxu0 %v3273
    %4541 = vmatprep.subr.bf16.mxu0 0
    %4542 = vmatpush2.bf16.msra.mxu0 %v3272
    %4543 = vmatprep.subr.bf16.mxu0 0
    %4544 = vmatpush2.bf16.msra.mxu0 %v3271
    %4545 = vmatprep.subr.bf16.mxu0 0
    %4546 = vmatpush2.bf16.msra.mxu0 %v3270
    %4547 = vmatprep.subr.bf16.mxu0 0
    %4548 = vmatpush2.bf16.msra.mxu0 %v3269
    %4549 = vmatprep.subr.bf16.mxu0 0
    %4550 = vmatpush2.bf16.msra.mxu0 %v3268
    %4551 = vmatprep.subr.bf16.mxu0 0
    %4552 = vmatpush2.bf16.msra.mxu0 %v3267
    %4553 = vmatprep.mubr.bf16.mxu0 %v1264
    %4554 = vmatmul.mubr.bf16.gmra.mxu0 %v1263
    %v4555 = vpop.f32.mrf.mxu0
    %v4556 = vadd.f32 %v4507, %v4555
    %v4557 = vpop.f32.mrf.mxu0
    %v4558 = vpop.f32.mrf.mxu0
    %v4559 = vadd.f32 %v4510, %v4558
    %v4560 = vpop.f32.mrf.mxu0
    %4561 = vmatprep.mubr.bf16.mxu0 %v1314
    %4562 = vmatmul.mubr.bf16.gmra.mxu0 %v1313
    %v4563 = vpop.f32.mrf.mxu0
    %v4564 = vadd.f32 %v4515, %v4563
    %v4565 = vpop.f32.mrf.mxu0
    %v4566 = vpop.f32.mrf.mxu0
    %v4567 = vadd.f32 %v4518, %v4566
    %v4568 = vpop.f32.mrf.mxu0
    %4569 = vdwg.mxu0
    %4570 = vmatprep.subr.bf16.mxu0 0
    %4571 = vmatpush1.bf16.msra.mxu0 %v3282
    %4572 = vmatprep.subr.bf16.mxu0 0
    %4573 = vmatpush1.bf16.msra.mxu0 %v3281
    %4574 = vmatprep.subr.bf16.mxu0 0
    %4575 = vmatpush1.bf16.msra.mxu0 %v3280
    %4576 = vmatprep.subr.bf16.mxu0 0
    %4577 = vmatpush1.bf16.msra.mxu0 %v3279
    %4578 = vmatprep.subr.bf16.mxu0 0
    %4579 = vmatpush1.bf16.msra.mxu0 %v3278
    %4580 = vmatprep.subr.bf16.mxu0 0
    %4581 = vmatpush1.bf16.msra.mxu0 %v3277
    %4582 = vmatprep.subr.bf16.mxu0 0
    %4583 = vmatpush1.bf16.msra.mxu0 %v3276
    %4584 = vmatprep.subr.bf16.mxu0 0
    %4585 = vmatpush1.bf16.msra.mxu0 %v3275
    %4586 = vmatprep.subr.bf16.mxu0 0
    %4587 = vmatpush2.bf16.msra.mxu0 %v3290
    %4588 = vmatprep.subr.bf16.mxu0 0
    %4589 = vmatpush2.bf16.msra.mxu0 %v3289
    %4590 = vmatprep.subr.bf16.mxu0 0
    %4591 = vmatpush2.bf16.msra.mxu0 %v3288
    %4592 = vmatprep.subr.bf16.mxu0 0
    %4593 = vmatpush2.bf16.msra.mxu0 %v3287
    %4594 = vmatprep.subr.bf16.mxu0 0
    %4595 = vmatpush2.bf16.msra.mxu0 %v3286
    %4596 = vmatprep.subr.bf16.mxu0 0
    %4597 = vmatpush2.bf16.msra.mxu0 %v3285
    %4598 = vmatprep.subr.bf16.mxu0 0
    %4599 = vmatpush2.bf16.msra.mxu0 %v3284
    %4600 = vmatprep.subr.bf16.mxu0 0
    %4601 = vmatpush2.bf16.msra.mxu0 %v3283
    %4602 = vmatprep.mubr.bf16.mxu0 %v1266
    %4603 = vmatmul.mubr.bf16.gmra.mxu0 %v1265
    %v4604 = vpop.f32.mrf.mxu0
    %v4605 = vadd.f32 %v4556, %v4604
    %v4606 = vpop.f32.mrf.mxu0
    %v4607 = vpop.f32.mrf.mxu0
    %v4608 = vadd.f32 %v4559, %v4607
    %v4609 = vpop.f32.mrf.mxu0
    %4610 = vmatprep.mubr.bf16.mxu0 %v1316
    %4611 = vmatmul.mubr.bf16.gmra.mxu0 %v1315
    %v4612 = vpop.f32.mrf.mxu0
    %v4613 = vadd.f32 %v4564, %v4612
    %v4614 = vpop.f32.mrf.mxu0
    %v4615 = vpop.f32.mrf.mxu0
    %v4616 = vadd.f32 %v4567, %v4615
    %v4617 = vpop.f32.mrf.mxu0
    %4618 = vdwg.mxu0
    %4619 = vmatprep.subr.bf16.mxu0 0
    %4620 = vmatpush1.bf16.msra.mxu0 %v3298
    %4621 = vmatprep.subr.bf16.mxu0 0
    %4622 = vmatpush1.bf16.msra.mxu0 %v3297
    %4623 = vmatprep.subr.bf16.mxu0 0
    %4624 = vmatpush1.bf16.msra.mxu0 %v3296
    %4625 = vmatprep.subr.bf16.mxu0 0
    %4626 = vmatpush1.bf16.msra.mxu0 %v3295
    %4627 = vmatprep.subr.bf16.mxu0 0
    %4628 = vmatpush1.bf16.msra.mxu0 %v3294
    %4629 = vmatprep.subr.bf16.mxu0 0
    %4630 = vmatpush1.bf16.msra.mxu0 %v3293
    %4631 = vmatprep.subr.bf16.mxu0 0
    %4632 = vmatpush1.bf16.msra.mxu0 %v3292
    %4633 = vmatprep.subr.bf16.mxu0 0
    %4634 = vmatpush1.bf16.msra.mxu0 %v3291
    %4635 = vmatprep.subr.bf16.mxu0 0
    %4636 = vmatpush2.bf16.msra.mxu0 %v3306
    %4637 = vmatprep.subr.bf16.mxu0 0
    %4638 = vmatpush2.bf16.msra.mxu0 %v3305
    %4639 = vmatprep.subr.bf16.mxu0 0
    %4640 = vmatpush2.bf16.msra.mxu0 %v3304
    %4641 = vmatprep.subr.bf16.mxu0 0
    %4642 = vmatpush2.bf16.msra.mxu0 %v3303
    %4643 = vmatprep.subr.bf16.mxu0 0
    %4644 = vmatpush2.bf16.msra.mxu0 %v3302
    %4645 = vmatprep.subr.bf16.mxu0 0
    %4646 = vmatpush2.bf16.msra.mxu0 %v3301
    %4647 = vmatprep.subr.bf16.mxu0 0
    %4648 = vmatpush2.bf16.msra.mxu0 %v3300
    %4649 = vmatprep.subr.bf16.mxu0 0
    %4650 = vmatpush2.bf16.msra.mxu0 %v3299
    %4651 = vmatprep.mubr.bf16.mxu0 %v1268
    %4652 = vmatmul.mubr.bf16.gmra.mxu0 %v1267
    %v4653 = vpop.f32.mrf.mxu0
    %v4654 = vadd.f32 %v4605, %v4653
    %v4655 = vpop.f32.mrf.mxu0
    %v4656 = vpop.f32.mrf.mxu0
    %v4657 = vadd.f32 %v4608, %v4656
    %v4658 = vpop.f32.mrf.mxu0
    %4659 = vmatprep.mubr.bf16.mxu0 %v1318
    %4660 = vmatmul.mubr.bf16.gmra.mxu0 %v1317
    %v4661 = vpop.f32.mrf.mxu0
    %v4662 = vadd.f32 %v4613, %v4661
    %v4663 = vpop.f32.mrf.mxu0
    %v4664 = vpop.f32.mrf.mxu0
    %v4665 = vadd.f32 %v4616, %v4664
    %v4666 = vpop.f32.mrf.mxu0
    %4667 = vdwg.mxu0
    %4668 = vmatprep.subr.bf16.mxu0 0
    %4669 = vmatpush1.bf16.msra.mxu0 %v3314
    %4670 = vmatprep.subr.bf16.mxu0 0
    %4671 = vmatpush1.bf16.msra.mxu0 %v3313
    %4672 = vmatprep.subr.bf16.mxu0 0
    %4673 = vmatpush1.bf16.msra.mxu0 %v3312
    %4674 = vmatprep.subr.bf16.mxu0 0
    %4675 = vmatpush1.bf16.msra.mxu0 %v3311
    %4676 = vmatprep.subr.bf16.mxu0 0
    %4677 = vmatpush1.bf16.msra.mxu0 %v3310
    %4678 = vmatprep.subr.bf16.mxu0 0
    %4679 = vmatpush1.bf16.msra.mxu0 %v3309
    %4680 = vmatprep.subr.bf16.mxu0 0
    %4681 = vmatpush1.bf16.msra.mxu0 %v3308
    %4682 = vmatprep.subr.bf16.mxu0 0
    %4683 = vmatpush1.bf16.msra.mxu0 %v3307
    %4684 = vmatprep.subr.bf16.mxu0 0
    %4685 = vmatpush2.bf16.msra.mxu0 %v3322
    %4686 = vmatprep.subr.bf16.mxu0 0
    %4687 = vmatpush2.bf16.msra.mxu0 %v3321
    %4688 = vmatprep.subr.bf16.mxu0 0
    %4689 = vmatpush2.bf16.msra.mxu0 %v3320
    %4690 = vmatprep.subr.bf16.mxu0 0
    %4691 = vmatpush2.bf16.msra.mxu0 %v3319
    %4692 = vmatprep.subr.bf16.mxu0 0
    %4693 = vmatpush2.bf16.msra.mxu0 %v3318
    %4694 = vmatprep.subr.bf16.mxu0 0
    %4695 = vmatpush2.bf16.msra.mxu0 %v3317
    %4696 = vmatprep.subr.bf16.mxu0 0
    %4697 = vmatpush2.bf16.msra.mxu0 %v3316
    %4698 = vmatprep.subr.bf16.mxu0 0
    %4699 = vmatpush2.bf16.msra.mxu0 %v3315
    %4700 = vmatprep.mubr.bf16.mxu0 %v1270
    %4701 = vmatmul.mubr.bf16.gmra.mxu0 %v1269
    %v4702 = vpop.f32.mrf.mxu0
    %v4703 = vadd.f32 %v4654, %v4702
    %v4704 = vpop.f32.mrf.mxu0
    %v4705 = vpop.f32.mrf.mxu0
    %v4706 = vadd.f32 %v4657, %v4705
    %v4707 = vpop.f32.mrf.mxu0
    %4708 = vmatprep.mubr.bf16.mxu0 %v1320
    %4709 = vmatmul.mubr.bf16.gmra.mxu0 %v1319
    %v4710 = vpop.f32.mrf.mxu0
    %v4711 = vadd.f32 %v4662, %v4710
    %v4712 = vpop.f32.mrf.mxu0
    %v4713 = vpop.f32.mrf.mxu0
    %v4714 = vadd.f32 %v4665, %v4713
    %v4715 = vpop.f32.mrf.mxu0
    %4716 = vdwg.mxu0
    %4717 = vmatprep.subr.bf16.mxu0 0
    %4718 = vmatpush1.bf16.msra.mxu0 %v3330
    %4719 = vmatprep.subr.bf16.mxu0 0
    %4720 = vmatpush1.bf16.msra.mxu0 %v3329
    %4721 = vmatprep.subr.bf16.mxu0 0
    %4722 = vmatpush1.bf16.msra.mxu0 %v3328
    %4723 = vmatprep.subr.bf16.mxu0 0
    %4724 = vmatpush1.bf16.msra.mxu0 %v3327
    %4725 = vmatprep.subr.bf16.mxu0 0
    %4726 = vmatpush1.bf16.msra.mxu0 %v3326
    %4727 = vmatprep.subr.bf16.mxu0 0
    %4728 = vmatpush1.bf16.msra.mxu0 %v3325
    %4729 = vmatprep.subr.bf16.mxu0 0
    %4730 = vmatpush1.bf16.msra.mxu0 %v3324
    %4731 = vmatprep.subr.bf16.mxu0 0
    %4732 = vmatpush1.bf16.msra.mxu0 %v3323
    %4733 = vmatprep.subr.bf16.mxu0 0
    %4734 = vmatpush2.bf16.msra.mxu0 %v3338
    %4735 = vmatprep.subr.bf16.mxu0 0
    %4736 = vmatpush2.bf16.msra.mxu0 %v3337
    %4737 = vmatprep.subr.bf16.mxu0 0
    %4738 = vmatpush2.bf16.msra.mxu0 %v3336
    %4739 = vmatprep.subr.bf16.mxu0 0
    %4740 = vmatpush2.bf16.msra.mxu0 %v3335
    %4741 = vmatprep.subr.bf16.mxu0 0
    %4742 = vmatpush2.bf16.msra.mxu0 %v3334
    %4743 = vmatprep.subr.bf16.mxu0 0
    %4744 = vmatpush2.bf16.msra.mxu0 %v3333
    %4745 = vmatprep.subr.bf16.mxu0 0
    %4746 = vmatpush2.bf16.msra.mxu0 %v3332
    %4747 = vmatprep.subr.bf16.mxu0 0
    %4748 = vmatpush2.bf16.msra.mxu0 %v3331
    %4749 = vmatprep.mubr.bf16.mxu0 %v1272
    %4750 = vmatmul.mubr.bf16.gmra.mxu0 %v1271
    %v4751 = vpop.f32.mrf.mxu0
    %v4752 = vadd.f32 %v4703, %v4751
    %v4753 = vpop.f32.mrf.mxu0
    %v4754 = vpop.f32.mrf.mxu0
    %v4755 = vadd.f32 %v4706, %v4754
    %v4756 = vpop.f32.mrf.mxu0
    %4757 = vmatprep.mubr.bf16.mxu0 %v1322
    %4758 = vmatmul.mubr.bf16.gmra.mxu0 %v1321
    %v4759 = vpop.f32.mrf.mxu0
    %v4760 = vadd.f32 %v4711, %v4759
    %v4761 = vpop.f32.mrf.mxu0
    %v4762 = vpop.f32.mrf.mxu0
    %v4763 = vadd.f32 %v4714, %v4762
    %v4764 = vpop.f32.mrf.mxu0
    %4765 = vdwg.mxu0
    %4766 = vmatprep.subr.bf16.mxu0 0
    %4767 = vmatpush1.bf16.msra.mxu0 %v3346
    %4768 = vmatprep.subr.bf16.mxu0 0
    %4769 = vmatpush1.bf16.msra.mxu0 %v3345
    %4770 = vmatprep.subr.bf16.mxu0 0
    %4771 = vmatpush1.bf16.msra.mxu0 %v3344
    %4772 = vmatprep.subr.bf16.mxu0 0
    %4773 = vmatpush1.bf16.msra.mxu0 %v3343
    %4774 = vmatprep.subr.bf16.mxu0 0
    %4775 = vmatpush1.bf16.msra.mxu0 %v3342
    %4776 = vmatprep.subr.bf16.mxu0 0
    %4777 = vmatpush1.bf16.msra.mxu0 %v3341
    %4778 = vmatprep.subr.bf16.mxu0 0
    %4779 = vmatpush1.bf16.msra.mxu0 %v3340
    %4780 = vmatprep.subr.bf16.mxu0 0
    %4781 = vmatpush1.bf16.msra.mxu0 %v3339
    %4782 = vmatprep.subr.bf16.mxu0 0
    %4783 = vmatpush2.bf16.msra.mxu0 %v3354
    %4784 = vmatprep.subr.bf16.mxu0 0
    %4785 = vmatpush2.bf16.msra.mxu0 %v3353
    %4786 = vmatprep.subr.bf16.mxu0 0
    %4787 = vmatpush2.bf16.msra.mxu0 %v3352
    %4788 = vmatprep.subr.bf16.mxu0 0
    %4789 = vmatpush2.bf16.msra.mxu0 %v3351
    %4790 = vmatprep.subr.bf16.mxu0 0
    %4791 = vmatpush2.bf16.msra.mxu0 %v3350
    %4792 = vmatprep.subr.bf16.mxu0 0
    %4793 = vmatpush2.bf16.msra.mxu0 %v3349
    %4794 = vmatprep.subr.bf16.mxu0 0
    %4795 = vmatpush2.bf16.msra.mxu0 %v3348
    %4796 = vmatprep.subr.bf16.mxu0 0
    %4797 = vmatpush2.bf16.msra.mxu0 %v3347
    %4798 = vmatprep.mubr.bf16.mxu0 %v1274
    %4799 = vmatmul.mubr.bf16.gmra.mxu0 %v1273
    %v4800 = vpop.f32.mrf.mxu0
    %v4801 = vadd.f32 %v4752, %v4800
    %v4802 = vpop.f32.mrf.mxu0
    %v4803 = vpop.f32.mrf.mxu0
    %v4804 = vadd.f32 %v4755, %v4803
    %v4805 = vpop.f32.mrf.mxu0
    %4806 = vmatprep.mubr.bf16.mxu0 %v1324
    %4807 = vmatmul.mubr.bf16.gmra.mxu0 %v1323
    %v4808 = vpop.f32.mrf.mxu0
    %v4809 = vadd.f32 %v4760, %v4808
    %v4810 = vpop.f32.mrf.mxu0
    %v4811 = vpop.f32.mrf.mxu0
    %v4812 = vadd.f32 %v4763, %v4811
    %v4813 = vpop.f32.mrf.mxu0
    %4814 = vdwg.mxu0
    %4815 = vmatprep.subr.bf16.mxu0 0
    %4816 = vmatpush1.bf16.msra.mxu0 %v3362
    %4817 = vmatprep.subr.bf16.mxu0 0
    %4818 = vmatpush1.bf16.msra.mxu0 %v3361
    %4819 = vmatprep.subr.bf16.mxu0 0
    %4820 = vmatpush1.bf16.msra.mxu0 %v3360
    %4821 = vmatprep.subr.bf16.mxu0 0
    %4822 = vmatpush1.bf16.msra.mxu0 %v3359
    %4823 = vmatprep.subr.bf16.mxu0 0
    %4824 = vmatpush1.bf16.msra.mxu0 %v3358
    %4825 = vmatprep.subr.bf16.mxu0 0
    %4826 = vmatpush1.bf16.msra.mxu0 %v3357
    %4827 = vmatprep.subr.bf16.mxu0 0
    %4828 = vmatpush1.bf16.msra.mxu0 %v3356
    %4829 = vmatprep.subr.bf16.mxu0 0
    %4830 = vmatpush1.bf16.msra.mxu0 %v3355
    %4831 = vmatprep.subr.bf16.mxu0 0
    %4832 = vmatpush2.bf16.msra.mxu0 %v3370
    %4833 = vmatprep.subr.bf16.mxu0 0
    %4834 = vmatpush2.bf16.msra.mxu0 %v3369
    %4835 = vmatprep.subr.bf16.mxu0 0
    %4836 = vmatpush2.bf16.msra.mxu0 %v3368
    %4837 = vmatprep.subr.bf16.mxu0 0
    %4838 = vmatpush2.bf16.msra.mxu0 %v3367
    %4839 = vmatprep.subr.bf16.mxu0 0
    %4840 = vmatpush2.bf16.msra.mxu0 %v3366
    %4841 = vmatprep.subr.bf16.mxu0 0
    %4842 = vmatpush2.bf16.msra.mxu0 %v3365
    %4843 = vmatprep.subr.bf16.mxu0 0
    %4844 = vmatpush2.bf16.msra.mxu0 %v3364
    %4845 = vmatprep.subr.bf16.mxu0 0
    %4846 = vmatpush2.bf16.msra.mxu0 %v3363
    %4847 = vmatprep.mubr.bf16.mxu0 %v1276
    %4848 = vmatmul.mubr.bf16.gmra.mxu0 %v1275
    %v4849 = vpop.f32.mrf.mxu0
    %v4850 = vadd.f32 %v4801, %v4849
    %v4851 = vpop.f32.mrf.mxu0
    %v4852 = vpop.f32.mrf.mxu0
    %v4853 = vadd.f32 %v4804, %v4852
    %v4854 = vpop.f32.mrf.mxu0
    %4855 = vmatprep.mubr.bf16.mxu0 %v1326
    %4856 = vmatmul.mubr.bf16.gmra.mxu0 %v1325
    %v4857 = vpop.f32.mrf.mxu0
    %v4858 = vadd.f32 %v4809, %v4857
    %v4859 = vpop.f32.mrf.mxu0
    %v4860 = vpop.f32.mrf.mxu0
    %v4861 = vadd.f32 %v4812, %v4860
    %v4862 = vpop.f32.mrf.mxu0
    %4863 = vdwg.mxu0
    %4864 = vmatprep.subr.bf16.mxu0 0
    %4865 = vmatpush1.bf16.msra.mxu0 %v3378
    %4866 = vmatprep.subr.bf16.mxu0 0
    %4867 = vmatpush1.bf16.msra.mxu0 %v3377
    %4868 = vmatprep.subr.bf16.mxu0 0
    %4869 = vmatpush1.bf16.msra.mxu0 %v3376
    %4870 = vmatprep.subr.bf16.mxu0 0
    %4871 = vmatpush1.bf16.msra.mxu0 %v3375
    %4872 = vmatprep.subr.bf16.mxu0 0
    %4873 = vmatpush1.bf16.msra.mxu0 %v3374
    %4874 = vmatprep.subr.bf16.mxu0 0
    %4875 = vmatpush1.bf16.msra.mxu0 %v3373
    %4876 = vmatprep.subr.bf16.mxu0 0
    %4877 = vmatpush1.bf16.msra.mxu0 %v3372
    %4878 = vmatprep.subr.bf16.mxu0 0
    %4879 = vmatpush1.bf16.msra.mxu0 %v3371
    %4880 = vmatprep.subr.bf16.mxu0 0
    %4881 = vmatpush2.bf16.msra.mxu0 %v3386
    %4882 = vmatprep.subr.bf16.mxu0 0
    %4883 = vmatpush2.bf16.msra.mxu0 %v3385
    %4884 = vmatprep.subr.bf16.mxu0 0
    %4885 = vmatpush2.bf16.msra.mxu0 %v3384
    %4886 = vmatprep.subr.bf16.mxu0 0
    %4887 = vmatpush2.bf16.msra.mxu0 %v3383
    %4888 = vmatprep.subr.bf16.mxu0 0
    %4889 = vmatpush2.bf16.msra.mxu0 %v3382
    %4890 = vmatprep.subr.bf16.mxu0 0
    %4891 = vmatpush2.bf16.msra.mxu0 %v3381
    %4892 = vmatprep.subr.bf16.mxu0 0
    %4893 = vmatpush2.bf16.msra.mxu0 %v3380
    %4894 = vmatprep.subr.bf16.mxu0 0
    %4895 = vmatpush2.bf16.msra.mxu0 %v3379
    %4896 = vmatprep.mubr.bf16.mxu0 %v1278
    %4897 = vmatmul.mubr.bf16.gmra.mxu0 %v1277
    %v4898 = vpop.f32.mrf.mxu0
    %v4899 = vadd.f32 %v4850, %v4898
    %v4900 = vpop.f32.mrf.mxu0
    %v4901 = vpop.f32.mrf.mxu0
    %v4902 = vadd.f32 %v4853, %v4901
    %v4903 = vpop.f32.mrf.mxu0
    %4904 = vmatprep.mubr.bf16.mxu0 %v1328
    %4905 = vmatmul.mubr.bf16.gmra.mxu0 %v1327
    %v4906 = vpop.f32.mrf.mxu0
    %v4907 = vadd.f32 %v4858, %v4906
    %v4908 = vpop.f32.mrf.mxu0
    %v4909 = vpop.f32.mrf.mxu0
    %v4910 = vadd.f32 %v4861, %v4909
    %v4911 = vpop.f32.mrf.mxu0
    %4912 = vdwg.mxu0
    %4913 = vmatprep.subr.bf16.mxu0 0
    %4914 = vmatpush1.bf16.msra.mxu0 %v3394
    %4915 = vmatprep.subr.bf16.mxu0 0
    %4916 = vmatpush1.bf16.msra.mxu0 %v3393
    %4917 = vmatprep.subr.bf16.mxu0 0
    %4918 = vmatpush1.bf16.msra.mxu0 %v3392
    %4919 = vmatprep.subr.bf16.mxu0 0
    %4920 = vmatpush1.bf16.msra.mxu0 %v3391
    %4921 = vmatprep.subr.bf16.mxu0 0
    %4922 = vmatpush1.bf16.msra.mxu0 %v3390
    %4923 = vmatprep.subr.bf16.mxu0 0
    %4924 = vmatpush1.bf16.msra.mxu0 %v3389
    %4925 = vmatprep.subr.bf16.mxu0 0
    %4926 = vmatpush1.bf16.msra.mxu0 %v3388
    %4927 = vmatprep.subr.bf16.mxu0 0
    %4928 = vmatpush1.bf16.msra.mxu0 %v3387
    %4929 = vmatprep.subr.bf16.mxu0 0
    %4930 = vmatpush2.bf16.msra.mxu0 %v3402
    %4931 = vmatprep.subr.bf16.mxu0 0
    %4932 = vmatpush2.bf16.msra.mxu0 %v3401
    %4933 = vmatprep.subr.bf16.mxu0 0
    %4934 = vmatpush2.bf16.msra.mxu0 %v3400
    %4935 = vmatprep.subr.bf16.mxu0 0
    %4936 = vmatpush2.bf16.msra.mxu0 %v3399
    %4937 = vmatprep.subr.bf16.mxu0 0
    %4938 = vmatpush2.bf16.msra.mxu0 %v3398
    %4939 = vmatprep.subr.bf16.mxu0 0
    %4940 = vmatpush2.bf16.msra.mxu0 %v3397
    %4941 = vmatprep.subr.bf16.mxu0 0
    %4942 = vmatpush2.bf16.msra.mxu0 %v3396
    %4943 = vmatprep.subr.bf16.mxu0 0
    %4944 = vmatpush2.bf16.msra.mxu0 %v3395
    %4945 = vmatprep.mubr.bf16.mxu0 %v1280
    %4946 = vmatmul.mubr.bf16.gmra.mxu0 %v1279
    %v4947 = vpop.f32.mrf.mxu0
    %v4948 = vadd.f32 %v4899, %v4947
    %v4949 = vpop.f32.mrf.mxu0
    %v4950 = vpop.f32.mrf.mxu0
    %v4951 = vadd.f32 %v4902, %v4950
    %v4952 = vpop.f32.mrf.mxu0
    %4953 = vmatprep.mubr.bf16.mxu0 %v1330
    %4954 = vmatmul.mubr.bf16.gmra.mxu0 %v1329
    %v4955 = vpop.f32.mrf.mxu0
    %v4956 = vadd.f32 %v4907, %v4955
    %v4957 = vpop.f32.mrf.mxu0
    %v4958 = vpop.f32.mrf.mxu0
    %v4959 = vadd.f32 %v4910, %v4958
    %v4960 = vpop.f32.mrf.mxu0
    %4961 = vdwg.mxu0
    %4962 = vmatprep.subr.bf16.mxu0 0
    %4963 = vmatpush1.bf16.msra.mxu0 %v3410
    %4964 = vmatprep.subr.bf16.mxu0 0
    %4965 = vmatpush1.bf16.msra.mxu0 %v3409
    %4966 = vmatprep.subr.bf16.mxu0 0
    %4967 = vmatpush1.bf16.msra.mxu0 %v3408
    %4968 = vmatprep.subr.bf16.mxu0 0
    %4969 = vmatpush1.bf16.msra.mxu0 %v3407
    %4970 = vmatprep.subr.bf16.mxu0 0
    %4971 = vmatpush1.bf16.msra.mxu0 %v3406
    %4972 = vmatprep.subr.bf16.mxu0 0
    %4973 = vmatpush1.bf16.msra.mxu0 %v3405
    %4974 = vmatprep.subr.bf16.mxu0 0
    %4975 = vmatpush1.bf16.msra.mxu0 %v3404
    %4976 = vmatprep.subr.bf16.mxu0 0
    %4977 = vmatpush1.bf16.msra.mxu0 %v3403
    %4978 = vmatprep.subr.bf16.mxu0 0
    %4979 = vmatpush2.bf16.msra.mxu0 %v3418
    %4980 = vmatprep.subr.bf16.mxu0 0
    %4981 = vmatpush2.bf16.msra.mxu0 %v3417
    %4982 = vmatprep.subr.bf16.mxu0 0
    %4983 = vmatpush2.bf16.msra.mxu0 %v3416
    %4984 = vmatprep.subr.bf16.mxu0 0
    %4985 = vmatpush2.bf16.msra.mxu0 %v3415
    %4986 = vmatprep.subr.bf16.mxu0 0
    %4987 = vmatpush2.bf16.msra.mxu0 %v3414
    %4988 = vmatprep.subr.bf16.mxu0 0
    %4989 = vmatpush2.bf16.msra.mxu0 %v3413
    %4990 = vmatprep.subr.bf16.mxu0 0
    %4991 = vmatpush2.bf16.msra.mxu0 %v3412
    %4992 = vmatprep.subr.bf16.mxu0 0
    %4993 = vmatpush2.bf16.msra.mxu0 %v3411
    %4994 = vmatprep.mubr.bf16.mxu0 %v1282
    %4995 = vmatmul.mubr.bf16.gmra.mxu0 %v1281
    %v4996 = vpop.f32.mrf.mxu0
    %v4997 = vadd.f32 %v4948, %v4996
    %v4998 = vpop.f32.mrf.mxu0
    %v4999 = vpop.f32.mrf.mxu0
    %v5000 = vadd.f32 %v4951, %v4999
    %v5001 = vpop.f32.mrf.mxu0
    %5002 = vmatprep.mubr.bf16.mxu0 %v1332
    %5003 = vmatmul.mubr.bf16.gmra.mxu0 %v1331
    %v5004 = vpop.f32.mrf.mxu0
    %v5005 = vadd.f32 %v4956, %v5004
    %v5006 = vpop.f32.mrf.mxu0
    %v5007 = vpop.f32.mrf.mxu0
    %v5008 = vadd.f32 %v4959, %v5007
    %v5009 = vpop.f32.mrf.mxu0
    %5010 = vdwg.mxu0
    %5011 = vmatprep.subr.bf16.mxu0 0
    %5012 = vmatpush1.bf16.msra.mxu0 %v3426
    %5013 = vmatprep.subr.bf16.mxu0 0
    %5014 = vmatpush1.bf16.msra.mxu0 %v3425
    %5015 = vmatprep.subr.bf16.mxu0 0
    %5016 = vmatpush1.bf16.msra.mxu0 %v3424
    %5017 = vmatprep.subr.bf16.mxu0 0
    %5018 = vmatpush1.bf16.msra.mxu0 %v3423
    %5019 = vmatprep.subr.bf16.mxu0 0
    %5020 = vmatpush1.bf16.msra.mxu0 %v3422
    %5021 = vmatprep.subr.bf16.mxu0 0
    %5022 = vmatpush1.bf16.msra.mxu0 %v3421
    %5023 = vmatprep.subr.bf16.mxu0 0
    %5024 = vmatpush1.bf16.msra.mxu0 %v3420
    %5025 = vmatprep.subr.bf16.mxu0 0
    %5026 = vmatpush1.bf16.msra.mxu0 %v3419
    %5027 = vmatprep.subr.bf16.mxu0 0
    %5028 = vmatpush2.bf16.msra.mxu0 %v3434
    %5029 = vmatprep.subr.bf16.mxu0 0
    %5030 = vmatpush2.bf16.msra.mxu0 %v3433
    %5031 = vmatprep.subr.bf16.mxu0 0
    %5032 = vmatpush2.bf16.msra.mxu0 %v3432
    %5033 = vmatprep.subr.bf16.mxu0 0
    %5034 = vmatpush2.bf16.msra.mxu0 %v3431
    %5035 = vmatprep.subr.bf16.mxu0 0
    %5036 = vmatpush2.bf16.msra.mxu0 %v3430
    %5037 = vmatprep.subr.bf16.mxu0 0
    %5038 = vmatpush2.bf16.msra.mxu0 %v3429
    %5039 = vmatprep.subr.bf16.mxu0 0
    %5040 = vmatpush2.bf16.msra.mxu0 %v3428
    %5041 = vmatprep.subr.bf16.mxu0 0
    %5042 = vmatpush2.bf16.msra.mxu0 %v3427
    %5043 = vmatprep.mubr.bf16.mxu0 %v1284
    %5044 = vmatmul.mubr.bf16.gmra.mxu0 %v1283
    %v5045 = vpop.f32.mrf.mxu0
    %v5046 = vadd.f32 %v4997, %v5045
    %v5047 = vpop.f32.mrf.mxu0
    %v5048 = vpop.f32.mrf.mxu0
    %v5049 = vadd.f32 %v5000, %v5048
    %v5050 = vpop.f32.mrf.mxu0
    %5051 = vmatprep.mubr.bf16.mxu0 %v1334
    %5052 = vmatmul.mubr.bf16.gmra.mxu0 %v1333
    %v5053 = vpop.f32.mrf.mxu0
    %v5054 = vadd.f32 %v5005, %v5053
    %v5055 = vpop.f32.mrf.mxu0
    %v5056 = vpop.f32.mrf.mxu0
    %v5057 = vadd.f32 %v5008, %v5056
    %v5058 = vpop.f32.mrf.mxu0
    %5059 = vdwg.mxu0
    %v5060 = vmax.f32 %v5046, 0.0
    %v5061 = vmax.f32 %v5049, 0.0
    %v5062 = vmax.f32 %v5054, 0.0
    %v5063 = vmax.f32 %v5057, 0.0
    %v5064 = vmax.f32 %v5060, %v5061
    %v5065 = vmax.f32 %v5064, %v5062
    %v5066 = vmax.f32 %v5065, %v5063
    %v5067 = vpack.c.bf16 %v5066, %v5066
    %v5068 = vld [vmem:[%s3] sm:$0xff]
    %v5069 = vld [vmem:[%s3 + $0x8] sm:$0xff]
    %v5070 = vld [vmem:[%s3 + $0x10] sm:$0xff]
    %v5071 = vld [vmem:[%s3 + $0x18] sm:$0xff]
    %v5072 = vld [vmem:[%s3 + $0x20] sm:$0xff]
    %v5073 = vld [vmem:[%s3 + $0x28] sm:$0xff]
    %v5074 = vld [vmem:[%s3 + $0x30] sm:$0xff]
    %v5075 = vld [vmem:[%s3 + $0x38] sm:$0xff]
    %s5076 = scalar_lea.vmem %s3, 64
    %v5077 = vld [vmem:[%s5076] sm:$0xff]
    %v5078 = vld [vmem:[%s5076 + $0x8] sm:$0xff]
    %v5079 = vld [vmem:[%s5076 + $0x10] sm:$0xff]
    %v5080 = vld [vmem:[%s5076 + $0x18] sm:$0xff]
    %v5081 = vld [vmem:[%s5076 + $0x20] sm:$0xff]
    %v5082 = vld [vmem:[%s5076 + $0x28] sm:$0xff]
    %v5083 = vld [vmem:[%s5076 + $0x30] sm:$0xff]
    %v5084 = vld [vmem:[%s5076 + $0x38] sm:$0xff]
    %v5086 = vshrl.u32 %v5067, 16
    %v5096 = vunpack.c.l.b16 %v5077
    %v5097 = vunpack.c.h.b16 %v5077
    %v5098 = vunpack.c.l.b16 %v5078
    %v5099 = vunpack.c.h.b16 %v5078
    %v5100 = vunpack.c.l.b16 %v5079
    %v5101 = vunpack.c.h.b16 %v5079
    %v5102 = vunpack.c.l.b16 %v5080
    %v5103 = vunpack.c.h.b16 %v5080
    %v5104 = vunpack.c.l.b16 %v5081
    %v5105 = vunpack.c.h.b16 %v5081
    %v5106 = vunpack.c.l.b16 %v5082
    %v5107 = vunpack.c.h.b16 %v5082
    %v5108 = vunpack.c.l.b16 %v5083
    %v5109 = vunpack.c.h.b16 %v5083
    %v5110 = vunpack.c.l.b16 %v5084
    %v5111 = vunpack.c.h.b16 %v5084
    %v5112 = vpack.c.b16 %v5100, %v5096
    %v5113 = vpack.c.b16 %v5101, %v5097
    %v5114 = vpack.c.b16 %v5102, %v5098
    %v5115 = vpack.c.b16 %v5103, %v5099
    %v5116 = vpack.c.b16 %v5108, %v5104
    %v5117 = vpack.c.b16 %v5109, %v5105
    %v5118 = vpack.c.b16 %v5110, %v5106
    %v5119 = vpack.c.b16 %v5111, %v5107
    %vm5128 = vcmask 261120
    %v5130 = vsel %vm5128, %v5086, 0
    %5132 = vmatprep.subr.bf16.mxu0 0
    %5133 = vmatpush1.bf16.msra.mxu0 0
    %5134 = vmatprep.subr.bf16.mxu0 0
    %5135 = vmatpush1.bf16.msra.mxu0 0
    %5136 = vmatprep.subr.bf16.mxu0 0
    %5137 = vmatpush1.bf16.msra.mxu0 0
    %5138 = vmatprep.subr.bf16.mxu0 0
    %5139 = vmatpush1.bf16.msra.mxu0 0
    %5140 = vmatprep.subr.bf16.mxu0 0
    %5141 = vmatpush1.bf16.msra.mxu0 0
    %5142 = vmatprep.subr.bf16.mxu0 0
    %5143 = vmatpush1.bf16.msra.mxu0 0
    %5144 = vmatprep.subr.bf16.mxu0 %v5117
    %5145 = vmatpush1.bf16.msra.mxu0 %v5116
    %5146 = vmatprep.subr.bf16.mxu0 %v5113
    %5147 = vmatpush1.bf16.msra.mxu0 %v5112
    %5148 = vmatprep.subr.bf16.mxu0 0
    %5149 = vmatpush2.bf16.msra.mxu0 0
    %5150 = vmatprep.subr.bf16.mxu0 0
    %5151 = vmatpush2.bf16.msra.mxu0 0
    %5152 = vmatprep.subr.bf16.mxu0 0
    %5153 = vmatpush2.bf16.msra.mxu0 0
    %5154 = vmatprep.subr.bf16.mxu0 0
    %5155 = vmatpush2.bf16.msra.mxu0 0
    %5156 = vmatprep.subr.bf16.mxu0 0
    %5157 = vmatpush2.bf16.msra.mxu0 0
    %5158 = vmatprep.subr.bf16.mxu0 0
    %5159 = vmatpush2.bf16.msra.mxu0 0
    %5160 = vmatprep.subr.bf16.mxu0 0
    %5161 = vmatpush2.bf16.msra.mxu0 0
    %5162 = vmatprep.subr.bf16.mxu0 0
    %5163 = vmatpush2.bf16.msra.mxu0 0
    %5164 = vmatprep.mubr.bf16.mxu0 0
    %5165 = vmatmul.mubr.bf16.gmra.mxu0 %v5130
    %v5166 = vpop.f32.mrf.mxu0
    %v5167 = vadd.f32 0.0, %v5166
    %v5168 = vpop.f32.mrf.mxu0
    %v5169 = vadd.f32 0.0, %v5168
    %v5170 = vpop.f32.mrf.mxu0
    %v5171 = vpop.f32.mrf.mxu0
    %5172 = vdwg.mxu0
    %5173 = vmatprep.subr.bf16.mxu0 0
    %5174 = vmatpush1.bf16.msra.mxu0 0
    %5175 = vmatprep.subr.bf16.mxu0 0
    %5176 = vmatpush1.bf16.msra.mxu0 0
    %5177 = vmatprep.subr.bf16.mxu0 0
    %5178 = vmatpush1.bf16.msra.mxu0 0
    %5179 = vmatprep.subr.bf16.mxu0 0
    %5180 = vmatpush1.bf16.msra.mxu0 0
    %5181 = vmatprep.subr.bf16.mxu0 0
    %5182 = vmatpush1.bf16.msra.mxu0 0
    %5183 = vmatprep.subr.bf16.mxu0 0
    %5184 = vmatpush1.bf16.msra.mxu0 0
    %5185 = vmatprep.subr.bf16.mxu0 %v5119
    %5186 = vmatpush1.bf16.msra.mxu0 %v5118
    %5187 = vmatprep.subr.bf16.mxu0 %v5115
    %5188 = vmatpush1.bf16.msra.mxu0 %v5114
    %5189 = vmatprep.subr.bf16.mxu0 0
    %5190 = vmatpush2.bf16.msra.mxu0 0
    %5191 = vmatprep.subr.bf16.mxu0 0
    %5192 = vmatpush2.bf16.msra.mxu0 0
    %5193 = vmatprep.subr.bf16.mxu0 0
    %5194 = vmatpush2.bf16.msra.mxu0 0
    %5195 = vmatprep.subr.bf16.mxu0 0
    %5196 = vmatpush2.bf16.msra.mxu0 0
    %5197 = vmatprep.subr.bf16.mxu0 0
    %5198 = vmatpush2.bf16.msra.mxu0 0
    %5199 = vmatprep.subr.bf16.mxu0 0
    %5200 = vmatpush2.bf16.msra.mxu0 0
    %5201 = vmatprep.subr.bf16.mxu0 0
    %5202 = vmatpush2.bf16.msra.mxu0 0
    %5203 = vmatprep.subr.bf16.mxu0 0
    %5204 = vmatpush2.bf16.msra.mxu0 0
    %5205 = vmatprep.mubr.bf16.mxu0 0
    %5206 = vmatmul.mubr.bf16.gmra.mxu0 %v5130
    %v5207 = vpop.f32.mrf.mxu0
    %v5208 = vadd.f32 0.0, %v5207
    %v5209 = vpop.f32.mrf.mxu0
    %v5210 = vadd.f32 0.0, %v5209
    %v5211 = vpop.f32.mrf.mxu0
    %v5212 = vpop.f32.mrf.mxu0
    %5213 = vdwg.mxu0
    %v5222 = vunpack.c.l.b16 %v5068
    %v5223 = vunpack.c.h.b16 %v5068
    %v5224 = vunpack.c.l.b16 %v5069
    %v5225 = vunpack.c.h.b16 %v5069
    %v5226 = vunpack.c.l.b16 %v5070
    %v5227 = vunpack.c.h.b16 %v5070
    %v5228 = vunpack.c.l.b16 %v5071
    %v5229 = vunpack.c.h.b16 %v5071
    %v5230 = vunpack.c.l.b16 %v5072
    %v5231 = vunpack.c.h.b16 %v5072
    %v5232 = vunpack.c.l.b16 %v5073
    %v5233 = vunpack.c.h.b16 %v5073
    %v5234 = vunpack.c.l.b16 %v5074
    %v5235 = vunpack.c.h.b16 %v5074
    %v5236 = vunpack.c.l.b16 %v5075
    %v5237 = vunpack.c.h.b16 %v5075
    %v5238 = vpack.c.b16 %v5226, %v5222
    %v5239 = vpack.c.b16 %v5227, %v5223
    %v5240 = vpack.c.b16 %v5228, %v5224
    %v5241 = vpack.c.b16 %v5229, %v5225
    %v5242 = vpack.c.b16 %v5234, %v5230
    %v5243 = vpack.c.b16 %v5235, %v5231
    %v5244 = vpack.c.b16 %v5236, %v5232
    %v5245 = vpack.c.b16 %v5237, %v5233
    %v5254 = vsel %vm5128, %v5067, 0
    %5256 = vmatprep.subr.bf16.mxu0 0
    %5257 = vmatpush1.bf16.msra.mxu0 0
    %5258 = vmatprep.subr.bf16.mxu0 0
    %5259 = vmatpush1.bf16.msra.mxu0 0
    %5260 = vmatprep.subr.bf16.mxu0 0
    %5261 = vmatpush1.bf16.msra.mxu0 0
    %5262 = vmatprep.subr.bf16.mxu0 0
    %5263 = vmatpush1.bf16.msra.mxu0 0
    %5264 = vmatprep.subr.bf16.mxu0 0
    %5265 = vmatpush1.bf16.msra.mxu0 0
    %5266 = vmatprep.subr.bf16.mxu0 0
    %5267 = vmatpush1.bf16.msra.mxu0 0
    %5268 = vmatprep.subr.bf16.mxu0 %v5243
    %5269 = vmatpush1.bf16.msra.mxu0 %v5242
    %5270 = vmatprep.subr.bf16.mxu0 %v5239
    %5271 = vmatpush1.bf16.msra.mxu0 %v5238
    %5272 = vmatprep.subr.bf16.mxu0 0
    %5273 = vmatpush2.bf16.msra.mxu0 0
    %5274 = vmatprep.subr.bf16.mxu0 0
    %5275 = vmatpush2.bf16.msra.mxu0 0
    %5276 = vmatprep.subr.bf16.mxu0 0
    %5277 = vmatpush2.bf16.msra.mxu0 0
    %5278 = vmatprep.subr.bf16.mxu0 0
    %5279 = vmatpush2.bf16.msra.mxu0 0
    %5280 = vmatprep.subr.bf16.mxu0 0
    %5281 = vmatpush2.bf16.msra.mxu0 0
    %5282 = vmatprep.subr.bf16.mxu0 0
    %5283 = vmatpush2.bf16.msra.mxu0 0
    %5284 = vmatprep.subr.bf16.mxu0 0
    %5285 = vmatpush2.bf16.msra.mxu0 0
    %5286 = vmatprep.subr.bf16.mxu0 0
    %5287 = vmatpush2.bf16.msra.mxu0 0
    %5288 = vmatprep.mubr.bf16.mxu0 0
    %5289 = vmatmul.mubr.bf16.gmra.mxu0 %v5254
    %v5290 = vpop.f32.mrf.mxu0
    %v5291 = vadd.f32 %v5167, %v5290
    %v5292 = vpop.f32.mrf.mxu0
    %v5293 = vadd.f32 %v5169, %v5292
    %v5294 = vpop.f32.mrf.mxu0
    %v5295 = vpop.f32.mrf.mxu0
    %5296 = vdwg.mxu0
    %5297 = vmatprep.subr.bf16.mxu0 0
    %5298 = vmatpush1.bf16.msra.mxu0 0
    %5299 = vmatprep.subr.bf16.mxu0 0
    %5300 = vmatpush1.bf16.msra.mxu0 0
    %5301 = vmatprep.subr.bf16.mxu0 0
    %5302 = vmatpush1.bf16.msra.mxu0 0
    %5303 = vmatprep.subr.bf16.mxu0 0
    %5304 = vmatpush1.bf16.msra.mxu0 0
    %5305 = vmatprep.subr.bf16.mxu0 0
    %5306 = vmatpush1.bf16.msra.mxu0 0
    %5307 = vmatprep.subr.bf16.mxu0 0
    %5308 = vmatpush1.bf16.msra.mxu0 0
    %5309 = vmatprep.subr.bf16.mxu0 %v5245
    %5310 = vmatpush1.bf16.msra.mxu0 %v5244
    %5311 = vmatprep.subr.bf16.mxu0 %v5241
    %5312 = vmatpush1.bf16.msra.mxu0 %v5240
    %5313 = vmatprep.subr.bf16.mxu0 0
    %5314 = vmatpush2.bf16.msra.mxu0 0
    %5315 = vmatprep.subr.bf16.mxu0 0
    %5316 = vmatpush2.bf16.msra.mxu0 0
    %5317 = vmatprep.subr.bf16.mxu0 0
    %5318 = vmatpush2.bf16.msra.mxu0 0
    %5319 = vmatprep.subr.bf16.mxu0 0
    %5320 = vmatpush2.bf16.msra.mxu0 0
    %5321 = vmatprep.subr.bf16.mxu0 0
    %5322 = vmatpush2.bf16.msra.mxu0 0
    %5323 = vmatprep.subr.bf16.mxu0 0
    %5324 = vmatpush2.bf16.msra.mxu0 0
    %5325 = vmatprep.subr.bf16.mxu0 0
    %5326 = vmatpush2.bf16.msra.mxu0 0
    %5327 = vmatprep.subr.bf16.mxu0 0
    %5328 = vmatpush2.bf16.msra.mxu0 0
    %5329 = vmatprep.mubr.bf16.mxu0 0
    %5330 = vmatmul.mubr.bf16.gmra.mxu0 %v5254
    %v5331 = vpop.f32.mrf.mxu0
    %v5332 = vadd.f32 %v5208, %v5331
    %v5333 = vpop.f32.mrf.mxu0
    %v5334 = vadd.f32 %v5210, %v5333
    %v5335 = vpop.f32.mrf.mxu0
    %v5336 = vpop.f32.mrf.mxu0
    %5337 = vdwg.mxu0
    %s5338 = scalar_lea.vmem %s3, 128
    %v5339 = vld [vmem:[%s5338] sm:$0xff]
    %v5340 = vld [vmem:[%s5338 + $0x8] sm:$0xff]
    %v5341 = vld [vmem:[%s5338 + $0x10] sm:$0xff]
    %v5342 = vld [vmem:[%s5338 + $0x18] sm:$0xff]
    %v5343 = vld [vmem:[%s5338 + $0x20] sm:$0xff]
    %v5344 = vld [vmem:[%s5338 + $0x28] sm:$0xff]
    %v5345 = vld [vmem:[%s5338 + $0x30] sm:$0xff]
    %v5346 = vld [vmem:[%s5338 + $0x38] sm:$0xff]
    %v5348 = vrot.slane %v5067, 1
    %v5357 = vunpack.c.l.b16 %v5339
    %v5358 = vunpack.c.h.b16 %v5339
    %v5359 = vunpack.c.l.b16 %v5340
    %v5360 = vunpack.c.h.b16 %v5340
    %v5361 = vunpack.c.l.b16 %v5341
    %v5362 = vunpack.c.h.b16 %v5341
    %v5363 = vunpack.c.l.b16 %v5342
    %v5364 = vunpack.c.h.b16 %v5342
    %v5365 = vunpack.c.l.b16 %v5343
    %v5366 = vunpack.c.h.b16 %v5343
    %v5367 = vunpack.c.l.b16 %v5344
    %v5368 = vunpack.c.h.b16 %v5344
    %v5369 = vunpack.c.l.b16 %v5345
    %v5370 = vunpack.c.h.b16 %v5345
    %v5371 = vunpack.c.l.b16 %v5346
    %v5372 = vunpack.c.h.b16 %v5346
    %v5373 = vpack.c.b16 %v5361, %v5357
    %v5374 = vpack.c.b16 %v5362, %v5358
    %v5375 = vpack.c.b16 %v5363, %v5359
    %v5376 = vpack.c.b16 %v5364, %v5360
    %v5377 = vpack.c.b16 %v5369, %v5365
    %v5378 = vpack.c.b16 %v5370, %v5366
    %v5379 = vpack.c.b16 %v5371, %v5367
    %v5380 = vpack.c.b16 %v5372, %v5368
    %v5390 = vsel %vm5128, %v5348, 0
    %5392 = vmatprep.subr.bf16.mxu0 0
    %5393 = vmatpush1.bf16.msra.mxu0 0
    %5394 = vmatprep.subr.bf16.mxu0 0
    %5395 = vmatpush1.bf16.msra.mxu0 0
    %5396 = vmatprep.subr.bf16.mxu0 0
    %5397 = vmatpush1.bf16.msra.mxu0 0
    %5398 = vmatprep.subr.bf16.mxu0 0
    %5399 = vmatpush1.bf16.msra.mxu0 0
    %5400 = vmatprep.subr.bf16.mxu0 0
    %5401 = vmatpush1.bf16.msra.mxu0 0
    %5402 = vmatprep.subr.bf16.mxu0 0
    %5403 = vmatpush1.bf16.msra.mxu0 0
    %5404 = vmatprep.subr.bf16.mxu0 %v5378
    %5405 = vmatpush1.bf16.msra.mxu0 %v5377
    %5406 = vmatprep.subr.bf16.mxu0 %v5374
    %5407 = vmatpush1.bf16.msra.mxu0 %v5373
    %5408 = vmatprep.subr.bf16.mxu0 0
    %5409 = vmatpush2.bf16.msra.mxu0 0
    %5410 = vmatprep.subr.bf16.mxu0 0
    %5411 = vmatpush2.bf16.msra.mxu0 0
    %5412 = vmatprep.subr.bf16.mxu0 0
    %5413 = vmatpush2.bf16.msra.mxu0 0
    %5414 = vmatprep.subr.bf16.mxu0 0
    %5415 = vmatpush2.bf16.msra.mxu0 0
    %5416 = vmatprep.subr.bf16.mxu0 0
    %5417 = vmatpush2.bf16.msra.mxu0 0
    %5418 = vmatprep.subr.bf16.mxu0 0
    %5419 = vmatpush2.bf16.msra.mxu0 0
    %5420 = vmatprep.subr.bf16.mxu0 0
    %5421 = vmatpush2.bf16.msra.mxu0 0
    %5422 = vmatprep.subr.bf16.mxu0 0
    %5423 = vmatpush2.bf16.msra.mxu0 0
    %5424 = vmatprep.mubr.bf16.mxu0 0
    %5425 = vmatmul.mubr.bf16.gmra.mxu0 %v5390
    %v5426 = vpop.f32.mrf.mxu0
    %v5427 = vadd.f32 0.0, %v5426
    %v5428 = vpop.f32.mrf.mxu0
    %v5429 = vadd.f32 0.0, %v5428
    %v5430 = vpop.f32.mrf.mxu0
    %v5431 = vpop.f32.mrf.mxu0
    %5432 = vdwg.mxu0
    %5433 = vmatprep.subr.bf16.mxu0 0
    %5434 = vmatpush1.bf16.msra.mxu0 0
    %5435 = vmatprep.subr.bf16.mxu0 0
    %5436 = vmatpush1.bf16.msra.mxu0 0
    %5437 = vmatprep.subr.bf16.mxu0 0
    %5438 = vmatpush1.bf16.msra.mxu0 0
    %5439 = vmatprep.subr.bf16.mxu0 0
    %5440 = vmatpush1.bf16.msra.mxu0 0
    %5441 = vmatprep.subr.bf16.mxu0 0
    %5442 = vmatpush1.bf16.msra.mxu0 0
    %5443 = vmatprep.subr.bf16.mxu0 0
    %5444 = vmatpush1.bf16.msra.mxu0 0
    %5445 = vmatprep.subr.bf16.mxu0 %v5380
    %5446 = vmatpush1.bf16.msra.mxu0 %v5379
    %5447 = vmatprep.subr.bf16.mxu0 %v5376
    %5448 = vmatpush1.bf16.msra.mxu0 %v5375
    %5449 = vmatprep.subr.bf16.mxu0 0
    %5450 = vmatpush2.bf16.msra.mxu0 0
    %5451 = vmatprep.subr.bf16.mxu0 0
    %5452 = vmatpush2.bf16.msra.mxu0 0
    %5453 = vmatprep.subr.bf16.mxu0 0
    %5454 = vmatpush2.bf16.msra.mxu0 0
    %5455 = vmatprep.subr.bf16.mxu0 0
    %5456 = vmatpush2.bf16.msra.mxu0 0
    %5457 = vmatprep.subr.bf16.mxu0 0
    %5458 = vmatpush2.bf16.msra.mxu0 0
    %5459 = vmatprep.subr.bf16.mxu0 0
    %5460 = vmatpush2.bf16.msra.mxu0 0
    %5461 = vmatprep.subr.bf16.mxu0 0
    %5462 = vmatpush2.bf16.msra.mxu0 0
    %5463 = vmatprep.subr.bf16.mxu0 0
    %5464 = vmatpush2.bf16.msra.mxu0 0
    %5465 = vmatprep.mubr.bf16.mxu0 0
    %5466 = vmatmul.mubr.bf16.gmra.mxu0 %v5390
    %v5467 = vpop.f32.mrf.mxu0
    %v5468 = vadd.f32 0.0, %v5467
    %v5469 = vpop.f32.mrf.mxu0
    %v5470 = vadd.f32 0.0, %v5469
    %v5471 = vpop.f32.mrf.mxu0
    %v5472 = vpop.f32.mrf.mxu0
    %5473 = vdwg.mxu0
    %v5474 = vadd.f32 %v5291, %v5427
    %v5475 = vadd.f32 %v5293, %v5429
    %v5476 = vadd.f32 %v5332, %v5468
    %v5477 = vadd.f32 %v5334, %v5470
    %s5478 = scalar_lea.vmem %s3, 192
    %v5479 = vld [vmem:[%s5478] sm:$0xff]
    %v5480 = vld [vmem:[%s5478 + $0x8] sm:$0xff]
    %v5481 = vld [vmem:[%s5478 + $0x10] sm:$0xff]
    %v5482 = vld [vmem:[%s5478 + $0x18] sm:$0xff]
    %v5483 = vld [vmem:[%s5478 + $0x20] sm:$0xff]
    %v5484 = vld [vmem:[%s5478 + $0x28] sm:$0xff]
    %v5485 = vld [vmem:[%s5478 + $0x30] sm:$0xff]
    %v5486 = vld [vmem:[%s5478 + $0x38] sm:$0xff]
    %v5487 = vrot.slane %v5086, 1
    %v5496 = vunpack.c.l.b16 %v5479
    %v5497 = vunpack.c.h.b16 %v5479
    %v5498 = vunpack.c.l.b16 %v5480
    %v5499 = vunpack.c.h.b16 %v5480
    %v5500 = vunpack.c.l.b16 %v5481
    %v5501 = vunpack.c.h.b16 %v5481
    %v5502 = vunpack.c.l.b16 %v5482
    %v5503 = vunpack.c.h.b16 %v5482
    %v5504 = vunpack.c.l.b16 %v5483
    %v5505 = vunpack.c.h.b16 %v5483
    %v5506 = vunpack.c.l.b16 %v5484
    %v5507 = vunpack.c.h.b16 %v5484
    %v5508 = vunpack.c.l.b16 %v5485
    %v5509 = vunpack.c.h.b16 %v5485
    %v5510 = vunpack.c.l.b16 %v5486
    %v5511 = vunpack.c.h.b16 %v5486
    %v5512 = vpack.c.b16 %v5500, %v5496
    %v5513 = vpack.c.b16 %v5501, %v5497
    %v5514 = vpack.c.b16 %v5502, %v5498
    %v5515 = vpack.c.b16 %v5503, %v5499
    %v5516 = vpack.c.b16 %v5508, %v5504
    %v5517 = vpack.c.b16 %v5509, %v5505
    %v5518 = vpack.c.b16 %v5510, %v5506
    %v5519 = vpack.c.b16 %v5511, %v5507
    %v5529 = vsel %vm5128, %v5487, 0
    %5531 = vmatprep.subr.bf16.mxu0 0
    %5532 = vmatpush1.bf16.msra.mxu0 0
    %5533 = vmatprep.subr.bf16.mxu0 0
    %5534 = vmatpush1.bf16.msra.mxu0 0
    %5535 = vmatprep.subr.bf16.mxu0 0
    %5536 = vmatpush1.bf16.msra.mxu0 0
    %5537 = vmatprep.subr.bf16.mxu0 0
    %5538 = vmatpush1.bf16.msra.mxu0 0
    %5539 = vmatprep.subr.bf16.mxu0 0
    %5540 = vmatpush1.bf16.msra.mxu0 0
    %5541 = vmatprep.subr.bf16.mxu0 0
    %5542 = vmatpush1.bf16.msra.mxu0 0
    %5543 = vmatprep.subr.bf16.mxu0 %v5517
    %5544 = vmatpush1.bf16.msra.mxu0 %v5516
    %5545 = vmatprep.subr.bf16.mxu0 %v5513
    %5546 = vmatpush1.bf16.msra.mxu0 %v5512
    %5547 = vmatprep.subr.bf16.mxu0 0
    %5548 = vmatpush2.bf16.msra.mxu0 0
    %5549 = vmatprep.subr.bf16.mxu0 0
    %5550 = vmatpush2.bf16.msra.mxu0 0
    %5551 = vmatprep.subr.bf16.mxu0 0
    %5552 = vmatpush2.bf16.msra.mxu0 0
    %5553 = vmatprep.subr.bf16.mxu0 0
    %5554 = vmatpush2.bf16.msra.mxu0 0
    %5555 = vmatprep.subr.bf16.mxu0 0
    %5556 = vmatpush2.bf16.msra.mxu0 0
    %5557 = vmatprep.subr.bf16.mxu0 0
    %5558 = vmatpush2.bf16.msra.mxu0 0
    %5559 = vmatprep.subr.bf16.mxu0 0
    %5560 = vmatpush2.bf16.msra.mxu0 0
    %5561 = vmatprep.subr.bf16.mxu0 0
    %5562 = vmatpush2.bf16.msra.mxu0 0
    %5563 = vmatprep.mubr.bf16.mxu0 0
    %5564 = vmatmul.mubr.bf16.gmra.mxu0 %v5529
    %v5565 = vpop.f32.mrf.mxu0
    %v5566 = vadd.f32 0.0, %v5565
    %v5567 = vpop.f32.mrf.mxu0
    %v5568 = vadd.f32 0.0, %v5567
    %v5569 = vpop.f32.mrf.mxu0
    %v5570 = vpop.f32.mrf.mxu0
    %5571 = vdwg.mxu0
    %5572 = vmatprep.subr.bf16.mxu0 0
    %5573 = vmatpush1.bf16.msra.mxu0 0
    %5574 = vmatprep.subr.bf16.mxu0 0
    %5575 = vmatpush1.bf16.msra.mxu0 0
    %5576 = vmatprep.subr.bf16.mxu0 0
    %5577 = vmatpush1.bf16.msra.mxu0 0
    %5578 = vmatprep.subr.bf16.mxu0 0
    %5579 = vmatpush1.bf16.msra.mxu0 0
    %5580 = vmatprep.subr.bf16.mxu0 0
    %5581 = vmatpush1.bf16.msra.mxu0 0
    %5582 = vmatprep.subr.bf16.mxu0 0
    %5583 = vmatpush1.bf16.msra.mxu0 0
    %5584 = vmatprep.subr.bf16.mxu0 %v5519
    %5585 = vmatpush1.bf16.msra.mxu0 %v5518
    %5586 = vmatprep.subr.bf16.mxu0 %v5515
    %5587 = vmatpush1.bf16.msra.mxu0 %v5514
    %5588 = vmatprep.subr.bf16.mxu0 0
    %5589 = vmatpush2.bf16.msra.mxu0 0
    %5590 = vmatprep.subr.bf16.mxu0 0
    %5591 = vmatpush2.bf16.msra.mxu0 0
    %5592 = vmatprep.subr.bf16.mxu0 0
    %5593 = vmatpush2.bf16.msra.mxu0 0
    %5594 = vmatprep.subr.bf16.mxu0 0
    %5595 = vmatpush2.bf16.msra.mxu0 0
    %5596 = vmatprep.subr.bf16.mxu0 0
    %5597 = vmatpush2.bf16.msra.mxu0 0
    %5598 = vmatprep.subr.bf16.mxu0 0
    %5599 = vmatpush2.bf16.msra.mxu0 0
    %5600 = vmatprep.subr.bf16.mxu0 0
    %5601 = vmatpush2.bf16.msra.mxu0 0
    %5602 = vmatprep.subr.bf16.mxu0 0
    %5603 = vmatpush2.bf16.msra.mxu0 0
    %5604 = vmatprep.mubr.bf16.mxu0 0
    %5605 = vmatmul.mubr.bf16.gmra.mxu0 %v5529
    %v5606 = vpop.f32.mrf.mxu0
    %v5607 = vadd.f32 0.0, %v5606
    %v5608 = vpop.f32.mrf.mxu0
    %v5609 = vadd.f32 0.0, %v5608
    %v5610 = vpop.f32.mrf.mxu0
    %v5611 = vpop.f32.mrf.mxu0
    %5612 = vdwg.mxu0
    %v5613 = vadd.f32 %v5474, %v5566
    %v5614 = vadd.f32 %v5475, %v5568
    %v5615 = vadd.f32 %v5476, %v5607
    %v5616 = vadd.f32 %v5477, %v5609
    %s5617 = scalar_lea.vmem %s3, 256
    %v5618 = vld [vmem:[%s5617] sm:$0xff]
    %v5619 = vld [vmem:[%s5617 + $0x8] sm:$0xff]
    %v5620 = vld [vmem:[%s5617 + $0x10] sm:$0xff]
    %v5621 = vld [vmem:[%s5617 + $0x18] sm:$0xff]
    %v5622 = vld [vmem:[%s5617 + $0x20] sm:$0xff]
    %v5623 = vld [vmem:[%s5617 + $0x28] sm:$0xff]
    %v5624 = vld [vmem:[%s5617 + $0x30] sm:$0xff]
    %v5625 = vld [vmem:[%s5617 + $0x38] sm:$0xff]
    %v5626 = vrot.slane %v5067, 2
    %v5635 = vunpack.c.l.b16 %v5618
    %v5636 = vunpack.c.h.b16 %v5618
    %v5637 = vunpack.c.l.b16 %v5619
    %v5638 = vunpack.c.h.b16 %v5619
    %v5639 = vunpack.c.l.b16 %v5620
    %v5640 = vunpack.c.h.b16 %v5620
    %v5641 = vunpack.c.l.b16 %v5621
    %v5642 = vunpack.c.h.b16 %v5621
    %v5643 = vunpack.c.l.b16 %v5622
    %v5644 = vunpack.c.h.b16 %v5622
    %v5645 = vunpack.c.l.b16 %v5623
    %v5646 = vunpack.c.h.b16 %v5623
    %v5647 = vunpack.c.l.b16 %v5624
    %v5648 = vunpack.c.h.b16 %v5624
    %v5649 = vunpack.c.l.b16 %v5625
    %v5650 = vunpack.c.h.b16 %v5625
    %v5651 = vpack.c.b16 %v5639, %v5635
    %v5652 = vpack.c.b16 %v5640, %v5636
    %v5653 = vpack.c.b16 %v5641, %v5637
    %v5654 = vpack.c.b16 %v5642, %v5638
    %v5655 = vpack.c.b16 %v5647, %v5643
    %v5656 = vpack.c.b16 %v5648, %v5644
    %v5657 = vpack.c.b16 %v5649, %v5645
    %v5658 = vpack.c.b16 %v5650, %v5646
    %v5668 = vsel %vm5128, %v5626, 0
    %5670 = vmatprep.subr.bf16.mxu0 0
    %5671 = vmatpush1.bf16.msra.mxu0 0
    %5672 = vmatprep.subr.bf16.mxu0 0
    %5673 = vmatpush1.bf16.msra.mxu0 0
    %5674 = vmatprep.subr.bf16.mxu0 0
    %5675 = vmatpush1.bf16.msra.mxu0 0
    %5676 = vmatprep.subr.bf16.mxu0 0
    %5677 = vmatpush1.bf16.msra.mxu0 0
    %5678 = vmatprep.subr.bf16.mxu0 0
    %5679 = vmatpush1.bf16.msra.mxu0 0
    %5680 = vmatprep.subr.bf16.mxu0 0
    %5681 = vmatpush1.bf16.msra.mxu0 0
    %5682 = vmatprep.subr.bf16.mxu0 %v5656
    %5683 = vmatpush1.bf16.msra.mxu0 %v5655
    %5684 = vmatprep.subr.bf16.mxu0 %v5652
    %5685 = vmatpush1.bf16.msra.mxu0 %v5651
    %5686 = vmatprep.subr.bf16.mxu0 0
    %5687 = vmatpush2.bf16.msra.mxu0 0
    %5688 = vmatprep.subr.bf16.mxu0 0
    %5689 = vmatpush2.bf16.msra.mxu0 0
    %5690 = vmatprep.subr.bf16.mxu0 0
    %5691 = vmatpush2.bf16.msra.mxu0 0
    %5692 = vmatprep.subr.bf16.mxu0 0
    %5693 = vmatpush2.bf16.msra.mxu0 0
    %5694 = vmatprep.subr.bf16.mxu0 0
    %5695 = vmatpush2.bf16.msra.mxu0 0
    %5696 = vmatprep.subr.bf16.mxu0 0
    %5697 = vmatpush2.bf16.msra.mxu0 0
    %5698 = vmatprep.subr.bf16.mxu0 0
    %5699 = vmatpush2.bf16.msra.mxu0 0
    %5700 = vmatprep.subr.bf16.mxu0 0
    %5701 = vmatpush2.bf16.msra.mxu0 0
    %5702 = vmatprep.mubr.bf16.mxu0 0
    %5703 = vmatmul.mubr.bf16.gmra.mxu0 %v5668
    %v5704 = vpop.f32.mrf.mxu0
    %v5705 = vadd.f32 0.0, %v5704
    %v5706 = vpop.f32.mrf.mxu0
    %v5707 = vadd.f32 0.0, %v5706
    %v5708 = vpop.f32.mrf.mxu0
    %v5709 = vpop.f32.mrf.mxu0
    %5710 = vdwg.mxu0
    %5711 = vmatprep.subr.bf16.mxu0 0
    %5712 = vmatpush1.bf16.msra.mxu0 0
    %5713 = vmatprep.subr.bf16.mxu0 0
    %5714 = vmatpush1.bf16.msra.mxu0 0
    %5715 = vmatprep.subr.bf16.mxu0 0
    %5716 = vmatpush1.bf16.msra.mxu0 0
    %5717 = vmatprep.subr.bf16.mxu0 0
    %5718 = vmatpush1.bf16.msra.mxu0 0
    %5719 = vmatprep.subr.bf16.mxu0 0
    %5720 = vmatpush1.bf16.msra.mxu0 0
    %5721 = vmatprep.subr.bf16.mxu0 0
    %5722 = vmatpush1.bf16.msra.mxu0 0
    %5723 = vmatprep.subr.bf16.mxu0 %v5658
    %5724 = vmatpush1.bf16.msra.mxu0 %v5657
    %5725 = vmatprep.subr.bf16.mxu0 %v5654
    %5726 = vmatpush1.bf16.msra.mxu0 %v5653
    %5727 = vmatprep.subr.bf16.mxu0 0
    %5728 = vmatpush2.bf16.msra.mxu0 0
    %5729 = vmatprep.subr.bf16.mxu0 0
    %5730 = vmatpush2.bf16.msra.mxu0 0
    %5731 = vmatprep.subr.bf16.mxu0 0
    %5732 = vmatpush2.bf16.msra.mxu0 0
    %5733 = vmatprep.subr.bf16.mxu0 0
    %5734 = vmatpush2.bf16.msra.mxu0 0
    %5735 = vmatprep.subr.bf16.mxu0 0
    %5736 = vmatpush2.bf16.msra.mxu0 0
    %5737 = vmatprep.subr.bf16.mxu0 0
    %5738 = vmatpush2.bf16.msra.mxu0 0
    %5739 = vmatprep.subr.bf16.mxu0 0
    %5740 = vmatpush2.bf16.msra.mxu0 0
    %5741 = vmatprep.subr.bf16.mxu0 0
    %5742 = vmatpush2.bf16.msra.mxu0 0
    %5743 = vmatprep.mubr.bf16.mxu0 0
    %5744 = vmatmul.mubr.bf16.gmra.mxu0 %v5668
    %v5745 = vpop.f32.mrf.mxu0
    %v5746 = vadd.f32 0.0, %v5745
    %v5747 = vpop.f32.mrf.mxu0
    %v5748 = vadd.f32 0.0, %v5747
    %v5749 = vpop.f32.mrf.mxu0
    %v5750 = vpop.f32.mrf.mxu0
    %5751 = vdwg.mxu0
    %v5752 = vadd.f32 %v5613, %v5705
    %v5753 = vadd.f32 %v5614, %v5707
    %v5754 = vadd.f32 %v5615, %v5746
    %v5755 = vadd.f32 %v5616, %v5748
    %s5756 = scalar_lea.vmem %s3, 320
    %v5757 = vld [vmem:[%s5756] sm:$0xff]
    %v5758 = vld [vmem:[%s5756 + $0x8] sm:$0xff]
    %v5759 = vld [vmem:[%s5756 + $0x10] sm:$0xff]
    %v5760 = vld [vmem:[%s5756 + $0x18] sm:$0xff]
    %v5761 = vld [vmem:[%s5756 + $0x20] sm:$0xff]
    %v5762 = vld [vmem:[%s5756 + $0x28] sm:$0xff]
    %v5763 = vld [vmem:[%s5756 + $0x30] sm:$0xff]
    %v5764 = vld [vmem:[%s5756 + $0x38] sm:$0xff]
    %v5765 = vrot.slane %v5086, 2
    %v5774 = vunpack.c.l.b16 %v5757
    %v5775 = vunpack.c.h.b16 %v5757
    %v5776 = vunpack.c.l.b16 %v5758
    %v5777 = vunpack.c.h.b16 %v5758
    %v5778 = vunpack.c.l.b16 %v5759
    %v5779 = vunpack.c.h.b16 %v5759
    %v5780 = vunpack.c.l.b16 %v5760
    %v5781 = vunpack.c.h.b16 %v5760
    %v5782 = vunpack.c.l.b16 %v5761
    %v5783 = vunpack.c.h.b16 %v5761
    %v5784 = vunpack.c.l.b16 %v5762
    %v5785 = vunpack.c.h.b16 %v5762
    %v5786 = vunpack.c.l.b16 %v5763
    %v5787 = vunpack.c.h.b16 %v5763
    %v5788 = vunpack.c.l.b16 %v5764
    %v5789 = vunpack.c.h.b16 %v5764
    %v5790 = vpack.c.b16 %v5778, %v5774
    %v5791 = vpack.c.b16 %v5779, %v5775
    %v5792 = vpack.c.b16 %v5780, %v5776
    %v5793 = vpack.c.b16 %v5781, %v5777
    %v5794 = vpack.c.b16 %v5786, %v5782
    %v5795 = vpack.c.b16 %v5787, %v5783
    %v5796 = vpack.c.b16 %v5788, %v5784
    %v5797 = vpack.c.b16 %v5789, %v5785
    %v5807 = vsel %vm5128, %v5765, 0
    %5809 = vmatprep.subr.bf16.mxu0 0
    %5810 = vmatpush1.bf16.msra.mxu0 0
    %5811 = vmatprep.subr.bf16.mxu0 0
    %5812 = vmatpush1.bf16.msra.mxu0 0
    %5813 = vmatprep.subr.bf16.mxu0 0
    %5814 = vmatpush1.bf16.msra.mxu0 0
    %5815 = vmatprep.subr.bf16.mxu0 0
    %5816 = vmatpush1.bf16.msra.mxu0 0
    %5817 = vmatprep.subr.bf16.mxu0 0
    %5818 = vmatpush1.bf16.msra.mxu0 0
    %5819 = vmatprep.subr.bf16.mxu0 0
    %5820 = vmatpush1.bf16.msra.mxu0 0
    %5821 = vmatprep.subr.bf16.mxu0 %v5795
    %5822 = vmatpush1.bf16.msra.mxu0 %v5794
    %5823 = vmatprep.subr.bf16.mxu0 %v5791
    %5824 = vmatpush1.bf16.msra.mxu0 %v5790
    %5825 = vmatprep.subr.bf16.mxu0 0
    %5826 = vmatpush2.bf16.msra.mxu0 0
    %5827 = vmatprep.subr.bf16.mxu0 0
    %5828 = vmatpush2.bf16.msra.mxu0 0
    %5829 = vmatprep.subr.bf16.mxu0 0
    %5830 = vmatpush2.bf16.msra.mxu0 0
    %5831 = vmatprep.subr.bf16.mxu0 0
    %5832 = vmatpush2.bf16.msra.mxu0 0
    %5833 = vmatprep.subr.bf16.mxu0 0
    %5834 = vmatpush2.bf16.msra.mxu0 0
    %5835 = vmatprep.subr.bf16.mxu0 0
    %5836 = vmatpush2.bf16.msra.mxu0 0
    %5837 = vmatprep.subr.bf16.mxu0 0
    %5838 = vmatpush2.bf16.msra.mxu0 0
    %5839 = vmatprep.subr.bf16.mxu0 0
    %5840 = vmatpush2.bf16.msra.mxu0 0
    %5841 = vmatprep.mubr.bf16.mxu0 0
    %5842 = vmatmul.mubr.bf16.gmra.mxu0 %v5807
    %v5843 = vpop.f32.mrf.mxu0
    %v5844 = vadd.f32 0.0, %v5843
    %v5845 = vpop.f32.mrf.mxu0
    %v5846 = vadd.f32 0.0, %v5845
    %v5847 = vpop.f32.mrf.mxu0
    %v5848 = vpop.f32.mrf.mxu0
    %5849 = vdwg.mxu0
    %5850 = vmatprep.subr.bf16.mxu0 0
    %5851 = vmatpush1.bf16.msra.mxu0 0
    %5852 = vmatprep.subr.bf16.mxu0 0
    %5853 = vmatpush1.bf16.msra.mxu0 0
    %5854 = vmatprep.subr.bf16.mxu0 0
    %5855 = vmatpush1.bf16.msra.mxu0 0
    %5856 = vmatprep.subr.bf16.mxu0 0
    %5857 = vmatpush1.bf16.msra.mxu0 0
    %5858 = vmatprep.subr.bf16.mxu0 0
    %5859 = vmatpush1.bf16.msra.mxu0 0
    %5860 = vmatprep.subr.bf16.mxu0 0
    %5861 = vmatpush1.bf16.msra.mxu0 0
    %5862 = vmatprep.subr.bf16.mxu0 %v5797
    %5863 = vmatpush1.bf16.msra.mxu0 %v5796
    %5864 = vmatprep.subr.bf16.mxu0 %v5793
    %5865 = vmatpush1.bf16.msra.mxu0 %v5792
    %5866 = vmatprep.subr.bf16.mxu0 0
    %5867 = vmatpush2.bf16.msra.mxu0 0
    %5868 = vmatprep.subr.bf16.mxu0 0
    %5869 = vmatpush2.bf16.msra.mxu0 0
    %5870 = vmatprep.subr.bf16.mxu0 0
    %5871 = vmatpush2.bf16.msra.mxu0 0
    %5872 = vmatprep.subr.bf16.mxu0 0
    %5873 = vmatpush2.bf16.msra.mxu0 0
    %5874 = vmatprep.subr.bf16.mxu0 0
    %5875 = vmatpush2.bf16.msra.mxu0 0
    %5876 = vmatprep.subr.bf16.mxu0 0
    %5877 = vmatpush2.bf16.msra.mxu0 0
    %5878 = vmatprep.subr.bf16.mxu0 0
    %5879 = vmatpush2.bf16.msra.mxu0 0
    %5880 = vmatprep.subr.bf16.mxu0 0
    %5881 = vmatpush2.bf16.msra.mxu0 0
    %5882 = vmatprep.mubr.bf16.mxu0 0
    %5883 = vmatmul.mubr.bf16.gmra.mxu0 %v5807
    %v5884 = vpop.f32.mrf.mxu0
    %v5885 = vadd.f32 0.0, %v5884
    %v5886 = vpop.f32.mrf.mxu0
    %v5887 = vadd.f32 0.0, %v5886
    %v5888 = vpop.f32.mrf.mxu0
    %v5889 = vpop.f32.mrf.mxu0
    %5890 = vdwg.mxu0
    %v5891 = vadd.f32 %v5752, %v5844
    %v5892 = vadd.f32 %v5753, %v5846
    %v5893 = vadd.f32 %v5754, %v5885
    %v5894 = vadd.f32 %v5755, %v5887
    %v5895 = vld [vmem:[%s4] sm:$0xf]
    %v5897 = vlaneseq
    %v5898 = vshrl.u32 %v5897, 7
    %v5899 = vsub.s32 0, %v5898
    %v5900 = vrot.slane %v5895, %v5899
    %v5901 = vlaneseq
    %v5902 = vshrl.u32 %v5901, 7
    %v5903 = vsub.s32 1, %v5902
    %v5904 = vrot.slane %v5895, %v5903
    %v5905 = vlaneseq
    %v5906 = vshrl.u32 %v5905, 7
    %v5907 = vsub.s32 2, %v5906
    %v5908 = vrot.slane %v5895, %v5907
    %v5909 = vlaneseq
    %v5910 = vshrl.u32 %v5909, 7
    %v5911 = vsub.s32 3, %v5910
    %v5912 = vrot.slane %v5895, %v5911
    %v5917 = vadd.f32 %v5891, %v5900
    %v5918 = vadd.f32 %v5892, %v5904
    %v5919 = vadd.f32 %v5893, %v5908
    %v5920 = vadd.f32 %v5894, %v5912
    %v5921 = vmax.f32 %v5917, 0.0
    %v5922 = vmax.f32 %v5918, 0.0
    %v5923 = vmax.f32 %v5919, 0.0
    %v5924 = vmax.f32 %v5920, 0.0
    %v5925 = vpack.c.bf16 %v5921, %v5921
    %v5926 = vpack.c.bf16 %v5922, %v5922
    %v5927 = vpack.c.bf16 %v5923, %v5923
    %v5928 = vpack.c.bf16 %v5924, %v5924
    %v5929 = vld [vmem:[%s5] sm:$0xf]
    %v5930 = vld [vmem:[%s5 + $0x4] sm:$0xf]
    %v5931 = vld [vmem:[%s5 + $0x8] sm:$0xf]
    %v5932 = vld [vmem:[%s5 + $0xc] sm:$0xf]
    %v5933 = vld [vmem:[%s5 + $0x10] sm:$0xf]
    %v5934 = vld [vmem:[%s5 + $0x14] sm:$0xf]
    %v5935 = vld [vmem:[%s5 + $0x18] sm:$0xf]
    %v5936 = vld [vmem:[%s5 + $0x1c] sm:$0xf]
    %v5937 = vld [vmem:[%s5 + $0x20] sm:$0xf]
    %v5938 = vld [vmem:[%s5 + $0x24] sm:$0xf]
    %v5939 = vld [vmem:[%s5 + $0x28] sm:$0xf]
    %v5940 = vld [vmem:[%s5 + $0x2c] sm:$0xf]
    %v5941 = vld [vmem:[%s5 + $0x30] sm:$0xf]
    %v5942 = vld [vmem:[%s5 + $0x34] sm:$0xf]
    %v5943 = vld [vmem:[%s5 + $0x38] sm:$0xf]
    %v5944 = vld [vmem:[%s5 + $0x3c] sm:$0xf]
    %v5945 = vld [vmem:[%s5 + $0x40] sm:$0xf]
    %v5946 = vld [vmem:[%s5 + $0x44] sm:$0xf]
    %v5947 = vld [vmem:[%s5 + $0x48] sm:$0xf]
    %v5948 = vld [vmem:[%s5 + $0x4c] sm:$0xf]
    %v5949 = vld [vmem:[%s5 + $0x50] sm:$0xf]
    %v5950 = vld [vmem:[%s5 + $0x54] sm:$0xf]
    %v5951 = vld [vmem:[%s5 + $0x58] sm:$0xf]
    %v5952 = vld [vmem:[%s5 + $0x5c] sm:$0xf]
    %v5953 = vld [vmem:[%s5 + $0x60] sm:$0xf]
    %v5954 = vld [vmem:[%s5 + $0x64] sm:$0xf]
    %v5955 = vld [vmem:[%s5 + $0x68] sm:$0xf]
    %v5956 = vld [vmem:[%s5 + $0x6c] sm:$0xf]
    %v5957 = vld [vmem:[%s5 + $0x70] sm:$0xf]
    %v5958 = vld [vmem:[%s5 + $0x74] sm:$0xf]
    %v5959 = vld [vmem:[%s5 + $0x78] sm:$0xf]
    %v5960 = vld [vmem:[%s5 + $0x7c] sm:$0xf]
    %v5961 = vld [vmem:[%s5 + $0x80] sm:$0xf]
    %v5962 = vld [vmem:[%s5 + $0x84] sm:$0xf]
    %v5963 = vld [vmem:[%s5 + $0x88] sm:$0xf]
    %v5964 = vld [vmem:[%s5 + $0x8c] sm:$0xf]
    %v5965 = vld [vmem:[%s5 + $0x90] sm:$0xf]
    %v5966 = vld [vmem:[%s5 + $0x94] sm:$0xf]
    %v5967 = vld [vmem:[%s5 + $0x98] sm:$0xf]
    %v5968 = vld [vmem:[%s5 + $0x9c] sm:$0xf]
    %v5969 = vld [vmem:[%s5 + $0xa0] sm:$0xf]
    %v5970 = vld [vmem:[%s5 + $0xa4] sm:$0xf]
    %v5971 = vld [vmem:[%s5 + $0xa8] sm:$0xf]
    %v5972 = vld [vmem:[%s5 + $0xac] sm:$0xf]
    %v5973 = vld [vmem:[%s5 + $0xb0] sm:$0xf]
    %v5974 = vld [vmem:[%s5 + $0xb4] sm:$0xf]
    %v5975 = vld [vmem:[%s5 + $0xb8] sm:$0xf]
    %v5976 = vld [vmem:[%s5 + $0xbc] sm:$0xf]
    %v5977 = vld [vmem:[%s5 + $0xc0] sm:$0xf]
    %v5978 = vld [vmem:[%s5 + $0xc4] sm:$0xf]
    %v5979 = vld [vmem:[%s6] sm:$0x1]
    %v6030 = vunpack.c.l.b16 %v5929
    %v6031 = vunpack.c.l.b16 %v5930
    %v6032 = vunpack.c.l.b16 %v5931
    %v6033 = vunpack.c.l.b16 %v5932
    %v6034 = vunpack.c.l.b16 %v5933
    %v6035 = vunpack.c.l.b16 %v5934
    %v6036 = vunpack.c.l.b16 %v5935
    %v6037 = vunpack.c.l.b16 %v5936
    %v6038 = vunpack.c.l.b16 %v5937
    %v6039 = vunpack.c.l.b16 %v5938
    %v6040 = vunpack.c.l.b16 %v5939
    %v6041 = vunpack.c.l.b16 %v5940
    %v6042 = vunpack.c.l.b16 %v5941
    %v6043 = vunpack.c.l.b16 %v5942
    %v6044 = vunpack.c.l.b16 %v5943
    %v6045 = vunpack.c.l.b16 %v5944
    %v6046 = vunpack.c.l.b16 %v5945
    %v6047 = vunpack.c.l.b16 %v5946
    %v6048 = vunpack.c.l.b16 %v5947
    %v6049 = vunpack.c.l.b16 %v5948
    %v6050 = vunpack.c.l.b16 %v5949
    %v6051 = vunpack.c.l.b16 %v5950
    %v6052 = vunpack.c.l.b16 %v5951
    %v6053 = vunpack.c.l.b16 %v5952
    %v6054 = vunpack.c.l.b16 %v5953
    %v6055 = vunpack.c.l.b16 %v5954
    %v6056 = vunpack.c.l.b16 %v5955
    %v6057 = vunpack.c.l.b16 %v5956
    %v6058 = vunpack.c.l.b16 %v5957
    %v6059 = vunpack.c.l.b16 %v5958
    %v6060 = vunpack.c.l.b16 %v5959
    %v6061 = vunpack.c.l.b16 %v5960
    %v6062 = vunpack.c.l.b16 %v5961
    %v6063 = vunpack.c.l.b16 %v5962
    %v6064 = vunpack.c.l.b16 %v5963
    %v6065 = vunpack.c.l.b16 %v5964
    %v6066 = vunpack.c.l.b16 %v5965
    %v6067 = vunpack.c.l.b16 %v5966
    %v6068 = vunpack.c.l.b16 %v5967
    %v6069 = vunpack.c.l.b16 %v5968
    %v6070 = vunpack.c.l.b16 %v5969
    %v6071 = vunpack.c.l.b16 %v5970
    %v6072 = vunpack.c.l.b16 %v5971
    %v6073 = vunpack.c.l.b16 %v5972
    %v6074 = vunpack.c.l.b16 %v5973
    %v6075 = vunpack.c.l.b16 %v5974
    %v6076 = vunpack.c.l.b16 %v5975
    %v6077 = vunpack.c.l.b16 %v5976
    %v6078 = vunpack.c.l.b16 %v5977
    %v6079 = vunpack.c.l.b16 %v5978
    %v6080 = vpack.c.b16 %v6031, %v6030
    %v6081 = vpack.c.b16 %v6033, %v6032
    %v6082 = vpack.c.b16 %v6035, %v6034
    %v6083 = vpack.c.b16 %v6037, %v6036
    %v6084 = vpack.c.b16 %v6039, %v6038
    %v6085 = vpack.c.b16 %v6041, %v6040
    %v6086 = vpack.c.b16 %v6043, %v6042
    %v6087 = vpack.c.b16 %v6045, %v6044
    %v6088 = vpack.c.b16 %v6047, %v6046
    %v6089 = vpack.c.b16 %v6049, %v6048
    %v6090 = vpack.c.b16 %v6051, %v6050
    %v6091 = vpack.c.b16 %v6053, %v6052
    %v6092 = vpack.c.b16 %v6055, %v6054
    %v6093 = vpack.c.b16 %v6057, %v6056
    %v6094 = vpack.c.b16 %v6059, %v6058
    %v6095 = vpack.c.b16 %v6061, %v6060
    %v6096 = vpack.c.b16 %v6063, %v6062
    %v6097 = vpack.c.b16 %v6065, %v6064
    %v6098 = vpack.c.b16 %v6067, %v6066
    %v6099 = vpack.c.b16 %v6069, %v6068
    %v6100 = vpack.c.b16 %v6071, %v6070
    %v6101 = vpack.c.b16 %v6073, %v6072
    %v6102 = vpack.c.b16 %v6075, %v6074
    %v6103 = vpack.c.b16 %v6077, %v6076
    %v6104 = vpack.c.b16 %v6079, %v6078
    %vm6130 = vcmask 130048
    %v6132 = vsel %vm6130, %v5928, 0
    %6134 = vmatprep.subr.bf16.mxu0 0
    %6135 = vmatpush1.bf16.msra.mxu0 %v6087
    %6136 = vmatprep.subr.bf16.mxu0 0
    %6137 = vmatpush1.bf16.msra.mxu0 %v6086
    %6138 = vmatprep.subr.bf16.mxu0 0
    %6139 = vmatpush1.bf16.msra.mxu0 %v6085
    %6140 = vmatprep.subr.bf16.mxu0 0
    %6141 = vmatpush1.bf16.msra.mxu0 %v6084
    %6142 = vmatprep.subr.bf16.mxu0 0
    %6143 = vmatpush1.bf16.msra.mxu0 %v6083
    %6144 = vmatprep.subr.bf16.mxu0 0
    %6145 = vmatpush1.bf16.msra.mxu0 %v6082
    %6146 = vmatprep.subr.bf16.mxu0 0
    %6147 = vmatpush1.bf16.msra.mxu0 %v6081
    %6148 = vmatprep.subr.bf16.mxu0 0
    %6149 = vmatpush1.bf16.msra.mxu0 %v6080
    %6150 = vmatprep.subr.bf16.mxu0 0
    %6151 = vmatpush2.bf16.msra.mxu0 %v6095
    %6152 = vmatprep.subr.bf16.mxu0 0
    %6153 = vmatpush2.bf16.msra.mxu0 %v6094
    %6154 = vmatprep.subr.bf16.mxu0 0
    %6155 = vmatpush2.bf16.msra.mxu0 %v6093
    %6156 = vmatprep.subr.bf16.mxu0 0
    %6157 = vmatpush2.bf16.msra.mxu0 %v6092
    %6158 = vmatprep.subr.bf16.mxu0 0
    %6159 = vmatpush2.bf16.msra.mxu0 %v6091
    %6160 = vmatprep.subr.bf16.mxu0 0
    %6161 = vmatpush2.bf16.msra.mxu0 %v6090
    %6162 = vmatprep.subr.bf16.mxu0 0
    %6163 = vmatpush2.bf16.msra.mxu0 %v6089
    %6164 = vmatprep.subr.bf16.mxu0 0
    %6165 = vmatpush2.bf16.msra.mxu0 %v6088
    %6166 = vmatprep.mubr.bf16.mxu0 %v5926
    %6167 = vmatmul.mubr.bf16.gmra.mxu0 %v5925
    %v6168 = vpop.f32.mrf.mxu0
    %v6169 = vadd.f32 %v5979, %v6168
    %v6170 = vpop.f32.mrf.mxu0
    %v6171 = vpop.f32.mrf.mxu0
    %v6172 = vpop.f32.mrf.mxu0
    %6173 = vdwg.mxu0
    %6174 = vmatprep.subr.bf16.mxu0 0
    %6175 = vmatpush1.bf16.msra.mxu0 %v6103
    %6176 = vmatprep.subr.bf16.mxu0 0
    %6177 = vmatpush1.bf16.msra.mxu0 %v6102
    %6178 = vmatprep.subr.bf16.mxu0 0
    %6179 = vmatpush1.bf16.msra.mxu0 %v6101
    %6180 = vmatprep.subr.bf16.mxu0 0
    %6181 = vmatpush1.bf16.msra.mxu0 %v6100
    %6182 = vmatprep.subr.bf16.mxu0 0
    %6183 = vmatpush1.bf16.msra.mxu0 %v6099
    %6184 = vmatprep.subr.bf16.mxu0 0
    %6185 = vmatpush1.bf16.msra.mxu0 %v6098
    %6186 = vmatprep.subr.bf16.mxu0 0
    %6187 = vmatpush1.bf16.msra.mxu0 %v6097
    %6188 = vmatprep.subr.bf16.mxu0 0
    %6189 = vmatpush1.bf16.msra.mxu0 %v6096
    %6190 = vmatprep.subr.bf16.mxu0 0
    %6191 = vmatpush2.bf16.msra.mxu0 0
    %6192 = vmatprep.subr.bf16.mxu0 0
    %6193 = vmatpush2.bf16.msra.mxu0 0
    %6194 = vmatprep.subr.bf16.mxu0 0
    %6195 = vmatpush2.bf16.msra.mxu0 0
    %6196 = vmatprep.subr.bf16.mxu0 0
    %6197 = vmatpush2.bf16.msra.mxu0 0
    %6198 = vmatprep.subr.bf16.mxu0 0
    %6199 = vmatpush2.bf16.msra.mxu0 0
    %6200 = vmatprep.subr.bf16.mxu0 0
    %6201 = vmatpush2.bf16.msra.mxu0 0
    %6202 = vmatprep.subr.bf16.mxu0 0
    %6203 = vmatpush2.bf16.msra.mxu0 0
    %6204 = vmatprep.subr.bf16.mxu0 0
    %6205 = vmatpush2.bf16.msra.mxu0 %v6104
    %6206 = vmatprep.mubr.bf16.mxu0 %v6132
    %6207 = vmatmul.mubr.bf16.gmra.mxu0 %v5927
    %v6208 = vpop.f32.mrf.mxu0
    %v6209 = vadd.f32 %v6169, %v6208
    %v6210 = vpop.f32.mrf.mxu0
    %v6211 = vpop.f32.mrf.mxu0
    %v6212 = vpop.f32.mrf.mxu0
    %6213 = vdwg.mxu0
    %vm6214 = vcmask 8192
    %6215 = vst.msk [vmem:[#allocation2] sm:$0x1] %vm6214, %v6209
    // Predicated region
    $region30: #{spec_model3_forward.3} parent=1 // pred_check
      _
    $region31: #{spec_model3_forward.3} parent=1 // pred_check_branch
      %6217 = sbr.rel (0) target = $region33
    $region32: #{spec_model3_forward.3} parent=1 // pred_region
      %s6219 = ssub.s32 16, 16
      %6220 = vsyncadd [#allocation3], %s6219
      %s6222 = sshll.u32 [#allocation2], 4
      %s6223 = int_to_ptr.vmem [resolvable:$true] %s6222
      %6225 = dma.vmem_to_hbm [thread:$0]  %s6223, 16, %s7, [#allocation3]
    $region33: #{spec_model3_forward.3} parent=1 // pred_fallthru
      _
    // Predicated region
    $region34: #{spec_model3_forward.3} parent=1 // pred_check
      _
    $region35: #{spec_model3_forward.3} parent=1 // pred_check_branch
      %6227 = sbr.rel (0) target = $region37
    $region36: #{spec_model3_forward.3} parent=1 // pred_region
      %6228 = dma.done [#allocation3], 16
    $region37: #{spec_model3_forward.3} parent=1 // pred_fallthru
      _
    %6229 = vsyncpa [#allocation3], 1

</llo_original>
